<compile_context>
chip_gen: v6e
topology: v6e:2x2x1
jax: 0.10.0
libtpu: 0.0.40
codegen_flags: <defaults>
</compile_context>

<pallas_src>
import math
import functools

import jax
import jax.numpy as jnp
from jax.experimental import pallas as pl
from jax.experimental.pallas import tpu as pltpu


def _round_up(n, m):
    return ((n + m - 1) // m) * m


# ----------------------------------------------------------------------------
# Pallas kernels
# ----------------------------------------------------------------------------

def _mm_bias_kernel(x_ref, w_ref, b_ref, o_ref, *, relu):
    acc = jnp.dot(x_ref[...], w_ref[...], preferred_element_type=jnp.float32)
    acc = acc + b_ref[...]
    if relu:
        acc = jnp.maximum(acc, 0.0)
    o_ref[...] = acc.astype(o_ref.dtype)


def _fc_kernel(x_ref, w_ref, b_ref, o_ref, acc_ref):
    @pl.when(pl.program_id(0) == 0)
    def _():
        acc_ref[...] = jnp.zeros_like(acc_ref)

    acc_ref[...] += jnp.dot(x_ref[...], w_ref[...],
                            preferred_element_type=jnp.float32)

    @pl.when(pl.program_id(0) == pl.num_programs(0) - 1)
    def _():
        o_ref[...] = acc_ref[...] + b_ref[...]


def _gmlp_kernel(x_ref, ln1g_ref, ln1b_ref, wr_ref, br_ref, wg_ref, bg_ref,
                 ln2g_ref, ln2b_ref, wsgu_ref, bsgu_ref, wo_ref, bo_ref,
                 o_ref, *, d_true, h_true, bb, seq):
    """bb batch elements per step.  Feature dims are zero-padded to 128-mults;
    LayerNorm stats are computed with the true feature counts so padding is
    exact (padded lanes of gamma/beta/bias/weights are zero)."""
    bf16 = jnp.bfloat16
    x = x_ref[...].astype(jnp.float32).reshape(bb * seq, -1)     # (bb*S, Dp)

    # PreNorm LayerNorm over the true `d_true` features (padded lanes are 0).
    mu = jnp.sum(x, axis=-1, keepdims=True) * (1.0 / d_true)
    ex2 = jnp.sum(x * x, axis=-1, keepdims=True) * (1.0 / d_true)
    var = ex2 - mu * mu
    xn = (x - mu) * jax.lax.rsqrt(var + 1e-5) * ln1g_ref[...] + ln1b_ref[...]
    xn16 = xn.astype(bf16)

    # proj_in (dim -> 4*dim) + GELU, split into res / gate halves.
    # TODO(synk): exact-erf GELU approximated with tanh form.
    res = jax.nn.gelu(
        jnp.dot(xn16, wr_ref[...], preferred_element_type=jnp.float32)
        + br_ref[...], approximate=True)
    gate = jax.nn.gelu(
        jnp.dot(xn16, wg_ref[...], preferred_element_type=jnp.float32)
        + bg_ref[...], approximate=True)

    # Spatial Gating Unit: LayerNorm(gate) over the true `h_true` features.
    gmu = jnp.sum(gate, axis=-1, keepdims=True) * (1.0 / h_true)
    gex2 = jnp.sum(gate * gate, axis=-1, keepdims=True) * (1.0 / h_true)
    gvar = gex2 - gmu * gmu
    gn = ((gate - gmu) * jax.lax.rsqrt(gvar + 1e-5) * ln2g_ref[...]
          + ln2b_ref[...]).astype(bf16)

    # Spatial projection along the sequence, per batch element.
    gated_rows = []
    for i in range(bb):
        g2 = jnp.dot(wsgu_ref[...], gn[i * seq:(i + 1) * seq],
                     preferred_element_type=jnp.float32) + bsgu_ref[...]
        gated_rows.append(jnp.tanh(g2))                          # act = Tanh
    tanh_all = gated_rows[0] if bb == 1 else jnp.concatenate(gated_rows, axis=0)
    gated = tanh_all * res

    # proj_out (2*dim -> dim) + residual + module-level ReLU fused here.
    out = jnp.dot(gated.astype(bf16), wo_ref[...],
                  preferred_element_type=jnp.float32) + bo_ref[...]
    y = jnp.maximum(x + out, 0.0)
    o_ref[...] = y.reshape(bb, seq, -1).astype(o_ref.dtype)


# ----------------------------------------------------------------------------
# Tiled matmul wrapper (the conv hot path)
# ----------------------------------------------------------------------------

def _matmul(x, w, b, relu=False, out_dtype=jnp.bfloat16):
    """out = [relu](x @ w + b).  bf16 MXU operands, f32 accumulation/epilogue,
    output stored as `out_dtype`.  Tiled over rows with a parallel grid."""
    M, K = x.shape
    N = w.shape[1]
    xb = x if x.dtype == jnp.bfloat16 else x.astype(jnp.bfloat16)
    wb = w.astype(jnp.bfloat16)
    b2 = b.reshape(1, N).astype(jnp.float32)

    cap = 1024 if N <= 64 else 512          # larger tiles for narrow layers
    tm = M if M <= cap else cap
    grid = (pl.cdiv(M, tm),)

    return pl.pallas_call(
        functools.partial(_mm_bias_kernel, relu=relu),
        out_shape=jax.ShapeDtypeStruct((M, N), out_dtype),
        grid=grid,
        in_specs=[pl.BlockSpec((tm, K), lambda i: (i, 0)),
                  pl.BlockSpec((K, N), lambda i: (0, 0)),    # resident weights
                  pl.BlockSpec((1, N), lambda i: (0, 0))],
        out_specs=pl.BlockSpec((tm, N), lambda i: (i, 0)),
        compiler_params=pltpu.CompilerParams(
            dimension_semantics=("parallel",),
            vmem_limit_bytes=32 * 1024 * 1024),
    )(xb, wb, b2)


# ----------------------------------------------------------------------------
# Conv / BN / pool glue (padding, im2col, weight folding)
# ----------------------------------------------------------------------------

def _bn_fold(gamma, beta, mean, var, eps=1e-5):
    scale = gamma / jnp.sqrt(var + eps)
    shift = beta - mean * scale
    return scale, shift


def _embed_kernel(w, kh_t, kw_t):
    """Zero-embed a small conv kernel into a larger centred window."""
    kh, kw = w.shape[0], w.shape[1]
    dh, dw = (kh_t - kh) // 2, (kw_t - kw) // 2
    return jnp.pad(w, ((dh, dh), (dw, dw), (0, 0), (0, 0)))


def _conv2d(x, w, b, pad, relu=False, out_dtype=jnp.bfloat16):
    """Stride-1 Conv2d via bf16 im2col + tiled Pallas matmul, fused epilogue."""
    B, H, W, Cin = x.shape
    KH, KW, _, Cout = w.shape
    ph, pw = pad
    xp = jnp.pad(x.astype(jnp.bfloat16), ((0, 0), (ph, ph), (pw, pw), (0, 0)))
    Ho = H + 2 * ph - KH + 1
    Wo = W + 2 * pw - KW + 1

    cols = [xp[:, kh:kh + Ho, kw:kw + Wo, :]
            for kh in range(KH) for kw in range(KW)]
    patches = jnp.concatenate(cols, axis=-1).reshape(B * Ho * Wo, KH * KW * Cin)
    wmat = w.reshape(KH * KW * Cin, Cout)

    out = _matmul(patches, wmat, b, relu=relu, out_dtype=out_dtype)
    return out.reshape(B, Ho, Wo, Cout)


def _res_multi_conv(x, p):
    """ResMultiConv: relu(bn(cat(conv3(x)+x, conv5(x)+x))).

    The 3x3 kernel is zero-embedded into the 5x5 window, both output halves
    are concatenated, BN is folded into weights/bias, and the short-cut
    residual is folded into the centre tap of the weight matrix — one matmul.
    """
    C = p['w3'].shape[2]
    w = jnp.concatenate([_embed_kernel(p['w3'], 5, 5), p['w5']], axis=-1)
    b = jnp.concatenate([p['b3'], p['b5']])

    scale, shift = _bn_fold(p['bn_g'], p['bn_b'], p['bn_m'], p['bn_v'])
    w_f = w * scale
    b_f = b * scale + shift

    # residual: bn applies scale to (conv(x) + x)  ->  add diag(scale) at the
    # centre tap (kh=2, kw=2) for both output-channel halves.
    eye = jnp.eye(C, dtype=w_f.dtype)
    resw = jnp.concatenate([eye * scale[:C], eye * scale[C:]], axis=-1)
    w_f = w_f.at[2, 2].add(resw)

    return _conv2d(x, w_f, b_f, (2, 2), relu=True)


def _maxpool2x2(x):
    # Plain XLA max of the four strided views (no extra Pallas launch needed).
    B, H, W, C = x.shape
    H2, W2 = H // 2, W // 2
    x = x[:, :H2 * 2, :W2 * 2, :]
    return jnp.maximum(
        jnp.maximum(x[:, 0::2, 0::2, :], x[:, 0::2, 1::2, :]),
        jnp.maximum(x[:, 1::2, 0::2, :], x[:, 1::2, 1::2, :]))


# ----------------------------------------------------------------------------
# gMLP block + final FC
# ----------------------------------------------------------------------------

def _gmlp_relu(x, p):
    """x: (B, seq=128, dim) -> relu(x + gMLPBlock(LN(x))), feature dims padded
    to multiples of 128.  Returns the PADDED (B, seq, Dp) bf16 output."""
    B, S, D = x.shape
    H = p['w_in_res'].shape[1]              # dim_ff // 2
    Dp = _round_up(max(D, 128), 128)
    Hp = _round_up(max(H, 128), 128)
    bb = 2 if B % 2 == 0 else 1             # >=2 batch elems per grid step

    f32, bf16 = jnp.float32, jnp.bfloat16

    def padr(a, rows, cols):
        return jnp.pad(a, ((0, rows - a.shape[0]), (0, cols - a.shape[1])))

    xg = jnp.pad(x.astype(bf16), ((0, 0), (0, 0), (0, Dp - D)))
    ln1g = padr(p['ln1_g'], 1, Dp).astype(f32)
    ln1b = padr(p['ln1_b'], 1, Dp).astype(f32)
    wr = padr(p['w_in_res'], Dp, Hp).astype(bf16)
    br = padr(p['b_in_res'], 1, Hp).astype(f32)
    wg = padr(p['w_in_gate'], Dp, Hp).astype(bf16)
    bg = padr(p['b_in_gate'], 1, Hp).astype(f32)
    ln2g = padr(p['ln2_g'], 1, Hp).astype(f32)
    ln2b = padr(p['ln2_b'], 1, Hp).astype(f32)
    wsgu = p['sgu_w'].astype(bf16)
    bsgu = p['sgu_b'].astype(f32)
    wo = padr(p['w_out'], Hp, Dp).astype(bf16)
    bo = padr(p['b_out'], 1, Dp).astype(f32)

    xmap = lambda i: (i, 0, 0)
    wmap = lambda i: (0, 0)
    kernel = functools.partial(_gmlp_kernel, d_true=D, h_true=H, bb=bb, seq=S)
    return pl.pallas_call(
        kernel,
        out_shape=jax.ShapeDtypeStruct((B, S, Dp), jnp.bfloat16),
        grid=(B // bb,),
        in_specs=[pl.BlockSpec((bb, S, Dp), xmap),
                  pl.BlockSpec((1, Dp), wmap), pl.BlockSpec((1, Dp), wmap),
                  pl.BlockSpec((Dp, Hp), wmap), pl.BlockSpec((1, Hp), wmap),
                  pl.BlockSpec((Dp, Hp), wmap), pl.BlockSpec((1, Hp), wmap),
                  pl.BlockSpec((1, Hp), wmap), pl.BlockSpec((1, Hp), wmap),
                  pl.BlockSpec((S, S), wmap), pl.BlockSpec((S, 1), wmap),
                  pl.BlockSpec((Hp, Dp), wmap), pl.BlockSpec((1, Dp), wmap)],
        out_specs=pl.BlockSpec((bb, S, Dp), xmap),
        compiler_params=pltpu.CompilerParams(
            dimension_semantics=("parallel",),
            vmem_limit_bytes=32 * 1024 * 1024),
    )(xg, ln1g, ln1b, wr, br, wg, bg, ln2g, ln2b, wsgu, bsgu, wo, bo)


def _fc(xg_padded, w, b, d_true):
    """Final Linear on the PADDED gMLP output.

    fc weights are row-padded to match the padded feature layout and the
    4 outputs are zero-padded to 128 lanes (lane-dense store); K is tiled
    over an 'arbitrary' axis with an f32 VMEM accumulator."""
    B, S, Dp = xg_padded.shape
    Nout = w.shape[1]
    w3 = w.reshape(S, d_true, Nout)
    w3 = jnp.pad(w3, ((0, 0), (0, Dp - d_true), (0, 128 - Nout)))
    wmat = w3.reshape(S * Dp, 128).astype(jnp.bfloat16)
    bvec = jnp.pad(b, (0, 128 - Nout)).reshape(1, 128).astype(jnp.float32)

    xf = xg_padded.reshape(B, S * Dp)
    K = S * Dp                              # multiple of 128*128
    tk = min(2048, K)
    grid = (K // tk,)

    out = pl.pallas_call(
        _fc_kernel,
        out_shape=jax.ShapeDtypeStruct((B, 128), jnp.float32),
        grid=grid,
        in_specs=[pl.BlockSpec((B, tk), lambda k: (0, k)),
                  pl.BlockSpec((tk, 128), lambda k: (k, 0)),
                  pl.BlockSpec((1, 128), lambda k: (0, 0))],
        out_specs=pl.BlockSpec((B, 128), lambda k: (0, 0)),
        scratch_shapes=[pltpu.VMEM((B, 128), jnp.float32)],
        compiler_params=pltpu.CompilerParams(
            dimension_semantics=("arbitrary",),
            vmem_limit_bytes=32 * 1024 * 1024),
    )(xf, wmat, bvec)
    return out[:, :Nout]


# ----------------------------------------------------------------------------
# Full forward
# ----------------------------------------------------------------------------

def gmlp_res_multi_conv35_forward(x_nchw, params):
    # PyTorch input is NCHW with Cin=1 -> NHWC, bf16 activations throughout.
    x = jnp.transpose(x_nchw, (0, 2, 3, 1)).astype(jnp.bfloat16)

    # All four first-layer convs (3x1/5x1/1x3/1x5) embedded into one 5x5
    # window, both BNs folded, ReLU fused -> a single matmul with 32 outputs.
    w1 = jnp.concatenate([_embed_kernel(params['w_a1'], 5, 5),
                          _embed_kernel(params['w_a2'], 5, 5),
                          _embed_kernel(params['w_b1'], 5, 5),
                          _embed_kernel(params['w_b2'], 5, 5)], axis=-1)
    b1 = jnp.concatenate([params['b_a1'], params['b_a2'],
                          params['b_b1'], params['b_b2']])
    sa, ha = _bn_fold(params['bn1a_g'], params['bn1a_b'],
                      params['bn1a_m'], params['bn1a_v'])
    sb, hb = _bn_fold(params['bn1b_g'], params['bn1b_b'],
                      params['bn1b_m'], params['bn1b_v'])
    scale1 = jnp.concatenate([sa, sb])
    shift1 = jnp.concatenate([ha, hb])
    y = _conv2d(x, w1 * scale1, b1 * scale1 + shift1, (2, 2), relu=True)

    # torch: x = cat((xa, xb), dim=2)  -> concat along H in NHWC.
    x = jnp.concatenate([y[..., :16], y[..., 16:]], axis=1)

    x = _res_multi_conv(x, params['conv2'])
    x = _maxpool2x2(x)
    x = _res_multi_conv(x, params['conv3'])
    x = _maxpool2x2(x)
    x = _res_multi_conv(x, params['conv4'])

    # conv5 + bn5 + relu (BN folded into the matmul epilogue).
    scale5, shift5 = _bn_fold(params['bn5_g'], params['bn5_b'],
                              params['bn5_m'], params['bn5_v'])
    x = _conv2d(x, params['w5c'] * scale5, params['b5c'] * scale5 + shift5,
                (2, 2), relu=True)

    B, Hc, Wc, C = x.shape                               # C == 128
    dim = Hc * Wc
    # torch: x.view(B, 128, H*W) — channel-major sequence of length 128.
    x = jnp.transpose(x, (0, 3, 1, 2)).reshape(B, C, dim)

    xg = _gmlp_relu(x, params['gmlp'])                   # padded (B, 128, Dp)
    out = _fc(xg, params['fc_w'], params['fc_b'], dim)   # (B, 4)
    return out


# ----------------------------------------------------------------------------
# Deterministic synthetic parameter initialization
# ----------------------------------------------------------------------------

def init_params(key, shape=(8, 16)):
    dim = (shape[0] // 2) * (shape[1] // 4)
    seq = 128
    keys = iter(jax.random.split(key, 96))

    def conv(cin, cout, kh, kw):
        s = 1.0 / math.sqrt(kh * kw * cin)
        w = jax.random.uniform(next(keys), (kh, kw, cin, cout), jnp.float32, -s, s)
        b = jax.random.uniform(next(keys), (cout,), jnp.float32, -s, s)
        return w, b

    def bn(c):
        g = jax.random.uniform(next(keys), (c,), jnp.float32, 0.5, 1.5)
        b = jax.random.uniform(next(keys), (c,), jnp.float32, -0.1, 0.1)
        m = jax.random.uniform(next(keys), (c,), jnp.float32, -0.1, 0.1)
        v = jax.random.uniform(next(keys), (c,), jnp.float32, 0.5, 1.5)
        return g, b, m, v

    def linear(fin, fout):
        s = 1.0 / math.sqrt(fin)
        w = jax.random.uniform(next(keys), (fin, fout), jnp.float32, -s, s)
        b = jax.random.uniform(next(keys), (fout,), jnp.float32, -s, s)
        return w, b

    params = {}
    params['w_a1'], params['b_a1'] = conv(1, 8, 3, 1)
    params['w_a2'], params['b_a2'] = conv(1, 8, 5, 1)
    params['w_b1'], params['b_b1'] = conv(1, 8, 1, 3)
    params['w_b2'], params['b_b2'] = conv(1, 8, 1, 5)
    (params['bn1a_g'], params['bn1a_b'],
     params['bn1a_m'], params['bn1a_v']) = bn(16)
    (params['bn1b_g'], params['bn1b_b'],
     params['bn1b_m'], params['bn1b_v']) = bn(16)

    def resmc(c):
        w3, b3 = conv(c, c, 3, 3)
        w5, b5 = conv(c, c, 5, 5)
        g, b, m, v = bn(2 * c)
        return dict(w3=w3, b3=b3, w5=w5, b5=b5, bn_g=g, bn_b=b, bn_m=m, bn_v=v)

    params['conv2'] = resmc(16)
    params['conv3'] = resmc(32)
    params['conv4'] = resmc(64)

    params['w5c'], params['b5c'] = conv(128, 128, 5, 5)
    (params['bn5_g'], params['bn5_b'],
     params['bn5_m'], params['bn5_v']) = bn(128)

    # gMLP(dim=dim, depth=1, seq_len=128, act=Tanh)
    dim_ff = 4 * dim
    half = dim_ff // 2
    w_in, b_in = linear(dim, dim_ff)
    w_out, b_out = linear(half, dim)
    params['gmlp'] = dict(
        ln1_g=jax.random.uniform(next(keys), (1, dim), jnp.float32, 0.5, 1.5),
        ln1_b=jax.random.uniform(next(keys), (1, dim), jnp.float32, -0.1, 0.1),
        w_in_res=w_in[:, :half],
        b_in_res=b_in[:half].reshape(1, half),
        w_in_gate=w_in[:, half:],
        b_in_gate=b_in[half:].reshape(1, half),
        ln2_g=jax.random.uniform(next(keys), (1, half), jnp.float32, 0.5, 1.5),
        ln2_b=jax.random.uniform(next(keys), (1, half), jnp.float32, -0.1, 0.1),
        sgu_w=jax.random.uniform(next(keys), (seq, seq), jnp.float32,
                                 -1e-3 / seq, 1e-3 / seq),
        sgu_b=jnp.ones((seq, 1), jnp.float32),
        w_out=w_out,
        b_out=b_out.reshape(1, dim),
    )

    params['fc_w'], params['fc_b'] = linear(128 * dim, 4)
    return params


# ----------------------------------------------------------------------------

if __name__ == "__main__":
    key = jax.random.PRNGKey(0)
    kx, kp = jax.random.split(key)

    shape = (8, 16)                     # small analogue of the default (26, 63)
    B = 2
    x = jax.random.normal(kx, (B, 1, shape[0], shape[1]), jnp.float32)

    params = init_params(kp, shape=shape)
    fwd = jax.jit(gmlp_res_multi_conv35_forward)
    out = fwd(x, params)
    out = jax.block_until_ready(out)

    assert out.shape == (B, 4), out.shape
    assert bool(jnp.all(jnp.isfinite(out)))
    print("KERNEL_OK")
</pallas_src>

<mosaic_0001>
module attributes {stable_mosaic.version = 11 : i64} {
  func.func @_mm_bias_kernel(%arg0: i32, %arg1: memref<256x25xbf16, #tpu.memory_space<vmem>>, %arg2: memref<25x32xbf16, #tpu.memory_space<vmem>>, %arg3: memref<1x32xf32, #tpu.memory_space<vmem>>, %arg4: memref<256x32xbf16, #tpu.memory_space<vmem>>) attributes {dimension_semantics = [#tpu.dimension_semantics<parallel>], iteration_bounds = array<i64: 1>, scalar_prefetch = 0 : i64, scratch_operands = 0 : i64, tpu.core_type = #tpu.core_type<tc>, window_params = [{transform_indices = @transform_0, window_bounds = array<i64: 256, 25>}, {pipeline_mode = #tpu.pipeline_mode<synchronous>, transform_indices = @transform_1, window_bounds = array<i64: 25, 32>}, {pipeline_mode = #tpu.pipeline_mode<synchronous>, transform_indices = @transform_2, window_bounds = array<i64: 1, 32>}, {transform_indices = @transform_3, window_bounds = array<i64: 256, 32>}]} {
    %c0 = arith.constant 0 : index
    %c0_0 = arith.constant 0 : index
    %0 = vector.load %arg1[%c0, %c0_0] : memref<256x25xbf16, #tpu.memory_space<vmem>>, vector<256x25xbf16>
    %c0_1 = arith.constant 0 : index
    %c0_2 = arith.constant 0 : index
    %1 = vector.load %arg2[%c0_1, %c0_2] : memref<25x32xbf16, #tpu.memory_space<vmem>>, vector<25x32xbf16>
    %cst = arith.constant dense<0.000000e+00> : vector<256x32xf32>
    %2 = tpu.matmul %0, %1, %cst {dimension_numbers = #tpu.dot_dimension_numbers<[1], [0], [0], [1], [0, 0, 1, 1], [], []>} : vector<256x25xbf16>, vector<25x32xbf16>, vector<256x32xf32> -> vector<256x32xf32>
    %c0_3 = arith.constant 0 : index
    %c0_4 = arith.constant 0 : index
    %3 = vector.load %arg3[%c0_3, %c0_4] : memref<1x32xf32, #tpu.memory_space<vmem>>, vector<1x32xf32>
    %4 = vector.broadcast %3 : vector<1x32xf32> to vector<256x32xf32>
    %5 = arith.addf %2, %4 : vector<256x32xf32>
    %cst_5 = arith.constant 0.000000e+00 : f32
    %6 = vector.broadcast %cst_5 : f32 to vector<256x32xf32>
    %7 = arith.maximumf %5, %6 : vector<256x32xf32>
    %8 = arith.truncf %7 : vector<256x32xf32> to vector<256x32xbf16>
    %c0_6 = arith.constant 0 : index
    %c0_7 = arith.constant 0 : index
    %9 = vector.load %arg4[%c0_6, %c0_7] : memref<256x32xbf16, #tpu.memory_space<vmem>>, vector<256x32xbf16>
    tpu.vector_store %arg4[%c0_6, %c0_7], %8 {strides = array<i32>} : memref<256x32xbf16, #tpu.memory_space<vmem>>, vector<256x32xbf16>,
    return
  }
  func.func @transform_0(%arg0: i32) -> (i32, i32) {
    %c0_i32 = arith.constant 0 : i32
    %c0_i32_0 = arith.constant 0 : i32
    return %arg0, %c0_i32 : i32, i32
  }
  func.func @transform_1(%arg0: i32) -> (i32, i32) {
    %c0_i32 = arith.constant 0 : i32
    %c0_i32_0 = arith.constant 0 : i32
    %c0_i32_1 = arith.constant 0 : i32
    return %c0_i32, %c0_i32_0 : i32, i32
  }
  func.func @transform_2(%arg0: i32) -> (i32, i32) {
    %c0_i32 = arith.constant 0 : i32
    %c0_i32_0 = arith.constant 0 : i32
    %c0_i32_1 = arith.constant 0 : i32
    return %c0_i32, %c0_i32_0 : i32, i32
  }
  func.func @transform_3(%arg0: i32) -> (i32, i32) {
    %c0_i32 = arith.constant 0 : i32
    %c0_i32_0 = arith.constant 0 : i32
    return %arg0, %c0_i32 : i32, i32
  }
}

module attributes {stable_mosaic.version = 11 : i64} {
  func.func @_mm_bias_kernel(%arg0: i32, %arg1: memref<512x400xbf16, #tpu.memory_space<vmem>>, %arg2: memref<400x32xbf16, #tpu.memory_space<vmem>>, %arg3: memref<1x32xf32, #tpu.memory_space<vmem>>, %arg4: memref<512x32xbf16, #tpu.memory_space<vmem>>) attributes {dimension_semantics = [#tpu.dimension_semantics<parallel>], iteration_bounds = array<i64: 1>, scalar_prefetch = 0 : i64, scratch_operands = 0 : i64, tpu.core_type = #tpu.core_type<tc>, window_params = [{transform_indices = @transform_0, window_bounds = array<i64: 512, 400>}, {pipeline_mode = #tpu.pipeline_mode<synchronous>, transform_indices = @transform_1, window_bounds = array<i64: 400, 32>}, {pipeline_mode = #tpu.pipeline_mode<synchronous>, transform_indices = @transform_2, window_bounds = array<i64: 1, 32>}, {transform_indices = @transform_3, window_bounds = array<i64: 512, 32>}]} {
    %c0 = arith.constant 0 : index
    %c0_0 = arith.constant 0 : index
    %0 = vector.load %arg1[%c0, %c0_0] : memref<512x400xbf16, #tpu.memory_space<vmem>>, vector<512x400xbf16>
    %c0_1 = arith.constant 0 : index
    %c0_2 = arith.constant 0 : index
    %1 = vector.load %arg2[%c0_1, %c0_2] : memref<400x32xbf16, #tpu.memory_space<vmem>>, vector<400x32xbf16>
    %cst = arith.constant dense<0.000000e+00> : vector<512x32xf32>
    %2 = tpu.matmul %0, %1, %cst {dimension_numbers = #tpu.dot_dimension_numbers<[1], [0], [0], [1], [0, 0, 1, 1], [], []>} : vector<512x400xbf16>, vector<400x32xbf16>, vector<512x32xf32> -> vector<512x32xf32>
    %c0_3 = arith.constant 0 : index
    %c0_4 = arith.constant 0 : index
    %3 = vector.load %arg3[%c0_3, %c0_4] : memref<1x32xf32, #tpu.memory_space<vmem>>, vector<1x32xf32>
    %4 = vector.broadcast %3 : vector<1x32xf32> to vector<512x32xf32>
    %5 = arith.addf %2, %4 : vector<512x32xf32>
    %cst_5 = arith.constant 0.000000e+00 : f32
    %6 = vector.broadcast %cst_5 : f32 to vector<512x32xf32>
    %7 = arith.maximumf %5, %6 : vector<512x32xf32>
    %8 = arith.truncf %7 : vector<512x32xf32> to vector<512x32xbf16>
    %c0_6 = arith.constant 0 : index
    %c0_7 = arith.constant 0 : index
    %9 = vector.load %arg4[%c0_6, %c0_7] : memref<512x32xbf16, #tpu.memory_space<vmem>>, vector<512x32xbf16>
    tpu.vector_store %arg4[%c0_6, %c0_7], %8 {strides = array<i32>} : memref<512x32xbf16, #tpu.memory_space<vmem>>, vector<512x32xbf16>,
    return
  }
  func.func @transform_0(%arg0: i32) -> (i32, i32) {
    %c0_i32 = arith.constant 0 : i32
    %c0_i32_0 = arith.constant 0 : i32
    return %arg0, %c0_i32 : i32, i32
  }
  func.func @transform_1(%arg0: i32) -> (i32, i32) {
    %c0_i32 = arith.constant 0 : i32
    %c0_i32_0 = arith.constant 0 : i32
    %c0_i32_1 = arith.constant 0 : i32
    return %c0_i32, %c0_i32_0 : i32, i32
  }
  func.func @transform_2(%arg0: i32) -> (i32, i32) {
    %c0_i32 = arith.constant 0 : i32
    %c0_i32_0 = arith.constant 0 : i32
    %c0_i32_1 = arith.constant 0 : i32
    return %c0_i32, %c0_i32_0 : i32, i32
  }
  func.func @transform_3(%arg0: i32) -> (i32, i32) {
    %c0_i32 = arith.constant 0 : i32
    %c0_i32_0 = arith.constant 0 : i32
    return %arg0, %c0_i32 : i32, i32
  }
}

module attributes {stable_mosaic.version = 11 : i64} {
  func.func @_mm_bias_kernel(%arg0: i32, %arg1: memref<128x800xbf16, #tpu.memory_space<vmem>>, %arg2: memref<800x64xbf16, #tpu.memory_space<vmem>>, %arg3: memref<1x64xf32, #tpu.memory_space<vmem>>, %arg4: memref<128x64xbf16, #tpu.memory_space<vmem>>) attributes {dimension_semantics = [#tpu.dimension_semantics<parallel>], iteration_bounds = array<i64: 1>, scalar_prefetch = 0 : i64, scratch_operands = 0 : i64, tpu.core_type = #tpu.core_type<tc>, window_params = [{transform_indices = @transform_0, window_bounds = array<i64: 128, 800>}, {pipeline_mode = #tpu.pipeline_mode<synchronous>, transform_indices = @transform_1, window_bounds = array<i64: 800, 64>}, {pipeline_mode = #tpu.pipeline_mode<synchronous>, transform_indices = @transform_2, window_bounds = array<i64: 1, 64>}, {transform_indices = @transform_3, window_bounds = array<i64: 128, 64>}]} {
    %c0 = arith.constant 0 : index
    %c0_0 = arith.constant 0 : index
    %0 = vector.load %arg1[%c0, %c0_0] : memref<128x800xbf16, #tpu.memory_space<vmem>>, vector<128x800xbf16>
    %c0_1 = arith.constant 0 : index
    %c0_2 = arith.constant 0 : index
    %1 = vector.load %arg2[%c0_1, %c0_2] : memref<800x64xbf16, #tpu.memory_space<vmem>>, vector<800x64xbf16>
    %cst = arith.constant dense<0.000000e+00> : vector<128x64xf32>
    %2 = tpu.matmul %0, %1, %cst {dimension_numbers = #tpu.dot_dimension_numbers<[1], [0], [0], [1], [0, 0, 1, 1], [], []>} : vector<128x800xbf16>, vector<800x64xbf16>, vector<128x64xf32> -> vector<128x64xf32>
    %c0_3 = arith.constant 0 : index
    %c0_4 = arith.constant 0 : index
    %3 = vector.load %arg3[%c0_3, %c0_4] : memref<1x64xf32, #tpu.memory_space<vmem>>, vector<1x64xf32>
    %4 = vector.broadcast %3 : vector<1x64xf32> to vector<128x64xf32>
    %5 = arith.addf %2, %4 : vector<128x64xf32>
    %cst_5 = arith.constant 0.000000e+00 : f32
    %6 = vector.broadcast %cst_5 : f32 to vector<128x64xf32>
    %7 = arith.maximumf %5, %6 : vector<128x64xf32>
    %8 = arith.truncf %7 : vector<128x64xf32> to vector<128x64xbf16>
    %c0_6 = arith.constant 0 : index
    %c0_7 = arith.constant 0 : index
    %9 = vector.load %arg4[%c0_6, %c0_7] : memref<128x64xbf16, #tpu.memory_space<vmem>>, vector<128x64xbf16>
    tpu.vector_store %arg4[%c0_6, %c0_7], %8 {strides = array<i32>} : memref<128x64xbf16, #tpu.memory_space<vmem>>, vector<128x64xbf16>,
    return
  }
  func.func @transform_0(%arg0: i32) -> (i32, i32) {
    %c0_i32 = arith.constant 0 : i32
    %c0_i32_0 = arith.constant 0 : i32
    return %arg0, %c0_i32 : i32, i32
  }
  func.func @transform_1(%arg0: i32) -> (i32, i32) {
    %c0_i32 = arith.constant 0 : i32
    %c0_i32_0 = arith.constant 0 : i32
    %c0_i32_1 = arith.constant 0 : i32
    return %c0_i32, %c0_i32_0 : i32, i32
  }
  func.func @transform_2(%arg0: i32) -> (i32, i32) {
    %c0_i32 = arith.constant 0 : i32
    %c0_i32_0 = arith.constant 0 : i32
    %c0_i32_1 = arith.constant 0 : i32
    return %c0_i32, %c0_i32_0 : i32, i32
  }
  func.func @transform_3(%arg0: i32) -> (i32, i32) {
    %c0_i32 = arith.constant 0 : i32
    %c0_i32_0 = arith.constant 0 : i32
    return %arg0, %c0_i32 : i32, i32
  }
}

module attributes {stable_mosaic.version = 11 : i64} {
  func.func @_mm_bias_kernel(%arg0: i32, %arg1: memref<32x1600xbf16, #tpu.memory_space<vmem>>, %arg2: memref<1600x128xbf16, #tpu.memory_space<vmem>>, %arg3: memref<1x128xf32, #tpu.memory_space<vmem>>, %arg4: memref<32x128xbf16, #tpu.memory_space<vmem>>) attributes {dimension_semantics = [#tpu.dimension_semantics<parallel>], iteration_bounds = array<i64: 1>, scalar_prefetch = 0 : i64, scratch_operands = 0 : i64, tpu.core_type = #tpu.core_type<tc>, window_params = [{transform_indices = @transform_0, window_bounds = array<i64: 32, 1600>}, {pipeline_mode = #tpu.pipeline_mode<synchronous>, transform_indices = @transform_1, window_bounds = array<i64: 1600, 128>}, {pipeline_mode = #tpu.pipeline_mode<synchronous>, transform_indices = @transform_2, window_bounds = array<i64: 1, 128>}, {transform_indices = @transform_3, window_bounds = array<i64: 32, 128>}]} {
    %c0 = arith.constant 0 : index
    %c0_0 = arith.constant 0 : index
    %0 = vector.load %arg1[%c0, %c0_0] : memref<32x1600xbf16, #tpu.memory_space<vmem>>, vector<32x1600xbf16>
    %c0_1 = arith.constant 0 : index
    %c0_2 = arith.constant 0 : index
    %1 = vector.load %arg2[%c0_1, %c0_2] : memref<1600x128xbf16, #tpu.memory_space<vmem>>, vector<1600x128xbf16>
    %cst = arith.constant dense<0.000000e+00> : vector<32x128xf32>
    %2 = tpu.matmul %0, %1, %cst {dimension_numbers = #tpu.dot_dimension_numbers<[1], [0], [0], [1], [0, 0, 1, 1], [], []>} : vector<32x1600xbf16>, vector<1600x128xbf16>, vector<32x128xf32> -> vector<32x128xf32>
    %c0_3 = arith.constant 0 : index
    %c0_4 = arith.constant 0 : index
    %3 = vector.load %arg3[%c0_3, %c0_4] : memref<1x128xf32, #tpu.memory_space<vmem>>, vector<1x128xf32>
    %4 = vector.broadcast %3 : vector<1x128xf32> to vector<32x128xf32>
    %5 = arith.addf %2, %4 : vector<32x128xf32>
    %cst_5 = arith.constant 0.000000e+00 : f32
    %6 = vector.broadcast %cst_5 : f32 to vector<32x128xf32>
    %7 = arith.maximumf %5, %6 : vector<32x128xf32>
    %8 = arith.truncf %7 : vector<32x128xf32> to vector<32x128xbf16>
    %c0_6 = arith.constant 0 : index
    %c0_7 = arith.constant 0 : index
    %9 = vector.load %arg4[%c0_6, %c0_7] : memref<32x128xbf16, #tpu.memory_space<vmem>>, vector<32x128xbf16>
    tpu.vector_store %arg4[%c0_6, %c0_7], %8 {strides = array<i32>} : memref<32x128xbf16, #tpu.memory_space<vmem>>, vector<32x128xbf16>,
    return
  }
  func.func @transform_0(%arg0: i32) -> (i32, i32) {
    %c0_i32 = arith.constant 0 : i32
    %c0_i32_0 = arith.constant 0 : i32
    return %arg0, %c0_i32 : i32, i32
  }
  func.func @transform_1(%arg0: i32) -> (i32, i32) {
    %c0_i32 = arith.constant 0 : i32
    %c0_i32_0 = arith.constant 0 : i32
    %c0_i32_1 = arith.constant 0 : i32
    return %c0_i32, %c0_i32_0 : i32, i32
  }
  func.func @transform_2(%arg0: i32) -> (i32, i32) {
    %c0_i32 = arith.constant 0 : i32
    %c0_i32_0 = arith.constant 0 : i32
    %c0_i32_1 = arith.constant 0 : i32
    return %c0_i32, %c0_i32_0 : i32, i32
  }
  func.func @transform_3(%arg0: i32) -> (i32, i32) {
    %c0_i32 = arith.constant 0 : i32
    %c0_i32_0 = arith.constant 0 : i32
    return %arg0, %c0_i32 : i32, i32
  }
}

module attributes {stable_mosaic.version = 11 : i64} {
  func.func @_mm_bias_kernel(%arg0: i32, %arg1: memref<32x3200xbf16, #tpu.memory_space<vmem>>, %arg2: memref<3200x128xbf16, #tpu.memory_space<vmem>>, %arg3: memref<1x128xf32, #tpu.memory_space<vmem>>, %arg4: memref<32x128xbf16, #tpu.memory_space<vmem>>) attributes {dimension_semantics = [#tpu.dimension_semantics<parallel>], iteration_bounds = array<i64: 1>, scalar_prefetch = 0 : i64, scratch_operands = 0 : i64, tpu.core_type = #tpu.core_type<tc>, window_params = [{transform_indices = @transform_0, window_bounds = array<i64: 32, 3200>}, {pipeline_mode = #tpu.pipeline_mode<synchronous>, transform_indices = @transform_1, window_bounds = array<i64: 3200, 128>}, {pipeline_mode = #tpu.pipeline_mode<synchronous>, transform_indices = @transform_2, window_bounds = array<i64: 1, 128>}, {transform_indices = @transform_3, window_bounds = array<i64: 32, 128>}]} {
    %c0 = arith.constant 0 : index
    %c0_0 = arith.constant 0 : index
    %0 = vector.load %arg1[%c0, %c0_0] : memref<32x3200xbf16, #tpu.memory_space<vmem>>, vector<32x3200xbf16>
    %c0_1 = arith.constant 0 : index
    %c0_2 = arith.constant 0 : index
    %1 = vector.load %arg2[%c0_1, %c0_2] : memref<3200x128xbf16, #tpu.memory_space<vmem>>, vector<3200x128xbf16>
    %cst = arith.constant dense<0.000000e+00> : vector<32x128xf32>
    %2 = tpu.matmul %0, %1, %cst {dimension_numbers = #tpu.dot_dimension_numbers<[1], [0], [0], [1], [0, 0, 1, 1], [], []>} : vector<32x3200xbf16>, vector<3200x128xbf16>, vector<32x128xf32> -> vector<32x128xf32>
    %c0_3 = arith.constant 0 : index
    %c0_4 = arith.constant 0 : index
    %3 = vector.load %arg3[%c0_3, %c0_4] : memref<1x128xf32, #tpu.memory_space<vmem>>, vector<1x128xf32>
    %4 = vector.broadcast %3 : vector<1x128xf32> to vector<32x128xf32>
    %5 = arith.addf %2, %4 : vector<32x128xf32>
    %cst_5 = arith.constant 0.000000e+00 : f32
    %6 = vector.broadcast %cst_5 : f32 to vector<32x128xf32>
    %7 = arith.maximumf %5, %6 : vector<32x128xf32>
    %8 = arith.truncf %7 : vector<32x128xf32> to vector<32x128xbf16>
    %c0_6 = arith.constant 0 : index
    %c0_7 = arith.constant 0 : index
    %9 = vector.load %arg4[%c0_6, %c0_7] : memref<32x128xbf16, #tpu.memory_space<vmem>>, vector<32x128xbf16>
    tpu.vector_store %arg4[%c0_6, %c0_7], %8 {strides = array<i32>} : memref<32x128xbf16, #tpu.memory_space<vmem>>, vector<32x128xbf16>,
    return
  }
  func.func @transform_0(%arg0: i32) -> (i32, i32) {
    %c0_i32 = arith.constant 0 : i32
    %c0_i32_0 = arith.constant 0 : i32
    return %arg0, %c0_i32 : i32, i32
  }
  func.func @transform_1(%arg0: i32) -> (i32, i32) {
    %c0_i32 = arith.constant 0 : i32
    %c0_i32_0 = arith.constant 0 : i32
    %c0_i32_1 = arith.constant 0 : i32
    return %c0_i32, %c0_i32_0 : i32, i32
  }
  func.func @transform_2(%arg0: i32) -> (i32, i32) {
    %c0_i32 = arith.constant 0 : i32
    %c0_i32_0 = arith.constant 0 : i32
    %c0_i32_1 = arith.constant 0 : i32
    return %c0_i32, %c0_i32_0 : i32, i32
  }
  func.func @transform_3(%arg0: i32) -> (i32, i32) {
    %c0_i32 = arith.constant 0 : i32
    %c0_i32_0 = arith.constant 0 : i32
    return %arg0, %c0_i32 : i32, i32
  }
}

module attributes {stable_mosaic.version = 11 : i64} {
  func.func @_gmlp_kernel(%arg0: i32, %arg1: memref<2x128x128xbf16, #tpu.memory_space<vmem>>, %arg2: memref<1x128xf32, #tpu.memory_space<vmem>>, %arg3: memref<1x128xf32, #tpu.memory_space<vmem>>, %arg4: memref<128x128xbf16, #tpu.memory_space<vmem>>, %arg5: memref<1x128xf32, #tpu.memory_space<vmem>>, %arg6: memref<128x128xbf16, #tpu.memory_space<vmem>>, %arg7: memref<1x128xf32, #tpu.memory_space<vmem>>, %arg8: memref<1x128xf32, #tpu.memory_space<vmem>>, %arg9: memref<1x128xf32, #tpu.memory_space<vmem>>, %arg10: memref<128x128xbf16, #tpu.memory_space<vmem>>, %arg11: memref<128x1xf32, #tpu.memory_space<vmem>>, %arg12: memref<128x128xbf16, #tpu.memory_space<vmem>>, %arg13: memref<1x128xf32, #tpu.memory_space<vmem>>, %arg14: memref<2x128x128xbf16, #tpu.memory_space<vmem>>) attributes {dimension_semantics = [#tpu.dimension_semantics<parallel>], iteration_bounds = array<i64: 1>, scalar_prefetch = 0 : i64, scratch_operands = 0 : i64, tpu.core_type = #tpu.core_type<tc>, window_params = [{transform_indices = @transform_0, window_bounds = array<i64: 2, 128, 128>}, {pipeline_mode = #tpu.pipeline_mode<synchronous>, transform_indices = @transform_1, window_bounds = array<i64: 1, 128>}, {pipeline_mode = #tpu.pipeline_mode<synchronous>, transform_indices = @transform_2, window_bounds = array<i64: 1, 128>}, {pipeline_mode = #tpu.pipeline_mode<synchronous>, transform_indices = @transform_3, window_bounds = array<i64: 128, 128>}, {pipeline_mode = #tpu.pipeline_mode<synchronous>, transform_indices = @transform_4, window_bounds = array<i64: 1, 128>}, {pipeline_mode = #tpu.pipeline_mode<synchronous>, transform_indices = @transform_5, window_bounds = array<i64: 128, 128>}, {pipeline_mode = #tpu.pipeline_mode<synchronous>, transform_indices = @transform_6, window_bounds = array<i64: 1, 128>}, {pipeline_mode = #tpu.pipeline_mode<synchronous>, transform_indices = @transform_7, window_bounds = array<i64: 1, 128>}, {pipeline_mode = #tpu.pipeline_mode<synchronous>, transform_indices = @transform_8, window_bounds = array<i64: 1, 128>}, {pipeline_mode = #tpu.pipeline_mode<synchronous>, transform_indices = @transform_9, window_bounds = array<i64: 128, 128>}, {pipeline_mode = #tpu.pipeline_mode<synchronous>, transform_indices = @transform_10, window_bounds = array<i64: 128, 1>}, {pipeline_mode = #tpu.pipeline_mode<synchronous>, transform_indices = @transform_11, window_bounds = array<i64: 128, 128>}, {pipeline_mode = #tpu.pipeline_mode<synchronous>, transform_indices = @transform_12, window_bounds = array<i64: 1, 128>}, {transform_indices = @transform_13, window_bounds = array<i64: 2, 128, 128>}]} {
    %c0 = arith.constant 0 : index
    %c0_0 = arith.constant 0 : index
    %c0_1 = arith.constant 0 : index
    %0 = vector.load %arg1[%c0, %c0_0, %c0_1] : memref<2x128x128xbf16, #tpu.memory_space<vmem>>, vector<2x128x128xbf16>
    %1 = arith.extf %0 : vector<2x128x128xbf16> to vector<2x128x128xf32>
    %2 = vector.shape_cast %1 : vector<2x128x128xf32> to vector<256x128xf32>
    %cst = arith.constant dense<0.000000e+00> : vector<256xf32>
    %3 = vector.multi_reduction <add>, %2, %cst [1] : vector<256x128xf32> to vector<256xf32>
    %4 = vector.shape_cast %3 : vector<256xf32> to vector<256x1xf32>
    %cst_2 = arith.constant 6.250000e-02 : f32
    %5 = vector.broadcast %cst_2 : f32 to vector<256x1xf32>
    %6 = arith.mulf %4, %5 : vector<256x1xf32>
    %7 = arith.mulf %2, %2 : vector<256x128xf32>
    %cst_3 = arith.constant dense<0.000000e+00> : vector<256xf32>
    %8 = vector.multi_reduction <add>, %7, %cst_3 [1] : vector<256x128xf32> to vector<256xf32>
    %9 = vector.shape_cast %8 : vector<256xf32> to vector<256x1xf32>
    %cst_4 = arith.constant 6.250000e-02 : f32
    %10 = vector.broadcast %cst_4 : f32 to vector<256x1xf32>
    %11 = arith.mulf %9, %10 : vector<256x1xf32>
    %12 = arith.mulf %6, %6 : vector<256x1xf32>
    %13 = arith.subf %11, %12 : vector<256x1xf32>
    %14 = vector.broadcast %6 : vector<256x1xf32> to vector<256x128xf32>
    %15 = arith.subf %2, %14 : vector<256x128xf32>
    %cst_5 = arith.constant 9.99999974E-6 : f32
    %16 = vector.broadcast %cst_5 : f32 to vector<256x1xf32>
    %17 = arith.addf %13, %16 : vector<256x1xf32>
    %18 = math.rsqrt %17 : vector<256x1xf32>
    %19 = vector.broadcast %18 : vector<256x1xf32> to vector<256x128xf32>
    %20 = arith.mulf %15, %19 : vector<256x128xf32>
    %c0_6 = arith.constant 0 : index
    %c0_7 = arith.constant 0 : index
    %21 = vector.load %arg2[%c0_6, %c0_7] : memref<1x128xf32, #tpu.memory_space<vmem>>, vector<1x128xf32>
    %22 = vector.broadcast %21 : vector<1x128xf32> to vector<256x128xf32>
    %23 = arith.mulf %20, %22 : vector<256x128xf32>
    %c0_8 = arith.constant 0 : index
    %c0_9 = arith.constant 0 : index
    %24 = vector.load %arg3[%c0_8, %c0_9] : memref<1x128xf32, #tpu.memory_space<vmem>>, vector<1x128xf32>
    %25 = vector.broadcast %24 : vector<1x128xf32> to vector<256x128xf32>
    %26 = arith.addf %23, %25 : vector<256x128xf32>
    %27 = arith.truncf %26 : vector<256x128xf32> to vector<256x128xbf16>
    %c0_10 = arith.constant 0 : index
    %c0_11 = arith.constant 0 : index
    %28 = vector.load %arg4[%c0_10, %c0_11] : memref<128x128xbf16, #tpu.memory_space<vmem>>, vector<128x128xbf16>
    %cst_12 = arith.constant dense<0.000000e+00> : vector<256x128xf32>
    %29 = tpu.matmul %27, %28, %cst_12 {dimension_numbers = #tpu.dot_dimension_numbers<[1], [0], [0], [1], [0, 0, 1, 1], [], []>} : vector<256x128xbf16>, vector<128x128xbf16>, vector<256x128xf32> -> vector<256x128xf32>
    %c0_13 = arith.constant 0 : index
    %c0_14 = arith.constant 0 : index
    %30 = vector.load %arg5[%c0_13, %c0_14] : memref<1x128xf32, #tpu.memory_space<vmem>>, vector<1x128xf32>
    %31 = vector.broadcast %30 : vector<1x128xf32> to vector<256x128xf32>
    %32 = arith.addf %29, %31 : vector<256x128xf32>
    %33 = arith.mulf %32, %32 : vector<256x128xf32>
    %34 = arith.mulf %32, %33 : vector<256x128xf32>
    %cst_15 = arith.constant 4.471500e-02 : f32
    %35 = vector.broadcast %cst_15 : f32 to vector<256x128xf32>
    %36 = arith.mulf %35, %34 : vector<256x128xf32>
    %37 = arith.addf %32, %36 : vector<256x128xf32>
    %cst_16 = arith.constant 0.797884583 : f32
    %38 = vector.broadcast %cst_16 : f32 to vector<256x128xf32>
    %39 = arith.mulf %38, %37 : vector<256x128xf32>
    %40 = math.tanh %39 : vector<256x128xf32>
    %cst_17 = arith.constant 1.000000e+00 : f32
    %41 = vector.broadcast %cst_17 : f32 to vector<256x128xf32>
    %42 = arith.addf %41, %40 : vector<256x128xf32>
    %cst_18 = arith.constant 5.000000e-01 : f32
    %43 = vector.broadcast %cst_18 : f32 to vector<256x128xf32>
    %44 = arith.mulf %43, %42 : vector<256x128xf32>
    %45 = arith.mulf %32, %44 : vector<256x128xf32>
    %c0_19 = arith.constant 0 : index
    %c0_20 = arith.constant 0 : index
    %46 = vector.load %arg6[%c0_19, %c0_20] : memref<128x128xbf16, #tpu.memory_space<vmem>>, vector<128x128xbf16>
    %cst_21 = arith.constant dense<0.000000e+00> : vector<256x128xf32>
    %47 = tpu.matmul %27, %46, %cst_21 {dimension_numbers = #tpu.dot_dimension_numbers<[1], [0], [0], [1], [0, 0, 1, 1], [], []>} : vector<256x128xbf16>, vector<128x128xbf16>, vector<256x128xf32> -> vector<256x128xf32>
    %c0_22 = arith.constant 0 : index
    %c0_23 = arith.constant 0 : index
    %48 = vector.load %arg7[%c0_22, %c0_23] : memref<1x128xf32, #tpu.memory_space<vmem>>, vector<1x128xf32>
    %49 = vector.broadcast %48 : vector<1x128xf32> to vector<256x128xf32>
    %50 = arith.addf %47, %49 : vector<256x128xf32>
    %51 = arith.mulf %50, %50 : vector<256x128xf32>
    %52 = arith.mulf %50, %51 : vector<256x128xf32>
    %cst_24 = arith.constant 4.471500e-02 : f32
    %53 = vector.broadcast %cst_24 : f32 to vector<256x128xf32>
    %54 = arith.mulf %53, %52 : vector<256x128xf32>
    %55 = arith.addf %50, %54 : vector<256x128xf32>
    %cst_25 = arith.constant 0.797884583 : f32
    %56 = vector.broadcast %cst_25 : f32 to vector<256x128xf32>
    %57 = arith.mulf %56, %55 : vector<256x128xf32>
    %58 = math.tanh %57 : vector<256x128xf32>
    %cst_26 = arith.constant 1.000000e+00 : f32
    %59 = vector.broadcast %cst_26 : f32 to vector<256x128xf32>
    %60 = arith.addf %59, %58 : vector<256x128xf32>
    %cst_27 = arith.constant 5.000000e-01 : f32
    %61 = vector.broadcast %cst_27 : f32 to vector<256x128xf32>
    %62 = arith.mulf %61, %60 : vector<256x128xf32>
    %63 = arith.mulf %50, %62 : vector<256x128xf32>
    %cst_28 = arith.constant dense<0.000000e+00> : vector<256xf32>
    %64 = vector.multi_reduction <add>, %63, %cst_28 [1] : vector<256x128xf32> to vector<256xf32>
    %65 = vector.shape_cast %64 : vector<256xf32> to vector<256x1xf32>
    %cst_29 = arith.constant 3.125000e-02 : f32
    %66 = vector.broadcast %cst_29 : f32 to vector<256x1xf32>
    %67 = arith.mulf %65, %66 : vector<256x1xf32>
    %68 = arith.mulf %63, %63 : vector<256x128xf32>
    %cst_30 = arith.constant dense<0.000000e+00> : vector<256xf32>
    %69 = vector.multi_reduction <add>, %68, %cst_30 [1] : vector<256x128xf32> to vector<256xf32>
    %70 = vector.shape_cast %69 : vector<256xf32> to vector<256x1xf32>
    %cst_31 = arith.constant 3.125000e-02 : f32
    %71 = vector.broadcast %cst_31 : f32 to vector<256x1xf32>
    %72 = arith.mulf %70, %71 : vector<256x1xf32>
    %73 = arith.mulf %67, %67 : vector<256x1xf32>
    %74 = arith.subf %72, %73 : vector<256x1xf32>
    %75 = vector.broadcast %67 : vector<256x1xf32> to vector<256x128xf32>
    %76 = arith.subf %63, %75 : vector<256x128xf32>
    %cst_32 = arith.constant 9.99999974E-6 : f32
    %77 = vector.broadcast %cst_32 : f32 to vector<256x1xf32>
    %78 = arith.addf %74, %77 : vector<256x1xf32>
    %79 = math.rsqrt %78 : vector<256x1xf32>
    %80 = vector.broadcast %79 : vector<256x1xf32> to vector<256x128xf32>
    %81 = arith.mulf %76, %80 : vector<256x128xf32>
    %c0_33 = arith.constant 0 : index
    %c0_34 = arith.constant 0 : index
    %82 = vector.load %arg8[%c0_33, %c0_34] : memref<1x128xf32, #tpu.memory_space<vmem>>, vector<1x128xf32>
    %83 = vector.broadcast %82 : vector<1x128xf32> to vector<256x128xf32>
    %84 = arith.mulf %81, %83 : vector<256x128xf32>
    %c0_35 = arith.constant 0 : index
    %c0_36 = arith.constant 0 : index
    %85 = vector.load %arg9[%c0_35, %c0_36] : memref<1x128xf32, #tpu.memory_space<vmem>>, vector<1x128xf32>
    %86 = vector.broadcast %85 : vector<1x128xf32> to vector<256x128xf32>
    %87 = arith.addf %84, %86 : vector<256x128xf32>
    %88 = arith.truncf %87 : vector<256x128xf32> to vector<256x128xbf16>
    %c0_37 = arith.constant 0 : index
    %c0_38 = arith.constant 0 : index
    %89 = vector.load %arg10[%c0_37, %c0_38] : memref<128x128xbf16, #tpu.memory_space<vmem>>, vector<128x128xbf16>
    %90 = vector.extract_strided_slice %88 {offsets = [0, 0], sizes = [128, 128], strides = [1, 1]} : vector<256x128xbf16> to vector<128x128xbf16>
    %cst_39 = arith.constant dense<0.000000e+00> : vector<128x128xf32>
    %91 = tpu.matmul %89, %90, %cst_39 {dimension_numbers = #tpu.dot_dimension_numbers<[1], [0], [0], [1], [0, 0, 1, 1], [], []>} : vector<128x128xbf16>, vector<128x128xbf16>, vector<128x128xf32> -> vector<128x128xf32>
    %c0_40 = arith.constant 0 : index
    %c0_41 = arith.constant 0 : index
    %92 = vector.load %arg11[%c0_40, %c0_41] : memref<128x1xf32, #tpu.memory_space<vmem>>, vector<128x1xf32>
    %93 = vector.broadcast %92 : vector<128x1xf32> to vector<128x128xf32>
    %94 = arith.addf %91, %93 : vector<128x128xf32>
    %95 = math.tanh %94 : vector<128x128xf32>
    %c0_42 = arith.constant 0 : index
    %c0_43 = arith.constant 0 : index
    %96 = vector.load %arg10[%c0_42, %c0_43] : memref<128x128xbf16, #tpu.memory_space<vmem>>, vector<128x128xbf16>
    %97 = vector.extract_strided_slice %88 {offsets = [128, 0], sizes = [128, 128], strides = [1, 1]} : vector<256x128xbf16> to vector<128x128xbf16>
    %cst_44 = arith.constant dense<0.000000e+00> : vector<128x128xf32>
    %98 = tpu.matmul %96, %97, %cst_44 {dimension_numbers = #tpu.dot_dimension_numbers<[1], [0], [0], [1], [0, 0, 1, 1], [], []>} : vector<128x128xbf16>, vector<128x128xbf16>, vector<128x128xf32> -> vector<128x128xf32>
    %c0_45 = arith.constant 0 : index
    %c0_46 = arith.constant 0 : index
    %99 = vector.load %arg11[%c0_45, %c0_46] : memref<128x1xf32, #tpu.memory_space<vmem>>, vector<128x1xf32>
    %100 = vector.broadcast %99 : vector<128x1xf32> to vector<128x128xf32>
    %101 = arith.addf %98, %100 : vector<128x128xf32>
    %102 = math.tanh %101 : vector<128x128xf32>
    %103 = tpu.concatenate %95, %102 in 0 : vector<128x128xf32>, vector<128x128xf32> -> vector<256x128xf32>
    %104 = arith.mulf %103, %45 : vector<256x128xf32>
    %105 = arith.truncf %104 : vector<256x128xf32> to vector<256x128xbf16>
    %c0_47 = arith.constant 0 : index
    %c0_48 = arith.constant 0 : index
    %106 = vector.load %arg12[%c0_47, %c0_48] : memref<128x128xbf16, #tpu.memory_space<vmem>>, vector<128x128xbf16>
    %cst_49 = arith.constant dense<0.000000e+00> : vector<256x128xf32>
    %107 = tpu.matmul %105, %106, %cst_49 {dimension_numbers = #tpu.dot_dimension_numbers<[1], [0], [0], [1], [0, 0, 1, 1], [], []>} : vector<256x128xbf16>, vector<128x128xbf16>, vector<256x128xf32> -> vector<256x128xf32>
    %c0_50 = arith.constant 0 : index
    %c0_51 = arith.constant 0 : index
    %108 = vector.load %arg13[%c0_50, %c0_51] : memref<1x128xf32, #tpu.memory_space<vmem>>, vector<1x128xf32>
    %109 = vector.broadcast %108 : vector<1x128xf32> to vector<256x128xf32>
    %110 = arith.addf %107, %109 : vector<256x128xf32>
    %111 = arith.addf %2, %110 : vector<256x128xf32>
    %cst_52 = arith.constant 0.000000e+00 : f32
    %112 = vector.broadcast %cst_52 : f32 to vector<256x128xf32>
    %113 = arith.maximumf %111, %112 : vector<256x128xf32>
    %114 = vector.shape_cast %113 : vector<256x128xf32> to vector<2x128x128xf32>
    %115 = arith.truncf %114 : vector<2x128x128xf32> to vector<2x128x128xbf16>
    %c0_53 = arith.constant 0 : index
    %c0_54 = arith.constant 0 : index
    %c0_55 = arith.constant 0 : index
    %116 = vector.load %arg14[%c0_53, %c0_54, %c0_55] : memref<2x128x128xbf16, #tpu.memory_space<vmem>>, vector<2x128x128xbf16>
    tpu.vector_store %arg14[%c0_53, %c0_54, %c0_55], %115 {strides = array<i32>} : memref<2x128x128xbf16, #tpu.memory_space<vmem>>, vector<2x128x128xbf16>,
    return
  }
  func.func @transform_0(%arg0: i32) -> (i32, i32, i32) {
    %c0_i32 = arith.constant 0 : i32
    %c0_i32_0 = arith.constant 0 : i32
    %c0_i32_1 = arith.constant 0 : i32
    return %arg0, %c0_i32, %c0_i32_0 : i32, i32, i32
  }
  func.func @transform_1(%arg0: i32) -> (i32, i32) {
    %c0_i32 = arith.constant 0 : i32
    %c0_i32_0 = arith.constant 0 : i32
    %c0_i32_1 = arith.constant 0 : i32
    return %c0_i32, %c0_i32_0 : i32, i32
  }
  func.func @transform_2(%arg0: i32) -> (i32, i32) {
    %c0_i32 = arith.constant 0 : i32
    %c0_i32_0 = arith.constant 0 : i32
    %c0_i32_1 = arith.constant 0 : i32
    return %c0_i32, %c0_i32_0 : i32, i32
  }
  func.func @transform_3(%arg0: i32) -> (i32, i32) {
    %c0_i32 = arith.constant 0 : i32
    %c0_i32_0 = arith.constant 0 : i32
    %c0_i32_1 = arith.constant 0 : i32
    return %c0_i32, %c0_i32_0 : i32, i32
  }
  func.func @transform_4(%arg0: i32) -> (i32, i32) {
    %c0_i32 = arith.constant 0 : i32
    %c0_i32_0 = arith.constant 0 : i32
    %c0_i32_1 = arith.constant 0 : i32
    return %c0_i32, %c0_i32_0 : i32, i32
  }
  func.func @transform_5(%arg0: i32) -> (i32, i32) {
    %c0_i32 = arith.constant 0 : i32
    %c0_i32_0 = arith.constant 0 : i32
    %c0_i32_1 = arith.constant 0 : i32
    return %c0_i32, %c0_i32_0 : i32, i32
  }
  func.func @transform_6(%arg0: i32) -> (i32, i32) {
    %c0_i32 = arith.constant 0 : i32
    %c0_i32_0 = arith.constant 0 : i32
    %c0_i32_1 = arith.constant 0 : i32
    return %c0_i32, %c0_i32_0 : i32, i32
  }
  func.func @transform_7(%arg0: i32) -> (i32, i32) {
    %c0_i32 = arith.constant 0 : i32
    %c0_i32_0 = arith.constant 0 : i32
    %c0_i32_1 = arith.constant 0 : i32
    return %c0_i32, %c0_i32_0 : i32, i32
  }
  func.func @transform_8(%arg0: i32) -> (i32, i32) {
    %c0_i32 = arith.constant 0 : i32
    %c0_i32_0 = arith.constant 0 : i32
    %c0_i32_1 = arith.constant 0 : i32
    return %c0_i32, %c0_i32_0 : i32, i32
  }
  func.func @transform_9(%arg0: i32) -> (i32, i32) {
    %c0_i32 = arith.constant 0 : i32
    %c0_i32_0 = arith.constant 0 : i32
    %c0_i32_1 = arith.constant 0 : i32
    return %c0_i32, %c0_i32_0 : i32, i32
  }
  func.func @transform_10(%arg0: i32) -> (i32, i32) {
    %c0_i32 = arith.constant 0 : i32
    %c0_i32_0 = arith.constant 0 : i32
    %c0_i32_1 = arith.constant 0 : i32
    return %c0_i32, %c0_i32_0 : i32, i32
  }
  func.func @transform_11(%arg0: i32) -> (i32, i32) {
    %c0_i32 = arith.constant 0 : i32
    %c0_i32_0 = arith.constant 0 : i32
    %c0_i32_1 = arith.constant 0 : i32
    return %c0_i32, %c0_i32_0 : i32, i32
  }
  func.func @transform_12(%arg0: i32) -> (i32, i32) {
    %c0_i32 = arith.constant 0 : i32
    %c0_i32_0 = arith.constant 0 : i32
    %c0_i32_1 = arith.constant 0 : i32
    return %c0_i32, %c0_i32_0 : i32, i32
  }
  func.func @transform_13(%arg0: i32) -> (i32, i32, i32) {
    %c0_i32 = arith.constant 0 : i32
    %c0_i32_0 = arith.constant 0 : i32
    %c0_i32_1 = arith.constant 0 : i32
    return %arg0, %c0_i32, %c0_i32_0 : i32, i32, i32
  }
}

module attributes {stable_mosaic.version = 11 : i64} {
  func.func @_fc_kernel(%arg0: i32, %arg1: memref<2x2048xbf16, #tpu.memory_space<vmem>>, %arg2: memref<2048x128xbf16, #tpu.memory_space<vmem>>, %arg3: memref<1x128xf32, #tpu.memory_space<vmem>>, %arg4: memref<2x128xf32, #tpu.memory_space<vmem>>, %arg5: memref<2x128xf32, #tpu.memory_space<vmem>>) attributes {dimension_semantics = [#tpu.dimension_semantics<arbitrary>], iteration_bounds = array<i64: 8>, scalar_prefetch = 0 : i64, scratch_operands = 1 : i64, tpu.core_type = #tpu.core_type<tc>, window_params = [{transform_indices = @transform_0, window_bounds = array<i64: 2, 2048>}, {transform_indices = @transform_1, window_bounds = array<i64: 2048, 128>}, {pipeline_mode = #tpu.pipeline_mode<synchronous>, transform_indices = @transform_2, window_bounds = array<i64: 1, 128>}, {pipeline_mode = #tpu.pipeline_mode<synchronous>, transform_indices = @transform_3, window_bounds = array<i64: 2, 128>}]} {
    %c0_i32 = arith.constant 0 : i32
    %0 = arith.cmpi eq, %arg0, %c0_i32 : i32
    %1 = arith.extui %0 : i1 to i32
    %c0_i32_0 = arith.constant 0 : i32
    %2 = arith.cmpi ne, %1, %c0_i32_0 : i32
    scf.if %2 {
      %cst_9 = arith.constant 0.000000e+00 : f32
      %12 = vector.broadcast %cst_9 : f32 to vector<2x128xf32>
      %c0_10 = arith.constant 0 : index
      %c0_11 = arith.constant 0 : index
      %13 = vector.load %arg5[%c0_10, %c0_11] : memref<2x128xf32, #tpu.memory_space<vmem>>, vector<2x128xf32>
      tpu.vector_store %arg5[%c0_10, %c0_11], %12 {strides = array<i32>} : memref<2x128xf32, #tpu.memory_space<vmem>>, vector<2x128xf32>,
    } else {
    }
    %c0 = arith.constant 0 : index
    %c0_1 = arith.constant 0 : index
    %3 = vector.load %arg5[%c0, %c0_1] : memref<2x128xf32, #tpu.memory_space<vmem>>, vector<2x128xf32>
    %c0_2 = arith.constant 0 : index
    %c0_3 = arith.constant 0 : index
    %4 = vector.load %arg1[%c0_2, %c0_3] : memref<2x2048xbf16, #tpu.memory_space<vmem>>, vector<2x2048xbf16>
    %c0_4 = arith.constant 0 : index
    %c0_5 = arith.constant 0 : index
    %5 = vector.load %arg2[%c0_4, %c0_5] : memref<2048x128xbf16, #tpu.memory_space<vmem>>, vector<2048x128xbf16>
    %cst = arith.constant dense<0.000000e+00> : vector<2x128xf32>
    %6 = tpu.matmul %4, %5, %cst {dimension_numbers = #tpu.dot_dimension_numbers<[1], [0], [0], [1], [0, 0, 1, 1], [], []>} : vector<2x2048xbf16>, vector<2048x128xbf16>, vector<2x128xf32> -> vector<2x128xf32>
    %7 = arith.addf %3, %6 : vector<2x128xf32>
    %c0_6 = arith.constant 0 : index
    %c0_7 = arith.constant 0 : index
    %8 = vector.load %arg5[%c0_6, %c0_7] : memref<2x128xf32, #tpu.memory_space<vmem>>, vector<2x128xf32>
    tpu.vector_store %arg5[%c0_6, %c0_7], %7 {strides = array<i32>} : memref<2x128xf32, #tpu.memory_space<vmem>>, vector<2x128xf32>,
    %c7_i32 = arith.constant 7 : i32
    %9 = arith.cmpi eq, %arg0, %c7_i32 : i32
    %10 = arith.extui %9 : i1 to i32
    %c0_i32_8 = arith.constant 0 : i32
    %11 = arith.cmpi ne, %10, %c0_i32_8 : i32
    scf.if %11 {
      %c0_9 = arith.constant 0 : index
      %c0_10 = arith.constant 0 : index
      %12 = vector.load %arg5[%c0_9, %c0_10] : memref<2x128xf32, #tpu.memory_space<vmem>>, vector<2x128xf32>
      %c0_11 = arith.constant 0 : index
      %c0_12 = arith.constant 0 : index
      %13 = vector.load %arg3[%c0_11, %c0_12] : memref<1x128xf32, #tpu.memory_space<vmem>>, vector<1x128xf32>
      %14 = vector.broadcast %13 : vector<1x128xf32> to vector<2x128xf32>
      %15 = arith.addf %12, %14 : vector<2x128xf32>
      %c0_13 = arith.constant 0 : index
      %c0_14 = arith.constant 0 : index
      %16 = vector.load %arg4[%c0_13, %c0_14] : memref<2x128xf32, #tpu.memory_space<vmem>>, vector<2x128xf32>
      tpu.vector_store %arg4[%c0_13, %c0_14], %15 {strides = array<i32>} : memref<2x128xf32, #tpu.memory_space<vmem>>, vector<2x128xf32>,
    } else {
    }
    return
  }
  func.func @transform_0(%arg0: i32) -> (i32, i32) {
    %c0_i32 = arith.constant 0 : i32
    %c0_i32_0 = arith.constant 0 : i32
    return %c0_i32, %arg0 : i32, i32
  }
  func.func @transform_1(%arg0: i32) -> (i32, i32) {
    %c0_i32 = arith.constant 0 : i32
    %c0_i32_0 = arith.constant 0 : i32
    return %arg0, %c0_i32 : i32, i32
  }
  func.func @transform_2(%arg0: i32) -> (i32, i32) {
    %c0_i32 = arith.constant 0 : i32
    %c0_i32_0 = arith.constant 0 : i32
    %c0_i32_1 = arith.constant 0 : i32
    return %c0_i32, %c0_i32_0 : i32, i32
  }
  func.func @transform_3(%arg0: i32) -> (i32, i32) {
    %c0_i32 = arith.constant 0 : i32
    %c0_i32_0 = arith.constant 0 : i32
    %c0_i32_1 = arith.constant 0 : i32
    return %c0_i32, %c0_i32_0 : i32, i32
  }
}

</mosaic_0001>

<llo_original>
// kernel: gmlp_res_multi_conv35_forward.7
$region0: #{gmlp_res_multi_conv35_forward.7}
  #allocation0 [shape = 'u32[]', space=smem, size = 0x4, offset = 0x4, fixed_abs, tag = 'smem constant byte address 0x4 - core index']
  #allocation1 [shape = 'u32[144,128]{1,0:T(1,128)}', space=vmem, size = 0x12000, scoped, tag = 'internal scratch']
  %s0 = inlined_call_operand.vmem [shape: bf16[256,25], index: 0, kind: input, shape index: {}]
  %s1 = inlined_call_operand.vmem [shape: bf16[25,32], index: 1, kind: input, shape index: {}]
  %s2 = inlined_call_operand.vmem [shape: f32[1,32], index: 2, kind: input, shape index: {}]
  %s3 = inlined_call_operand.vmem [shape: bf16[256,32], index: 3, kind: output, shape index: {}]
  %s4 = sld [smem:[#allocation0]]
  $region22: #{gmlp_res_multi_conv35_forward.7} parent=0
    _
  %s6 = ssub.s32 1, %s4
  %s7 = scalar_select 0, %s6, %s4
  // Predicated region
  $region2: #{gmlp_res_multi_conv35_forward.7} parent=0 // pred_check
    _
  $region3: #{gmlp_res_multi_conv35_forward.7} parent=0 // pred_check_branch
    %9 = sbr.rel (0) target = $region5
  $region4: #{gmlp_res_multi_conv35_forward.7} parent=0 // pred_region
    _
  $region5: #{gmlp_res_multi_conv35_forward.7} parent=0 // pred_fallthru
    _
  // Predicated region
  $region6: #{gmlp_res_multi_conv35_forward.7} parent=0 // pred_check
    _
  $region7: #{gmlp_res_multi_conv35_forward.7} parent=0 // pred_check_branch
    %11 = sbr.rel (0) target = $region9
  $region8: #{gmlp_res_multi_conv35_forward.7} parent=0 // pred_region
    _
  $region9: #{gmlp_res_multi_conv35_forward.7} parent=0 // pred_fallthru
    _
  // Predicated region
  $region10: #{gmlp_res_multi_conv35_forward.7} parent=0 // pred_check
    _
  $region11: #{gmlp_res_multi_conv35_forward.7} parent=0 // pred_check_branch
    %13 = sbr.rel (0) target = $region13
  $region12: #{gmlp_res_multi_conv35_forward.7} parent=0 // pred_region
    _
  $region13: #{gmlp_res_multi_conv35_forward.7} parent=0 // pred_fallthru
    _
  %v15 = vld [vmem:[%s0] sm:$0xf]
  %v16 = vld [vmem:[%s0 + $0x4] sm:$0xf]
  %v17 = vld [vmem:[%s0 + $0x8] sm:$0xf]
  %v18 = vld [vmem:[%s0 + $0xc] sm:$0xf]
  %v19 = vld [vmem:[%s0 + $0x10] sm:$0xf]
  %v20 = vld [vmem:[%s0 + $0x14] sm:$0xf]
  %v21 = vld [vmem:[%s0 + $0x18] sm:$0xf]
  %v22 = vld [vmem:[%s0 + $0x1c] sm:$0xf]
  %v23 = vld [vmem:[%s0 + $0x20] sm:$0xf]
  %v24 = vld [vmem:[%s0 + $0x24] sm:$0xf]
  %v25 = vld [vmem:[%s0 + $0x28] sm:$0xf]
  %v26 = vld [vmem:[%s0 + $0x2c] sm:$0xf]
  %v27 = vld [vmem:[%s0 + $0x30] sm:$0xf]
  %v28 = vld [vmem:[%s0 + $0x34] sm:$0xf]
  %v29 = vld [vmem:[%s0 + $0x38] sm:$0xf]
  %v30 = vld [vmem:[%s0 + $0x3c] sm:$0xf]
  %v31 = vld [vmem:[%s0 + $0x40] sm:$0xf]
  %v32 = vld [vmem:[%s0 + $0x44] sm:$0xf]
  %v33 = vld [vmem:[%s0 + $0x48] sm:$0xf]
  %v34 = vld [vmem:[%s0 + $0x4c] sm:$0xf]
  %v35 = vld [vmem:[%s0 + $0x50] sm:$0xf]
  %v36 = vld [vmem:[%s0 + $0x54] sm:$0xf]
  %v37 = vld [vmem:[%s0 + $0x58] sm:$0xf]
  %v38 = vld [vmem:[%s0 + $0x5c] sm:$0xf]
  %v39 = vld [vmem:[%s0 + $0x60] sm:$0xf]
  %v40 = vld [vmem:[%s0 + $0x64] sm:$0xf]
  %v41 = vld [vmem:[%s0 + $0x68] sm:$0xf]
  %v42 = vld [vmem:[%s0 + $0x6c] sm:$0xf]
  %v43 = vld [vmem:[%s0 + $0x70] sm:$0xf]
  %v44 = vld [vmem:[%s0 + $0x74] sm:$0xf]
  %v45 = vld [vmem:[%s0 + $0x78] sm:$0xf]
  %v46 = vld [vmem:[%s0 + $0x7c] sm:$0xf]
  %v47 = vld [vmem:[%s1] sm:$0xf]
  %v48 = vld [vmem:[%s1 + $0x4] sm:$0xf]
  %v49 = vld [vmem:[%s1 + $0x8] sm:$0xf]
  %v50 = vld [vmem:[%s1 + $0xc] sm:$0x1]
  %v51 = vld [vmem:[%s2] sm:$0x1]
  %v53 = vlaneseq
  %v54 = vshrl.u32 %v53, 7
  %v55 = vsub.s32 0, %v54
  %v56 = vrot.slane %v51, %v55
  %v90 = vunpack.c.l.b16 %v15
  %v91 = vunpack.c.l.b16 %v16
  %v92 = vunpack.c.l.b16 %v17
  %v93 = vunpack.c.l.b16 %v18
  %v94 = vunpack.c.l.b16 %v19
  %v95 = vunpack.c.l.b16 %v20
  %v96 = vunpack.c.l.b16 %v21
  %v97 = vunpack.c.l.b16 %v22
  %v98 = vunpack.c.l.b16 %v23
  %v99 = vunpack.c.l.b16 %v24
  %v100 = vunpack.c.l.b16 %v25
  %v101 = vunpack.c.l.b16 %v26
  %v102 = vunpack.c.l.b16 %v27
  %v103 = vunpack.c.l.b16 %v28
  %v104 = vunpack.c.l.b16 %v29
  %v105 = vunpack.c.l.b16 %v30
  %v106 = vunpack.c.l.b16 %v31
  %v107 = vunpack.c.l.b16 %v32
  %v108 = vunpack.c.l.b16 %v33
  %v109 = vunpack.c.l.b16 %v34
  %v110 = vunpack.c.l.b16 %v35
  %v111 = vunpack.c.l.b16 %v36
  %v112 = vunpack.c.l.b16 %v37
  %v113 = vunpack.c.l.b16 %v38
  %v114 = vunpack.c.l.b16 %v39
  %v115 = vunpack.c.l.b16 %v40
  %v116 = vunpack.c.l.b16 %v41
  %v117 = vunpack.c.l.b16 %v42
  %v118 = vunpack.c.l.b16 %v43
  %v119 = vunpack.c.l.b16 %v44
  %v120 = vunpack.c.l.b16 %v45
  %v121 = vunpack.c.l.b16 %v46
  %v122 = vpack.c.b16 %v91, %v90
  %v123 = vpack.c.b16 %v93, %v92
  %v124 = vpack.c.b16 %v95, %v94
  %v125 = vpack.c.b16 %v97, %v96
  %v126 = vpack.c.b16 %v99, %v98
  %v127 = vpack.c.b16 %v101, %v100
  %v128 = vpack.c.b16 %v103, %v102
  %v129 = vpack.c.b16 %v105, %v104
  %v130 = vpack.c.b16 %v107, %v106
  %v131 = vpack.c.b16 %v109, %v108
  %v132 = vpack.c.b16 %v111, %v110
  %v133 = vpack.c.b16 %v113, %v112
  %v134 = vpack.c.b16 %v115, %v114
  %v135 = vpack.c.b16 %v117, %v116
  %v136 = vpack.c.b16 %v119, %v118
  %v137 = vpack.c.b16 %v121, %v120
  %v142 = vunpack.c.l.b16 %v47
  %v143 = vunpack.c.l.b16 %v48
  %v144 = vunpack.c.l.b16 %v49
  %v145 = vunpack.c.l.b16 %v50
  %v146 = vpack.c.b16 %v143, %v142
  %v147 = vpack.c.b16 %v145, %v144
  %vm149 = vcmask 203776
  %v151 = vsel %vm149, %v122, 0
  %v154 = vsel %vm149, %v123, 0
  %v157 = vsel %vm149, %v124, 0
  %v160 = vsel %vm149, %v125, 0
  %v163 = vsel %vm149, %v126, 0
  %v166 = vsel %vm149, %v127, 0
  %v169 = vsel %vm149, %v128, 0
  %v172 = vsel %vm149, %v129, 0
  %v175 = vsel %vm149, %v130, 0
  %v178 = vsel %vm149, %v131, 0
  %v181 = vsel %vm149, %v132, 0
  %v184 = vsel %vm149, %v133, 0
  %v187 = vsel %vm149, %v134, 0
  %v190 = vsel %vm149, %v135, 0
  %v193 = vsel %vm149, %v136, 0
  %v196 = vsel %vm149, %v137, 0
  %vm198 = vcmask 1043456
  %vm199 = vcmask 1044480
  %v200 = vsel %vm198, 4294967295, 65535
  %v201 = vsel %vm199, %v200, 0
  %v203 = vand.u32 %v147, %v201
  %205 = vmatprep.subr.bf16.mxu0 0
  %206 = vmatpush1.bf16.msra.mxu0 0
  %207 = vmatprep.subr.bf16.mxu0 0
  %208 = vmatpush1.bf16.msra.mxu0 0
  %209 = vmatprep.subr.bf16.mxu0 0
  %210 = vmatpush1.bf16.msra.mxu0 0
  %211 = vmatprep.subr.bf16.mxu0 0
  %212 = vmatpush1.bf16.msra.mxu0 0
  %213 = vmatprep.subr.bf16.mxu0 0
  %214 = vmatpush1.bf16.msra.mxu0 0
  %215 = vmatprep.subr.bf16.mxu0 0
  %216 = vmatpush1.bf16.msra.mxu0 0
  %217 = vmatprep.subr.bf16.mxu0 0
  %218 = vmatpush1.bf16.msra.mxu0 %v203
  %219 = vmatprep.subr.bf16.mxu0 0
  %220 = vmatpush1.bf16.msra.mxu0 %v146
  %221 = vmatprep.subr.bf16.mxu0 0
  %222 = vmatpush2.bf16.msra.mxu0 0
  %223 = vmatprep.subr.bf16.mxu0 0
  %224 = vmatpush2.bf16.msra.mxu0 0
  %225 = vmatprep.subr.bf16.mxu0 0
  %226 = vmatpush2.bf16.msra.mxu0 0
  %227 = vmatprep.subr.bf16.mxu0 0
  %228 = vmatpush2.bf16.msra.mxu0 0
  %229 = vmatprep.subr.bf16.mxu0 0
  %230 = vmatpush2.bf16.msra.mxu0 0
  %231 = vmatprep.subr.bf16.mxu0 0
  %232 = vmatpush2.bf16.msra.mxu0 0
  %233 = vmatprep.subr.bf16.mxu0 0
  %234 = vmatpush2.bf16.msra.mxu0 0
  %235 = vmatprep.subr.bf16.mxu0 0
  %236 = vmatpush2.bf16.msra.mxu0 0
  %237 = vmatprep.mubr.bf16.mxu0 0
  %238 = vmatmul.mubr.bf16.gmra.mxu0 %v151
  %v239 = vpop.f32.mrf.mxu0
  %v240 = vadd.f32 %v56, %v239
  %v241 = vpop.f32.mrf.mxu0
  %v242 = vpop.f32.mrf.mxu0
  %v243 = vadd.f32 %v56, %v242
  %v244 = vpop.f32.mrf.mxu0
  %245 = vmatprep.mubr.bf16.mxu0 0
  %246 = vmatmul.mubr.bf16.gmra.mxu0 %v154
  %v247 = vpop.f32.mrf.mxu0
  %v248 = vadd.f32 %v56, %v247
  %v249 = vpop.f32.mrf.mxu0
  %v250 = vpop.f32.mrf.mxu0
  %v251 = vadd.f32 %v56, %v250
  %v252 = vpop.f32.mrf.mxu0
  %253 = vmatprep.mubr.bf16.mxu0 0
  %254 = vmatmul.mubr.bf16.gmra.mxu0 %v157
  %v255 = vpop.f32.mrf.mxu0
  %v256 = vadd.f32 %v56, %v255
  %v257 = vpop.f32.mrf.mxu0
  %v258 = vpop.f32.mrf.mxu0
  %v259 = vadd.f32 %v56, %v258
  %v260 = vpop.f32.mrf.mxu0
  %261 = vmatprep.mubr.bf16.mxu0 0
  %262 = vmatmul.mubr.bf16.gmra.mxu0 %v160
  %v263 = vpop.f32.mrf.mxu0
  %v264 = vadd.f32 %v56, %v263
  %v265 = vpop.f32.mrf.mxu0
  %v266 = vpop.f32.mrf.mxu0
  %v267 = vadd.f32 %v56, %v266
  %v268 = vpop.f32.mrf.mxu0
  %269 = vmatprep.mubr.bf16.mxu0 0
  %270 = vmatmul.mubr.bf16.gmra.mxu0 %v163
  %v271 = vpop.f32.mrf.mxu0
  %v272 = vadd.f32 %v56, %v271
  %v273 = vpop.f32.mrf.mxu0
  %v274 = vpop.f32.mrf.mxu0
  %v275 = vadd.f32 %v56, %v274
  %v276 = vpop.f32.mrf.mxu0
  %277 = vmatprep.mubr.bf16.mxu0 0
  %278 = vmatmul.mubr.bf16.gmra.mxu0 %v166
  %v279 = vpop.f32.mrf.mxu0
  %v280 = vadd.f32 %v56, %v279
  %v281 = vpop.f32.mrf.mxu0
  %v282 = vpop.f32.mrf.mxu0
  %v283 = vadd.f32 %v56, %v282
  %v284 = vpop.f32.mrf.mxu0
  %285 = vmatprep.mubr.bf16.mxu0 0
  %286 = vmatmul.mubr.bf16.gmra.mxu0 %v169
  %v287 = vpop.f32.mrf.mxu0
  %v288 = vadd.f32 %v56, %v287
  %v289 = vpop.f32.mrf.mxu0
  %v290 = vpop.f32.mrf.mxu0
  %v291 = vadd.f32 %v56, %v290
  %v292 = vpop.f32.mrf.mxu0
  %293 = vmatprep.mubr.bf16.mxu0 0
  %294 = vmatmul.mubr.bf16.gmra.mxu0 %v172
  %v295 = vpop.f32.mrf.mxu0
  %v296 = vadd.f32 %v56, %v295
  %v297 = vpop.f32.mrf.mxu0
  %v298 = vpop.f32.mrf.mxu0
  %v299 = vadd.f32 %v56, %v298
  %v300 = vpop.f32.mrf.mxu0
  %301 = vmatprep.mubr.bf16.mxu0 0
  %302 = vmatmul.mubr.bf16.gmra.mxu0 %v175
  %v303 = vpop.f32.mrf.mxu0
  %v304 = vadd.f32 %v56, %v303
  %v305 = vpop.f32.mrf.mxu0
  %v306 = vpop.f32.mrf.mxu0
  %v307 = vadd.f32 %v56, %v306
  %v308 = vpop.f32.mrf.mxu0
  %309 = vmatprep.mubr.bf16.mxu0 0
  %310 = vmatmul.mubr.bf16.gmra.mxu0 %v178
  %v311 = vpop.f32.mrf.mxu0
  %v312 = vadd.f32 %v56, %v311
  %v313 = vpop.f32.mrf.mxu0
  %v314 = vpop.f32.mrf.mxu0
  %v315 = vadd.f32 %v56, %v314
  %v316 = vpop.f32.mrf.mxu0
  %317 = vmatprep.mubr.bf16.mxu0 0
  %318 = vmatmul.mubr.bf16.gmra.mxu0 %v181
  %v319 = vpop.f32.mrf.mxu0
  %v320 = vadd.f32 %v56, %v319
  %v321 = vpop.f32.mrf.mxu0
  %v322 = vpop.f32.mrf.mxu0
  %v323 = vadd.f32 %v56, %v322
  %v324 = vpop.f32.mrf.mxu0
  %325 = vmatprep.mubr.bf16.mxu0 0
  %326 = vmatmul.mubr.bf16.gmra.mxu0 %v184
  %v327 = vpop.f32.mrf.mxu0
  %v328 = vadd.f32 %v56, %v327
  %v329 = vpop.f32.mrf.mxu0
  %v330 = vpop.f32.mrf.mxu0
  %v331 = vadd.f32 %v56, %v330
  %v332 = vpop.f32.mrf.mxu0
  %333 = vmatprep.mubr.bf16.mxu0 0
  %334 = vmatmul.mubr.bf16.gmra.mxu0 %v187
  %v335 = vpop.f32.mrf.mxu0
  %v336 = vadd.f32 %v56, %v335
  %v337 = vpop.f32.mrf.mxu0
  %v338 = vpop.f32.mrf.mxu0
  %v339 = vadd.f32 %v56, %v338
  %v340 = vpop.f32.mrf.mxu0
  %341 = vmatprep.mubr.bf16.mxu0 0
  %342 = vmatmul.mubr.bf16.gmra.mxu0 %v190
  %v343 = vpop.f32.mrf.mxu0
  %v344 = vadd.f32 %v56, %v343
  %v345 = vpop.f32.mrf.mxu0
  %v346 = vpop.f32.mrf.mxu0
  %v347 = vadd.f32 %v56, %v346
  %v348 = vpop.f32.mrf.mxu0
  %349 = vmatprep.mubr.bf16.mxu0 0
  %350 = vmatmul.mubr.bf16.gmra.mxu0 %v193
  %v351 = vpop.f32.mrf.mxu0
  %v352 = vadd.f32 %v56, %v351
  %v353 = vpop.f32.mrf.mxu0
  %v354 = vpop.f32.mrf.mxu0
  %v355 = vadd.f32 %v56, %v354
  %v356 = vpop.f32.mrf.mxu0
  %357 = vmatprep.mubr.bf16.mxu0 0
  %358 = vmatmul.mubr.bf16.gmra.mxu0 %v196
  %v359 = vpop.f32.mrf.mxu0
  %v360 = vadd.f32 %v56, %v359
  %v361 = vpop.f32.mrf.mxu0
  %v362 = vpop.f32.mrf.mxu0
  %v363 = vadd.f32 %v56, %v362
  %v364 = vpop.f32.mrf.mxu0
  %365 = vdwg.mxu0
  %v366 = vmax.f32 %v240, 0.0
  %v367 = vmax.f32 %v243, 0.0
  %v368 = vmax.f32 %v248, 0.0
  %v369 = vmax.f32 %v251, 0.0
  %v370 = vmax.f32 %v256, 0.0
  %v371 = vmax.f32 %v259, 0.0
  %v372 = vmax.f32 %v264, 0.0
  %v373 = vmax.f32 %v267, 0.0
  %v374 = vmax.f32 %v272, 0.0
  %v375 = vmax.f32 %v275, 0.0
  %v376 = vmax.f32 %v280, 0.0
  %v377 = vmax.f32 %v283, 0.0
  %v378 = vmax.f32 %v288, 0.0
  %v379 = vmax.f32 %v291, 0.0
  %v380 = vmax.f32 %v296, 0.0
  %v381 = vmax.f32 %v299, 0.0
  %v382 = vmax.f32 %v304, 0.0
  %v383 = vmax.f32 %v307, 0.0
  %v384 = vmax.f32 %v312, 0.0
  %v385 = vmax.f32 %v315, 0.0
  %v386 = vmax.f32 %v320, 0.0
  %v387 = vmax.f32 %v323, 0.0
  %v388 = vmax.f32 %v328, 0.0
  %v389 = vmax.f32 %v331, 0.0
  %v390 = vmax.f32 %v336, 0.0
  %v391 = vmax.f32 %v339, 0.0
  %v392 = vmax.f32 %v344, 0.0
  %v393 = vmax.f32 %v347, 0.0
  %v394 = vmax.f32 %v352, 0.0
  %v395 = vmax.f32 %v355, 0.0
  %v396 = vmax.f32 %v360, 0.0
  %v397 = vmax.f32 %v363, 0.0
  %v398 = vpack.c.bf16 %v367, %v366
  %v399 = vpack.c.bf16 %v369, %v368
  %v400 = vpack.c.bf16 %v371, %v370
  %v401 = vpack.c.bf16 %v373, %v372
  %v402 = vpack.c.bf16 %v375, %v374
  %v403 = vpack.c.bf16 %v377, %v376
  %v404 = vpack.c.bf16 %v379, %v378
  %v405 = vpack.c.bf16 %v381, %v380
  %v406 = vpack.c.bf16 %v383, %v382
  %v407 = vpack.c.bf16 %v385, %v384
  %v408 = vpack.c.bf16 %v387, %v386
  %v409 = vpack.c.bf16 %v389, %v388
  %v410 = vpack.c.bf16 %v391, %v390
  %v411 = vpack.c.bf16 %v393, %v392
  %v412 = vpack.c.bf16 %v395, %v394
  %v413 = vpack.c.bf16 %v397, %v396
  %v430 = vunpack.c.l.b16 %v398
  %v431 = vunpack.c.h.b16 %v398
  %v432 = vunpack.c.l.b16 %v399
  %v433 = vunpack.c.h.b16 %v399
  %v434 = vunpack.c.l.b16 %v400
  %v435 = vunpack.c.h.b16 %v400
  %v436 = vunpack.c.l.b16 %v401
  %v437 = vunpack.c.h.b16 %v401
  %v438 = vunpack.c.l.b16 %v402
  %v439 = vunpack.c.h.b16 %v402
  %v440 = vunpack.c.l.b16 %v403
  %v441 = vunpack.c.h.b16 %v403
  %v442 = vunpack.c.l.b16 %v404
  %v443 = vunpack.c.h.b16 %v404
  %v444 = vunpack.c.l.b16 %v405
  %v445 = vunpack.c.h.b16 %v405
  %v446 = vunpack.c.l.b16 %v406
  %v447 = vunpack.c.h.b16 %v406
  %v448 = vunpack.c.l.b16 %v407
  %v449 = vunpack.c.h.b16 %v407
  %v450 = vunpack.c.l.b16 %v408
  %v451 = vunpack.c.h.b16 %v408
  %v452 = vunpack.c.l.b16 %v409
  %v453 = vunpack.c.h.b16 %v409
  %v454 = vunpack.c.l.b16 %v410
  %v455 = vunpack.c.h.b16 %v410
  %v456 = vunpack.c.l.b16 %v411
  %v457 = vunpack.c.h.b16 %v411
  %v458 = vunpack.c.l.b16 %v412
  %v459 = vunpack.c.h.b16 %v412
  %v460 = vunpack.c.l.b16 %v413
  %v461 = vunpack.c.h.b16 %v413
  %v462 = vpack.c.b16 %v430, %v430
  %v463 = vpack.c.b16 %v431, %v431
  %v464 = vpack.c.b16 %v432, %v432
  %v465 = vpack.c.b16 %v433, %v433
  %v466 = vpack.c.b16 %v434, %v434
  %v467 = vpack.c.b16 %v435, %v435
  %v468 = vpack.c.b16 %v436, %v436
  %v469 = vpack.c.b16 %v437, %v437
  %v470 = vpack.c.b16 %v438, %v438
  %v471 = vpack.c.b16 %v439, %v439
  %v472 = vpack.c.b16 %v440, %v440
  %v473 = vpack.c.b16 %v441, %v441
  %v474 = vpack.c.b16 %v442, %v442
  %v475 = vpack.c.b16 %v443, %v443
  %v476 = vpack.c.b16 %v444, %v444
  %v477 = vpack.c.b16 %v445, %v445
  %v478 = vpack.c.b16 %v446, %v446
  %v479 = vpack.c.b16 %v447, %v447
  %v480 = vpack.c.b16 %v448, %v448
  %v481 = vpack.c.b16 %v449, %v449
  %v482 = vpack.c.b16 %v450, %v450
  %v483 = vpack.c.b16 %v451, %v451
  %v484 = vpack.c.b16 %v452, %v452
  %v485 = vpack.c.b16 %v453, %v453
  %v486 = vpack.c.b16 %v454, %v454
  %v487 = vpack.c.b16 %v455, %v455
  %v488 = vpack.c.b16 %v456, %v456
  %v489 = vpack.c.b16 %v457, %v457
  %v490 = vpack.c.b16 %v458, %v458
  %v491 = vpack.c.b16 %v459, %v459
  %v492 = vpack.c.b16 %v460, %v460
  %v493 = vpack.c.b16 %v461, %v461
  %vm526 = vcmask 257024
  %527 = vst.msk [vmem:[%s3] sm:$0xf] %vm526, %v462
  %528 = vst.msk [vmem:[%s3 + $0x4] sm:$0xf] %vm526, %v463
  %529 = vst.msk [vmem:[%s3 + $0x8] sm:$0xf] %vm526, %v464
  %530 = vst.msk [vmem:[%s3 + $0xc] sm:$0xf] %vm526, %v465
  %531 = vst.msk [vmem:[%s3 + $0x10] sm:$0xf] %vm526, %v466
  %532 = vst.msk [vmem:[%s3 + $0x14] sm:$0xf] %vm526, %v467
  %533 = vst.msk [vmem:[%s3 + $0x18] sm:$0xf] %vm526, %v468
  %534 = vst.msk [vmem:[%s3 + $0x1c] sm:$0xf] %vm526, %v469
  %535 = vst.msk [vmem:[%s3 + $0x20] sm:$0xf] %vm526, %v470
  %536 = vst.msk [vmem:[%s3 + $0x24] sm:$0xf] %vm526, %v471
  %537 = vst.msk [vmem:[%s3 + $0x28] sm:$0xf] %vm526, %v472
  %538 = vst.msk [vmem:[%s3 + $0x2c] sm:$0xf] %vm526, %v473
  %539 = vst.msk [vmem:[%s3 + $0x30] sm:$0xf] %vm526, %v474
  %540 = vst.msk [vmem:[%s3 + $0x34] sm:$0xf] %vm526, %v475
  %541 = vst.msk [vmem:[%s3 + $0x38] sm:$0xf] %vm526, %v476
  %542 = vst.msk [vmem:[%s3 + $0x3c] sm:$0xf] %vm526, %v477
  %543 = vst.msk [vmem:[%s3 + $0x40] sm:$0xf] %vm526, %v478
  %544 = vst.msk [vmem:[%s3 + $0x44] sm:$0xf] %vm526, %v479
  %545 = vst.msk [vmem:[%s3 + $0x48] sm:$0xf] %vm526, %v480
  %546 = vst.msk [vmem:[%s3 + $0x4c] sm:$0xf] %vm526, %v481
  %547 = vst.msk [vmem:[%s3 + $0x50] sm:$0xf] %vm526, %v482
  %548 = vst.msk [vmem:[%s3 + $0x54] sm:$0xf] %vm526, %v483
  %549 = vst.msk [vmem:[%s3 + $0x58] sm:$0xf] %vm526, %v484
  %550 = vst.msk [vmem:[%s3 + $0x5c] sm:$0xf] %vm526, %v485
  %551 = vst.msk [vmem:[%s3 + $0x60] sm:$0xf] %vm526, %v486
  %552 = vst.msk [vmem:[%s3 + $0x64] sm:$0xf] %vm526, %v487
  %553 = vst.msk [vmem:[%s3 + $0x68] sm:$0xf] %vm526, %v488
  %554 = vst.msk [vmem:[%s3 + $0x6c] sm:$0xf] %vm526, %v489
  %555 = vst.msk [vmem:[%s3 + $0x70] sm:$0xf] %vm526, %v490
  %556 = vst.msk [vmem:[%s3 + $0x74] sm:$0xf] %vm526, %v491
  %557 = vst.msk [vmem:[%s3 + $0x78] sm:$0xf] %vm526, %v492
  %558 = vst.msk [vmem:[%s3 + $0x7c] sm:$0xf] %vm526, %v493
  // Predicated region
  $region14: #{gmlp_res_multi_conv35_forward.7} parent=0 // pred_check
    _
  $region15: #{gmlp_res_multi_conv35_forward.7} parent=0 // pred_check_branch
    %560 = sbr.rel (0) target = $region17
  $region16: #{gmlp_res_multi_conv35_forward.7} parent=0 // pred_region
    _
  $region17: #{gmlp_res_multi_conv35_forward.7} parent=0 // pred_fallthru
    _
  // Predicated region
  $region18: #{gmlp_res_multi_conv35_forward.7} parent=0 // pred_check
    _
  $region19: #{gmlp_res_multi_conv35_forward.7} parent=0 // pred_check_branch
    %562 = sbr.rel (0) target = $region21
  $region20: #{gmlp_res_multi_conv35_forward.7} parent=0 // pred_region
    _
  $region21: #{gmlp_res_multi_conv35_forward.7} parent=0 // pred_fallthru
    _

// kernel: gmlp_res_multi_conv35_forward.8
$region0: #{gmlp_res_multi_conv35_forward.8}
  #allocation0 [shape = 'u32[]', space=smem, size = 0x4, offset = 0x4, fixed_abs, tag = 'smem constant byte address 0x4 - core index']
  #allocation1 [shape = 'u32[144,128]{1,0:T(1,128)}', space=vmem, size = 0x12000, scoped, tag = 'internal scratch']
  %s0 = inlined_call_operand.vmem [shape: bf16[512,400], index: 0, kind: input, shape index: {}]
  %s1 = inlined_call_operand.vmem [shape: bf16[400,32], index: 1, kind: input, shape index: {}]
  %s2 = inlined_call_operand.vmem [shape: f32[1,32], index: 2, kind: input, shape index: {}]
  %s3 = inlined_call_operand.vmem [shape: bf16[512,32], index: 3, kind: output, shape index: {}]
  %s4 = sld [smem:[#allocation0]]
  $region22: #{gmlp_res_multi_conv35_forward.8} parent=0
    _
  %s6 = ssub.s32 1, %s4
  %s7 = scalar_select 0, %s6, %s4
  // Predicated region
  $region2: #{gmlp_res_multi_conv35_forward.8} parent=0 // pred_check
    _
  $region3: #{gmlp_res_multi_conv35_forward.8} parent=0 // pred_check_branch
    %9 = sbr.rel (0) target = $region5
  $region4: #{gmlp_res_multi_conv35_forward.8} parent=0 // pred_region
    _
  $region5: #{gmlp_res_multi_conv35_forward.8} parent=0 // pred_fallthru
    _
  // Predicated region
  $region6: #{gmlp_res_multi_conv35_forward.8} parent=0 // pred_check
    _
  $region7: #{gmlp_res_multi_conv35_forward.8} parent=0 // pred_check_branch
    %11 = sbr.rel (0) target = $region9
  $region8: #{gmlp_res_multi_conv35_forward.8} parent=0 // pred_region
    _
  $region9: #{gmlp_res_multi_conv35_forward.8} parent=0 // pred_fallthru
    _
  // Predicated region
  $region10: #{gmlp_res_multi_conv35_forward.8} parent=0 // pred_check
    _
  $region11: #{gmlp_res_multi_conv35_forward.8} parent=0 // pred_check_branch
    %13 = sbr.rel (0) target = $region13
  $region12: #{gmlp_res_multi_conv35_forward.8} parent=0 // pred_region
    _
  $region13: #{gmlp_res_multi_conv35_forward.8} parent=0 // pred_fallthru
    _
  %v15 = vld [vmem:[%s0] sm:$0xff]
  %v16 = vld [vmem:[%s0 + $0x8] sm:$0xff]
  %v17 = vld [vmem:[%s0 + $0x10] sm:$0xff]
  %v18 = vld [vmem:[%s0 + $0x18] sm:$0xff]
  %v19 = vld [vmem:[%s0 + $0x20] sm:$0xff]
  %v20 = vld [vmem:[%s0 + $0x28] sm:$0xff]
  %v21 = vld [vmem:[%s0 + $0x30] sm:$0xff]
  %v22 = vld [vmem:[%s0 + $0x38] sm:$0xff]
  %v23 = vld [vmem:[%s0 + $0x40] sm:$0xff]
  %v24 = vld [vmem:[%s0 + $0x48] sm:$0xff]
  %v25 = vld [vmem:[%s0 + $0x50] sm:$0xff]
  %v26 = vld [vmem:[%s0 + $0x58] sm:$0xff]
  %v27 = vld [vmem:[%s0 + $0x60] sm:$0xff]
  %v28 = vld [vmem:[%s0 + $0x68] sm:$0xff]
  %v29 = vld [vmem:[%s0 + $0x70] sm:$0xff]
  %v30 = vld [vmem:[%s0 + $0x78] sm:$0xff]
  %v31 = vld [vmem:[%s0 + $0x80] sm:$0xff]
  %v32 = vld [vmem:[%s0 + $0x88] sm:$0xff]
  %v33 = vld [vmem:[%s0 + $0x90] sm:$0xff]
  %v34 = vld [vmem:[%s0 + $0x98] sm:$0xff]
  %v35 = vld [vmem:[%s0 + $0xa0] sm:$0xff]
  %v36 = vld [vmem:[%s0 + $0xa8] sm:$0xff]
  %v37 = vld [vmem:[%s0 + $0xb0] sm:$0xff]
  %v38 = vld [vmem:[%s0 + $0xb8] sm:$0xff]
  %v39 = vld [vmem:[%s0 + $0xc0] sm:$0xff]
  %v40 = vld [vmem:[%s0 + $0xc8] sm:$0xff]
  %v41 = vld [vmem:[%s0 + $0xd0] sm:$0xff]
  %v42 = vld [vmem:[%s0 + $0xd8] sm:$0xff]
  %v43 = vld [vmem:[%s0 + $0xe0] sm:$0xff]
  %v44 = vld [vmem:[%s0 + $0xe8] sm:$0xff]
  %v45 = vld [vmem:[%s0 + $0xf0] sm:$0xff]
  %v46 = vld [vmem:[%s0 + $0xf8] sm:$0xff]
  %v47 = vld [vmem:[%s0 + $0x100] sm:$0xff]
  %v48 = vld [vmem:[%s0 + $0x108] sm:$0xff]
  %v49 = vld [vmem:[%s0 + $0x110] sm:$0xff]
  %v50 = vld [vmem:[%s0 + $0x118] sm:$0xff]
  %v51 = vld [vmem:[%s0 + $0x120] sm:$0xff]
  %v52 = vld [vmem:[%s0 + $0x128] sm:$0xff]
  %v53 = vld [vmem:[%s0 + $0x130] sm:$0xff]
  %v54 = vld [vmem:[%s0 + $0x138] sm:$0xff]
  %v55 = vld [vmem:[%s0 + $0x140] sm:$0xff]
  %v56 = vld [vmem:[%s0 + $0x148] sm:$0xff]
  %v57 = vld [vmem:[%s0 + $0x150] sm:$0xff]
  %v58 = vld [vmem:[%s0 + $0x158] sm:$0xff]
  %v59 = vld [vmem:[%s0 + $0x160] sm:$0xff]
  %v60 = vld [vmem:[%s0 + $0x168] sm:$0xff]
  %v61 = vld [vmem:[%s0 + $0x170] sm:$0xff]
  %v62 = vld [vmem:[%s0 + $0x178] sm:$0xff]
  %v63 = vld [vmem:[%s0 + $0x180] sm:$0xff]
  %v64 = vld [vmem:[%s0 + $0x188] sm:$0xff]
  %v65 = vld [vmem:[%s0 + $0x190] sm:$0xff]
  %v66 = vld [vmem:[%s0 + $0x198] sm:$0xff]
  %v67 = vld [vmem:[%s0 + $0x1a0] sm:$0xff]
  %v68 = vld [vmem:[%s0 + $0x1a8] sm:$0xff]
  %v69 = vld [vmem:[%s0 + $0x1b0] sm:$0xff]
  %v70 = vld [vmem:[%s0 + $0x1b8] sm:$0xff]
  %v71 = vld [vmem:[%s0 + $0x1c0] sm:$0xff]
  %v72 = vld [vmem:[%s0 + $0x1c8] sm:$0xff]
  %v73 = vld [vmem:[%s0 + $0x1d0] sm:$0xff]
  %v74 = vld [vmem:[%s0 + $0x1d8] sm:$0xff]
  %v75 = vld [vmem:[%s0 + $0x1e0] sm:$0xff]
  %v76 = vld [vmem:[%s0 + $0x1e8] sm:$0xff]
  %v77 = vld [vmem:[%s0 + $0x1f0] sm:$0xff]
  %v78 = vld [vmem:[%s0 + $0x1f8] sm:$0xff]
  %v79 = vld [vmem:[%s0 + $0x200] sm:$0xff]
  %v80 = vld [vmem:[%s0 + $0x208] sm:$0xff]
  %v81 = vld [vmem:[%s0 + $0x210] sm:$0xff]
  %v82 = vld [vmem:[%s0 + $0x218] sm:$0xff]
  %v83 = vld [vmem:[%s0 + $0x220] sm:$0xff]
  %v84 = vld [vmem:[%s0 + $0x228] sm:$0xff]
  %v85 = vld [vmem:[%s0 + $0x230] sm:$0xff]
  %v86 = vld [vmem:[%s0 + $0x238] sm:$0xff]
  %v87 = vld [vmem:[%s0 + $0x240] sm:$0xff]
  %v88 = vld [vmem:[%s0 + $0x248] sm:$0xff]
  %v89 = vld [vmem:[%s0 + $0x250] sm:$0xff]
  %v90 = vld [vmem:[%s0 + $0x258] sm:$0xff]
  %v91 = vld [vmem:[%s0 + $0x260] sm:$0xff]
  %v92 = vld [vmem:[%s0 + $0x268] sm:$0xff]
  %v93 = vld [vmem:[%s0 + $0x270] sm:$0xff]
  %v94 = vld [vmem:[%s0 + $0x278] sm:$0xff]
  %v95 = vld [vmem:[%s0 + $0x280] sm:$0xff]
  %v96 = vld [vmem:[%s0 + $0x288] sm:$0xff]
  %v97 = vld [vmem:[%s0 + $0x290] sm:$0xff]
  %v98 = vld [vmem:[%s0 + $0x298] sm:$0xff]
  %v99 = vld [vmem:[%s0 + $0x2a0] sm:$0xff]
  %v100 = vld [vmem:[%s0 + $0x2a8] sm:$0xff]
  %v101 = vld [vmem:[%s0 + $0x2b0] sm:$0xff]
  %v102 = vld [vmem:[%s0 + $0x2b8] sm:$0xff]
  %v103 = vld [vmem:[%s0 + $0x2c0] sm:$0xff]
  %v104 = vld [vmem:[%s0 + $0x2c8] sm:$0xff]
  %v105 = vld [vmem:[%s0 + $0x2d0] sm:$0xff]
  %v106 = vld [vmem:[%s0 + $0x2d8] sm:$0xff]
  %v107 = vld [vmem:[%s0 + $0x2e0] sm:$0xff]
  %v108 = vld [vmem:[%s0 + $0x2e8] sm:$0xff]
  %v109 = vld [vmem:[%s0 + $0x2f0] sm:$0xff]
  %v110 = vld [vmem:[%s0 + $0x2f8] sm:$0xff]
  %v111 = vld [vmem:[%s0 + $0x300] sm:$0xff]
  %v112 = vld [vmem:[%s0 + $0x308] sm:$0xff]
  %v113 = vld [vmem:[%s0 + $0x310] sm:$0xff]
  %v114 = vld [vmem:[%s0 + $0x318] sm:$0xff]
  %v115 = vld [vmem:[%s0 + $0x320] sm:$0xff]
  %v116 = vld [vmem:[%s0 + $0x328] sm:$0xff]
  %v117 = vld [vmem:[%s0 + $0x330] sm:$0xff]
  %v118 = vld [vmem:[%s0 + $0x338] sm:$0xff]
  %v119 = vld [vmem:[%s0 + $0x340] sm:$0xff]
  %v120 = vld [vmem:[%s0 + $0x348] sm:$0xff]
  %v121 = vld [vmem:[%s0 + $0x350] sm:$0xff]
  %v122 = vld [vmem:[%s0 + $0x358] sm:$0xff]
  %v123 = vld [vmem:[%s0 + $0x360] sm:$0xff]
  %v124 = vld [vmem:[%s0 + $0x368] sm:$0xff]
  %v125 = vld [vmem:[%s0 + $0x370] sm:$0xff]
  %v126 = vld [vmem:[%s0 + $0x378] sm:$0xff]
  %v127 = vld [vmem:[%s0 + $0x380] sm:$0xff]
  %v128 = vld [vmem:[%s0 + $0x388] sm:$0xff]
  %v129 = vld [vmem:[%s0 + $0x390] sm:$0xff]
  %v130 = vld [vmem:[%s0 + $0x398] sm:$0xff]
  %v131 = vld [vmem:[%s0 + $0x3a0] sm:$0xff]
  %v132 = vld [vmem:[%s0 + $0x3a8] sm:$0xff]
  %v133 = vld [vmem:[%s0 + $0x3b0] sm:$0xff]
  %v134 = vld [vmem:[%s0 + $0x3b8] sm:$0xff]
  %v135 = vld [vmem:[%s0 + $0x3c0] sm:$0xff]
  %v136 = vld [vmem:[%s0 + $0x3c8] sm:$0xff]
  %v137 = vld [vmem:[%s0 + $0x3d0] sm:$0xff]
  %v138 = vld [vmem:[%s0 + $0x3d8] sm:$0xff]
  %v139 = vld [vmem:[%s0 + $0x3e0] sm:$0xff]
  %v140 = vld [vmem:[%s0 + $0x3e8] sm:$0xff]
  %v141 = vld [vmem:[%s0 + $0x3f0] sm:$0xff]
  %v142 = vld [vmem:[%s0 + $0x3f8] sm:$0xff]
  %v143 = vld [vmem:[%s1] sm:$0xf]
  %v144 = vld [vmem:[%s1 + $0x4] sm:$0xf]
  %v145 = vld [vmem:[%s1 + $0x8] sm:$0xf]
  %v146 = vld [vmem:[%s1 + $0xc] sm:$0xf]
  %v147 = vld [vmem:[%s1 + $0x10] sm:$0xf]
  %v148 = vld [vmem:[%s1 + $0x14] sm:$0xf]
  %v149 = vld [vmem:[%s1 + $0x18] sm:$0xf]
  %v150 = vld [vmem:[%s1 + $0x1c] sm:$0xf]
  %v151 = vld [vmem:[%s1 + $0x20] sm:$0xf]
  %v152 = vld [vmem:[%s1 + $0x24] sm:$0xf]
  %v153 = vld [vmem:[%s1 + $0x28] sm:$0xf]
  %v154 = vld [vmem:[%s1 + $0x2c] sm:$0xf]
  %v155 = vld [vmem:[%s1 + $0x30] sm:$0xf]
  %v156 = vld [vmem:[%s1 + $0x34] sm:$0xf]
  %v157 = vld [vmem:[%s1 + $0x38] sm:$0xf]
  %v158 = vld [vmem:[%s1 + $0x3c] sm:$0xf]
  %v159 = vld [vmem:[%s1 + $0x40] sm:$0xf]
  %v160 = vld [vmem:[%s1 + $0x44] sm:$0xf]
  %v161 = vld [vmem:[%s1 + $0x48] sm:$0xf]
  %v162 = vld [vmem:[%s1 + $0x4c] sm:$0xf]
  %v163 = vld [vmem:[%s1 + $0x50] sm:$0xf]
  %v164 = vld [vmem:[%s1 + $0x54] sm:$0xf]
  %v165 = vld [vmem:[%s1 + $0x58] sm:$0xf]
  %v166 = vld [vmem:[%s1 + $0x5c] sm:$0xf]
  %v167 = vld [vmem:[%s1 + $0x60] sm:$0xf]
  %v168 = vld [vmem:[%s1 + $0x64] sm:$0xf]
  %v169 = vld [vmem:[%s1 + $0x68] sm:$0xf]
  %v170 = vld [vmem:[%s1 + $0x6c] sm:$0xf]
  %v171 = vld [vmem:[%s1 + $0x70] sm:$0xf]
  %v172 = vld [vmem:[%s1 + $0x74] sm:$0xf]
  %v173 = vld [vmem:[%s1 + $0x78] sm:$0xf]
  %v174 = vld [vmem:[%s1 + $0x7c] sm:$0xf]
  %v175 = vld [vmem:[%s1 + $0x80] sm:$0xf]
  %v176 = vld [vmem:[%s1 + $0x84] sm:$0xf]
  %v177 = vld [vmem:[%s1 + $0x88] sm:$0xf]
  %v178 = vld [vmem:[%s1 + $0x8c] sm:$0xf]
  %v179 = vld [vmem:[%s1 + $0x90] sm:$0xf]
  %v180 = vld [vmem:[%s1 + $0x94] sm:$0xf]
  %v181 = vld [vmem:[%s1 + $0x98] sm:$0xf]
  %v182 = vld [vmem:[%s1 + $0x9c] sm:$0xf]
  %v183 = vld [vmem:[%s1 + $0xa0] sm:$0xf]
  %v184 = vld [vmem:[%s1 + $0xa4] sm:$0xf]
  %v185 = vld [vmem:[%s1 + $0xa8] sm:$0xf]
  %v186 = vld [vmem:[%s1 + $0xac] sm:$0xf]
  %v187 = vld [vmem:[%s1 + $0xb0] sm:$0xf]
  %v188 = vld [vmem:[%s1 + $0xb4] sm:$0xf]
  %v189 = vld [vmem:[%s1 + $0xb8] sm:$0xf]
  %v190 = vld [vmem:[%s1 + $0xbc] sm:$0xf]
  %v191 = vld [vmem:[%s1 + $0xc0] sm:$0xf]
  %v192 = vld [vmem:[%s1 + $0xc4] sm:$0xf]
  %v193 = vld [vmem:[%s2] sm:$0x1]
  %v195 = vlaneseq
  %v196 = vshrl.u32 %v195, 7
  %v197 = vsub.s32 0, %v196
  %v198 = vrot.slane %v193, %v197
  %v328 = vunpack.c.l.b16 %v15
  %v329 = vunpack.c.h.b16 %v15
  %v330 = vunpack.c.l.b16 %v16
  %v331 = vunpack.c.h.b16 %v16
  %v332 = vunpack.c.l.b16 %v17
  %v333 = vunpack.c.h.b16 %v17
  %v334 = vunpack.c.l.b16 %v18
  %v335 = vunpack.c.h.b16 %v18
  %v336 = vunpack.c.l.b16 %v19
  %v337 = vunpack.c.h.b16 %v19
  %v338 = vunpack.c.l.b16 %v20
  %v339 = vunpack.c.h.b16 %v20
  %v340 = vunpack.c.l.b16 %v21
  %v341 = vunpack.c.h.b16 %v21
  %v342 = vunpack.c.l.b16 %v22
  %v343 = vunpack.c.h.b16 %v22
  %v344 = vunpack.c.l.b16 %v23
  %v345 = vunpack.c.h.b16 %v23
  %v346 = vunpack.c.l.b16 %v24
  %v347 = vunpack.c.h.b16 %v24
  %v348 = vunpack.c.l.b16 %v25
  %v349 = vunpack.c.h.b16 %v25
  %v350 = vunpack.c.l.b16 %v26
  %v351 = vunpack.c.h.b16 %v26
  %v352 = vunpack.c.l.b16 %v27
  %v353 = vunpack.c.h.b16 %v27
  %v354 = vunpack.c.l.b16 %v28
  %v355 = vunpack.c.h.b16 %v28
  %v356 = vunpack.c.l.b16 %v29
  %v357 = vunpack.c.h.b16 %v29
  %v358 = vunpack.c.l.b16 %v30
  %v359 = vunpack.c.h.b16 %v30
  %v360 = vunpack.c.l.b16 %v31
  %v361 = vunpack.c.h.b16 %v31
  %v362 = vunpack.c.l.b16 %v32
  %v363 = vunpack.c.h.b16 %v32
  %v364 = vunpack.c.l.b16 %v33
  %v365 = vunpack.c.h.b16 %v33
  %v366 = vunpack.c.l.b16 %v34
  %v367 = vunpack.c.h.b16 %v34
  %v368 = vunpack.c.l.b16 %v35
  %v369 = vunpack.c.h.b16 %v35
  %v370 = vunpack.c.l.b16 %v36
  %v371 = vunpack.c.h.b16 %v36
  %v372 = vunpack.c.l.b16 %v37
  %v373 = vunpack.c.h.b16 %v37
  %v374 = vunpack.c.l.b16 %v38
  %v375 = vunpack.c.h.b16 %v38
  %v376 = vunpack.c.l.b16 %v39
  %v377 = vunpack.c.h.b16 %v39
  %v378 = vunpack.c.l.b16 %v40
  %v379 = vunpack.c.h.b16 %v40
  %v380 = vunpack.c.l.b16 %v41
  %v381 = vunpack.c.h.b16 %v41
  %v382 = vunpack.c.l.b16 %v42
  %v383 = vunpack.c.h.b16 %v42
  %v384 = vunpack.c.l.b16 %v43
  %v385 = vunpack.c.h.b16 %v43
  %v386 = vunpack.c.l.b16 %v44
  %v387 = vunpack.c.h.b16 %v44
  %v388 = vunpack.c.l.b16 %v45
  %v389 = vunpack.c.h.b16 %v45
  %v390 = vunpack.c.l.b16 %v46
  %v391 = vunpack.c.h.b16 %v46
  %v392 = vunpack.c.l.b16 %v47
  %v393 = vunpack.c.h.b16 %v47
  %v394 = vunpack.c.l.b16 %v48
  %v395 = vunpack.c.h.b16 %v48
  %v396 = vunpack.c.l.b16 %v49
  %v397 = vunpack.c.h.b16 %v49
  %v398 = vunpack.c.l.b16 %v50
  %v399 = vunpack.c.h.b16 %v50
  %v400 = vunpack.c.l.b16 %v51
  %v401 = vunpack.c.h.b16 %v51
  %v402 = vunpack.c.l.b16 %v52
  %v403 = vunpack.c.h.b16 %v52
  %v404 = vunpack.c.l.b16 %v53
  %v405 = vunpack.c.h.b16 %v53
  %v406 = vunpack.c.l.b16 %v54
  %v407 = vunpack.c.h.b16 %v54
  %v408 = vunpack.c.l.b16 %v55
  %v409 = vunpack.c.h.b16 %v55
  %v410 = vunpack.c.l.b16 %v56
  %v411 = vunpack.c.h.b16 %v56
  %v412 = vunpack.c.l.b16 %v57
  %v413 = vunpack.c.h.b16 %v57
  %v414 = vunpack.c.l.b16 %v58
  %v415 = vunpack.c.h.b16 %v58
  %v416 = vunpack.c.l.b16 %v59
  %v417 = vunpack.c.h.b16 %v59
  %v418 = vunpack.c.l.b16 %v60
  %v419 = vunpack.c.h.b16 %v60
  %v420 = vunpack.c.l.b16 %v61
  %v421 = vunpack.c.h.b16 %v61
  %v422 = vunpack.c.l.b16 %v62
  %v423 = vunpack.c.h.b16 %v62
  %v424 = vunpack.c.l.b16 %v63
  %v425 = vunpack.c.h.b16 %v63
  %v426 = vunpack.c.l.b16 %v64
  %v427 = vunpack.c.h.b16 %v64
  %v428 = vunpack.c.l.b16 %v65
  %v429 = vunpack.c.h.b16 %v65
  %v430 = vunpack.c.l.b16 %v66
  %v431 = vunpack.c.h.b16 %v66
  %v432 = vunpack.c.l.b16 %v67
  %v433 = vunpack.c.h.b16 %v67
  %v434 = vunpack.c.l.b16 %v68
  %v435 = vunpack.c.h.b16 %v68
  %v436 = vunpack.c.l.b16 %v69
  %v437 = vunpack.c.h.b16 %v69
  %v438 = vunpack.c.l.b16 %v70
  %v439 = vunpack.c.h.b16 %v70
  %v440 = vunpack.c.l.b16 %v71
  %v441 = vunpack.c.h.b16 %v71
  %v442 = vunpack.c.l.b16 %v72
  %v443 = vunpack.c.h.b16 %v72
  %v444 = vunpack.c.l.b16 %v73
  %v445 = vunpack.c.h.b16 %v73
  %v446 = vunpack.c.l.b16 %v74
  %v447 = vunpack.c.h.b16 %v74
  %v448 = vunpack.c.l.b16 %v75
  %v449 = vunpack.c.h.b16 %v75
  %v450 = vunpack.c.l.b16 %v76
  %v451 = vunpack.c.h.b16 %v76
  %v452 = vunpack.c.l.b16 %v77
  %v453 = vunpack.c.h.b16 %v77
  %v454 = vunpack.c.l.b16 %v78
  %v455 = vunpack.c.h.b16 %v78
  %v456 = vunpack.c.l.b16 %v79
  %v457 = vunpack.c.h.b16 %v79
  %v458 = vunpack.c.l.b16 %v80
  %v459 = vunpack.c.h.b16 %v80
  %v460 = vunpack.c.l.b16 %v81
  %v461 = vunpack.c.h.b16 %v81
  %v462 = vunpack.c.l.b16 %v82
  %v463 = vunpack.c.h.b16 %v82
  %v464 = vunpack.c.l.b16 %v83
  %v465 = vunpack.c.h.b16 %v83
  %v466 = vunpack.c.l.b16 %v84
  %v467 = vunpack.c.h.b16 %v84
  %v468 = vunpack.c.l.b16 %v85
  %v469 = vunpack.c.h.b16 %v85
  %v470 = vunpack.c.l.b16 %v86
  %v471 = vunpack.c.h.b16 %v86
  %v472 = vunpack.c.l.b16 %v87
  %v473 = vunpack.c.h.b16 %v87
  %v474 = vunpack.c.l.b16 %v88
  %v475 = vunpack.c.h.b16 %v88
  %v476 = vunpack.c.l.b16 %v89
  %v477 = vunpack.c.h.b16 %v89
  %v478 = vunpack.c.l.b16 %v90
  %v479 = vunpack.c.h.b16 %v90
  %v480 = vunpack.c.l.b16 %v91
  %v481 = vunpack.c.h.b16 %v91
  %v482 = vunpack.c.l.b16 %v92
  %v483 = vunpack.c.h.b16 %v92
  %v484 = vunpack.c.l.b16 %v93
  %v485 = vunpack.c.h.b16 %v93
  %v486 = vunpack.c.l.b16 %v94
  %v487 = vunpack.c.h.b16 %v94
  %v488 = vunpack.c.l.b16 %v95
  %v489 = vunpack.c.h.b16 %v95
  %v490 = vunpack.c.l.b16 %v96
  %v491 = vunpack.c.h.b16 %v96
  %v492 = vunpack.c.l.b16 %v97
  %v493 = vunpack.c.h.b16 %v97
  %v494 = vunpack.c.l.b16 %v98
  %v495 = vunpack.c.h.b16 %v98
  %v496 = vunpack.c.l.b16 %v99
  %v497 = vunpack.c.h.b16 %v99
  %v498 = vunpack.c.l.b16 %v100
  %v499 = vunpack.c.h.b16 %v100
  %v500 = vunpack.c.l.b16 %v101
  %v501 = vunpack.c.h.b16 %v101
  %v502 = vunpack.c.l.b16 %v102
  %v503 = vunpack.c.h.b16 %v102
  %v504 = vunpack.c.l.b16 %v103
  %v505 = vunpack.c.h.b16 %v103
  %v506 = vunpack.c.l.b16 %v104
  %v507 = vunpack.c.h.b16 %v104
  %v508 = vunpack.c.l.b16 %v105
  %v509 = vunpack.c.h.b16 %v105
  %v510 = vunpack.c.l.b16 %v106
  %v511 = vunpack.c.h.b16 %v106
  %v512 = vunpack.c.l.b16 %v107
  %v513 = vunpack.c.h.b16 %v107
  %v514 = vunpack.c.l.b16 %v108
  %v515 = vunpack.c.h.b16 %v108
  %v516 = vunpack.c.l.b16 %v109
  %v517 = vunpack.c.h.b16 %v109
  %v518 = vunpack.c.l.b16 %v110
  %v519 = vunpack.c.h.b16 %v110
  %v520 = vunpack.c.l.b16 %v111
  %v521 = vunpack.c.h.b16 %v111
  %v522 = vunpack.c.l.b16 %v112
  %v523 = vunpack.c.h.b16 %v112
  %v524 = vunpack.c.l.b16 %v113
  %v525 = vunpack.c.h.b16 %v113
  %v526 = vunpack.c.l.b16 %v114
  %v527 = vunpack.c.h.b16 %v114
  %v528 = vunpack.c.l.b16 %v115
  %v529 = vunpack.c.h.b16 %v115
  %v530 = vunpack.c.l.b16 %v116
  %v531 = vunpack.c.h.b16 %v116
  %v532 = vunpack.c.l.b16 %v117
  %v533 = vunpack.c.h.b16 %v117
  %v534 = vunpack.c.l.b16 %v118
  %v535 = vunpack.c.h.b16 %v118
  %v536 = vunpack.c.l.b16 %v119
  %v537 = vunpack.c.h.b16 %v119
  %v538 = vunpack.c.l.b16 %v120
  %v539 = vunpack.c.h.b16 %v120
  %v540 = vunpack.c.l.b16 %v121
  %v541 = vunpack.c.h.b16 %v121
  %v542 = vunpack.c.l.b16 %v122
  %v543 = vunpack.c.h.b16 %v122
  %v544 = vunpack.c.l.b16 %v123
  %v545 = vunpack.c.h.b16 %v123
  %v546 = vunpack.c.l.b16 %v124
  %v547 = vunpack.c.h.b16 %v124
  %v548 = vunpack.c.l.b16 %v125
  %v549 = vunpack.c.h.b16 %v125
  %v550 = vunpack.c.l.b16 %v126
  %v551 = vunpack.c.h.b16 %v126
  %v552 = vunpack.c.l.b16 %v127
  %v553 = vunpack.c.h.b16 %v127
  %v554 = vunpack.c.l.b16 %v128
  %v555 = vunpack.c.h.b16 %v128
  %v556 = vunpack.c.l.b16 %v129
  %v557 = vunpack.c.h.b16 %v129
  %v558 = vunpack.c.l.b16 %v130
  %v559 = vunpack.c.h.b16 %v130
  %v560 = vunpack.c.l.b16 %v131
  %v561 = vunpack.c.h.b16 %v131
  %v562 = vunpack.c.l.b16 %v132
  %v563 = vunpack.c.h.b16 %v132
  %v564 = vunpack.c.l.b16 %v133
  %v565 = vunpack.c.h.b16 %v133
  %v566 = vunpack.c.l.b16 %v134
  %v567 = vunpack.c.h.b16 %v134
  %v568 = vunpack.c.l.b16 %v135
  %v569 = vunpack.c.h.b16 %v135
  %v570 = vunpack.c.l.b16 %v136
  %v571 = vunpack.c.h.b16 %v136
  %v572 = vunpack.c.l.b16 %v137
  %v573 = vunpack.c.h.b16 %v137
  %v574 = vunpack.c.l.b16 %v138
  %v575 = vunpack.c.h.b16 %v138
  %v576 = vunpack.c.l.b16 %v139
  %v577 = vunpack.c.h.b16 %v139
  %v578 = vunpack.c.l.b16 %v140
  %v579 = vunpack.c.h.b16 %v140
  %v580 = vunpack.c.l.b16 %v141
  %v581 = vunpack.c.h.b16 %v141
  %v582 = vunpack.c.l.b16 %v142
  %v583 = vunpack.c.h.b16 %v142
  %v584 = vpack.c.b16 %v332, %v328
  %v585 = vpack.c.b16 %v333, %v329
  %v586 = vpack.c.b16 %v334, %v330
  %v587 = vpack.c.b16 %v335, %v331
  %v588 = vpack.c.b16 %v340, %v336
  %v589 = vpack.c.b16 %v341, %v337
  %v590 = vpack.c.b16 %v342, %v338
  %v591 = vpack.c.b16 %v343, %v339
  %v592 = vpack.c.b16 %v348, %v344
  %v593 = vpack.c.b16 %v349, %v345
  %v594 = vpack.c.b16 %v350, %v346
  %v595 = vpack.c.b16 %v351, %v347
  %v596 = vpack.c.b16 %v356, %v352
  %v597 = vpack.c.b16 %v357, %v353
  %v598 = vpack.c.b16 %v358, %v354
  %v599 = vpack.c.b16 %v359, %v355
  %v600 = vpack.c.b16 %v364, %v360
  %v601 = vpack.c.b16 %v365, %v361
  %v602 = vpack.c.b16 %v366, %v362
  %v603 = vpack.c.b16 %v367, %v363
  %v604 = vpack.c.b16 %v372, %v368
  %v605 = vpack.c.b16 %v373, %v369
  %v606 = vpack.c.b16 %v374, %v370
  %v607 = vpack.c.b16 %v375, %v371
  %v608 = vpack.c.b16 %v380, %v376
  %v609 = vpack.c.b16 %v381, %v377
  %v610 = vpack.c.b16 %v382, %v378
  %v611 = vpack.c.b16 %v383, %v379
  %v612 = vpack.c.b16 %v388, %v384
  %v613 = vpack.c.b16 %v389, %v385
  %v614 = vpack.c.b16 %v390, %v386
  %v615 = vpack.c.b16 %v391, %v387
  %v616 = vpack.c.b16 %v396, %v392
  %v617 = vpack.c.b16 %v397, %v393
  %v618 = vpack.c.b16 %v398, %v394
  %v619 = vpack.c.b16 %v399, %v395
  %v620 = vpack.c.b16 %v404, %v400
  %v621 = vpack.c.b16 %v405, %v401
  %v622 = vpack.c.b16 %v406, %v402
  %v623 = vpack.c.b16 %v407, %v403
  %v624 = vpack.c.b16 %v412, %v408
  %v625 = vpack.c.b16 %v413, %v409
  %v626 = vpack.c.b16 %v414, %v410
  %v627 = vpack.c.b16 %v415, %v411
  %v628 = vpack.c.b16 %v420, %v416
  %v629 = vpack.c.b16 %v421, %v417
  %v630 = vpack.c.b16 %v422, %v418
  %v631 = vpack.c.b16 %v423, %v419
  %v632 = vpack.c.b16 %v428, %v424
  %v633 = vpack.c.b16 %v429, %v425
  %v634 = vpack.c.b16 %v430, %v426
  %v635 = vpack.c.b16 %v431, %v427
  %v636 = vpack.c.b16 %v436, %v432
  %v637 = vpack.c.b16 %v437, %v433
  %v638 = vpack.c.b16 %v438, %v434
  %v639 = vpack.c.b16 %v439, %v435
  %v640 = vpack.c.b16 %v444, %v440
  %v641 = vpack.c.b16 %v445, %v441
  %v642 = vpack.c.b16 %v446, %v442
  %v643 = vpack.c.b16 %v447, %v443
  %v644 = vpack.c.b16 %v452, %v448
  %v645 = vpack.c.b16 %v453, %v449
  %v646 = vpack.c.b16 %v454, %v450
  %v647 = vpack.c.b16 %v455, %v451
  %v648 = vpack.c.b16 %v460, %v456
  %v649 = vpack.c.b16 %v461, %v457
  %v650 = vpack.c.b16 %v462, %v458
  %v651 = vpack.c.b16 %v463, %v459
  %v652 = vpack.c.b16 %v468, %v464
  %v653 = vpack.c.b16 %v469, %v465
  %v654 = vpack.c.b16 %v470, %v466
  %v655 = vpack.c.b16 %v471, %v467
  %v656 = vpack.c.b16 %v476, %v472
  %v657 = vpack.c.b16 %v477, %v473
  %v658 = vpack.c.b16 %v478, %v474
  %v659 = vpack.c.b16 %v479, %v475
  %v660 = vpack.c.b16 %v484, %v480
  %v661 = vpack.c.b16 %v485, %v481
  %v662 = vpack.c.b16 %v486, %v482
  %v663 = vpack.c.b16 %v487, %v483
  %v664 = vpack.c.b16 %v492, %v488
  %v665 = vpack.c.b16 %v493, %v489
  %v666 = vpack.c.b16 %v494, %v490
  %v667 = vpack.c.b16 %v495, %v491
  %v668 = vpack.c.b16 %v500, %v496
  %v669 = vpack.c.b16 %v501, %v497
  %v670 = vpack.c.b16 %v502, %v498
  %v671 = vpack.c.b16 %v503, %v499
  %v672 = vpack.c.b16 %v508, %v504
  %v673 = vpack.c.b16 %v509, %v505
  %v674 = vpack.c.b16 %v510, %v506
  %v675 = vpack.c.b16 %v511, %v507
  %v676 = vpack.c.b16 %v516, %v512
  %v677 = vpack.c.b16 %v517, %v513
  %v678 = vpack.c.b16 %v518, %v514
  %v679 = vpack.c.b16 %v519, %v515
  %v680 = vpack.c.b16 %v524, %v520
  %v681 = vpack.c.b16 %v525, %v521
  %v682 = vpack.c.b16 %v526, %v522
  %v683 = vpack.c.b16 %v527, %v523
  %v684 = vpack.c.b16 %v532, %v528
  %v685 = vpack.c.b16 %v533, %v529
  %v686 = vpack.c.b16 %v534, %v530
  %v687 = vpack.c.b16 %v535, %v531
  %v688 = vpack.c.b16 %v540, %v536
  %v689 = vpack.c.b16 %v541, %v537
  %v690 = vpack.c.b16 %v542, %v538
  %v691 = vpack.c.b16 %v543, %v539
  %v692 = vpack.c.b16 %v548, %v544
  %v693 = vpack.c.b16 %v549, %v545
  %v694 = vpack.c.b16 %v550, %v546
  %v695 = vpack.c.b16 %v551, %v547
  %v696 = vpack.c.b16 %v556, %v552
  %v697 = vpack.c.b16 %v557, %v553
  %v698 = vpack.c.b16 %v558, %v554
  %v699 = vpack.c.b16 %v559, %v555
  %v700 = vpack.c.b16 %v564, %v560
  %v701 = vpack.c.b16 %v565, %v561
  %v702 = vpack.c.b16 %v566, %v562
  %v703 = vpack.c.b16 %v567, %v563
  %v704 = vpack.c.b16 %v572, %v568
  %v705 = vpack.c.b16 %v573, %v569
  %v706 = vpack.c.b16 %v574, %v570
  %v707 = vpack.c.b16 %v575, %v571
  %v708 = vpack.c.b16 %v580, %v576
  %v709 = vpack.c.b16 %v581, %v577
  %v710 = vpack.c.b16 %v582, %v578
  %v711 = vpack.c.b16 %v583, %v579
  %v858 = vunpack.c.l.b16 %v143
  %v859 = vunpack.c.l.b16 %v144
  %v860 = vunpack.c.l.b16 %v145
  %v861 = vunpack.c.l.b16 %v146
  %v862 = vunpack.c.l.b16 %v147
  %v863 = vunpack.c.l.b16 %v148
  %v864 = vunpack.c.l.b16 %v149
  %v865 = vunpack.c.l.b16 %v150
  %v866 = vunpack.c.l.b16 %v151
  %v867 = vunpack.c.l.b16 %v152
  %v868 = vunpack.c.l.b16 %v153
  %v869 = vunpack.c.l.b16 %v154
  %v870 = vunpack.c.l.b16 %v155
  %v871 = vunpack.c.l.b16 %v156
  %v872 = vunpack.c.l.b16 %v157
  %v873 = vunpack.c.l.b16 %v158
  %v874 = vunpack.c.l.b16 %v159
  %v875 = vunpack.c.l.b16 %v160
  %v876 = vunpack.c.l.b16 %v161
  %v877 = vunpack.c.l.b16 %v162
  %v878 = vunpack.c.l.b16 %v163
  %v879 = vunpack.c.l.b16 %v164
  %v880 = vunpack.c.l.b16 %v165
  %v881 = vunpack.c.l.b16 %v166
  %v882 = vunpack.c.l.b16 %v167
  %v883 = vunpack.c.l.b16 %v168
  %v884 = vunpack.c.l.b16 %v169
  %v885 = vunpack.c.l.b16 %v170
  %v886 = vunpack.c.l.b16 %v171
  %v887 = vunpack.c.l.b16 %v172
  %v888 = vunpack.c.l.b16 %v173
  %v889 = vunpack.c.l.b16 %v174
  %v890 = vunpack.c.l.b16 %v175
  %v891 = vunpack.c.l.b16 %v176
  %v892 = vunpack.c.l.b16 %v177
  %v893 = vunpack.c.l.b16 %v178
  %v894 = vunpack.c.l.b16 %v179
  %v895 = vunpack.c.l.b16 %v180
  %v896 = vunpack.c.l.b16 %v181
  %v897 = vunpack.c.l.b16 %v182
  %v898 = vunpack.c.l.b16 %v183
  %v899 = vunpack.c.l.b16 %v184
  %v900 = vunpack.c.l.b16 %v185
  %v901 = vunpack.c.l.b16 %v186
  %v902 = vunpack.c.l.b16 %v187
  %v903 = vunpack.c.l.b16 %v188
  %v904 = vunpack.c.l.b16 %v189
  %v905 = vunpack.c.l.b16 %v190
  %v906 = vunpack.c.l.b16 %v191
  %v907 = vunpack.c.l.b16 %v192
  %v908 = vpack.c.b16 %v859, %v858
  %v909 = vpack.c.b16 %v861, %v860
  %v910 = vpack.c.b16 %v863, %v862
  %v911 = vpack.c.b16 %v865, %v864
  %v912 = vpack.c.b16 %v867, %v866
  %v913 = vpack.c.b16 %v869, %v868
  %v914 = vpack.c.b16 %v871, %v870
  %v915 = vpack.c.b16 %v873, %v872
  %v916 = vpack.c.b16 %v875, %v874
  %v917 = vpack.c.b16 %v877, %v876
  %v918 = vpack.c.b16 %v879, %v878
  %v919 = vpack.c.b16 %v881, %v880
  %v920 = vpack.c.b16 %v883, %v882
  %v921 = vpack.c.b16 %v885, %v884
  %v922 = vpack.c.b16 %v887, %v886
  %v923 = vpack.c.b16 %v889, %v888
  %v924 = vpack.c.b16 %v891, %v890
  %v925 = vpack.c.b16 %v893, %v892
  %v926 = vpack.c.b16 %v895, %v894
  %v927 = vpack.c.b16 %v897, %v896
  %v928 = vpack.c.b16 %v899, %v898
  %v929 = vpack.c.b16 %v901, %v900
  %v930 = vpack.c.b16 %v903, %v902
  %v931 = vpack.c.b16 %v905, %v904
  %v932 = vpack.c.b16 %v907, %v906
  %vm958 = vcmask 130048
  %v960 = vsel %vm958, %v587, 0
  %v963 = vsel %vm958, %v591, 0
  %v966 = vsel %vm958, %v595, 0
  %v969 = vsel %vm958, %v599, 0
  %v972 = vsel %vm958, %v603, 0
  %v975 = vsel %vm958, %v607, 0
  %v978 = vsel %vm958, %v611, 0
  %v981 = vsel %vm958, %v615, 0
  %v984 = vsel %vm958, %v619, 0
  %v987 = vsel %vm958, %v623, 0
  %v990 = vsel %vm958, %v627, 0
  %v993 = vsel %vm958, %v631, 0
  %v996 = vsel %vm958, %v635, 0
  %v999 = vsel %vm958, %v639, 0
  %v1002 = vsel %vm958, %v643, 0
  %v1005 = vsel %vm958, %v647, 0
  %v1008 = vsel %vm958, %v651, 0
  %v1011 = vsel %vm958, %v655, 0
  %v1014 = vsel %vm958, %v659, 0
  %v1017 = vsel %vm958, %v663, 0
  %v1020 = vsel %vm958, %v667, 0
  %v1023 = vsel %vm958, %v671, 0
  %v1026 = vsel %vm958, %v675, 0
  %v1029 = vsel %vm958, %v679, 0
  %v1032 = vsel %vm958, %v683, 0
  %v1035 = vsel %vm958, %v687, 0
  %v1038 = vsel %vm958, %v691, 0
  %v1041 = vsel %vm958, %v695, 0
  %v1044 = vsel %vm958, %v699, 0
  %v1047 = vsel %vm958, %v703, 0
  %v1050 = vsel %vm958, %v707, 0
  %v1053 = vsel %vm958, %v711, 0
  %1055 = vmatprep.subr.bf16.mxu0 0
  %1056 = vmatpush1.bf16.msra.mxu0 %v915
  %1057 = vmatprep.subr.bf16.mxu0 0
  %1058 = vmatpush1.bf16.msra.mxu0 %v914
  %1059 = vmatprep.subr.bf16.mxu0 0
  %1060 = vmatpush1.bf16.msra.mxu0 %v913
  %1061 = vmatprep.subr.bf16.mxu0 0
  %1062 = vmatpush1.bf16.msra.mxu0 %v912
  %1063 = vmatprep.subr.bf16.mxu0 0
  %1064 = vmatpush1.bf16.msra.mxu0 %v911
  %1065 = vmatprep.subr.bf16.mxu0 0
  %1066 = vmatpush1.bf16.msra.mxu0 %v910
  %1067 = vmatprep.subr.bf16.mxu0 0
  %1068 = vmatpush1.bf16.msra.mxu0 %v909
  %1069 = vmatprep.subr.bf16.mxu0 0
  %1070 = vmatpush1.bf16.msra.mxu0 %v908
  %1071 = vmatprep.subr.bf16.mxu0 0
  %1072 = vmatpush2.bf16.msra.mxu0 %v923
  %1073 = vmatprep.subr.bf16.mxu0 0
  %1074 = vmatpush2.bf16.msra.mxu0 %v922
  %1075 = vmatprep.subr.bf16.mxu0 0
  %1076 = vmatpush2.bf16.msra.mxu0 %v921
  %1077 = vmatprep.subr.bf16.mxu0 0
  %1078 = vmatpush2.bf16.msra.mxu0 %v920
  %1079 = vmatprep.subr.bf16.mxu0 0
  %1080 = vmatpush2.bf16.msra.mxu0 %v919
  %1081 = vmatprep.subr.bf16.mxu0 0
  %1082 = vmatpush2.bf16.msra.mxu0 %v918
  %1083 = vmatprep.subr.bf16.mxu0 0
  %1084 = vmatpush2.bf16.msra.mxu0 %v917
  %1085 = vmatprep.subr.bf16.mxu0 0
  %1086 = vmatpush2.bf16.msra.mxu0 %v916
  %1087 = vmatprep.mubr.bf16.mxu0 %v585
  %1088 = vmatmul.mubr.bf16.gmra.mxu0 %v584
  %v1089 = vpop.f32.mrf.mxu0
  %v1090 = vadd.f32 %v198, %v1089
  %v1091 = vpop.f32.mrf.mxu0
  %v1092 = vpop.f32.mrf.mxu0
  %v1093 = vadd.f32 %v198, %v1092
  %v1094 = vpop.f32.mrf.mxu0
  %1095 = vmatprep.mubr.bf16.mxu0 %v589
  %1096 = vmatmul.mubr.bf16.gmra.mxu0 %v588
  %v1097 = vpop.f32.mrf.mxu0
  %v1098 = vadd.f32 %v198, %v1097
  %v1099 = vpop.f32.mrf.mxu0
  %v1100 = vpop.f32.mrf.mxu0
  %v1101 = vadd.f32 %v198, %v1100
  %v1102 = vpop.f32.mrf.mxu0
  %1103 = vmatprep.mubr.bf16.mxu0 %v593
  %1104 = vmatmul.mubr.bf16.gmra.mxu0 %v592
  %v1105 = vpop.f32.mrf.mxu0
  %v1106 = vadd.f32 %v198, %v1105
  %v1107 = vpop.f32.mrf.mxu0
  %v1108 = vpop.f32.mrf.mxu0
  %v1109 = vadd.f32 %v198, %v1108
  %v1110 = vpop.f32.mrf.mxu0
  %1111 = vmatprep.mubr.bf16.mxu0 %v597
  %1112 = vmatmul.mubr.bf16.gmra.mxu0 %v596
  %v1113 = vpop.f32.mrf.mxu0
  %v1114 = vadd.f32 %v198, %v1113
  %v1115 = vpop.f32.mrf.mxu0
  %v1116 = vpop.f32.mrf.mxu0
  %v1117 = vadd.f32 %v198, %v1116
  %v1118 = vpop.f32.mrf.mxu0
  %1119 = vmatprep.mubr.bf16.mxu0 %v601
  %1120 = vmatmul.mubr.bf16.gmra.mxu0 %v600
  %v1121 = vpop.f32.mrf.mxu0
  %v1122 = vadd.f32 %v198, %v1121
  %v1123 = vpop.f32.mrf.mxu0
  %v1124 = vpop.f32.mrf.mxu0
  %v1125 = vadd.f32 %v198, %v1124
  %v1126 = vpop.f32.mrf.mxu0
  %1127 = vmatprep.mubr.bf16.mxu0 %v605
  %1128 = vmatmul.mubr.bf16.gmra.mxu0 %v604
  %v1129 = vpop.f32.mrf.mxu0
  %v1130 = vadd.f32 %v198, %v1129
  %v1131 = vpop.f32.mrf.mxu0
  %v1132 = vpop.f32.mrf.mxu0
  %v1133 = vadd.f32 %v198, %v1132
  %v1134 = vpop.f32.mrf.mxu0
  %1135 = vmatprep.mubr.bf16.mxu0 %v609
  %1136 = vmatmul.mubr.bf16.gmra.mxu0 %v608
  %v1137 = vpop.f32.mrf.mxu0
  %v1138 = vadd.f32 %v198, %v1137
  %v1139 = vpop.f32.mrf.mxu0
  %v1140 = vpop.f32.mrf.mxu0
  %v1141 = vadd.f32 %v198, %v1140
  %v1142 = vpop.f32.mrf.mxu0
  %1143 = vmatprep.mubr.bf16.mxu0 %v613
  %1144 = vmatmul.mubr.bf16.gmra.mxu0 %v612
  %v1145 = vpop.f32.mrf.mxu0
  %v1146 = vadd.f32 %v198, %v1145
  %v1147 = vpop.f32.mrf.mxu0
  %v1148 = vpop.f32.mrf.mxu0
  %v1149 = vadd.f32 %v198, %v1148
  %v1150 = vpop.f32.mrf.mxu0
  %1151 = vmatprep.mubr.bf16.mxu0 %v617
  %1152 = vmatmul.mubr.bf16.gmra.mxu0 %v616
  %v1153 = vpop.f32.mrf.mxu0
  %v1154 = vadd.f32 %v198, %v1153
  %v1155 = vpop.f32.mrf.mxu0
  %v1156 = vpop.f32.mrf.mxu0
  %v1157 = vadd.f32 %v198, %v1156
  %v1158 = vpop.f32.mrf.mxu0
  %1159 = vmatprep.mubr.bf16.mxu0 %v621
  %1160 = vmatmul.mubr.bf16.gmra.mxu0 %v620
  %v1161 = vpop.f32.mrf.mxu0
  %v1162 = vadd.f32 %v198, %v1161
  %v1163 = vpop.f32.mrf.mxu0
  %v1164 = vpop.f32.mrf.mxu0
  %v1165 = vadd.f32 %v198, %v1164
  %v1166 = vpop.f32.mrf.mxu0
  %1167 = vmatprep.mubr.bf16.mxu0 %v625
  %1168 = vmatmul.mubr.bf16.gmra.mxu0 %v624
  %v1169 = vpop.f32.mrf.mxu0
  %v1170 = vadd.f32 %v198, %v1169
  %v1171 = vpop.f32.mrf.mxu0
  %v1172 = vpop.f32.mrf.mxu0
  %v1173 = vadd.f32 %v198, %v1172
  %v1174 = vpop.f32.mrf.mxu0
  %1175 = vmatprep.mubr.bf16.mxu0 %v629
  %1176 = vmatmul.mubr.bf16.gmra.mxu0 %v628
  %v1177 = vpop.f32.mrf.mxu0
  %v1178 = vadd.f32 %v198, %v1177
  %v1179 = vpop.f32.mrf.mxu0
  %v1180 = vpop.f32.mrf.mxu0
  %v1181 = vadd.f32 %v198, %v1180
  %v1182 = vpop.f32.mrf.mxu0
  %1183 = vmatprep.mubr.bf16.mxu0 %v633
  %1184 = vmatmul.mubr.bf16.gmra.mxu0 %v632
  %v1185 = vpop.f32.mrf.mxu0
  %v1186 = vadd.f32 %v198, %v1185
  %v1187 = vpop.f32.mrf.mxu0
  %v1188 = vpop.f32.mrf.mxu0
  %v1189 = vadd.f32 %v198, %v1188
  %v1190 = vpop.f32.mrf.mxu0
  %1191 = vmatprep.mubr.bf16.mxu0 %v637
  %1192 = vmatmul.mubr.bf16.gmra.mxu0 %v636
  %v1193 = vpop.f32.mrf.mxu0
  %v1194 = vadd.f32 %v198, %v1193
  %v1195 = vpop.f32.mrf.mxu0
  %v1196 = vpop.f32.mrf.mxu0
  %v1197 = vadd.f32 %v198, %v1196
  %v1198 = vpop.f32.mrf.mxu0
  %1199 = vmatprep.mubr.bf16.mxu0 %v641
  %1200 = vmatmul.mubr.bf16.gmra.mxu0 %v640
  %v1201 = vpop.f32.mrf.mxu0
  %v1202 = vadd.f32 %v198, %v1201
  %v1203 = vpop.f32.mrf.mxu0
  %v1204 = vpop.f32.mrf.mxu0
  %v1205 = vadd.f32 %v198, %v1204
  %v1206 = vpop.f32.mrf.mxu0
  %1207 = vmatprep.mubr.bf16.mxu0 %v645
  %1208 = vmatmul.mubr.bf16.gmra.mxu0 %v644
  %v1209 = vpop.f32.mrf.mxu0
  %v1210 = vadd.f32 %v198, %v1209
  %v1211 = vpop.f32.mrf.mxu0
  %v1212 = vpop.f32.mrf.mxu0
  %v1213 = vadd.f32 %v198, %v1212
  %v1214 = vpop.f32.mrf.mxu0
  %1215 = vmatprep.mubr.bf16.mxu0 %v649
  %1216 = vmatmul.mubr.bf16.gmra.mxu0 %v648
  %v1217 = vpop.f32.mrf.mxu0
  %v1218 = vadd.f32 %v198, %v1217
  %v1219 = vpop.f32.mrf.mxu0
  %v1220 = vpop.f32.mrf.mxu0
  %v1221 = vadd.f32 %v198, %v1220
  %v1222 = vpop.f32.mrf.mxu0
  %1223 = vmatprep.mubr.bf16.mxu0 %v653
  %1224 = vmatmul.mubr.bf16.gmra.mxu0 %v652
  %v1225 = vpop.f32.mrf.mxu0
  %v1226 = vadd.f32 %v198, %v1225
  %v1227 = vpop.f32.mrf.mxu0
  %v1228 = vpop.f32.mrf.mxu0
  %v1229 = vadd.f32 %v198, %v1228
  %v1230 = vpop.f32.mrf.mxu0
  %1231 = vmatprep.mubr.bf16.mxu0 %v657
  %1232 = vmatmul.mubr.bf16.gmra.mxu0 %v656
  %v1233 = vpop.f32.mrf.mxu0
  %v1234 = vadd.f32 %v198, %v1233
  %v1235 = vpop.f32.mrf.mxu0
  %v1236 = vpop.f32.mrf.mxu0
  %v1237 = vadd.f32 %v198, %v1236
  %v1238 = vpop.f32.mrf.mxu0
  %1239 = vmatprep.mubr.bf16.mxu0 %v661
  %1240 = vmatmul.mubr.bf16.gmra.mxu0 %v660
  %v1241 = vpop.f32.mrf.mxu0
  %v1242 = vadd.f32 %v198, %v1241
  %v1243 = vpop.f32.mrf.mxu0
  %v1244 = vpop.f32.mrf.mxu0
  %v1245 = vadd.f32 %v198, %v1244
  %v1246 = vpop.f32.mrf.mxu0
  %1247 = vmatprep.mubr.bf16.mxu0 %v665
  %1248 = vmatmul.mubr.bf16.gmra.mxu0 %v664
  %v1249 = vpop.f32.mrf.mxu0
  %v1250 = vadd.f32 %v198, %v1249
  %v1251 = vpop.f32.mrf.mxu0
  %v1252 = vpop.f32.mrf.mxu0
  %v1253 = vadd.f32 %v198, %v1252
  %v1254 = vpop.f32.mrf.mxu0
  %1255 = vmatprep.mubr.bf16.mxu0 %v669
  %1256 = vmatmul.mubr.bf16.gmra.mxu0 %v668
  %v1257 = vpop.f32.mrf.mxu0
  %v1258 = vadd.f32 %v198, %v1257
  %v1259 = vpop.f32.mrf.mxu0
  %v1260 = vpop.f32.mrf.mxu0
  %v1261 = vadd.f32 %v198, %v1260
  %v1262 = vpop.f32.mrf.mxu0
  %1263 = vmatprep.mubr.bf16.mxu0 %v673
  %1264 = vmatmul.mubr.bf16.gmra.mxu0 %v672
  %v1265 = vpop.f32.mrf.mxu0
  %v1266 = vadd.f32 %v198, %v1265
  %v1267 = vpop.f32.mrf.mxu0
  %v1268 = vpop.f32.mrf.mxu0
  %v1269 = vadd.f32 %v198, %v1268
  %v1270 = vpop.f32.mrf.mxu0
  %1271 = vmatprep.mubr.bf16.mxu0 %v677
  %1272 = vmatmul.mubr.bf16.gmra.mxu0 %v676
  %v1273 = vpop.f32.mrf.mxu0
  %v1274 = vadd.f32 %v198, %v1273
  %v1275 = vpop.f32.mrf.mxu0
  %v1276 = vpop.f32.mrf.mxu0
  %v1277 = vadd.f32 %v198, %v1276
  %v1278 = vpop.f32.mrf.mxu0
  %1279 = vmatprep.mubr.bf16.mxu0 %v681
  %1280 = vmatmul.mubr.bf16.gmra.mxu0 %v680
  %v1281 = vpop.f32.mrf.mxu0
  %v1282 = vadd.f32 %v198, %v1281
  %v1283 = vpop.f32.mrf.mxu0
  %v1284 = vpop.f32.mrf.mxu0
  %v1285 = vadd.f32 %v198, %v1284
  %v1286 = vpop.f32.mrf.mxu0
  %1287 = vmatprep.mubr.bf16.mxu0 %v685
  %1288 = vmatmul.mubr.bf16.gmra.mxu0 %v684
  %v1289 = vpop.f32.mrf.mxu0
  %v1290 = vadd.f32 %v198, %v1289
  %v1291 = vpop.f32.mrf.mxu0
  %v1292 = vpop.f32.mrf.mxu0
  %v1293 = vadd.f32 %v198, %v1292
  %v1294 = vpop.f32.mrf.mxu0
  %1295 = vmatprep.mubr.bf16.mxu0 %v689
  %1296 = vmatmul.mubr.bf16.gmra.mxu0 %v688
  %v1297 = vpop.f32.mrf.mxu0
  %v1298 = vadd.f32 %v198, %v1297
  %v1299 = vpop.f32.mrf.mxu0
  %v1300 = vpop.f32.mrf.mxu0
  %v1301 = vadd.f32 %v198, %v1300
  %v1302 = vpop.f32.mrf.mxu0
  %1303 = vmatprep.mubr.bf16.mxu0 %v693
  %1304 = vmatmul.mubr.bf16.gmra.mxu0 %v692
  %v1305 = vpop.f32.mrf.mxu0
  %v1306 = vadd.f32 %v198, %v1305
  %v1307 = vpop.f32.mrf.mxu0
  %v1308 = vpop.f32.mrf.mxu0
  %v1309 = vadd.f32 %v198, %v1308
  %v1310 = vpop.f32.mrf.mxu0
  %1311 = vmatprep.mubr.bf16.mxu0 %v697
  %1312 = vmatmul.mubr.bf16.gmra.mxu0 %v696
  %v1313 = vpop.f32.mrf.mxu0
  %v1314 = vadd.f32 %v198, %v1313
  %v1315 = vpop.f32.mrf.mxu0
  %v1316 = vpop.f32.mrf.mxu0
  %v1317 = vadd.f32 %v198, %v1316
  %v1318 = vpop.f32.mrf.mxu0
  %1319 = vmatprep.mubr.bf16.mxu0 %v701
  %1320 = vmatmul.mubr.bf16.gmra.mxu0 %v700
  %v1321 = vpop.f32.mrf.mxu0
  %v1322 = vadd.f32 %v198, %v1321
  %v1323 = vpop.f32.mrf.mxu0
  %v1324 = vpop.f32.mrf.mxu0
  %v1325 = vadd.f32 %v198, %v1324
  %v1326 = vpop.f32.mrf.mxu0
  %1327 = vmatprep.mubr.bf16.mxu0 %v705
  %1328 = vmatmul.mubr.bf16.gmra.mxu0 %v704
  %v1329 = vpop.f32.mrf.mxu0
  %v1330 = vadd.f32 %v198, %v1329
  %v1331 = vpop.f32.mrf.mxu0
  %v1332 = vpop.f32.mrf.mxu0
  %v1333 = vadd.f32 %v198, %v1332
  %v1334 = vpop.f32.mrf.mxu0
  %1335 = vmatprep.mubr.bf16.mxu0 %v709
  %1336 = vmatmul.mubr.bf16.gmra.mxu0 %v708
  %v1337 = vpop.f32.mrf.mxu0
  %v1338 = vadd.f32 %v198, %v1337
  %v1339 = vpop.f32.mrf.mxu0
  %v1340 = vpop.f32.mrf.mxu0
  %v1341 = vadd.f32 %v198, %v1340
  %v1342 = vpop.f32.mrf.mxu0
  %1343 = vdwg.mxu0
  %1344 = vmatprep.subr.bf16.mxu0 0
  %1345 = vmatpush1.bf16.msra.mxu0 %v931
  %1346 = vmatprep.subr.bf16.mxu0 0
  %1347 = vmatpush1.bf16.msra.mxu0 %v930
  %1348 = vmatprep.subr.bf16.mxu0 0
  %1349 = vmatpush1.bf16.msra.mxu0 %v929
  %1350 = vmatprep.subr.bf16.mxu0 0
  %1351 = vmatpush1.bf16.msra.mxu0 %v928
  %1352 = vmatprep.subr.bf16.mxu0 0
  %1353 = vmatpush1.bf16.msra.mxu0 %v927
  %1354 = vmatprep.subr.bf16.mxu0 0
  %1355 = vmatpush1.bf16.msra.mxu0 %v926
  %1356 = vmatprep.subr.bf16.mxu0 0
  %1357 = vmatpush1.bf16.msra.mxu0 %v925
  %1358 = vmatprep.subr.bf16.mxu0 0
  %1359 = vmatpush1.bf16.msra.mxu0 %v924
  %1360 = vmatprep.subr.bf16.mxu0 0
  %1361 = vmatpush2.bf16.msra.mxu0 0
  %1362 = vmatprep.subr.bf16.mxu0 0
  %1363 = vmatpush2.bf16.msra.mxu0 0
  %1364 = vmatprep.subr.bf16.mxu0 0
  %1365 = vmatpush2.bf16.msra.mxu0 0
  %1366 = vmatprep.subr.bf16.mxu0 0
  %1367 = vmatpush2.bf16.msra.mxu0 0
  %1368 = vmatprep.subr.bf16.mxu0 0
  %1369 = vmatpush2.bf16.msra.mxu0 0
  %1370 = vmatprep.subr.bf16.mxu0 0
  %1371 = vmatpush2.bf16.msra.mxu0 0
  %1372 = vmatprep.subr.bf16.mxu0 0
  %1373 = vmatpush2.bf16.msra.mxu0 0
  %1374 = vmatprep.subr.bf16.mxu0 0
  %1375 = vmatpush2.bf16.msra.mxu0 %v932
  %1376 = vmatprep.mubr.bf16.mxu0 %v960
  %1377 = vmatmul.mubr.bf16.gmra.mxu0 %v586
  %v1378 = vpop.f32.mrf.mxu0
  %v1379 = vadd.f32 %v1090, %v1378
  %v1380 = vpop.f32.mrf.mxu0
  %v1381 = vpop.f32.mrf.mxu0
  %v1382 = vadd.f32 %v1093, %v1381
  %v1383 = vpop.f32.mrf.mxu0
  %1384 = vmatprep.mubr.bf16.mxu0 %v963
  %1385 = vmatmul.mubr.bf16.gmra.mxu0 %v590
  %v1386 = vpop.f32.mrf.mxu0
  %v1387 = vadd.f32 %v1098, %v1386
  %v1388 = vpop.f32.mrf.mxu0
  %v1389 = vpop.f32.mrf.mxu0
  %v1390 = vadd.f32 %v1101, %v1389
  %v1391 = vpop.f32.mrf.mxu0
  %1392 = vmatprep.mubr.bf16.mxu0 %v966
  %1393 = vmatmul.mubr.bf16.gmra.mxu0 %v594
  %v1394 = vpop.f32.mrf.mxu0
  %v1395 = vadd.f32 %v1106, %v1394
  %v1396 = vpop.f32.mrf.mxu0
  %v1397 = vpop.f32.mrf.mxu0
  %v1398 = vadd.f32 %v1109, %v1397
  %v1399 = vpop.f32.mrf.mxu0
  %1400 = vmatprep.mubr.bf16.mxu0 %v969
  %1401 = vmatmul.mubr.bf16.gmra.mxu0 %v598
  %v1402 = vpop.f32.mrf.mxu0
  %v1403 = vadd.f32 %v1114, %v1402
  %v1404 = vpop.f32.mrf.mxu0
  %v1405 = vpop.f32.mrf.mxu0
  %v1406 = vadd.f32 %v1117, %v1405
  %v1407 = vpop.f32.mrf.mxu0
  %1408 = vmatprep.mubr.bf16.mxu0 %v972
  %1409 = vmatmul.mubr.bf16.gmra.mxu0 %v602
  %v1410 = vpop.f32.mrf.mxu0
  %v1411 = vadd.f32 %v1122, %v1410
  %v1412 = vpop.f32.mrf.mxu0
  %v1413 = vpop.f32.mrf.mxu0
  %v1414 = vadd.f32 %v1125, %v1413
  %v1415 = vpop.f32.mrf.mxu0
  %1416 = vmatprep.mubr.bf16.mxu0 %v975
  %1417 = vmatmul.mubr.bf16.gmra.mxu0 %v606
  %v1418 = vpop.f32.mrf.mxu0
  %v1419 = vadd.f32 %v1130, %v1418
  %v1420 = vpop.f32.mrf.mxu0
  %v1421 = vpop.f32.mrf.mxu0
  %v1422 = vadd.f32 %v1133, %v1421
  %v1423 = vpop.f32.mrf.mxu0
  %1424 = vmatprep.mubr.bf16.mxu0 %v978
  %1425 = vmatmul.mubr.bf16.gmra.mxu0 %v610
  %v1426 = vpop.f32.mrf.mxu0
  %v1427 = vadd.f32 %v1138, %v1426
  %v1428 = vpop.f32.mrf.mxu0
  %v1429 = vpop.f32.mrf.mxu0
  %v1430 = vadd.f32 %v1141, %v1429
  %v1431 = vpop.f32.mrf.mxu0
  %1432 = vmatprep.mubr.bf16.mxu0 %v981
  %1433 = vmatmul.mubr.bf16.gmra.mxu0 %v614
  %v1434 = vpop.f32.mrf.mxu0
  %v1435 = vadd.f32 %v1146, %v1434
  %v1436 = vpop.f32.mrf.mxu0
  %v1437 = vpop.f32.mrf.mxu0
  %v1438 = vadd.f32 %v1149, %v1437
  %v1439 = vpop.f32.mrf.mxu0
  %1440 = vmatprep.mubr.bf16.mxu0 %v984
  %1441 = vmatmul.mubr.bf16.gmra.mxu0 %v618
  %v1442 = vpop.f32.mrf.mxu0
  %v1443 = vadd.f32 %v1154, %v1442
  %v1444 = vpop.f32.mrf.mxu0
  %v1445 = vpop.f32.mrf.mxu0
  %v1446 = vadd.f32 %v1157, %v1445
  %v1447 = vpop.f32.mrf.mxu0
  %1448 = vmatprep.mubr.bf16.mxu0 %v987
  %1449 = vmatmul.mubr.bf16.gmra.mxu0 %v622
  %v1450 = vpop.f32.mrf.mxu0
  %v1451 = vadd.f32 %v1162, %v1450
  %v1452 = vpop.f32.mrf.mxu0
  %v1453 = vpop.f32.mrf.mxu0
  %v1454 = vadd.f32 %v1165, %v1453
  %v1455 = vpop.f32.mrf.mxu0
  %1456 = vmatprep.mubr.bf16.mxu0 %v990
  %1457 = vmatmul.mubr.bf16.gmra.mxu0 %v626
  %v1458 = vpop.f32.mrf.mxu0
  %v1459 = vadd.f32 %v1170, %v1458
  %v1460 = vpop.f32.mrf.mxu0
  %v1461 = vpop.f32.mrf.mxu0
  %v1462 = vadd.f32 %v1173, %v1461
  %v1463 = vpop.f32.mrf.mxu0
  %1464 = vmatprep.mubr.bf16.mxu0 %v993
  %1465 = vmatmul.mubr.bf16.gmra.mxu0 %v630
  %v1466 = vpop.f32.mrf.mxu0
  %v1467 = vadd.f32 %v1178, %v1466
  %v1468 = vpop.f32.mrf.mxu0
  %v1469 = vpop.f32.mrf.mxu0
  %v1470 = vadd.f32 %v1181, %v1469
  %v1471 = vpop.f32.mrf.mxu0
  %1472 = vmatprep.mubr.bf16.mxu0 %v996
  %1473 = vmatmul.mubr.bf16.gmra.mxu0 %v634
  %v1474 = vpop.f32.mrf.mxu0
  %v1475 = vadd.f32 %v1186, %v1474
  %v1476 = vpop.f32.mrf.mxu0
  %v1477 = vpop.f32.mrf.mxu0
  %v1478 = vadd.f32 %v1189, %v1477
  %v1479 = vpop.f32.mrf.mxu0
  %1480 = vmatprep.mubr.bf16.mxu0 %v999
  %1481 = vmatmul.mubr.bf16.gmra.mxu0 %v638
  %v1482 = vpop.f32.mrf.mxu0
  %v1483 = vadd.f32 %v1194, %v1482
  %v1484 = vpop.f32.mrf.mxu0
  %v1485 = vpop.f32.mrf.mxu0
  %v1486 = vadd.f32 %v1197, %v1485
  %v1487 = vpop.f32.mrf.mxu0
  %1488 = vmatprep.mubr.bf16.mxu0 %v1002
  %1489 = vmatmul.mubr.bf16.gmra.mxu0 %v642
  %v1490 = vpop.f32.mrf.mxu0
  %v1491 = vadd.f32 %v1202, %v1490
  %v1492 = vpop.f32.mrf.mxu0
  %v1493 = vpop.f32.mrf.mxu0
  %v1494 = vadd.f32 %v1205, %v1493
  %v1495 = vpop.f32.mrf.mxu0
  %1496 = vmatprep.mubr.bf16.mxu0 %v1005
  %1497 = vmatmul.mubr.bf16.gmra.mxu0 %v646
  %v1498 = vpop.f32.mrf.mxu0
  %v1499 = vadd.f32 %v1210, %v1498
  %v1500 = vpop.f32.mrf.mxu0
  %v1501 = vpop.f32.mrf.mxu0
  %v1502 = vadd.f32 %v1213, %v1501
  %v1503 = vpop.f32.mrf.mxu0
  %1504 = vmatprep.mubr.bf16.mxu0 %v1008
  %1505 = vmatmul.mubr.bf16.gmra.mxu0 %v650
  %v1506 = vpop.f32.mrf.mxu0
  %v1507 = vadd.f32 %v1218, %v1506
  %v1508 = vpop.f32.mrf.mxu0
  %v1509 = vpop.f32.mrf.mxu0
  %v1510 = vadd.f32 %v1221, %v1509
  %v1511 = vpop.f32.mrf.mxu0
  %1512 = vmatprep.mubr.bf16.mxu0 %v1011
  %1513 = vmatmul.mubr.bf16.gmra.mxu0 %v654
  %v1514 = vpop.f32.mrf.mxu0
  %v1515 = vadd.f32 %v1226, %v1514
  %v1516 = vpop.f32.mrf.mxu0
  %v1517 = vpop.f32.mrf.mxu0
  %v1518 = vadd.f32 %v1229, %v1517
  %v1519 = vpop.f32.mrf.mxu0
  %1520 = vmatprep.mubr.bf16.mxu0 %v1014
  %1521 = vmatmul.mubr.bf16.gmra.mxu0 %v658
  %v1522 = vpop.f32.mrf.mxu0
  %v1523 = vadd.f32 %v1234, %v1522
  %v1524 = vpop.f32.mrf.mxu0
  %v1525 = vpop.f32.mrf.mxu0
  %v1526 = vadd.f32 %v1237, %v1525
  %v1527 = vpop.f32.mrf.mxu0
  %1528 = vmatprep.mubr.bf16.mxu0 %v1017
  %1529 = vmatmul.mubr.bf16.gmra.mxu0 %v662
  %v1530 = vpop.f32.mrf.mxu0
  %v1531 = vadd.f32 %v1242, %v1530
  %v1532 = vpop.f32.mrf.mxu0
  %v1533 = vpop.f32.mrf.mxu0
  %v1534 = vadd.f32 %v1245, %v1533
  %v1535 = vpop.f32.mrf.mxu0
  %1536 = vmatprep.mubr.bf16.mxu0 %v1020
  %1537 = vmatmul.mubr.bf16.gmra.mxu0 %v666
  %v1538 = vpop.f32.mrf.mxu0
  %v1539 = vadd.f32 %v1250, %v1538
  %v1540 = vpop.f32.mrf.mxu0
  %v1541 = vpop.f32.mrf.mxu0
  %v1542 = vadd.f32 %v1253, %v1541
  %v1543 = vpop.f32.mrf.mxu0
  %1544 = vmatprep.mubr.bf16.mxu0 %v1023
  %1545 = vmatmul.mubr.bf16.gmra.mxu0 %v670
  %v1546 = vpop.f32.mrf.mxu0
  %v1547 = vadd.f32 %v1258, %v1546
  %v1548 = vpop.f32.mrf.mxu0
  %v1549 = vpop.f32.mrf.mxu0
  %v1550 = vadd.f32 %v1261, %v1549
  %v1551 = vpop.f32.mrf.mxu0
  %1552 = vmatprep.mubr.bf16.mxu0 %v1026
  %1553 = vmatmul.mubr.bf16.gmra.mxu0 %v674
  %v1554 = vpop.f32.mrf.mxu0
  %v1555 = vadd.f32 %v1266, %v1554
  %v1556 = vpop.f32.mrf.mxu0
  %v1557 = vpop.f32.mrf.mxu0
  %v1558 = vadd.f32 %v1269, %v1557
  %v1559 = vpop.f32.mrf.mxu0
  %1560 = vmatprep.mubr.bf16.mxu0 %v1029
  %1561 = vmatmul.mubr.bf16.gmra.mxu0 %v678
  %v1562 = vpop.f32.mrf.mxu0
  %v1563 = vadd.f32 %v1274, %v1562
  %v1564 = vpop.f32.mrf.mxu0
  %v1565 = vpop.f32.mrf.mxu0
  %v1566 = vadd.f32 %v1277, %v1565
  %v1567 = vpop.f32.mrf.mxu0
  %1568 = vmatprep.mubr.bf16.mxu0 %v1032
  %1569 = vmatmul.mubr.bf16.gmra.mxu0 %v682
  %v1570 = vpop.f32.mrf.mxu0
  %v1571 = vadd.f32 %v1282, %v1570
  %v1572 = vpop.f32.mrf.mxu0
  %v1573 = vpop.f32.mrf.mxu0
  %v1574 = vadd.f32 %v1285, %v1573
  %v1575 = vpop.f32.mrf.mxu0
  %1576 = vmatprep.mubr.bf16.mxu0 %v1035
  %1577 = vmatmul.mubr.bf16.gmra.mxu0 %v686
  %v1578 = vpop.f32.mrf.mxu0
  %v1579 = vadd.f32 %v1290, %v1578
  %v1580 = vpop.f32.mrf.mxu0
  %v1581 = vpop.f32.mrf.mxu0
  %v1582 = vadd.f32 %v1293, %v1581
  %v1583 = vpop.f32.mrf.mxu0
  %1584 = vmatprep.mubr.bf16.mxu0 %v1038
  %1585 = vmatmul.mubr.bf16.gmra.mxu0 %v690
  %v1586 = vpop.f32.mrf.mxu0
  %v1587 = vadd.f32 %v1298, %v1586
  %v1588 = vpop.f32.mrf.mxu0
  %v1589 = vpop.f32.mrf.mxu0
  %v1590 = vadd.f32 %v1301, %v1589
  %v1591 = vpop.f32.mrf.mxu0
  %1592 = vmatprep.mubr.bf16.mxu0 %v1041
  %1593 = vmatmul.mubr.bf16.gmra.mxu0 %v694
  %v1594 = vpop.f32.mrf.mxu0
  %v1595 = vadd.f32 %v1306, %v1594
  %v1596 = vpop.f32.mrf.mxu0
  %v1597 = vpop.f32.mrf.mxu0
  %v1598 = vadd.f32 %v1309, %v1597
  %v1599 = vpop.f32.mrf.mxu0
  %1600 = vmatprep.mubr.bf16.mxu0 %v1044
  %1601 = vmatmul.mubr.bf16.gmra.mxu0 %v698
  %v1602 = vpop.f32.mrf.mxu0
  %v1603 = vadd.f32 %v1314, %v1602
  %v1604 = vpop.f32.mrf.mxu0
  %v1605 = vpop.f32.mrf.mxu0
  %v1606 = vadd.f32 %v1317, %v1605
  %v1607 = vpop.f32.mrf.mxu0
  %1608 = vmatprep.mubr.bf16.mxu0 %v1047
  %1609 = vmatmul.mubr.bf16.gmra.mxu0 %v702
  %v1610 = vpop.f32.mrf.mxu0
  %v1611 = vadd.f32 %v1322, %v1610
  %v1612 = vpop.f32.mrf.mxu0
  %v1613 = vpop.f32.mrf.mxu0
  %v1614 = vadd.f32 %v1325, %v1613
  %v1615 = vpop.f32.mrf.mxu0
  %1616 = vmatprep.mubr.bf16.mxu0 %v1050
  %1617 = vmatmul.mubr.bf16.gmra.mxu0 %v706
  %v1618 = vpop.f32.mrf.mxu0
  %v1619 = vadd.f32 %v1330, %v1618
  %v1620 = vpop.f32.mrf.mxu0
  %v1621 = vpop.f32.mrf.mxu0
  %v1622 = vadd.f32 %v1333, %v1621
  %v1623 = vpop.f32.mrf.mxu0
  %1624 = vmatprep.mubr.bf16.mxu0 %v1053
  %1625 = vmatmul.mubr.bf16.gmra.mxu0 %v710
  %v1626 = vpop.f32.mrf.mxu0
  %v1627 = vadd.f32 %v1338, %v1626
  %v1628 = vpop.f32.mrf.mxu0
  %v1629 = vpop.f32.mrf.mxu0
  %v1630 = vadd.f32 %v1341, %v1629
  %v1631 = vpop.f32.mrf.mxu0
  %1632 = vdwg.mxu0
  %v1633 = vmax.f32 %v1379, 0.0
  %v1634 = vmax.f32 %v1382, 0.0
  %v1635 = vmax.f32 %v1387, 0.0
  %v1636 = vmax.f32 %v1390, 0.0
  %v1637 = vmax.f32 %v1395, 0.0
  %v1638 = vmax.f32 %v1398, 0.0
  %v1639 = vmax.f32 %v1403, 0.0
  %v1640 = vmax.f32 %v1406, 0.0
  %v1641 = vmax.f32 %v1411, 0.0
  %v1642 = vmax.f32 %v1414, 0.0
  %v1643 = vmax.f32 %v1419, 0.0
  %v1644 = vmax.f32 %v1422, 0.0
  %v1645 = vmax.f32 %v1427, 0.0
  %v1646 = vmax.f32 %v1430, 0.0
  %v1647 = vmax.f32 %v1435, 0.0
  %v1648 = vmax.f32 %v1438, 0.0
  %v1649 = vmax.f32 %v1443, 0.0
  %v1650 = vmax.f32 %v1446, 0.0
  %v1651 = vmax.f32 %v1451, 0.0
  %v1652 = vmax.f32 %v1454, 0.0
  %v1653 = vmax.f32 %v1459, 0.0
  %v1654 = vmax.f32 %v1462, 0.0
  %v1655 = vmax.f32 %v1467, 0.0
  %v1656 = vmax.f32 %v1470, 0.0
  %v1657 = vmax.f32 %v1475, 0.0
  %v1658 = vmax.f32 %v1478, 0.0
  %v1659 = vmax.f32 %v1483, 0.0
  %v1660 = vmax.f32 %v1486, 0.0
  %v1661 = vmax.f32 %v1491, 0.0
  %v1662 = vmax.f32 %v1494, 0.0
  %v1663 = vmax.f32 %v1499, 0.0
  %v1664 = vmax.f32 %v1502, 0.0
  %v1665 = vmax.f32 %v1507, 0.0
  %v1666 = vmax.f32 %v1510, 0.0
  %v1667 = vmax.f32 %v1515, 0.0
  %v1668 = vmax.f32 %v1518, 0.0
  %v1669 = vmax.f32 %v1523, 0.0
  %v1670 = vmax.f32 %v1526, 0.0
  %v1671 = vmax.f32 %v1531, 0.0
  %v1672 = vmax.f32 %v1534, 0.0
  %v1673 = vmax.f32 %v1539, 0.0
  %v1674 = vmax.f32 %v1542, 0.0
  %v1675 = vmax.f32 %v1547, 0.0
  %v1676 = vmax.f32 %v1550, 0.0
  %v1677 = vmax.f32 %v1555, 0.0
  %v1678 = vmax.f32 %v1558, 0.0
  %v1679 = vmax.f32 %v1563, 0.0
  %v1680 = vmax.f32 %v1566, 0.0
  %v1681 = vmax.f32 %v1571, 0.0
  %v1682 = vmax.f32 %v1574, 0.0
  %v1683 = vmax.f32 %v1579, 0.0
  %v1684 = vmax.f32 %v1582, 0.0
  %v1685 = vmax.f32 %v1587, 0.0
  %v1686 = vmax.f32 %v1590, 0.0
  %v1687 = vmax.f32 %v1595, 0.0
  %v1688 = vmax.f32 %v1598, 0.0
  %v1689 = vmax.f32 %v1603, 0.0
  %v1690 = vmax.f32 %v1606, 0.0
  %v1691 = vmax.f32 %v1611, 0.0
  %v1692 = vmax.f32 %v1614, 0.0
  %v1693 = vmax.f32 %v1619, 0.0
  %v1694 = vmax.f32 %v1622, 0.0
  %v1695 = vmax.f32 %v1627, 0.0
  %v1696 = vmax.f32 %v1630, 0.0
  %v1697 = vpack.c.bf16 %v1634, %v1633
  %v1698 = vpack.c.bf16 %v1636, %v1635
  %v1699 = vpack.c.bf16 %v1638, %v1637
  %v1700 = vpack.c.bf16 %v1640, %v1639
  %v1701 = vpack.c.bf16 %v1642, %v1641
  %v1702 = vpack.c.bf16 %v1644, %v1643
  %v1703 = vpack.c.bf16 %v1646, %v1645
  %v1704 = vpack.c.bf16 %v1648, %v1647
  %v1705 = vpack.c.bf16 %v1650, %v1649
  %v1706 = vpack.c.bf16 %v1652, %v1651
  %v1707 = vpack.c.bf16 %v1654, %v1653
  %v1708 = vpack.c.bf16 %v1656, %v1655
  %v1709 = vpack.c.bf16 %v1658, %v1657
  %v1710 = vpack.c.bf16 %v1660, %v1659
  %v1711 = vpack.c.bf16 %v1662, %v1661
  %v1712 = vpack.c.bf16 %v1664, %v1663
  %v1713 = vpack.c.bf16 %v1666, %v1665
  %v1714 = vpack.c.bf16 %v1668, %v1667
  %v1715 = vpack.c.bf16 %v1670, %v1669
  %v1716 = vpack.c.bf16 %v1672, %v1671
  %v1717 = vpack.c.bf16 %v1674, %v1673
  %v1718 = vpack.c.bf16 %v1676, %v1675
  %v1719 = vpack.c.bf16 %v1678, %v1677
  %v1720 = vpack.c.bf16 %v1680, %v1679
  %v1721 = vpack.c.bf16 %v1682, %v1681
  %v1722 = vpack.c.bf16 %v1684, %v1683
  %v1723 = vpack.c.bf16 %v1686, %v1685
  %v1724 = vpack.c.bf16 %v1688, %v1687
  %v1725 = vpack.c.bf16 %v1690, %v1689
  %v1726 = vpack.c.bf16 %v1692, %v1691
  %v1727 = vpack.c.bf16 %v1694, %v1693
  %v1728 = vpack.c.bf16 %v1696, %v1695
  %v1761 = vunpack.c.l.b16 %v1697
  %v1762 = vunpack.c.h.b16 %v1697
  %v1763 = vunpack.c.l.b16 %v1698
  %v1764 = vunpack.c.h.b16 %v1698
  %v1765 = vunpack.c.l.b16 %v1699
  %v1766 = vunpack.c.h.b16 %v1699
  %v1767 = vunpack.c.l.b16 %v1700
  %v1768 = vunpack.c.h.b16 %v1700
  %v1769 = vunpack.c.l.b16 %v1701
  %v1770 = vunpack.c.h.b16 %v1701
  %v1771 = vunpack.c.l.b16 %v1702
  %v1772 = vunpack.c.h.b16 %v1702
  %v1773 = vunpack.c.l.b16 %v1703
  %v1774 = vunpack.c.h.b16 %v1703
  %v1775 = vunpack.c.l.b16 %v1704
  %v1776 = vunpack.c.h.b16 %v1704
  %v1777 = vunpack.c.l.b16 %v1705
  %v1778 = vunpack.c.h.b16 %v1705
  %v1779 = vunpack.c.l.b16 %v1706
  %v1780 = vunpack.c.h.b16 %v1706
  %v1781 = vunpack.c.l.b16 %v1707
  %v1782 = vunpack.c.h.b16 %v1707
  %v1783 = vunpack.c.l.b16 %v1708
  %v1784 = vunpack.c.h.b16 %v1708
  %v1785 = vunpack.c.l.b16 %v1709
  %v1786 = vunpack.c.h.b16 %v1709
  %v1787 = vunpack.c.l.b16 %v1710
  %v1788 = vunpack.c.h.b16 %v1710
  %v1789 = vunpack.c.l.b16 %v1711
  %v1790 = vunpack.c.h.b16 %v1711
  %v1791 = vunpack.c.l.b16 %v1712
  %v1792 = vunpack.c.h.b16 %v1712
  %v1793 = vunpack.c.l.b16 %v1713
  %v1794 = vunpack.c.h.b16 %v1713
  %v1795 = vunpack.c.l.b16 %v1714
  %v1796 = vunpack.c.h.b16 %v1714
  %v1797 = vunpack.c.l.b16 %v1715
  %v1798 = vunpack.c.h.b16 %v1715
  %v1799 = vunpack.c.l.b16 %v1716
  %v1800 = vunpack.c.h.b16 %v1716
  %v1801 = vunpack.c.l.b16 %v1717
  %v1802 = vunpack.c.h.b16 %v1717
  %v1803 = vunpack.c.l.b16 %v1718
  %v1804 = vunpack.c.h.b16 %v1718
  %v1805 = vunpack.c.l.b16 %v1719
  %v1806 = vunpack.c.h.b16 %v1719
  %v1807 = vunpack.c.l.b16 %v1720
  %v1808 = vunpack.c.h.b16 %v1720
  %v1809 = vunpack.c.l.b16 %v1721
  %v1810 = vunpack.c.h.b16 %v1721
  %v1811 = vunpack.c.l.b16 %v1722
  %v1812 = vunpack.c.h.b16 %v1722
  %v1813 = vunpack.c.l.b16 %v1723
  %v1814 = vunpack.c.h.b16 %v1723
  %v1815 = vunpack.c.l.b16 %v1724
  %v1816 = vunpack.c.h.b16 %v1724
  %v1817 = vunpack.c.l.b16 %v1725
  %v1818 = vunpack.c.h.b16 %v1725
  %v1819 = vunpack.c.l.b16 %v1726
  %v1820 = vunpack.c.h.b16 %v1726
  %v1821 = vunpack.c.l.b16 %v1727
  %v1822 = vunpack.c.h.b16 %v1727
  %v1823 = vunpack.c.l.b16 %v1728
  %v1824 = vunpack.c.h.b16 %v1728
  %v1825 = vpack.c.b16 %v1761, %v1761
  %v1826 = vpack.c.b16 %v1762, %v1762
  %v1827 = vpack.c.b16 %v1763, %v1763
  %v1828 = vpack.c.b16 %v1764, %v1764
  %v1829 = vpack.c.b16 %v1765, %v1765
  %v1830 = vpack.c.b16 %v1766, %v1766
  %v1831 = vpack.c.b16 %v1767, %v1767
  %v1832 = vpack.c.b16 %v1768, %v1768
  %v1833 = vpack.c.b16 %v1769, %v1769
  %v1834 = vpack.c.b16 %v1770, %v1770
  %v1835 = vpack.c.b16 %v1771, %v1771
  %v1836 = vpack.c.b16 %v1772, %v1772
  %v1837 = vpack.c.b16 %v1773, %v1773
  %v1838 = vpack.c.b16 %v1774, %v1774
  %v1839 = vpack.c.b16 %v1775, %v1775
  %v1840 = vpack.c.b16 %v1776, %v1776
  %v1841 = vpack.c.b16 %v1777, %v1777
  %v1842 = vpack.c.b16 %v1778, %v1778
  %v1843 = vpack.c.b16 %v1779, %v1779
  %v1844 = vpack.c.b16 %v1780, %v1780
  %v1845 = vpack.c.b16 %v1781, %v1781
  %v1846 = vpack.c.b16 %v1782, %v1782
  %v1847 = vpack.c.b16 %v1783, %v1783
  %v1848 = vpack.c.b16 %v1784, %v1784
  %v1849 = vpack.c.b16 %v1785, %v1785
  %v1850 = vpack.c.b16 %v1786, %v1786
  %v1851 = vpack.c.b16 %v1787, %v1787
  %v1852 = vpack.c.b16 %v1788, %v1788
  %v1853 = vpack.c.b16 %v1789, %v1789
  %v1854 = vpack.c.b16 %v1790, %v1790
  %v1855 = vpack.c.b16 %v1791, %v1791
  %v1856 = vpack.c.b16 %v1792, %v1792
  %v1857 = vpack.c.b16 %v1793, %v1793
  %v1858 = vpack.c.b16 %v1794, %v1794
  %v1859 = vpack.c.b16 %v1795, %v1795
  %v1860 = vpack.c.b16 %v1796, %v1796
  %v1861 = vpack.c.b16 %v1797, %v1797
  %v1862 = vpack.c.b16 %v1798, %v1798
  %v1863 = vpack.c.b16 %v1799, %v1799
  %v1864 = vpack.c.b16 %v1800, %v1800
  %v1865 = vpack.c.b16 %v1801, %v1801
  %v1866 = vpack.c.b16 %v1802, %v1802
  %v1867 = vpack.c.b16 %v1803, %v1803
  %v1868 = vpack.c.b16 %v1804, %v1804
  %v1869 = vpack.c.b16 %v1805, %v1805
  %v1870 = vpack.c.b16 %v1806, %v1806
  %v1871 = vpack.c.b16 %v1807, %v1807
  %v1872 = vpack.c.b16 %v1808, %v1808
  %v1873 = vpack.c.b16 %v1809, %v1809
  %v1874 = vpack.c.b16 %v1810, %v1810
  %v1875 = vpack.c.b16 %v1811, %v1811
  %v1876 = vpack.c.b16 %v1812, %v1812
  %v1877 = vpack.c.b16 %v1813, %v1813
  %v1878 = vpack.c.b16 %v1814, %v1814
  %v1879 = vpack.c.b16 %v1815, %v1815
  %v1880 = vpack.c.b16 %v1816, %v1816
  %v1881 = vpack.c.b16 %v1817, %v1817
  %v1882 = vpack.c.b16 %v1818, %v1818
  %v1883 = vpack.c.b16 %v1819, %v1819
  %v1884 = vpack.c.b16 %v1820, %v1820
  %v1885 = vpack.c.b16 %v1821, %v1821
  %v1886 = vpack.c.b16 %v1822, %v1822
  %v1887 = vpack.c.b16 %v1823, %v1823
  %v1888 = vpack.c.b16 %v1824, %v1824
  %vm1953 = vcmask 257024
  %1954 = vst.msk [vmem:[%s3] sm:$0xf] %vm1953, %v1825
  %1955 = vst.msk [vmem:[%s3 + $0x4] sm:$0xf] %vm1953, %v1826
  %1956 = vst.msk [vmem:[%s3 + $0x8] sm:$0xf] %vm1953, %v1827
  %1957 = vst.msk [vmem:[%s3 + $0xc] sm:$0xf] %vm1953, %v1828
  %1958 = vst.msk [vmem:[%s3 + $0x10] sm:$0xf] %vm1953, %v1829
  %1959 = vst.msk [vmem:[%s3 + $0x14] sm:$0xf] %vm1953, %v1830
  %1960 = vst.msk [vmem:[%s3 + $0x18] sm:$0xf] %vm1953, %v1831
  %1961 = vst.msk [vmem:[%s3 + $0x1c] sm:$0xf] %vm1953, %v1832
  %1962 = vst.msk [vmem:[%s3 + $0x20] sm:$0xf] %vm1953, %v1833
  %1963 = vst.msk [vmem:[%s3 + $0x24] sm:$0xf] %vm1953, %v1834
  %1964 = vst.msk [vmem:[%s3 + $0x28] sm:$0xf] %vm1953, %v1835
  %1965 = vst.msk [vmem:[%s3 + $0x2c] sm:$0xf] %vm1953, %v1836
  %1966 = vst.msk [vmem:[%s3 + $0x30] sm:$0xf] %vm1953, %v1837
  %1967 = vst.msk [vmem:[%s3 + $0x34] sm:$0xf] %vm1953, %v1838
  %1968 = vst.msk [vmem:[%s3 + $0x38] sm:$0xf] %vm1953, %v1839
  %1969 = vst.msk [vmem:[%s3 + $0x3c] sm:$0xf] %vm1953, %v1840
  %1970 = vst.msk [vmem:[%s3 + $0x40] sm:$0xf] %vm1953, %v1841
  %1971 = vst.msk [vmem:[%s3 + $0x44] sm:$0xf] %vm1953, %v1842
  %1972 = vst.msk [vmem:[%s3 + $0x48] sm:$0xf] %vm1953, %v1843
  %1973 = vst.msk [vmem:[%s3 + $0x4c] sm:$0xf] %vm1953, %v1844
  %1974 = vst.msk [vmem:[%s3 + $0x50] sm:$0xf] %vm1953, %v1845
  %1975 = vst.msk [vmem:[%s3 + $0x54] sm:$0xf] %vm1953, %v1846
  %1976 = vst.msk [vmem:[%s3 + $0x58] sm:$0xf] %vm1953, %v1847
  %1977 = vst.msk [vmem:[%s3 + $0x5c] sm:$0xf] %vm1953, %v1848
  %1978 = vst.msk [vmem:[%s3 + $0x60] sm:$0xf] %vm1953, %v1849
  %1979 = vst.msk [vmem:[%s3 + $0x64] sm:$0xf] %vm1953, %v1850
  %1980 = vst.msk [vmem:[%s3 + $0x68] sm:$0xf] %vm1953, %v1851
  %1981 = vst.msk [vmem:[%s3 + $0x6c] sm:$0xf] %vm1953, %v1852
  %1982 = vst.msk [vmem:[%s3 + $0x70] sm:$0xf] %vm1953, %v1853
  %1983 = vst.msk [vmem:[%s3 + $0x74] sm:$0xf] %vm1953, %v1854
  %1984 = vst.msk [vmem:[%s3 + $0x78] sm:$0xf] %vm1953, %v1855
  %1985 = vst.msk [vmem:[%s3 + $0x7c] sm:$0xf] %vm1953, %v1856
  %1986 = vst.msk [vmem:[%s3 + $0x80] sm:$0xf] %vm1953, %v1857
  %1987 = vst.msk [vmem:[%s3 + $0x84] sm:$0xf] %vm1953, %v1858
  %1988 = vst.msk [vmem:[%s3 + $0x88] sm:$0xf] %vm1953, %v1859
  %1989 = vst.msk [vmem:[%s3 + $0x8c] sm:$0xf] %vm1953, %v1860
  %1990 = vst.msk [vmem:[%s3 + $0x90] sm:$0xf] %vm1953, %v1861
  %1991 = vst.msk [vmem:[%s3 + $0x94] sm:$0xf] %vm1953, %v1862
  %1992 = vst.msk [vmem:[%s3 + $0x98] sm:$0xf] %vm1953, %v1863
  %1993 = vst.msk [vmem:[%s3 + $0x9c] sm:$0xf] %vm1953, %v1864
  %1994 = vst.msk [vmem:[%s3 + $0xa0] sm:$0xf] %vm1953, %v1865
  %1995 = vst.msk [vmem:[%s3 + $0xa4] sm:$0xf] %vm1953, %v1866
  %1996 = vst.msk [vmem:[%s3 + $0xa8] sm:$0xf] %vm1953, %v1867
  %1997 = vst.msk [vmem:[%s3 + $0xac] sm:$0xf] %vm1953, %v1868
  %1998 = vst.msk [vmem:[%s3 + $0xb0] sm:$0xf] %vm1953, %v1869
  %1999 = vst.msk [vmem:[%s3 + $0xb4] sm:$0xf] %vm1953, %v1870
  %2000 = vst.msk [vmem:[%s3 + $0xb8] sm:$0xf] %vm1953, %v1871
  %2001 = vst.msk [vmem:[%s3 + $0xbc] sm:$0xf] %vm1953, %v1872
  %2002 = vst.msk [vmem:[%s3 + $0xc0] sm:$0xf] %vm1953, %v1873
  %2003 = vst.msk [vmem:[%s3 + $0xc4] sm:$0xf] %vm1953, %v1874
  %2004 = vst.msk [vmem:[%s3 + $0xc8] sm:$0xf] %vm1953, %v1875
  %2005 = vst.msk [vmem:[%s3 + $0xcc] sm:$0xf] %vm1953, %v1876
  %2006 = vst.msk [vmem:[%s3 + $0xd0] sm:$0xf] %vm1953, %v1877
  %2007 = vst.msk [vmem:[%s3 + $0xd4] sm:$0xf] %vm1953, %v1878
  %2008 = vst.msk [vmem:[%s3 + $0xd8] sm:$0xf] %vm1953, %v1879
  %2009 = vst.msk [vmem:[%s3 + $0xdc] sm:$0xf] %vm1953, %v1880
  %2010 = vst.msk [vmem:[%s3 + $0xe0] sm:$0xf] %vm1953, %v1881
  %2011 = vst.msk [vmem:[%s3 + $0xe4] sm:$0xf] %vm1953, %v1882
  %2012 = vst.msk [vmem:[%s3 + $0xe8] sm:$0xf] %vm1953, %v1883
  %2013 = vst.msk [vmem:[%s3 + $0xec] sm:$0xf] %vm1953, %v1884
  %2014 = vst.msk [vmem:[%s3 + $0xf0] sm:$0xf] %vm1953, %v1885
  %2015 = vst.msk [vmem:[%s3 + $0xf4] sm:$0xf] %vm1953, %v1886
  %2016 = vst.msk [vmem:[%s3 + $0xf8] sm:$0xf] %vm1953, %v1887
  %2017 = vst.msk [vmem:[%s3 + $0xfc] sm:$0xf] %vm1953, %v1888
  // Predicated region
  $region14: #{gmlp_res_multi_conv35_forward.8} parent=0 // pred_check
    _
  $region15: #{gmlp_res_multi_conv35_forward.8} parent=0 // pred_check_branch
    %2019 = sbr.rel (0) target = $region17
  $region16: #{gmlp_res_multi_conv35_forward.8} parent=0 // pred_region
    _
  $region17: #{gmlp_res_multi_conv35_forward.8} parent=0 // pred_fallthru
    _
  // Predicated region
  $region18: #{gmlp_res_multi_conv35_forward.8} parent=0 // pred_check
    _
  $region19: #{gmlp_res_multi_conv35_forward.8} parent=0 // pred_check_branch
    %2021 = sbr.rel (0) target = $region21
  $region20: #{gmlp_res_multi_conv35_forward.8} parent=0 // pred_region
    _
  $region21: #{gmlp_res_multi_conv35_forward.8} parent=0 // pred_fallthru
    _

// kernel: gmlp_res_multi_conv35_forward.9
$region0: #{gmlp_res_multi_conv35_forward.9}
  #allocation0 [shape = 'u32[]', space=smem, size = 0x4, offset = 0x4, fixed_abs, tag = 'smem constant byte address 0x4 - core index']
  #allocation1 [shape = 'u32[144,128]{1,0:T(1,128)}', space=vmem, size = 0x12000, scoped, tag = 'internal scratch']
  %s0 = inlined_call_operand.vmem [shape: bf16[128,800], index: 0, kind: input, shape index: {}]
  %s1 = inlined_call_operand.vmem [shape: bf16[800,64], index: 1, kind: input, shape index: {}]
  %s2 = inlined_call_operand.vmem [shape: f32[1,64], index: 2, kind: input, shape index: {}]
  %s3 = inlined_call_operand.vmem [shape: bf16[128,64], index: 3, kind: output, shape index: {}]
  %s4 = sld [smem:[#allocation0]]
  $region22: #{gmlp_res_multi_conv35_forward.9} parent=0
    _
  %s6 = ssub.s32 1, %s4
  %s7 = scalar_select 0, %s6, %s4
  // Predicated region
  $region2: #{gmlp_res_multi_conv35_forward.9} parent=0 // pred_check
    _
  $region3: #{gmlp_res_multi_conv35_forward.9} parent=0 // pred_check_branch
    %9 = sbr.rel (0) target = $region5
  $region4: #{gmlp_res_multi_conv35_forward.9} parent=0 // pred_region
    _
  $region5: #{gmlp_res_multi_conv35_forward.9} parent=0 // pred_fallthru
    _
  // Predicated region
  $region6: #{gmlp_res_multi_conv35_forward.9} parent=0 // pred_check
    _
  $region7: #{gmlp_res_multi_conv35_forward.9} parent=0 // pred_check_branch
    %11 = sbr.rel (0) target = $region9
  $region8: #{gmlp_res_multi_conv35_forward.9} parent=0 // pred_region
    _
  $region9: #{gmlp_res_multi_conv35_forward.9} parent=0 // pred_fallthru
    _
  // Predicated region
  $region10: #{gmlp_res_multi_conv35_forward.9} parent=0 // pred_check
    _
  $region11: #{gmlp_res_multi_conv35_forward.9} parent=0 // pred_check_branch
    %13 = sbr.rel (0) target = $region13
  $region12: #{gmlp_res_multi_conv35_forward.9} parent=0 // pred_region
    _
  $region13: #{gmlp_res_multi_conv35_forward.9} parent=0 // pred_fallthru
    _
  %v15 = vld [vmem:[%s0] sm:$0xff]
  %v16 = vld [vmem:[%s0 + $0x8] sm:$0xff]
  %v17 = vld [vmem:[%s0 + $0x10] sm:$0xff]
  %v18 = vld [vmem:[%s0 + $0x18] sm:$0xf]
  %v19 = vld [vmem:[%s0 + $0x1c] sm:$0xff]
  %v20 = vld [vmem:[%s0 + $0x24] sm:$0xff]
  %v21 = vld [vmem:[%s0 + $0x2c] sm:$0xff]
  %v22 = vld [vmem:[%s0 + $0x34] sm:$0xf]
  %v23 = vld [vmem:[%s0 + $0x38] sm:$0xff]
  %v24 = vld [vmem:[%s0 + $0x40] sm:$0xff]
  %v25 = vld [vmem:[%s0 + $0x48] sm:$0xff]
  %v26 = vld [vmem:[%s0 + $0x50] sm:$0xf]
  %v27 = vld [vmem:[%s0 + $0x54] sm:$0xff]
  %v28 = vld [vmem:[%s0 + $0x5c] sm:$0xff]
  %v29 = vld [vmem:[%s0 + $0x64] sm:$0xff]
  %v30 = vld [vmem:[%s0 + $0x6c] sm:$0xf]
  %v31 = vld [vmem:[%s0 + $0x70] sm:$0xff]
  %v32 = vld [vmem:[%s0 + $0x78] sm:$0xff]
  %v33 = vld [vmem:[%s0 + $0x80] sm:$0xff]
  %v34 = vld [vmem:[%s0 + $0x88] sm:$0xf]
  %v35 = vld [vmem:[%s0 + $0x8c] sm:$0xff]
  %v36 = vld [vmem:[%s0 + $0x94] sm:$0xff]
  %v37 = vld [vmem:[%s0 + $0x9c] sm:$0xff]
  %v38 = vld [vmem:[%s0 + $0xa4] sm:$0xf]
  %v39 = vld [vmem:[%s0 + $0xa8] sm:$0xff]
  %v40 = vld [vmem:[%s0 + $0xb0] sm:$0xff]
  %v41 = vld [vmem:[%s0 + $0xb8] sm:$0xff]
  %v42 = vld [vmem:[%s0 + $0xc0] sm:$0xf]
  %v43 = vld [vmem:[%s0 + $0xc4] sm:$0xff]
  %v44 = vld [vmem:[%s0 + $0xcc] sm:$0xff]
  %v45 = vld [vmem:[%s0 + $0xd4] sm:$0xff]
  %v46 = vld [vmem:[%s0 + $0xdc] sm:$0xf]
  %v47 = vld [vmem:[%s0 + $0xe0] sm:$0xff]
  %v48 = vld [vmem:[%s0 + $0xe8] sm:$0xff]
  %v49 = vld [vmem:[%s0 + $0xf0] sm:$0xff]
  %v50 = vld [vmem:[%s0 + $0xf8] sm:$0xf]
  %v51 = vld [vmem:[%s0 + $0xfc] sm:$0xff]
  %v52 = vld [vmem:[%s0 + $0x104] sm:$0xff]
  %v53 = vld [vmem:[%s0 + $0x10c] sm:$0xff]
  %v54 = vld [vmem:[%s0 + $0x114] sm:$0xf]
  %v55 = vld [vmem:[%s0 + $0x118] sm:$0xff]
  %v56 = vld [vmem:[%s0 + $0x120] sm:$0xff]
  %v57 = vld [vmem:[%s0 + $0x128] sm:$0xff]
  %v58 = vld [vmem:[%s0 + $0x130] sm:$0xf]
  %v59 = vld [vmem:[%s0 + $0x134] sm:$0xff]
  %v60 = vld [vmem:[%s0 + $0x13c] sm:$0xff]
  %v61 = vld [vmem:[%s0 + $0x144] sm:$0xff]
  %v62 = vld [vmem:[%s0 + $0x14c] sm:$0xf]
  %v63 = vld [vmem:[%s0 + $0x150] sm:$0xff]
  %v64 = vld [vmem:[%s0 + $0x158] sm:$0xff]
  %v65 = vld [vmem:[%s0 + $0x160] sm:$0xff]
  %v66 = vld [vmem:[%s0 + $0x168] sm:$0xf]
  %v67 = vld [vmem:[%s0 + $0x16c] sm:$0xff]
  %v68 = vld [vmem:[%s0 + $0x174] sm:$0xff]
  %v69 = vld [vmem:[%s0 + $0x17c] sm:$0xff]
  %v70 = vld [vmem:[%s0 + $0x184] sm:$0xf]
  %v71 = vld [vmem:[%s0 + $0x188] sm:$0xff]
  %v72 = vld [vmem:[%s0 + $0x190] sm:$0xff]
  %v73 = vld [vmem:[%s0 + $0x198] sm:$0xff]
  %v74 = vld [vmem:[%s0 + $0x1a0] sm:$0xf]
  %v75 = vld [vmem:[%s0 + $0x1a4] sm:$0xff]
  %v76 = vld [vmem:[%s0 + $0x1ac] sm:$0xff]
  %v77 = vld [vmem:[%s0 + $0x1b4] sm:$0xff]
  %v78 = vld [vmem:[%s0 + $0x1bc] sm:$0xf]
  %v79 = vld [vmem:[%s1] sm:$0xf]
  %v80 = vld [vmem:[%s1 + $0x4] sm:$0xf]
  %v81 = vld [vmem:[%s1 + $0x8] sm:$0xf]
  %v82 = vld [vmem:[%s1 + $0xc] sm:$0xf]
  %v83 = vld [vmem:[%s1 + $0x10] sm:$0xf]
  %v84 = vld [vmem:[%s1 + $0x14] sm:$0xf]
  %v85 = vld [vmem:[%s1 + $0x18] sm:$0xf]
  %v86 = vld [vmem:[%s1 + $0x1c] sm:$0xf]
  %v87 = vld [vmem:[%s1 + $0x20] sm:$0xf]
  %v88 = vld [vmem:[%s1 + $0x24] sm:$0xf]
  %v89 = vld [vmem:[%s1 + $0x28] sm:$0xf]
  %v90 = vld [vmem:[%s1 + $0x2c] sm:$0xf]
  %v91 = vld [vmem:[%s1 + $0x30] sm:$0xf]
  %v92 = vld [vmem:[%s1 + $0x34] sm:$0xf]
  %v93 = vld [vmem:[%s1 + $0x38] sm:$0xf]
  %v94 = vld [vmem:[%s1 + $0x3c] sm:$0xf]
  %v95 = vld [vmem:[%s1 + $0x40] sm:$0xf]
  %v96 = vld [vmem:[%s1 + $0x44] sm:$0xf]
  %v97 = vld [vmem:[%s1 + $0x48] sm:$0xf]
  %v98 = vld [vmem:[%s1 + $0x4c] sm:$0xf]
  %v99 = vld [vmem:[%s1 + $0x50] sm:$0xf]
  %v100 = vld [vmem:[%s1 + $0x54] sm:$0xf]
  %v101 = vld [vmem:[%s1 + $0x58] sm:$0xf]
  %v102 = vld [vmem:[%s1 + $0x5c] sm:$0xf]
  %v103 = vld [vmem:[%s1 + $0x60] sm:$0xf]
  %v104 = vld [vmem:[%s1 + $0x64] sm:$0xf]
  %v105 = vld [vmem:[%s1 + $0x68] sm:$0xf]
  %v106 = vld [vmem:[%s1 + $0x6c] sm:$0xf]
  %v107 = vld [vmem:[%s1 + $0x70] sm:$0xf]
  %v108 = vld [vmem:[%s1 + $0x74] sm:$0xf]
  %v109 = vld [vmem:[%s1 + $0x78] sm:$0xf]
  %v110 = vld [vmem:[%s1 + $0x7c] sm:$0xf]
  %v111 = vld [vmem:[%s1 + $0x80] sm:$0xf]
  %v112 = vld [vmem:[%s1 + $0x84] sm:$0xf]
  %v113 = vld [vmem:[%s1 + $0x88] sm:$0xf]
  %v114 = vld [vmem:[%s1 + $0x8c] sm:$0xf]
  %v115 = vld [vmem:[%s1 + $0x90] sm:$0xf]
  %v116 = vld [vmem:[%s1 + $0x94] sm:$0xf]
  %v117 = vld [vmem:[%s1 + $0x98] sm:$0xf]
  %v118 = vld [vmem:[%s1 + $0x9c] sm:$0xf]
  %v119 = vld [vmem:[%s1 + $0xa0] sm:$0xf]
  %v120 = vld [vmem:[%s1 + $0xa4] sm:$0xf]
  %v121 = vld [vmem:[%s1 + $0xa8] sm:$0xf]
  %v122 = vld [vmem:[%s1 + $0xac] sm:$0xf]
  %v123 = vld [vmem:[%s1 + $0xb0] sm:$0xf]
  %v124 = vld [vmem:[%s1 + $0xb4] sm:$0xf]
  %v125 = vld [vmem:[%s1 + $0xb8] sm:$0xf]
  %v126 = vld [vmem:[%s1 + $0xbc] sm:$0xf]
  %v127 = vld [vmem:[%s1 + $0xc0] sm:$0xf]
  %v128 = vld [vmem:[%s1 + $0xc4] sm:$0xf]
  %v129 = vld [vmem:[%s1 + $0xc8] sm:$0xf]
  %v130 = vld [vmem:[%s1 + $0xcc] sm:$0xf]
  %v131 = vld [vmem:[%s1 + $0xd0] sm:$0xf]
  %v132 = vld [vmem:[%s1 + $0xd4] sm:$0xf]
  %v133 = vld [vmem:[%s1 + $0xd8] sm:$0xf]
  %v134 = vld [vmem:[%s1 + $0xdc] sm:$0xf]
  %v135 = vld [vmem:[%s1 + $0xe0] sm:$0xf]
  %v136 = vld [vmem:[%s1 + $0xe4] sm:$0xf]
  %v137 = vld [vmem:[%s1 + $0xe8] sm:$0xf]
  %v138 = vld [vmem:[%s1 + $0xec] sm:$0xf]
  %v139 = vld [vmem:[%s1 + $0xf0] sm:$0xf]
  %v140 = vld [vmem:[%s1 + $0xf4] sm:$0xf]
  %v141 = vld [vmem:[%s1 + $0xf8] sm:$0xf]
  %v142 = vld [vmem:[%s1 + $0xfc] sm:$0xf]
  %v143 = vld [vmem:[%s1 + $0x100] sm:$0xf]
  %v144 = vld [vmem:[%s1 + $0x104] sm:$0xf]
  %v145 = vld [vmem:[%s1 + $0x108] sm:$0xf]
  %v146 = vld [vmem:[%s1 + $0x10c] sm:$0xf]
  %v147 = vld [vmem:[%s1 + $0x110] sm:$0xf]
  %v148 = vld [vmem:[%s1 + $0x114] sm:$0xf]
  %v149 = vld [vmem:[%s1 + $0x118] sm:$0xf]
  %v150 = vld [vmem:[%s1 + $0x11c] sm:$0xf]
  %v151 = vld [vmem:[%s1 + $0x120] sm:$0xf]
  %v152 = vld [vmem:[%s1 + $0x124] sm:$0xf]
  %v153 = vld [vmem:[%s1 + $0x128] sm:$0xf]
  %v154 = vld [vmem:[%s1 + $0x12c] sm:$0xf]
  %v155 = vld [vmem:[%s1 + $0x130] sm:$0xf]
  %v156 = vld [vmem:[%s1 + $0x134] sm:$0xf]
  %v157 = vld [vmem:[%s1 + $0x138] sm:$0xf]
  %v158 = vld [vmem:[%s1 + $0x13c] sm:$0xf]
  %v159 = vld [vmem:[%s1 + $0x140] sm:$0xf]
  %v160 = vld [vmem:[%s1 + $0x144] sm:$0xf]
  %v161 = vld [vmem:[%s1 + $0x148] sm:$0xf]
  %v162 = vld [vmem:[%s1 + $0x14c] sm:$0xf]
  %v163 = vld [vmem:[%s1 + $0x150] sm:$0xf]
  %v164 = vld [vmem:[%s1 + $0x154] sm:$0xf]
  %v165 = vld [vmem:[%s1 + $0x158] sm:$0xf]
  %v166 = vld [vmem:[%s1 + $0x15c] sm:$0xf]
  %v167 = vld [vmem:[%s1 + $0x160] sm:$0xf]
  %v168 = vld [vmem:[%s1 + $0x164] sm:$0xf]
  %v169 = vld [vmem:[%s1 + $0x168] sm:$0xf]
  %v170 = vld [vmem:[%s1 + $0x16c] sm:$0xf]
  %v171 = vld [vmem:[%s1 + $0x170] sm:$0xf]
  %v172 = vld [vmem:[%s1 + $0x174] sm:$0xf]
  %v173 = vld [vmem:[%s1 + $0x178] sm:$0xf]
  %v174 = vld [vmem:[%s1 + $0x17c] sm:$0xf]
  %v175 = vld [vmem:[%s1 + $0x180] sm:$0xf]
  %v176 = vld [vmem:[%s1 + $0x184] sm:$0xf]
  %v177 = vld [vmem:[%s1 + $0x188] sm:$0xf]
  %v178 = vld [vmem:[%s1 + $0x18c] sm:$0xf]
  %v179 = vld [vmem:[%s2] sm:$0x1]
  %v181 = vlaneseq
  %v182 = vshrl.u32 %v181, 7
  %v183 = vsub.s32 0, %v182
  %v184 = vrot.slane %v179, %v183
  %v250 = vunpack.c.l.b16 %v15
  %v251 = vunpack.c.h.b16 %v15
  %v252 = vunpack.c.l.b16 %v16
  %v253 = vunpack.c.h.b16 %v16
  %v254 = vunpack.c.l.b16 %v17
  %v255 = vunpack.c.h.b16 %v17
  %v256 = vunpack.c.l.b16 %v18
  %v257 = vunpack.c.l.b16 %v19
  %v258 = vunpack.c.h.b16 %v19
  %v259 = vunpack.c.l.b16 %v20
  %v260 = vunpack.c.h.b16 %v20
  %v261 = vunpack.c.l.b16 %v21
  %v262 = vunpack.c.h.b16 %v21
  %v263 = vunpack.c.l.b16 %v22
  %v264 = vunpack.c.l.b16 %v23
  %v265 = vunpack.c.h.b16 %v23
  %v266 = vunpack.c.l.b16 %v24
  %v267 = vunpack.c.h.b16 %v24
  %v268 = vunpack.c.l.b16 %v25
  %v269 = vunpack.c.h.b16 %v25
  %v270 = vunpack.c.l.b16 %v26
  %v271 = vunpack.c.l.b16 %v27
  %v272 = vunpack.c.h.b16 %v27
  %v273 = vunpack.c.l.b16 %v28
  %v274 = vunpack.c.h.b16 %v28
  %v275 = vunpack.c.l.b16 %v29
  %v276 = vunpack.c.h.b16 %v29
  %v277 = vunpack.c.l.b16 %v30
  %v278 = vunpack.c.l.b16 %v31
  %v279 = vunpack.c.h.b16 %v31
  %v280 = vunpack.c.l.b16 %v32
  %v281 = vunpack.c.h.b16 %v32
  %v282 = vunpack.c.l.b16 %v33
  %v283 = vunpack.c.h.b16 %v33
  %v284 = vunpack.c.l.b16 %v34
  %v285 = vunpack.c.l.b16 %v35
  %v286 = vunpack.c.h.b16 %v35
  %v287 = vunpack.c.l.b16 %v36
  %v288 = vunpack.c.h.b16 %v36
  %v289 = vunpack.c.l.b16 %v37
  %v290 = vunpack.c.h.b16 %v37
  %v291 = vunpack.c.l.b16 %v38
  %v292 = vunpack.c.l.b16 %v39
  %v293 = vunpack.c.h.b16 %v39
  %v294 = vunpack.c.l.b16 %v40
  %v295 = vunpack.c.h.b16 %v40
  %v296 = vunpack.c.l.b16 %v41
  %v297 = vunpack.c.h.b16 %v41
  %v298 = vunpack.c.l.b16 %v42
  %v299 = vunpack.c.l.b16 %v43
  %v300 = vunpack.c.h.b16 %v43
  %v301 = vunpack.c.l.b16 %v44
  %v302 = vunpack.c.h.b16 %v44
  %v303 = vunpack.c.l.b16 %v45
  %v304 = vunpack.c.h.b16 %v45
  %v305 = vunpack.c.l.b16 %v46
  %v306 = vunpack.c.l.b16 %v47
  %v307 = vunpack.c.h.b16 %v47
  %v308 = vunpack.c.l.b16 %v48
  %v309 = vunpack.c.h.b16 %v48
  %v310 = vunpack.c.l.b16 %v49
  %v311 = vunpack.c.h.b16 %v49
  %v312 = vunpack.c.l.b16 %v50
  %v313 = vunpack.c.l.b16 %v51
  %v314 = vunpack.c.h.b16 %v51
  %v315 = vunpack.c.l.b16 %v52
  %v316 = vunpack.c.h.b16 %v52
  %v317 = vunpack.c.l.b16 %v53
  %v318 = vunpack.c.h.b16 %v53
  %v319 = vunpack.c.l.b16 %v54
  %v320 = vunpack.c.l.b16 %v55
  %v321 = vunpack.c.h.b16 %v55
  %v322 = vunpack.c.l.b16 %v56
  %v323 = vunpack.c.h.b16 %v56
  %v324 = vunpack.c.l.b16 %v57
  %v325 = vunpack.c.h.b16 %v57
  %v326 = vunpack.c.l.b16 %v58
  %v327 = vunpack.c.l.b16 %v59
  %v328 = vunpack.c.h.b16 %v59
  %v329 = vunpack.c.l.b16 %v60
  %v330 = vunpack.c.h.b16 %v60
  %v331 = vunpack.c.l.b16 %v61
  %v332 = vunpack.c.h.b16 %v61
  %v333 = vunpack.c.l.b16 %v62
  %v334 = vunpack.c.l.b16 %v63
  %v335 = vunpack.c.h.b16 %v63
  %v336 = vunpack.c.l.b16 %v64
  %v337 = vunpack.c.h.b16 %v64
  %v338 = vunpack.c.l.b16 %v65
  %v339 = vunpack.c.h.b16 %v65
  %v340 = vunpack.c.l.b16 %v66
  %v341 = vunpack.c.l.b16 %v67
  %v342 = vunpack.c.h.b16 %v67
  %v343 = vunpack.c.l.b16 %v68
  %v344 = vunpack.c.h.b16 %v68
  %v345 = vunpack.c.l.b16 %v69
  %v346 = vunpack.c.h.b16 %v69
  %v347 = vunpack.c.l.b16 %v70
  %v348 = vunpack.c.l.b16 %v71
  %v349 = vunpack.c.h.b16 %v71
  %v350 = vunpack.c.l.b16 %v72
  %v351 = vunpack.c.h.b16 %v72
  %v352 = vunpack.c.l.b16 %v73
  %v353 = vunpack.c.h.b16 %v73
  %v354 = vunpack.c.l.b16 %v74
  %v355 = vunpack.c.l.b16 %v75
  %v356 = vunpack.c.h.b16 %v75
  %v357 = vunpack.c.l.b16 %v76
  %v358 = vunpack.c.h.b16 %v76
  %v359 = vunpack.c.l.b16 %v77
  %v360 = vunpack.c.h.b16 %v77
  %v361 = vunpack.c.l.b16 %v78
  %v362 = vpack.c.b16 %v257, %v250
  %v363 = vpack.c.b16 %v258, %v251
  %v364 = vpack.c.b16 %v259, %v252
  %v365 = vpack.c.b16 %v260, %v253
  %v366 = vpack.c.b16 %v261, %v254
  %v367 = vpack.c.b16 %v262, %v255
  %v368 = vpack.c.b16 %v263, %v256
  %v369 = vpack.c.b16 %v271, %v264
  %v370 = vpack.c.b16 %v272, %v265
  %v371 = vpack.c.b16 %v273, %v266
  %v372 = vpack.c.b16 %v274, %v267
  %v373 = vpack.c.b16 %v275, %v268
  %v374 = vpack.c.b16 %v276, %v269
  %v375 = vpack.c.b16 %v277, %v270
  %v376 = vpack.c.b16 %v285, %v278
  %v377 = vpack.c.b16 %v286, %v279
  %v378 = vpack.c.b16 %v287, %v280
  %v379 = vpack.c.b16 %v288, %v281
  %v380 = vpack.c.b16 %v289, %v282
  %v381 = vpack.c.b16 %v290, %v283
  %v382 = vpack.c.b16 %v291, %v284
  %v383 = vpack.c.b16 %v299, %v292
  %v384 = vpack.c.b16 %v300, %v293
  %v385 = vpack.c.b16 %v301, %v294
  %v386 = vpack.c.b16 %v302, %v295
  %v387 = vpack.c.b16 %v303, %v296
  %v388 = vpack.c.b16 %v304, %v297
  %v389 = vpack.c.b16 %v305, %v298
  %v390 = vpack.c.b16 %v313, %v306
  %v391 = vpack.c.b16 %v314, %v307
  %v392 = vpack.c.b16 %v315, %v308
  %v393 = vpack.c.b16 %v316, %v309
  %v394 = vpack.c.b16 %v317, %v310
  %v395 = vpack.c.b16 %v318, %v311
  %v396 = vpack.c.b16 %v319, %v312
  %v397 = vpack.c.b16 %v327, %v320
  %v398 = vpack.c.b16 %v328, %v321
  %v399 = vpack.c.b16 %v329, %v322
  %v400 = vpack.c.b16 %v330, %v323
  %v401 = vpack.c.b16 %v331, %v324
  %v402 = vpack.c.b16 %v332, %v325
  %v403 = vpack.c.b16 %v333, %v326
  %v404 = vpack.c.b16 %v341, %v334
  %v405 = vpack.c.b16 %v342, %v335
  %v406 = vpack.c.b16 %v343, %v336
  %v407 = vpack.c.b16 %v344, %v337
  %v408 = vpack.c.b16 %v345, %v338
  %v409 = vpack.c.b16 %v346, %v339
  %v410 = vpack.c.b16 %v347, %v340
  %v411 = vpack.c.b16 %v355, %v348
  %v412 = vpack.c.b16 %v356, %v349
  %v413 = vpack.c.b16 %v357, %v350
  %v414 = vpack.c.b16 %v358, %v351
  %v415 = vpack.c.b16 %v359, %v352
  %v416 = vpack.c.b16 %v360, %v353
  %v417 = vpack.c.b16 %v361, %v354
  %v566 = vunpack.c.l.b16 %v79
  %v567 = vunpack.c.l.b16 %v80
  %v568 = vunpack.c.l.b16 %v81
  %v569 = vunpack.c.l.b16 %v82
  %v570 = vunpack.c.l.b16 %v83
  %v571 = vunpack.c.l.b16 %v84
  %v572 = vunpack.c.l.b16 %v85
  %v573 = vunpack.c.l.b16 %v86
  %v574 = vunpack.c.l.b16 %v87
  %v575 = vunpack.c.l.b16 %v88
  %v576 = vunpack.c.l.b16 %v89
  %v577 = vunpack.c.l.b16 %v90
  %v578 = vunpack.c.l.b16 %v91
  %v579 = vunpack.c.l.b16 %v92
  %v580 = vunpack.c.l.b16 %v93
  %v581 = vunpack.c.l.b16 %v94
  %v582 = vunpack.c.l.b16 %v95
  %v583 = vunpack.c.l.b16 %v96
  %v584 = vunpack.c.l.b16 %v97
  %v585 = vunpack.c.l.b16 %v98
  %v586 = vunpack.c.l.b16 %v99
  %v587 = vunpack.c.l.b16 %v100
  %v588 = vunpack.c.l.b16 %v101
  %v589 = vunpack.c.l.b16 %v102
  %v590 = vunpack.c.l.b16 %v103
  %v591 = vunpack.c.l.b16 %v104
  %v592 = vunpack.c.l.b16 %v105
  %v593 = vunpack.c.l.b16 %v106
  %v594 = vunpack.c.l.b16 %v107
  %v595 = vunpack.c.l.b16 %v108
  %v596 = vunpack.c.l.b16 %v109
  %v597 = vunpack.c.l.b16 %v110
  %v598 = vunpack.c.l.b16 %v111
  %v599 = vunpack.c.l.b16 %v112
  %v600 = vunpack.c.l.b16 %v113
  %v601 = vunpack.c.l.b16 %v114
  %v602 = vunpack.c.l.b16 %v115
  %v603 = vunpack.c.l.b16 %v116
  %v604 = vunpack.c.l.b16 %v117
  %v605 = vunpack.c.l.b16 %v118
  %v606 = vunpack.c.l.b16 %v119
  %v607 = vunpack.c.l.b16 %v120
  %v608 = vunpack.c.l.b16 %v121
  %v609 = vunpack.c.l.b16 %v122
  %v610 = vunpack.c.l.b16 %v123
  %v611 = vunpack.c.l.b16 %v124
  %v612 = vunpack.c.l.b16 %v125
  %v613 = vunpack.c.l.b16 %v126
  %v614 = vunpack.c.l.b16 %v127
  %v615 = vunpack.c.l.b16 %v128
  %v616 = vunpack.c.l.b16 %v129
  %v617 = vunpack.c.l.b16 %v130
  %v618 = vunpack.c.l.b16 %v131
  %v619 = vunpack.c.l.b16 %v132
  %v620 = vunpack.c.l.b16 %v133
  %v621 = vunpack.c.l.b16 %v134
  %v622 = vunpack.c.l.b16 %v135
  %v623 = vunpack.c.l.b16 %v136
  %v624 = vunpack.c.l.b16 %v137
  %v625 = vunpack.c.l.b16 %v138
  %v626 = vunpack.c.l.b16 %v139
  %v627 = vunpack.c.l.b16 %v140
  %v628 = vunpack.c.l.b16 %v141
  %v629 = vunpack.c.l.b16 %v142
  %v630 = vunpack.c.l.b16 %v143
  %v631 = vunpack.c.l.b16 %v144
  %v632 = vunpack.c.l.b16 %v145
  %v633 = vunpack.c.l.b16 %v146
  %v634 = vunpack.c.l.b16 %v147
  %v635 = vunpack.c.l.b16 %v148
  %v636 = vunpack.c.l.b16 %v149
  %v637 = vunpack.c.l.b16 %v150
  %v638 = vunpack.c.l.b16 %v151
  %v639 = vunpack.c.l.b16 %v152
  %v640 = vunpack.c.l.b16 %v153
  %v641 = vunpack.c.l.b16 %v154
  %v642 = vunpack.c.l.b16 %v155
  %v643 = vunpack.c.l.b16 %v156
  %v644 = vunpack.c.l.b16 %v157
  %v645 = vunpack.c.l.b16 %v158
  %v646 = vunpack.c.l.b16 %v159
  %v647 = vunpack.c.l.b16 %v160
  %v648 = vunpack.c.l.b16 %v161
  %v649 = vunpack.c.l.b16 %v162
  %v650 = vunpack.c.l.b16 %v163
  %v651 = vunpack.c.l.b16 %v164
  %v652 = vunpack.c.l.b16 %v165
  %v653 = vunpack.c.l.b16 %v166
  %v654 = vunpack.c.l.b16 %v167
  %v655 = vunpack.c.l.b16 %v168
  %v656 = vunpack.c.l.b16 %v169
  %v657 = vunpack.c.l.b16 %v170
  %v658 = vunpack.c.l.b16 %v171
  %v659 = vunpack.c.l.b16 %v172
  %v660 = vunpack.c.l.b16 %v173
  %v661 = vunpack.c.l.b16 %v174
  %v662 = vunpack.c.l.b16 %v175
  %v663 = vunpack.c.l.b16 %v176
  %v664 = vunpack.c.l.b16 %v177
  %v665 = vunpack.c.l.b16 %v178
  %v666 = vpack.c.b16 %v567, %v566
  %v667 = vpack.c.b16 %v569, %v568
  %v668 = vpack.c.b16 %v571, %v570
  %v669 = vpack.c.b16 %v573, %v572
  %v670 = vpack.c.b16 %v575, %v574
  %v671 = vpack.c.b16 %v577, %v576
  %v672 = vpack.c.b16 %v579, %v578
  %v673 = vpack.c.b16 %v581, %v580
  %v674 = vpack.c.b16 %v583, %v582
  %v675 = vpack.c.b16 %v585, %v584
  %v676 = vpack.c.b16 %v587, %v586
  %v677 = vpack.c.b16 %v589, %v588
  %v678 = vpack.c.b16 %v591, %v590
  %v679 = vpack.c.b16 %v593, %v592
  %v680 = vpack.c.b16 %v595, %v594
  %v681 = vpack.c.b16 %v597, %v596
  %v682 = vpack.c.b16 %v599, %v598
  %v683 = vpack.c.b16 %v601, %v600
  %v684 = vpack.c.b16 %v603, %v602
  %v685 = vpack.c.b16 %v605, %v604
  %v686 = vpack.c.b16 %v607, %v606
  %v687 = vpack.c.b16 %v609, %v608
  %v688 = vpack.c.b16 %v611, %v610
  %v689 = vpack.c.b16 %v613, %v612
  %v690 = vpack.c.b16 %v615, %v614
  %v691 = vpack.c.b16 %v617, %v616
  %v692 = vpack.c.b16 %v619, %v618
  %v693 = vpack.c.b16 %v621, %v620
  %v694 = vpack.c.b16 %v623, %v622
  %v695 = vpack.c.b16 %v625, %v624
  %v696 = vpack.c.b16 %v627, %v626
  %v697 = vpack.c.b16 %v629, %v628
  %v698 = vpack.c.b16 %v631, %v630
  %v699 = vpack.c.b16 %v633, %v632
  %v700 = vpack.c.b16 %v635, %v634
  %v701 = vpack.c.b16 %v637, %v636
  %v702 = vpack.c.b16 %v639, %v638
  %v703 = vpack.c.b16 %v641, %v640
  %v704 = vpack.c.b16 %v643, %v642
  %v705 = vpack.c.b16 %v645, %v644
  %v706 = vpack.c.b16 %v647, %v646
  %v707 = vpack.c.b16 %v649, %v648
  %v708 = vpack.c.b16 %v651, %v650
  %v709 = vpack.c.b16 %v653, %v652
  %v710 = vpack.c.b16 %v655, %v654
  %v711 = vpack.c.b16 %v657, %v656
  %v712 = vpack.c.b16 %v659, %v658
  %v713 = vpack.c.b16 %v661, %v660
  %v714 = vpack.c.b16 %v663, %v662
  %v715 = vpack.c.b16 %v665, %v664
  %vm766 = vcmask 261120
  %v768 = vsel %vm766, %v368, 0
  %v771 = vsel %vm766, %v375, 0
  %v774 = vsel %vm766, %v382, 0
  %v777 = vsel %vm766, %v389, 0
  %v780 = vsel %vm766, %v396, 0
  %v783 = vsel %vm766, %v403, 0
  %v786 = vsel %vm766, %v410, 0
  %v789 = vsel %vm766, %v417, 0
  %791 = vmatprep.subr.bf16.mxu0 0
  %792 = vmatpush1.bf16.msra.mxu0 %v673
  %793 = vmatprep.subr.bf16.mxu0 0
  %794 = vmatpush1.bf16.msra.mxu0 %v672
  %795 = vmatprep.subr.bf16.mxu0 0
  %796 = vmatpush1.bf16.msra.mxu0 %v671
  %797 = vmatprep.subr.bf16.mxu0 0
  %798 = vmatpush1.bf16.msra.mxu0 %v670
  %799 = vmatprep.subr.bf16.mxu0 0
  %800 = vmatpush1.bf16.msra.mxu0 %v669
  %801 = vmatprep.subr.bf16.mxu0 0
  %802 = vmatpush1.bf16.msra.mxu0 %v668
  %803 = vmatprep.subr.bf16.mxu0 0
  %804 = vmatpush1.bf16.msra.mxu0 %v667
  %805 = vmatprep.subr.bf16.mxu0 0
  %806 = vmatpush1.bf16.msra.mxu0 %v666
  %807 = vmatprep.subr.bf16.mxu0 0
  %808 = vmatpush2.bf16.msra.mxu0 %v681
  %809 = vmatprep.subr.bf16.mxu0 0
  %810 = vmatpush2.bf16.msra.mxu0 %v680
  %811 = vmatprep.subr.bf16.mxu0 0
  %812 = vmatpush2.bf16.msra.mxu0 %v679
  %813 = vmatprep.subr.bf16.mxu0 0
  %814 = vmatpush2.bf16.msra.mxu0 %v678
  %815 = vmatprep.subr.bf16.mxu0 0
  %816 = vmatpush2.bf16.msra.mxu0 %v677
  %817 = vmatprep.subr.bf16.mxu0 0
  %818 = vmatpush2.bf16.msra.mxu0 %v676
  %819 = vmatprep.subr.bf16.mxu0 0
  %820 = vmatpush2.bf16.msra.mxu0 %v675
  %821 = vmatprep.subr.bf16.mxu0 0
  %822 = vmatpush2.bf16.msra.mxu0 %v674
  %823 = vmatprep.mubr.bf16.mxu0 %v363
  %824 = vmatmul.mubr.bf16.gmra.mxu0 %v362
  %v825 = vpop.f32.mrf.mxu0
  %v826 = vadd.f32 %v184, %v825
  %v827 = vpop.f32.mrf.mxu0
  %v828 = vpop.f32.mrf.mxu0
  %v829 = vadd.f32 %v184, %v828
  %v830 = vpop.f32.mrf.mxu0
  %831 = vmatprep.mubr.bf16.mxu0 %v370
  %832 = vmatmul.mubr.bf16.gmra.mxu0 %v369
  %v833 = vpop.f32.mrf.mxu0
  %v834 = vadd.f32 %v184, %v833
  %v835 = vpop.f32.mrf.mxu0
  %v836 = vpop.f32.mrf.mxu0
  %v837 = vadd.f32 %v184, %v836
  %v838 = vpop.f32.mrf.mxu0
  %839 = vmatprep.mubr.bf16.mxu0 %v377
  %840 = vmatmul.mubr.bf16.gmra.mxu0 %v376
  %v841 = vpop.f32.mrf.mxu0
  %v842 = vadd.f32 %v184, %v841
  %v843 = vpop.f32.mrf.mxu0
  %v844 = vpop.f32.mrf.mxu0
  %v845 = vadd.f32 %v184, %v844
  %v846 = vpop.f32.mrf.mxu0
  %847 = vmatprep.mubr.bf16.mxu0 %v384
  %848 = vmatmul.mubr.bf16.gmra.mxu0 %v383
  %v849 = vpop.f32.mrf.mxu0
  %v850 = vadd.f32 %v184, %v849
  %v851 = vpop.f32.mrf.mxu0
  %v852 = vpop.f32.mrf.mxu0
  %v853 = vadd.f32 %v184, %v852
  %v854 = vpop.f32.mrf.mxu0
  %855 = vmatprep.mubr.bf16.mxu0 %v391
  %856 = vmatmul.mubr.bf16.gmra.mxu0 %v390
  %v857 = vpop.f32.mrf.mxu0
  %v858 = vadd.f32 %v184, %v857
  %v859 = vpop.f32.mrf.mxu0
  %v860 = vpop.f32.mrf.mxu0
  %v861 = vadd.f32 %v184, %v860
  %v862 = vpop.f32.mrf.mxu0
  %863 = vmatprep.mubr.bf16.mxu0 %v398
  %864 = vmatmul.mubr.bf16.gmra.mxu0 %v397
  %v865 = vpop.f32.mrf.mxu0
  %v866 = vadd.f32 %v184, %v865
  %v867 = vpop.f32.mrf.mxu0
  %v868 = vpop.f32.mrf.mxu0
  %v869 = vadd.f32 %v184, %v868
  %v870 = vpop.f32.mrf.mxu0
  %871 = vmatprep.mubr.bf16.mxu0 %v405
  %872 = vmatmul.mubr.bf16.gmra.mxu0 %v404
  %v873 = vpop.f32.mrf.mxu0
  %v874 = vadd.f32 %v184, %v873
  %v875 = vpop.f32.mrf.mxu0
  %v876 = vpop.f32.mrf.mxu0
  %v877 = vadd.f32 %v184, %v876
  %v878 = vpop.f32.mrf.mxu0
  %879 = vmatprep.mubr.bf16.mxu0 %v412
  %880 = vmatmul.mubr.bf16.gmra.mxu0 %v411
  %v881 = vpop.f32.mrf.mxu0
  %v882 = vadd.f32 %v184, %v881
  %v883 = vpop.f32.mrf.mxu0
  %v884 = vpop.f32.mrf.mxu0
  %v885 = vadd.f32 %v184, %v884
  %v886 = vpop.f32.mrf.mxu0
  %887 = vdwg.mxu0
  %888 = vmatprep.subr.bf16.mxu0 0
  %889 = vmatpush1.bf16.msra.mxu0 %v689
  %890 = vmatprep.subr.bf16.mxu0 0
  %891 = vmatpush1.bf16.msra.mxu0 %v688
  %892 = vmatprep.subr.bf16.mxu0 0
  %893 = vmatpush1.bf16.msra.mxu0 %v687
  %894 = vmatprep.subr.bf16.mxu0 0
  %895 = vmatpush1.bf16.msra.mxu0 %v686
  %896 = vmatprep.subr.bf16.mxu0 0
  %897 = vmatpush1.bf16.msra.mxu0 %v685
  %898 = vmatprep.subr.bf16.mxu0 0
  %899 = vmatpush1.bf16.msra.mxu0 %v684
  %900 = vmatprep.subr.bf16.mxu0 0
  %901 = vmatpush1.bf16.msra.mxu0 %v683
  %902 = vmatprep.subr.bf16.mxu0 0
  %903 = vmatpush1.bf16.msra.mxu0 %v682
  %904 = vmatprep.subr.bf16.mxu0 0
  %905 = vmatpush2.bf16.msra.mxu0 %v697
  %906 = vmatprep.subr.bf16.mxu0 0
  %907 = vmatpush2.bf16.msra.mxu0 %v696
  %908 = vmatprep.subr.bf16.mxu0 0
  %909 = vmatpush2.bf16.msra.mxu0 %v695
  %910 = vmatprep.subr.bf16.mxu0 0
  %911 = vmatpush2.bf16.msra.mxu0 %v694
  %912 = vmatprep.subr.bf16.mxu0 0
  %913 = vmatpush2.bf16.msra.mxu0 %v693
  %914 = vmatprep.subr.bf16.mxu0 0
  %915 = vmatpush2.bf16.msra.mxu0 %v692
  %916 = vmatprep.subr.bf16.mxu0 0
  %917 = vmatpush2.bf16.msra.mxu0 %v691
  %918 = vmatprep.subr.bf16.mxu0 0
  %919 = vmatpush2.bf16.msra.mxu0 %v690
  %920 = vmatprep.mubr.bf16.mxu0 %v365
  %921 = vmatmul.mubr.bf16.gmra.mxu0 %v364
  %v922 = vpop.f32.mrf.mxu0
  %v923 = vadd.f32 %v826, %v922
  %v924 = vpop.f32.mrf.mxu0
  %v925 = vpop.f32.mrf.mxu0
  %v926 = vadd.f32 %v829, %v925
  %v927 = vpop.f32.mrf.mxu0
  %928 = vmatprep.mubr.bf16.mxu0 %v372
  %929 = vmatmul.mubr.bf16.gmra.mxu0 %v371
  %v930 = vpop.f32.mrf.mxu0
  %v931 = vadd.f32 %v834, %v930
  %v932 = vpop.f32.mrf.mxu0
  %v933 = vpop.f32.mrf.mxu0
  %v934 = vadd.f32 %v837, %v933
  %v935 = vpop.f32.mrf.mxu0
  %936 = vmatprep.mubr.bf16.mxu0 %v379
  %937 = vmatmul.mubr.bf16.gmra.mxu0 %v378
  %v938 = vpop.f32.mrf.mxu0
  %v939 = vadd.f32 %v842, %v938
  %v940 = vpop.f32.mrf.mxu0
  %v941 = vpop.f32.mrf.mxu0
  %v942 = vadd.f32 %v845, %v941
  %v943 = vpop.f32.mrf.mxu0
  %944 = vmatprep.mubr.bf16.mxu0 %v386
  %945 = vmatmul.mubr.bf16.gmra.mxu0 %v385
  %v946 = vpop.f32.mrf.mxu0
  %v947 = vadd.f32 %v850, %v946
  %v948 = vpop.f32.mrf.mxu0
  %v949 = vpop.f32.mrf.mxu0
  %v950 = vadd.f32 %v853, %v949
  %v951 = vpop.f32.mrf.mxu0
  %952 = vmatprep.mubr.bf16.mxu0 %v393
  %953 = vmatmul.mubr.bf16.gmra.mxu0 %v392
  %v954 = vpop.f32.mrf.mxu0
  %v955 = vadd.f32 %v858, %v954
  %v956 = vpop.f32.mrf.mxu0
  %v957 = vpop.f32.mrf.mxu0
  %v958 = vadd.f32 %v861, %v957
  %v959 = vpop.f32.mrf.mxu0
  %960 = vmatprep.mubr.bf16.mxu0 %v400
  %961 = vmatmul.mubr.bf16.gmra.mxu0 %v399
  %v962 = vpop.f32.mrf.mxu0
  %v963 = vadd.f32 %v866, %v962
  %v964 = vpop.f32.mrf.mxu0
  %v965 = vpop.f32.mrf.mxu0
  %v966 = vadd.f32 %v869, %v965
  %v967 = vpop.f32.mrf.mxu0
  %968 = vmatprep.mubr.bf16.mxu0 %v407
  %969 = vmatmul.mubr.bf16.gmra.mxu0 %v406
  %v970 = vpop.f32.mrf.mxu0
  %v971 = vadd.f32 %v874, %v970
  %v972 = vpop.f32.mrf.mxu0
  %v973 = vpop.f32.mrf.mxu0
  %v974 = vadd.f32 %v877, %v973
  %v975 = vpop.f32.mrf.mxu0
  %976 = vmatprep.mubr.bf16.mxu0 %v414
  %977 = vmatmul.mubr.bf16.gmra.mxu0 %v413
  %v978 = vpop.f32.mrf.mxu0
  %v979 = vadd.f32 %v882, %v978
  %v980 = vpop.f32.mrf.mxu0
  %v981 = vpop.f32.mrf.mxu0
  %v982 = vadd.f32 %v885, %v981
  %v983 = vpop.f32.mrf.mxu0
  %984 = vdwg.mxu0
  %985 = vmatprep.subr.bf16.mxu0 0
  %986 = vmatpush1.bf16.msra.mxu0 %v705
  %987 = vmatprep.subr.bf16.mxu0 0
  %988 = vmatpush1.bf16.msra.mxu0 %v704
  %989 = vmatprep.subr.bf16.mxu0 0
  %990 = vmatpush1.bf16.msra.mxu0 %v703
  %991 = vmatprep.subr.bf16.mxu0 0
  %992 = vmatpush1.bf16.msra.mxu0 %v702
  %993 = vmatprep.subr.bf16.mxu0 0
  %994 = vmatpush1.bf16.msra.mxu0 %v701
  %995 = vmatprep.subr.bf16.mxu0 0
  %996 = vmatpush1.bf16.msra.mxu0 %v700
  %997 = vmatprep.subr.bf16.mxu0 0
  %998 = vmatpush1.bf16.msra.mxu0 %v699
  %999 = vmatprep.subr.bf16.mxu0 0
  %1000 = vmatpush1.bf16.msra.mxu0 %v698
  %1001 = vmatprep.subr.bf16.mxu0 0
  %1002 = vmatpush2.bf16.msra.mxu0 %v713
  %1003 = vmatprep.subr.bf16.mxu0 0
  %1004 = vmatpush2.bf16.msra.mxu0 %v712
  %1005 = vmatprep.subr.bf16.mxu0 0
  %1006 = vmatpush2.bf16.msra.mxu0 %v711
  %1007 = vmatprep.subr.bf16.mxu0 0
  %1008 = vmatpush2.bf16.msra.mxu0 %v710
  %1009 = vmatprep.subr.bf16.mxu0 0
  %1010 = vmatpush2.bf16.msra.mxu0 %v709
  %1011 = vmatprep.subr.bf16.mxu0 0
  %1012 = vmatpush2.bf16.msra.mxu0 %v708
  %1013 = vmatprep.subr.bf16.mxu0 0
  %1014 = vmatpush2.bf16.msra.mxu0 %v707
  %1015 = vmatprep.subr.bf16.mxu0 0
  %1016 = vmatpush2.bf16.msra.mxu0 %v706
  %1017 = vmatprep.mubr.bf16.mxu0 %v367
  %1018 = vmatmul.mubr.bf16.gmra.mxu0 %v366
  %v1019 = vpop.f32.mrf.mxu0
  %v1020 = vadd.f32 %v923, %v1019
  %v1021 = vpop.f32.mrf.mxu0
  %v1022 = vpop.f32.mrf.mxu0
  %v1023 = vadd.f32 %v926, %v1022
  %v1024 = vpop.f32.mrf.mxu0
  %1025 = vmatprep.mubr.bf16.mxu0 %v374
  %1026 = vmatmul.mubr.bf16.gmra.mxu0 %v373
  %v1027 = vpop.f32.mrf.mxu0
  %v1028 = vadd.f32 %v931, %v1027
  %v1029 = vpop.f32.mrf.mxu0
  %v1030 = vpop.f32.mrf.mxu0
  %v1031 = vadd.f32 %v934, %v1030
  %v1032 = vpop.f32.mrf.mxu0
  %1033 = vmatprep.mubr.bf16.mxu0 %v381
  %1034 = vmatmul.mubr.bf16.gmra.mxu0 %v380
  %v1035 = vpop.f32.mrf.mxu0
  %v1036 = vadd.f32 %v939, %v1035
  %v1037 = vpop.f32.mrf.mxu0
  %v1038 = vpop.f32.mrf.mxu0
  %v1039 = vadd.f32 %v942, %v1038
  %v1040 = vpop.f32.mrf.mxu0
  %1041 = vmatprep.mubr.bf16.mxu0 %v388
  %1042 = vmatmul.mubr.bf16.gmra.mxu0 %v387
  %v1043 = vpop.f32.mrf.mxu0
  %v1044 = vadd.f32 %v947, %v1043
  %v1045 = vpop.f32.mrf.mxu0
  %v1046 = vpop.f32.mrf.mxu0
  %v1047 = vadd.f32 %v950, %v1046
  %v1048 = vpop.f32.mrf.mxu0
  %1049 = vmatprep.mubr.bf16.mxu0 %v395
  %1050 = vmatmul.mubr.bf16.gmra.mxu0 %v394
  %v1051 = vpop.f32.mrf.mxu0
  %v1052 = vadd.f32 %v955, %v1051
  %v1053 = vpop.f32.mrf.mxu0
  %v1054 = vpop.f32.mrf.mxu0
  %v1055 = vadd.f32 %v958, %v1054
  %v1056 = vpop.f32.mrf.mxu0
  %1057 = vmatprep.mubr.bf16.mxu0 %v402
  %1058 = vmatmul.mubr.bf16.gmra.mxu0 %v401
  %v1059 = vpop.f32.mrf.mxu0
  %v1060 = vadd.f32 %v963, %v1059
  %v1061 = vpop.f32.mrf.mxu0
  %v1062 = vpop.f32.mrf.mxu0
  %v1063 = vadd.f32 %v966, %v1062
  %v1064 = vpop.f32.mrf.mxu0
  %1065 = vmatprep.mubr.bf16.mxu0 %v409
  %1066 = vmatmul.mubr.bf16.gmra.mxu0 %v408
  %v1067 = vpop.f32.mrf.mxu0
  %v1068 = vadd.f32 %v971, %v1067
  %v1069 = vpop.f32.mrf.mxu0
  %v1070 = vpop.f32.mrf.mxu0
  %v1071 = vadd.f32 %v974, %v1070
  %v1072 = vpop.f32.mrf.mxu0
  %1073 = vmatprep.mubr.bf16.mxu0 %v416
  %1074 = vmatmul.mubr.bf16.gmra.mxu0 %v415
  %v1075 = vpop.f32.mrf.mxu0
  %v1076 = vadd.f32 %v979, %v1075
  %v1077 = vpop.f32.mrf.mxu0
  %v1078 = vpop.f32.mrf.mxu0
  %v1079 = vadd.f32 %v982, %v1078
  %v1080 = vpop.f32.mrf.mxu0
  %1081 = vdwg.mxu0
  %1082 = vmatprep.subr.bf16.mxu0 0
  %1083 = vmatpush1.bf16.msra.mxu0 0
  %1084 = vmatprep.subr.bf16.mxu0 0
  %1085 = vmatpush1.bf16.msra.mxu0 0
  %1086 = vmatprep.subr.bf16.mxu0 0
  %1087 = vmatpush1.bf16.msra.mxu0 0
  %1088 = vmatprep.subr.bf16.mxu0 0
  %1089 = vmatpush1.bf16.msra.mxu0 0
  %1090 = vmatprep.subr.bf16.mxu0 0
  %1091 = vmatpush1.bf16.msra.mxu0 0
  %1092 = vmatprep.subr.bf16.mxu0 0
  %1093 = vmatpush1.bf16.msra.mxu0 0
  %1094 = vmatprep.subr.bf16.mxu0 0
  %1095 = vmatpush1.bf16.msra.mxu0 %v715
  %1096 = vmatprep.subr.bf16.mxu0 0
  %1097 = vmatpush1.bf16.msra.mxu0 %v714
  %1098 = vmatprep.subr.bf16.mxu0 0
  %1099 = vmatpush2.bf16.msra.mxu0 0
  %1100 = vmatprep.subr.bf16.mxu0 0
  %1101 = vmatpush2.bf16.msra.mxu0 0
  %1102 = vmatprep.subr.bf16.mxu0 0
  %1103 = vmatpush2.bf16.msra.mxu0 0
  %1104 = vmatprep.subr.bf16.mxu0 0
  %1105 = vmatpush2.bf16.msra.mxu0 0
  %1106 = vmatprep.subr.bf16.mxu0 0
  %1107 = vmatpush2.bf16.msra.mxu0 0
  %1108 = vmatprep.subr.bf16.mxu0 0
  %1109 = vmatpush2.bf16.msra.mxu0 0
  %1110 = vmatprep.subr.bf16.mxu0 0
  %1111 = vmatpush2.bf16.msra.mxu0 0
  %1112 = vmatprep.subr.bf16.mxu0 0
  %1113 = vmatpush2.bf16.msra.mxu0 0
  %1114 = vmatprep.mubr.bf16.mxu0 0
  %1115 = vmatmul.mubr.bf16.gmra.mxu0 %v768
  %v1116 = vpop.f32.mrf.mxu0
  %v1117 = vadd.f32 %v1020, %v1116
  %v1118 = vpop.f32.mrf.mxu0
  %v1119 = vpop.f32.mrf.mxu0
  %v1120 = vadd.f32 %v1023, %v1119
  %v1121 = vpop.f32.mrf.mxu0
  %1122 = vmatprep.mubr.bf16.mxu0 0
  %1123 = vmatmul.mubr.bf16.gmra.mxu0 %v771
  %v1124 = vpop.f32.mrf.mxu0
  %v1125 = vadd.f32 %v1028, %v1124
  %v1126 = vpop.f32.mrf.mxu0
  %v1127 = vpop.f32.mrf.mxu0
  %v1128 = vadd.f32 %v1031, %v1127
  %v1129 = vpop.f32.mrf.mxu0
  %1130 = vmatprep.mubr.bf16.mxu0 0
  %1131 = vmatmul.mubr.bf16.gmra.mxu0 %v774
  %v1132 = vpop.f32.mrf.mxu0
  %v1133 = vadd.f32 %v1036, %v1132
  %v1134 = vpop.f32.mrf.mxu0
  %v1135 = vpop.f32.mrf.mxu0
  %v1136 = vadd.f32 %v1039, %v1135
  %v1137 = vpop.f32.mrf.mxu0
  %1138 = vmatprep.mubr.bf16.mxu0 0
  %1139 = vmatmul.mubr.bf16.gmra.mxu0 %v777
  %v1140 = vpop.f32.mrf.mxu0
  %v1141 = vadd.f32 %v1044, %v1140
  %v1142 = vpop.f32.mrf.mxu0
  %v1143 = vpop.f32.mrf.mxu0
  %v1144 = vadd.f32 %v1047, %v1143
  %v1145 = vpop.f32.mrf.mxu0
  %1146 = vmatprep.mubr.bf16.mxu0 0
  %1147 = vmatmul.mubr.bf16.gmra.mxu0 %v780
  %v1148 = vpop.f32.mrf.mxu0
  %v1149 = vadd.f32 %v1052, %v1148
  %v1150 = vpop.f32.mrf.mxu0
  %v1151 = vpop.f32.mrf.mxu0
  %v1152 = vadd.f32 %v1055, %v1151
  %v1153 = vpop.f32.mrf.mxu0
  %1154 = vmatprep.mubr.bf16.mxu0 0
  %1155 = vmatmul.mubr.bf16.gmra.mxu0 %v783
  %v1156 = vpop.f32.mrf.mxu0
  %v1157 = vadd.f32 %v1060, %v1156
  %v1158 = vpop.f32.mrf.mxu0
  %v1159 = vpop.f32.mrf.mxu0
  %v1160 = vadd.f32 %v1063, %v1159
  %v1161 = vpop.f32.mrf.mxu0
  %1162 = vmatprep.mubr.bf16.mxu0 0
  %1163 = vmatmul.mubr.bf16.gmra.mxu0 %v786
  %v1164 = vpop.f32.mrf.mxu0
  %v1165 = vadd.f32 %v1068, %v1164
  %v1166 = vpop.f32.mrf.mxu0
  %v1167 = vpop.f32.mrf.mxu0
  %v1168 = vadd.f32 %v1071, %v1167
  %v1169 = vpop.f32.mrf.mxu0
  %1170 = vmatprep.mubr.bf16.mxu0 0
  %1171 = vmatmul.mubr.bf16.gmra.mxu0 %v789
  %v1172 = vpop.f32.mrf.mxu0
  %v1173 = vadd.f32 %v1076, %v1172
  %v1174 = vpop.f32.mrf.mxu0
  %v1175 = vpop.f32.mrf.mxu0
  %v1176 = vadd.f32 %v1079, %v1175
  %v1177 = vpop.f32.mrf.mxu0
  %1178 = vdwg.mxu0
  %v1179 = vmax.f32 %v1117, 0.0
  %v1180 = vmax.f32 %v1120, 0.0
  %v1181 = vmax.f32 %v1125, 0.0
  %v1182 = vmax.f32 %v1128, 0.0
  %v1183 = vmax.f32 %v1133, 0.0
  %v1184 = vmax.f32 %v1136, 0.0
  %v1185 = vmax.f32 %v1141, 0.0
  %v1186 = vmax.f32 %v1144, 0.0
  %v1187 = vmax.f32 %v1149, 0.0
  %v1188 = vmax.f32 %v1152, 0.0
  %v1189 = vmax.f32 %v1157, 0.0
  %v1190 = vmax.f32 %v1160, 0.0
  %v1191 = vmax.f32 %v1165, 0.0
  %v1192 = vmax.f32 %v1168, 0.0
  %v1193 = vmax.f32 %v1173, 0.0
  %v1194 = vmax.f32 %v1176, 0.0
  %v1195 = vpack.c.bf16 %v1180, %v1179
  %v1196 = vpack.c.bf16 %v1182, %v1181
  %v1197 = vpack.c.bf16 %v1184, %v1183
  %v1198 = vpack.c.bf16 %v1186, %v1185
  %v1199 = vpack.c.bf16 %v1188, %v1187
  %v1200 = vpack.c.bf16 %v1190, %v1189
  %v1201 = vpack.c.bf16 %v1192, %v1191
  %v1202 = vpack.c.bf16 %v1194, %v1193
  %v1211 = vunpack.c.l.b16 %v1195
  %v1212 = vunpack.c.h.b16 %v1195
  %v1213 = vunpack.c.l.b16 %v1196
  %v1214 = vunpack.c.h.b16 %v1196
  %v1215 = vunpack.c.l.b16 %v1197
  %v1216 = vunpack.c.h.b16 %v1197
  %v1217 = vunpack.c.l.b16 %v1198
  %v1218 = vunpack.c.h.b16 %v1198
  %v1219 = vunpack.c.l.b16 %v1199
  %v1220 = vunpack.c.h.b16 %v1199
  %v1221 = vunpack.c.l.b16 %v1200
  %v1222 = vunpack.c.h.b16 %v1200
  %v1223 = vunpack.c.l.b16 %v1201
  %v1224 = vunpack.c.h.b16 %v1201
  %v1225 = vunpack.c.l.b16 %v1202
  %v1226 = vunpack.c.h.b16 %v1202
  %v1227 = vpack.c.b16 %v1211, %v1211
  %v1228 = vpack.c.b16 %v1212, %v1212
  %v1229 = vpack.c.b16 %v1213, %v1213
  %v1230 = vpack.c.b16 %v1214, %v1214
  %v1231 = vpack.c.b16 %v1215, %v1215
  %v1232 = vpack.c.b16 %v1216, %v1216
  %v1233 = vpack.c.b16 %v1217, %v1217
  %v1234 = vpack.c.b16 %v1218, %v1218
  %v1235 = vpack.c.b16 %v1219, %v1219
  %v1236 = vpack.c.b16 %v1220, %v1220
  %v1237 = vpack.c.b16 %v1221, %v1221
  %v1238 = vpack.c.b16 %v1222, %v1222
  %v1239 = vpack.c.b16 %v1223, %v1223
  %v1240 = vpack.c.b16 %v1224, %v1224
  %v1241 = vpack.c.b16 %v1225, %v1225
  %v1242 = vpack.c.b16 %v1226, %v1226
  %vm1259 = vcmask 519168
  %1260 = vst.msk [vmem:[%s3] sm:$0xf] %vm1259, %v1227
  %1261 = vst.msk [vmem:[%s3 + $0x4] sm:$0xf] %vm1259, %v1228
  %1262 = vst.msk [vmem:[%s3 + $0x8] sm:$0xf] %vm1259, %v1229
  %1263 = vst.msk [vmem:[%s3 + $0xc] sm:$0xf] %vm1259, %v1230
  %1264 = vst.msk [vmem:[%s3 + $0x10] sm:$0xf] %vm1259, %v1231
  %1265 = vst.msk [vmem:[%s3 + $0x14] sm:$0xf] %vm1259, %v1232
  %1266 = vst.msk [vmem:[%s3 + $0x18] sm:$0xf] %vm1259, %v1233
  %1267 = vst.msk [vmem:[%s3 + $0x1c] sm:$0xf] %vm1259, %v1234
  %1268 = vst.msk [vmem:[%s3 + $0x20] sm:$0xf] %vm1259, %v1235
  %1269 = vst.msk [vmem:[%s3 + $0x24] sm:$0xf] %vm1259, %v1236
  %1270 = vst.msk [vmem:[%s3 + $0x28] sm:$0xf] %vm1259, %v1237
  %1271 = vst.msk [vmem:[%s3 + $0x2c] sm:$0xf] %vm1259, %v1238
  %1272 = vst.msk [vmem:[%s3 + $0x30] sm:$0xf] %vm1259, %v1239
  %1273 = vst.msk [vmem:[%s3 + $0x34] sm:$0xf] %vm1259, %v1240
  %1274 = vst.msk [vmem:[%s3 + $0x38] sm:$0xf] %vm1259, %v1241
  %1275 = vst.msk [vmem:[%s3 + $0x3c] sm:$0xf] %vm1259, %v1242
  // Predicated region
  $region14: #{gmlp_res_multi_conv35_forward.9} parent=0 // pred_check
    _
  $region15: #{gmlp_res_multi_conv35_forward.9} parent=0 // pred_check_branch
    %1277 = sbr.rel (0) target = $region17
  $region16: #{gmlp_res_multi_conv35_forward.9} parent=0 // pred_region
    _
  $region17: #{gmlp_res_multi_conv35_forward.9} parent=0 // pred_fallthru
    _
  // Predicated region
  $region18: #{gmlp_res_multi_conv35_forward.9} parent=0 // pred_check
    _
  $region19: #{gmlp_res_multi_conv35_forward.9} parent=0 // pred_check_branch
    %1279 = sbr.rel (0) target = $region21
  $region20: #{gmlp_res_multi_conv35_forward.9} parent=0 // pred_region
    _
  $region21: #{gmlp_res_multi_conv35_forward.9} parent=0 // pred_fallthru
    _

// kernel: gmlp_res_multi_conv35_forward.10
$region0: #{gmlp_res_multi_conv35_forward.10}
  #allocation0 [shape = 'u32[]', space=smem, size = 0x4, offset = 0x4, fixed_abs, tag = 'smem constant byte address 0x4 - core index']
  #allocation1 [shape = 'u32[144,128]{1,0:T(1,128)}', space=vmem, size = 0x12000, scoped, tag = 'internal scratch']
  %s0 = inlined_call_operand.vmem [shape: bf16[32,1600], index: 0, kind: input, shape index: {}]
  %s1 = inlined_call_operand.vmem [shape: bf16[1600,128], index: 1, kind: input, shape index: {}]
  %s2 = inlined_call_operand.vmem [shape: f32[1,128], index: 2, kind: input, shape index: {}]
  %s3 = inlined_call_operand.vmem [shape: bf16[32,128], index: 3, kind: output, shape index: {}]
  %s4 = sld [smem:[#allocation0]]
  $region22: #{gmlp_res_multi_conv35_forward.10} parent=0
    _
  %s6 = ssub.s32 1, %s4
  %s7 = scalar_select 0, %s6, %s4
  // Predicated region
  $region2: #{gmlp_res_multi_conv35_forward.10} parent=0 // pred_check
    _
  $region3: #{gmlp_res_multi_conv35_forward.10} parent=0 // pred_check_branch
    %9 = sbr.rel (0) target = $region5
  $region4: #{gmlp_res_multi_conv35_forward.10} parent=0 // pred_region
    _
  $region5: #{gmlp_res_multi_conv35_forward.10} parent=0 // pred_fallthru
    _
  // Predicated region
  $region6: #{gmlp_res_multi_conv35_forward.10} parent=0 // pred_check
    _
  $region7: #{gmlp_res_multi_conv35_forward.10} parent=0 // pred_check_branch
    %11 = sbr.rel (0) target = $region9
  $region8: #{gmlp_res_multi_conv35_forward.10} parent=0 // pred_region
    _
  $region9: #{gmlp_res_multi_conv35_forward.10} parent=0 // pred_fallthru
    _
  // Predicated region
  $region10: #{gmlp_res_multi_conv35_forward.10} parent=0 // pred_check
    _
  $region11: #{gmlp_res_multi_conv35_forward.10} parent=0 // pred_check_branch
    %13 = sbr.rel (0) target = $region13
  $region12: #{gmlp_res_multi_conv35_forward.10} parent=0 // pred_region
    _
  $region13: #{gmlp_res_multi_conv35_forward.10} parent=0 // pred_fallthru
    _
  %v15 = vld [vmem:[%s0] sm:$0xff]
  %v16 = vld [vmem:[%s0 + $0x8] sm:$0xff]
  %v17 = vld [vmem:[%s0 + $0x10] sm:$0xff]
  %v18 = vld [vmem:[%s0 + $0x18] sm:$0xff]
  %v19 = vld [vmem:[%s0 + $0x20] sm:$0xff]
  %v20 = vld [vmem:[%s0 + $0x28] sm:$0xff]
  %v21 = vld [vmem:[%s0 + $0x30] sm:$0xf]
  %v22 = vld [vmem:[%s0 + $0x34] sm:$0xff]
  %v23 = vld [vmem:[%s0 + $0x3c] sm:$0xff]
  %v24 = vld [vmem:[%s0 + $0x44] sm:$0xff]
  %v25 = vld [vmem:[%s0 + $0x4c] sm:$0xff]
  %v26 = vld [vmem:[%s0 + $0x54] sm:$0xff]
  %v27 = vld [vmem:[%s0 + $0x5c] sm:$0xff]
  %v28 = vld [vmem:[%s0 + $0x64] sm:$0xf]
  %v29 = vld [vmem:[%s0 + $0x68] sm:$0xff]
  %v30 = vld [vmem:[%s0 + $0x70] sm:$0xff]
  %v31 = vld [vmem:[%s0 + $0x78] sm:$0xff]
  %v32 = vld [vmem:[%s0 + $0x80] sm:$0xff]
  %v33 = vld [vmem:[%s0 + $0x88] sm:$0xff]
  %v34 = vld [vmem:[%s0 + $0x90] sm:$0xff]
  %v35 = vld [vmem:[%s0 + $0x98] sm:$0xf]
  %v36 = vld [vmem:[%s0 + $0x9c] sm:$0xff]
  %v37 = vld [vmem:[%s0 + $0xa4] sm:$0xff]
  %v38 = vld [vmem:[%s0 + $0xac] sm:$0xff]
  %v39 = vld [vmem:[%s0 + $0xb4] sm:$0xff]
  %v40 = vld [vmem:[%s0 + $0xbc] sm:$0xff]
  %v41 = vld [vmem:[%s0 + $0xc4] sm:$0xff]
  %v42 = vld [vmem:[%s0 + $0xcc] sm:$0xf]
  %v43 = vld [vmem:[%s1] sm:$0xf]
  %v44 = vld [vmem:[%s1 + $0x4] sm:$0xf]
  %v45 = vld [vmem:[%s1 + $0x8] sm:$0xf]
  %v46 = vld [vmem:[%s1 + $0xc] sm:$0xf]
  %v47 = vld [vmem:[%s1 + $0x10] sm:$0xf]
  %v48 = vld [vmem:[%s1 + $0x14] sm:$0xf]
  %v49 = vld [vmem:[%s1 + $0x18] sm:$0xf]
  %v50 = vld [vmem:[%s1 + $0x1c] sm:$0xf]
  %v51 = vld [vmem:[%s1 + $0x20] sm:$0xf]
  %v52 = vld [vmem:[%s1 + $0x24] sm:$0xf]
  %v53 = vld [vmem:[%s1 + $0x28] sm:$0xf]
  %v54 = vld [vmem:[%s1 + $0x2c] sm:$0xf]
  %v55 = vld [vmem:[%s1 + $0x30] sm:$0xf]
  %v56 = vld [vmem:[%s1 + $0x34] sm:$0xf]
  %v57 = vld [vmem:[%s1 + $0x38] sm:$0xf]
  %v58 = vld [vmem:[%s1 + $0x3c] sm:$0xf]
  %v59 = vld [vmem:[%s1 + $0x40] sm:$0xf]
  %v60 = vld [vmem:[%s1 + $0x44] sm:$0xf]
  %v61 = vld [vmem:[%s1 + $0x48] sm:$0xf]
  %v62 = vld [vmem:[%s1 + $0x4c] sm:$0xf]
  %v63 = vld [vmem:[%s1 + $0x50] sm:$0xf]
  %v64 = vld [vmem:[%s1 + $0x54] sm:$0xf]
  %v65 = vld [vmem:[%s1 + $0x58] sm:$0xf]
  %v66 = vld [vmem:[%s1 + $0x5c] sm:$0xf]
  %v67 = vld [vmem:[%s1 + $0x60] sm:$0xf]
  %v68 = vld [vmem:[%s1 + $0x64] sm:$0xf]
  %v69 = vld [vmem:[%s1 + $0x68] sm:$0xf]
  %v70 = vld [vmem:[%s1 + $0x6c] sm:$0xf]
  %v71 = vld [vmem:[%s1 + $0x70] sm:$0xf]
  %v72 = vld [vmem:[%s1 + $0x74] sm:$0xf]
  %v73 = vld [vmem:[%s1 + $0x78] sm:$0xf]
  %v74 = vld [vmem:[%s1 + $0x7c] sm:$0xf]
  %v75 = vld [vmem:[%s1 + $0x80] sm:$0xf]
  %v76 = vld [vmem:[%s1 + $0x84] sm:$0xf]
  %v77 = vld [vmem:[%s1 + $0x88] sm:$0xf]
  %v78 = vld [vmem:[%s1 + $0x8c] sm:$0xf]
  %v79 = vld [vmem:[%s1 + $0x90] sm:$0xf]
  %v80 = vld [vmem:[%s1 + $0x94] sm:$0xf]
  %v81 = vld [vmem:[%s1 + $0x98] sm:$0xf]
  %v82 = vld [vmem:[%s1 + $0x9c] sm:$0xf]
  %v83 = vld [vmem:[%s1 + $0xa0] sm:$0xf]
  %v84 = vld [vmem:[%s1 + $0xa4] sm:$0xf]
  %v85 = vld [vmem:[%s1 + $0xa8] sm:$0xf]
  %v86 = vld [vmem:[%s1 + $0xac] sm:$0xf]
  %v87 = vld [vmem:[%s1 + $0xb0] sm:$0xf]
  %v88 = vld [vmem:[%s1 + $0xb4] sm:$0xf]
  %v89 = vld [vmem:[%s1 + $0xb8] sm:$0xf]
  %v90 = vld [vmem:[%s1 + $0xbc] sm:$0xf]
  %v91 = vld [vmem:[%s1 + $0xc0] sm:$0xf]
  %v92 = vld [vmem:[%s1 + $0xc4] sm:$0xf]
  %v93 = vld [vmem:[%s1 + $0xc8] sm:$0xf]
  %v94 = vld [vmem:[%s1 + $0xcc] sm:$0xf]
  %v95 = vld [vmem:[%s1 + $0xd0] sm:$0xf]
  %v96 = vld [vmem:[%s1 + $0xd4] sm:$0xf]
  %v97 = vld [vmem:[%s1 + $0xd8] sm:$0xf]
  %v98 = vld [vmem:[%s1 + $0xdc] sm:$0xf]
  %v99 = vld [vmem:[%s1 + $0xe0] sm:$0xf]
  %v100 = vld [vmem:[%s1 + $0xe4] sm:$0xf]
  %v101 = vld [vmem:[%s1 + $0xe8] sm:$0xf]
  %v102 = vld [vmem:[%s1 + $0xec] sm:$0xf]
  %v103 = vld [vmem:[%s1 + $0xf0] sm:$0xf]
  %v104 = vld [vmem:[%s1 + $0xf4] sm:$0xf]
  %v105 = vld [vmem:[%s1 + $0xf8] sm:$0xf]
  %v106 = vld [vmem:[%s1 + $0xfc] sm:$0xf]
  %v107 = vld [vmem:[%s1 + $0x100] sm:$0xf]
  %v108 = vld [vmem:[%s1 + $0x104] sm:$0xf]
  %v109 = vld [vmem:[%s1 + $0x108] sm:$0xf]
  %v110 = vld [vmem:[%s1 + $0x10c] sm:$0xf]
  %v111 = vld [vmem:[%s1 + $0x110] sm:$0xf]
  %v112 = vld [vmem:[%s1 + $0x114] sm:$0xf]
  %v113 = vld [vmem:[%s1 + $0x118] sm:$0xf]
  %v114 = vld [vmem:[%s1 + $0x11c] sm:$0xf]
  %v115 = vld [vmem:[%s1 + $0x120] sm:$0xf]
  %v116 = vld [vmem:[%s1 + $0x124] sm:$0xf]
  %v117 = vld [vmem:[%s1 + $0x128] sm:$0xf]
  %v118 = vld [vmem:[%s1 + $0x12c] sm:$0xf]
  %v119 = vld [vmem:[%s1 + $0x130] sm:$0xf]
  %v120 = vld [vmem:[%s1 + $0x134] sm:$0xf]
  %v121 = vld [vmem:[%s1 + $0x138] sm:$0xf]
  %v122 = vld [vmem:[%s1 + $0x13c] sm:$0xf]
  %v123 = vld [vmem:[%s1 + $0x140] sm:$0xf]
  %v124 = vld [vmem:[%s1 + $0x144] sm:$0xf]
  %v125 = vld [vmem:[%s1 + $0x148] sm:$0xf]
  %v126 = vld [vmem:[%s1 + $0x14c] sm:$0xf]
  %v127 = vld [vmem:[%s1 + $0x150] sm:$0xf]
  %v128 = vld [vmem:[%s1 + $0x154] sm:$0xf]
  %v129 = vld [vmem:[%s1 + $0x158] sm:$0xf]
  %v130 = vld [vmem:[%s1 + $0x15c] sm:$0xf]
  %v131 = vld [vmem:[%s1 + $0x160] sm:$0xf]
  %v132 = vld [vmem:[%s1 + $0x164] sm:$0xf]
  %v133 = vld [vmem:[%s1 + $0x168] sm:$0xf]
  %v134 = vld [vmem:[%s1 + $0x16c] sm:$0xf]
  %v135 = vld [vmem:[%s1 + $0x170] sm:$0xf]
  %v136 = vld [vmem:[%s1 + $0x174] sm:$0xf]
  %v137 = vld [vmem:[%s1 + $0x178] sm:$0xf]
  %v138 = vld [vmem:[%s1 + $0x17c] sm:$0xf]
  %v139 = vld [vmem:[%s1 + $0x180] sm:$0xf]
  %v140 = vld [vmem:[%s1 + $0x184] sm:$0xf]
  %v141 = vld [vmem:[%s1 + $0x188] sm:$0xf]
  %v142 = vld [vmem:[%s1 + $0x18c] sm:$0xf]
  %v143 = vld [vmem:[%s1 + $0x190] sm:$0xf]
  %v144 = vld [vmem:[%s1 + $0x194] sm:$0xf]
  %v145 = vld [vmem:[%s1 + $0x198] sm:$0xf]
  %v146 = vld [vmem:[%s1 + $0x19c] sm:$0xf]
  %v147 = vld [vmem:[%s1 + $0x1a0] sm:$0xf]
  %v148 = vld [vmem:[%s1 + $0x1a4] sm:$0xf]
  %v149 = vld [vmem:[%s1 + $0x1a8] sm:$0xf]
  %v150 = vld [vmem:[%s1 + $0x1ac] sm:$0xf]
  %v151 = vld [vmem:[%s1 + $0x1b0] sm:$0xf]
  %v152 = vld [vmem:[%s1 + $0x1b4] sm:$0xf]
  %v153 = vld [vmem:[%s1 + $0x1b8] sm:$0xf]
  %v154 = vld [vmem:[%s1 + $0x1bc] sm:$0xf]
  %v155 = vld [vmem:[%s1 + $0x1c0] sm:$0xf]
  %v156 = vld [vmem:[%s1 + $0x1c4] sm:$0xf]
  %v157 = vld [vmem:[%s1 + $0x1c8] sm:$0xf]
  %v158 = vld [vmem:[%s1 + $0x1cc] sm:$0xf]
  %v159 = vld [vmem:[%s1 + $0x1d0] sm:$0xf]
  %v160 = vld [vmem:[%s1 + $0x1d4] sm:$0xf]
  %v161 = vld [vmem:[%s1 + $0x1d8] sm:$0xf]
  %v162 = vld [vmem:[%s1 + $0x1dc] sm:$0xf]
  %v163 = vld [vmem:[%s1 + $0x1e0] sm:$0xf]
  %v164 = vld [vmem:[%s1 + $0x1e4] sm:$0xf]
  %v165 = vld [vmem:[%s1 + $0x1e8] sm:$0xf]
  %v166 = vld [vmem:[%s1 + $0x1ec] sm:$0xf]
  %v167 = vld [vmem:[%s1 + $0x1f0] sm:$0xf]
  %v168 = vld [vmem:[%s1 + $0x1f4] sm:$0xf]
  %v169 = vld [vmem:[%s1 + $0x1f8] sm:$0xf]
  %v170 = vld [vmem:[%s1 + $0x1fc] sm:$0xf]
  %v171 = vld [vmem:[%s1 + $0x200] sm:$0xf]
  %v172 = vld [vmem:[%s1 + $0x204] sm:$0xf]
  %v173 = vld [vmem:[%s1 + $0x208] sm:$0xf]
  %v174 = vld [vmem:[%s1 + $0x20c] sm:$0xf]
  %v175 = vld [vmem:[%s1 + $0x210] sm:$0xf]
  %v176 = vld [vmem:[%s1 + $0x214] sm:$0xf]
  %v177 = vld [vmem:[%s1 + $0x218] sm:$0xf]
  %v178 = vld [vmem:[%s1 + $0x21c] sm:$0xf]
  %v179 = vld [vmem:[%s1 + $0x220] sm:$0xf]
  %v180 = vld [vmem:[%s1 + $0x224] sm:$0xf]
  %v181 = vld [vmem:[%s1 + $0x228] sm:$0xf]
  %v182 = vld [vmem:[%s1 + $0x22c] sm:$0xf]
  %v183 = vld [vmem:[%s1 + $0x230] sm:$0xf]
  %v184 = vld [vmem:[%s1 + $0x234] sm:$0xf]
  %v185 = vld [vmem:[%s1 + $0x238] sm:$0xf]
  %v186 = vld [vmem:[%s1 + $0x23c] sm:$0xf]
  %v187 = vld [vmem:[%s1 + $0x240] sm:$0xf]
  %v188 = vld [vmem:[%s1 + $0x244] sm:$0xf]
  %v189 = vld [vmem:[%s1 + $0x248] sm:$0xf]
  %v190 = vld [vmem:[%s1 + $0x24c] sm:$0xf]
  %v191 = vld [vmem:[%s1 + $0x250] sm:$0xf]
  %v192 = vld [vmem:[%s1 + $0x254] sm:$0xf]
  %v193 = vld [vmem:[%s1 + $0x258] sm:$0xf]
  %v194 = vld [vmem:[%s1 + $0x25c] sm:$0xf]
  %v195 = vld [vmem:[%s1 + $0x260] sm:$0xf]
  %v196 = vld [vmem:[%s1 + $0x264] sm:$0xf]
  %v197 = vld [vmem:[%s1 + $0x268] sm:$0xf]
  %v198 = vld [vmem:[%s1 + $0x26c] sm:$0xf]
  %v199 = vld [vmem:[%s1 + $0x270] sm:$0xf]
  %v200 = vld [vmem:[%s1 + $0x274] sm:$0xf]
  %v201 = vld [vmem:[%s1 + $0x278] sm:$0xf]
  %v202 = vld [vmem:[%s1 + $0x27c] sm:$0xf]
  %v203 = vld [vmem:[%s1 + $0x280] sm:$0xf]
  %v204 = vld [vmem:[%s1 + $0x284] sm:$0xf]
  %v205 = vld [vmem:[%s1 + $0x288] sm:$0xf]
  %v206 = vld [vmem:[%s1 + $0x28c] sm:$0xf]
  %v207 = vld [vmem:[%s1 + $0x290] sm:$0xf]
  %v208 = vld [vmem:[%s1 + $0x294] sm:$0xf]
  %v209 = vld [vmem:[%s1 + $0x298] sm:$0xf]
  %v210 = vld [vmem:[%s1 + $0x29c] sm:$0xf]
  %v211 = vld [vmem:[%s1 + $0x2a0] sm:$0xf]
  %v212 = vld [vmem:[%s1 + $0x2a4] sm:$0xf]
  %v213 = vld [vmem:[%s1 + $0x2a8] sm:$0xf]
  %v214 = vld [vmem:[%s1 + $0x2ac] sm:$0xf]
  %v215 = vld [vmem:[%s1 + $0x2b0] sm:$0xf]
  %v216 = vld [vmem:[%s1 + $0x2b4] sm:$0xf]
  %v217 = vld [vmem:[%s1 + $0x2b8] sm:$0xf]
  %v218 = vld [vmem:[%s1 + $0x2bc] sm:$0xf]
  %v219 = vld [vmem:[%s1 + $0x2c0] sm:$0xf]
  %v220 = vld [vmem:[%s1 + $0x2c4] sm:$0xf]
  %v221 = vld [vmem:[%s1 + $0x2c8] sm:$0xf]
  %v222 = vld [vmem:[%s1 + $0x2cc] sm:$0xf]
  %v223 = vld [vmem:[%s1 + $0x2d0] sm:$0xf]
  %v224 = vld [vmem:[%s1 + $0x2d4] sm:$0xf]
  %v225 = vld [vmem:[%s1 + $0x2d8] sm:$0xf]
  %v226 = vld [vmem:[%s1 + $0x2dc] sm:$0xf]
  %v227 = vld [vmem:[%s1 + $0x2e0] sm:$0xf]
  %v228 = vld [vmem:[%s1 + $0x2e4] sm:$0xf]
  %v229 = vld [vmem:[%s1 + $0x2e8] sm:$0xf]
  %v230 = vld [vmem:[%s1 + $0x2ec] sm:$0xf]
  %v231 = vld [vmem:[%s1 + $0x2f0] sm:$0xf]
  %v232 = vld [vmem:[%s1 + $0x2f4] sm:$0xf]
  %v233 = vld [vmem:[%s1 + $0x2f8] sm:$0xf]
  %v234 = vld [vmem:[%s1 + $0x2fc] sm:$0xf]
  %v235 = vld [vmem:[%s1 + $0x300] sm:$0xf]
  %v236 = vld [vmem:[%s1 + $0x304] sm:$0xf]
  %v237 = vld [vmem:[%s1 + $0x308] sm:$0xf]
  %v238 = vld [vmem:[%s1 + $0x30c] sm:$0xf]
  %v239 = vld [vmem:[%s1 + $0x310] sm:$0xf]
  %v240 = vld [vmem:[%s1 + $0x314] sm:$0xf]
  %v241 = vld [vmem:[%s1 + $0x318] sm:$0xf]
  %v242 = vld [vmem:[%s1 + $0x31c] sm:$0xf]
  %v243 = vld [vmem:[%s2] sm:$0x1]
  %v245 = vlaneseq
  %v246 = vshrl.u32 %v245, 7
  %v247 = vsub.s32 0, %v246
  %v248 = vrot.slane %v243, %v247
  %v278 = vunpack.c.l.b16 %v15
  %v279 = vunpack.c.h.b16 %v15
  %v280 = vunpack.c.l.b16 %v16
  %v281 = vunpack.c.h.b16 %v16
  %v282 = vunpack.c.l.b16 %v17
  %v283 = vunpack.c.h.b16 %v17
  %v284 = vunpack.c.l.b16 %v18
  %v285 = vunpack.c.h.b16 %v18
  %v286 = vunpack.c.l.b16 %v19
  %v287 = vunpack.c.h.b16 %v19
  %v288 = vunpack.c.l.b16 %v20
  %v289 = vunpack.c.h.b16 %v20
  %v290 = vunpack.c.l.b16 %v21
  %v291 = vunpack.c.l.b16 %v22
  %v292 = vunpack.c.h.b16 %v22
  %v293 = vunpack.c.l.b16 %v23
  %v294 = vunpack.c.h.b16 %v23
  %v295 = vunpack.c.l.b16 %v24
  %v296 = vunpack.c.h.b16 %v24
  %v297 = vunpack.c.l.b16 %v25
  %v298 = vunpack.c.h.b16 %v25
  %v299 = vunpack.c.l.b16 %v26
  %v300 = vunpack.c.h.b16 %v26
  %v301 = vunpack.c.l.b16 %v27
  %v302 = vunpack.c.h.b16 %v27
  %v303 = vunpack.c.l.b16 %v28
  %v304 = vunpack.c.l.b16 %v29
  %v305 = vunpack.c.h.b16 %v29
  %v306 = vunpack.c.l.b16 %v30
  %v307 = vunpack.c.h.b16 %v30
  %v308 = vunpack.c.l.b16 %v31
  %v309 = vunpack.c.h.b16 %v31
  %v310 = vunpack.c.l.b16 %v32
  %v311 = vunpack.c.h.b16 %v32
  %v312 = vunpack.c.l.b16 %v33
  %v313 = vunpack.c.h.b16 %v33
  %v314 = vunpack.c.l.b16 %v34
  %v315 = vunpack.c.h.b16 %v34
  %v316 = vunpack.c.l.b16 %v35
  %v317 = vunpack.c.l.b16 %v36
  %v318 = vunpack.c.h.b16 %v36
  %v319 = vunpack.c.l.b16 %v37
  %v320 = vunpack.c.h.b16 %v37
  %v321 = vunpack.c.l.b16 %v38
  %v322 = vunpack.c.h.b16 %v38
  %v323 = vunpack.c.l.b16 %v39
  %v324 = vunpack.c.h.b16 %v39
  %v325 = vunpack.c.l.b16 %v40
  %v326 = vunpack.c.h.b16 %v40
  %v327 = vunpack.c.l.b16 %v41
  %v328 = vunpack.c.h.b16 %v41
  %v329 = vunpack.c.l.b16 %v42
  %v330 = vpack.c.b16 %v291, %v278
  %v331 = vpack.c.b16 %v292, %v279
  %v332 = vpack.c.b16 %v293, %v280
  %v333 = vpack.c.b16 %v294, %v281
  %v334 = vpack.c.b16 %v295, %v282
  %v335 = vpack.c.b16 %v296, %v283
  %v336 = vpack.c.b16 %v297, %v284
  %v337 = vpack.c.b16 %v298, %v285
  %v338 = vpack.c.b16 %v299, %v286
  %v339 = vpack.c.b16 %v300, %v287
  %v340 = vpack.c.b16 %v301, %v288
  %v341 = vpack.c.b16 %v302, %v289
  %v342 = vpack.c.b16 %v303, %v290
  %v343 = vpack.c.b16 %v317, %v304
  %v344 = vpack.c.b16 %v318, %v305
  %v345 = vpack.c.b16 %v319, %v306
  %v346 = vpack.c.b16 %v320, %v307
  %v347 = vpack.c.b16 %v321, %v308
  %v348 = vpack.c.b16 %v322, %v309
  %v349 = vpack.c.b16 %v323, %v310
  %v350 = vpack.c.b16 %v324, %v311
  %v351 = vpack.c.b16 %v325, %v312
  %v352 = vpack.c.b16 %v326, %v313
  %v353 = vpack.c.b16 %v327, %v314
  %v354 = vpack.c.b16 %v328, %v315
  %v355 = vpack.c.b16 %v329, %v316
  %v580 = vunpack.c.l.b16 %v43
  %v581 = vunpack.c.l.b16 %v44
  %v582 = vunpack.c.l.b16 %v45
  %v583 = vunpack.c.l.b16 %v46
  %v584 = vunpack.c.l.b16 %v47
  %v585 = vunpack.c.l.b16 %v48
  %v586 = vunpack.c.l.b16 %v49
  %v587 = vunpack.c.l.b16 %v50
  %v588 = vunpack.c.l.b16 %v51
  %v589 = vunpack.c.l.b16 %v52
  %v590 = vunpack.c.l.b16 %v53
  %v591 = vunpack.c.l.b16 %v54
  %v592 = vunpack.c.l.b16 %v55
  %v593 = vunpack.c.l.b16 %v56
  %v594 = vunpack.c.l.b16 %v57
  %v595 = vunpack.c.l.b16 %v58
  %v596 = vunpack.c.l.b16 %v59
  %v597 = vunpack.c.l.b16 %v60
  %v598 = vunpack.c.l.b16 %v61
  %v599 = vunpack.c.l.b16 %v62
  %v600 = vunpack.c.l.b16 %v63
  %v601 = vunpack.c.l.b16 %v64
  %v602 = vunpack.c.l.b16 %v65
  %v603 = vunpack.c.l.b16 %v66
  %v604 = vunpack.c.l.b16 %v67
  %v605 = vunpack.c.l.b16 %v68
  %v606 = vunpack.c.l.b16 %v69
  %v607 = vunpack.c.l.b16 %v70
  %v608 = vunpack.c.l.b16 %v71
  %v609 = vunpack.c.l.b16 %v72
  %v610 = vunpack.c.l.b16 %v73
  %v611 = vunpack.c.l.b16 %v74
  %v612 = vunpack.c.l.b16 %v75
  %v613 = vunpack.c.l.b16 %v76
  %v614 = vunpack.c.l.b16 %v77
  %v615 = vunpack.c.l.b16 %v78
  %v616 = vunpack.c.l.b16 %v79
  %v617 = vunpack.c.l.b16 %v80
  %v618 = vunpack.c.l.b16 %v81
  %v619 = vunpack.c.l.b16 %v82
  %v620 = vunpack.c.l.b16 %v83
  %v621 = vunpack.c.l.b16 %v84
  %v622 = vunpack.c.l.b16 %v85
  %v623 = vunpack.c.l.b16 %v86
  %v624 = vunpack.c.l.b16 %v87
  %v625 = vunpack.c.l.b16 %v88
  %v626 = vunpack.c.l.b16 %v89
  %v627 = vunpack.c.l.b16 %v90
  %v628 = vunpack.c.l.b16 %v91
  %v629 = vunpack.c.l.b16 %v92
  %v630 = vunpack.c.l.b16 %v93
  %v631 = vunpack.c.l.b16 %v94
  %v632 = vunpack.c.l.b16 %v95
  %v633 = vunpack.c.l.b16 %v96
  %v634 = vunpack.c.l.b16 %v97
  %v635 = vunpack.c.l.b16 %v98
  %v636 = vunpack.c.l.b16 %v99
  %v637 = vunpack.c.l.b16 %v100
  %v638 = vunpack.c.l.b16 %v101
  %v639 = vunpack.c.l.b16 %v102
  %v640 = vunpack.c.l.b16 %v103
  %v641 = vunpack.c.l.b16 %v104
  %v642 = vunpack.c.l.b16 %v105
  %v643 = vunpack.c.l.b16 %v106
  %v644 = vunpack.c.l.b16 %v107
  %v645 = vunpack.c.l.b16 %v108
  %v646 = vunpack.c.l.b16 %v109
  %v647 = vunpack.c.l.b16 %v110
  %v648 = vunpack.c.l.b16 %v111
  %v649 = vunpack.c.l.b16 %v112
  %v650 = vunpack.c.l.b16 %v113
  %v651 = vunpack.c.l.b16 %v114
  %v652 = vunpack.c.l.b16 %v115
  %v653 = vunpack.c.l.b16 %v116
  %v654 = vunpack.c.l.b16 %v117
  %v655 = vunpack.c.l.b16 %v118
  %v656 = vunpack.c.l.b16 %v119
  %v657 = vunpack.c.l.b16 %v120
  %v658 = vunpack.c.l.b16 %v121
  %v659 = vunpack.c.l.b16 %v122
  %v660 = vunpack.c.l.b16 %v123
  %v661 = vunpack.c.l.b16 %v124
  %v662 = vunpack.c.l.b16 %v125
  %v663 = vunpack.c.l.b16 %v126
  %v664 = vunpack.c.l.b16 %v127
  %v665 = vunpack.c.l.b16 %v128
  %v666 = vunpack.c.l.b16 %v129
  %v667 = vunpack.c.l.b16 %v130
  %v668 = vunpack.c.l.b16 %v131
  %v669 = vunpack.c.l.b16 %v132
  %v670 = vunpack.c.l.b16 %v133
  %v671 = vunpack.c.l.b16 %v134
  %v672 = vunpack.c.l.b16 %v135
  %v673 = vunpack.c.l.b16 %v136
  %v674 = vunpack.c.l.b16 %v137
  %v675 = vunpack.c.l.b16 %v138
  %v676 = vunpack.c.l.b16 %v139
  %v677 = vunpack.c.l.b16 %v140
  %v678 = vunpack.c.l.b16 %v141
  %v679 = vunpack.c.l.b16 %v142
  %v680 = vunpack.c.l.b16 %v143
  %v681 = vunpack.c.l.b16 %v144
  %v682 = vunpack.c.l.b16 %v145
  %v683 = vunpack.c.l.b16 %v146
  %v684 = vunpack.c.l.b16 %v147
  %v685 = vunpack.c.l.b16 %v148
  %v686 = vunpack.c.l.b16 %v149
  %v687 = vunpack.c.l.b16 %v150
  %v688 = vunpack.c.l.b16 %v151
  %v689 = vunpack.c.l.b16 %v152
  %v690 = vunpack.c.l.b16 %v153
  %v691 = vunpack.c.l.b16 %v154
  %v692 = vunpack.c.l.b16 %v155
  %v693 = vunpack.c.l.b16 %v156
  %v694 = vunpack.c.l.b16 %v157
  %v695 = vunpack.c.l.b16 %v158
  %v696 = vunpack.c.l.b16 %v159
  %v697 = vunpack.c.l.b16 %v160
  %v698 = vunpack.c.l.b16 %v161
  %v699 = vunpack.c.l.b16 %v162
  %v700 = vunpack.c.l.b16 %v163
  %v701 = vunpack.c.l.b16 %v164
  %v702 = vunpack.c.l.b16 %v165
  %v703 = vunpack.c.l.b16 %v166
  %v704 = vunpack.c.l.b16 %v167
  %v705 = vunpack.c.l.b16 %v168
  %v706 = vunpack.c.l.b16 %v169
  %v707 = vunpack.c.l.b16 %v170
  %v708 = vunpack.c.l.b16 %v171
  %v709 = vunpack.c.l.b16 %v172
  %v710 = vunpack.c.l.b16 %v173
  %v711 = vunpack.c.l.b16 %v174
  %v712 = vunpack.c.l.b16 %v175
  %v713 = vunpack.c.l.b16 %v176
  %v714 = vunpack.c.l.b16 %v177
  %v715 = vunpack.c.l.b16 %v178
  %v716 = vunpack.c.l.b16 %v179
  %v717 = vunpack.c.l.b16 %v180
  %v718 = vunpack.c.l.b16 %v181
  %v719 = vunpack.c.l.b16 %v182
  %v720 = vunpack.c.l.b16 %v183
  %v721 = vunpack.c.l.b16 %v184
  %v722 = vunpack.c.l.b16 %v185
  %v723 = vunpack.c.l.b16 %v186
  %v724 = vunpack.c.l.b16 %v187
  %v725 = vunpack.c.l.b16 %v188
  %v726 = vunpack.c.l.b16 %v189
  %v727 = vunpack.c.l.b16 %v190
  %v728 = vunpack.c.l.b16 %v191
  %v729 = vunpack.c.l.b16 %v192
  %v730 = vunpack.c.l.b16 %v193
  %v731 = vunpack.c.l.b16 %v194
  %v732 = vunpack.c.l.b16 %v195
  %v733 = vunpack.c.l.b16 %v196
  %v734 = vunpack.c.l.b16 %v197
  %v735 = vunpack.c.l.b16 %v198
  %v736 = vunpack.c.l.b16 %v199
  %v737 = vunpack.c.l.b16 %v200
  %v738 = vunpack.c.l.b16 %v201
  %v739 = vunpack.c.l.b16 %v202
  %v740 = vunpack.c.l.b16 %v203
  %v741 = vunpack.c.l.b16 %v204
  %v742 = vunpack.c.l.b16 %v205
  %v743 = vunpack.c.l.b16 %v206
  %v744 = vunpack.c.l.b16 %v207
  %v745 = vunpack.c.l.b16 %v208
  %v746 = vunpack.c.l.b16 %v209
  %v747 = vunpack.c.l.b16 %v210
  %v748 = vunpack.c.l.b16 %v211
  %v749 = vunpack.c.l.b16 %v212
  %v750 = vunpack.c.l.b16 %v213
  %v751 = vunpack.c.l.b16 %v214
  %v752 = vunpack.c.l.b16 %v215
  %v753 = vunpack.c.l.b16 %v216
  %v754 = vunpack.c.l.b16 %v217
  %v755 = vunpack.c.l.b16 %v218
  %v756 = vunpack.c.l.b16 %v219
  %v757 = vunpack.c.l.b16 %v220
  %v758 = vunpack.c.l.b16 %v221
  %v759 = vunpack.c.l.b16 %v222
  %v760 = vunpack.c.l.b16 %v223
  %v761 = vunpack.c.l.b16 %v224
  %v762 = vunpack.c.l.b16 %v225
  %v763 = vunpack.c.l.b16 %v226
  %v764 = vunpack.c.l.b16 %v227
  %v765 = vunpack.c.l.b16 %v228
  %v766 = vunpack.c.l.b16 %v229
  %v767 = vunpack.c.l.b16 %v230
  %v768 = vunpack.c.l.b16 %v231
  %v769 = vunpack.c.l.b16 %v232
  %v770 = vunpack.c.l.b16 %v233
  %v771 = vunpack.c.l.b16 %v234
  %v772 = vunpack.c.l.b16 %v235
  %v773 = vunpack.c.l.b16 %v236
  %v774 = vunpack.c.l.b16 %v237
  %v775 = vunpack.c.l.b16 %v238
  %v776 = vunpack.c.l.b16 %v239
  %v777 = vunpack.c.l.b16 %v240
  %v778 = vunpack.c.l.b16 %v241
  %v779 = vunpack.c.l.b16 %v242
  %v780 = vpack.c.b16 %v581, %v580
  %v781 = vpack.c.b16 %v583, %v582
  %v782 = vpack.c.b16 %v585, %v584
  %v783 = vpack.c.b16 %v587, %v586
  %v784 = vpack.c.b16 %v589, %v588
  %v785 = vpack.c.b16 %v591, %v590
  %v786 = vpack.c.b16 %v593, %v592
  %v787 = vpack.c.b16 %v595, %v594
  %v788 = vpack.c.b16 %v597, %v596
  %v789 = vpack.c.b16 %v599, %v598
  %v790 = vpack.c.b16 %v601, %v600
  %v791 = vpack.c.b16 %v603, %v602
  %v792 = vpack.c.b16 %v605, %v604
  %v793 = vpack.c.b16 %v607, %v606
  %v794 = vpack.c.b16 %v609, %v608
  %v795 = vpack.c.b16 %v611, %v610
  %v796 = vpack.c.b16 %v613, %v612
  %v797 = vpack.c.b16 %v615, %v614
  %v798 = vpack.c.b16 %v617, %v616
  %v799 = vpack.c.b16 %v619, %v618
  %v800 = vpack.c.b16 %v621, %v620
  %v801 = vpack.c.b16 %v623, %v622
  %v802 = vpack.c.b16 %v625, %v624
  %v803 = vpack.c.b16 %v627, %v626
  %v804 = vpack.c.b16 %v629, %v628
  %v805 = vpack.c.b16 %v631, %v630
  %v806 = vpack.c.b16 %v633, %v632
  %v807 = vpack.c.b16 %v635, %v634
  %v808 = vpack.c.b16 %v637, %v636
  %v809 = vpack.c.b16 %v639, %v638
  %v810 = vpack.c.b16 %v641, %v640
  %v811 = vpack.c.b16 %v643, %v642
  %v812 = vpack.c.b16 %v645, %v644
  %v813 = vpack.c.b16 %v647, %v646
  %v814 = vpack.c.b16 %v649, %v648
  %v815 = vpack.c.b16 %v651, %v650
  %v816 = vpack.c.b16 %v653, %v652
  %v817 = vpack.c.b16 %v655, %v654
  %v818 = vpack.c.b16 %v657, %v656
  %v819 = vpack.c.b16 %v659, %v658
  %v820 = vpack.c.b16 %v661, %v660
  %v821 = vpack.c.b16 %v663, %v662
  %v822 = vpack.c.b16 %v665, %v664
  %v823 = vpack.c.b16 %v667, %v666
  %v824 = vpack.c.b16 %v669, %v668
  %v825 = vpack.c.b16 %v671, %v670
  %v826 = vpack.c.b16 %v673, %v672
  %v827 = vpack.c.b16 %v675, %v674
  %v828 = vpack.c.b16 %v677, %v676
  %v829 = vpack.c.b16 %v679, %v678
  %v830 = vpack.c.b16 %v681, %v680
  %v831 = vpack.c.b16 %v683, %v682
  %v832 = vpack.c.b16 %v685, %v684
  %v833 = vpack.c.b16 %v687, %v686
  %v834 = vpack.c.b16 %v689, %v688
  %v835 = vpack.c.b16 %v691, %v690
  %v836 = vpack.c.b16 %v693, %v692
  %v837 = vpack.c.b16 %v695, %v694
  %v838 = vpack.c.b16 %v697, %v696
  %v839 = vpack.c.b16 %v699, %v698
  %v840 = vpack.c.b16 %v701, %v700
  %v841 = vpack.c.b16 %v703, %v702
  %v842 = vpack.c.b16 %v705, %v704
  %v843 = vpack.c.b16 %v707, %v706
  %v844 = vpack.c.b16 %v709, %v708
  %v845 = vpack.c.b16 %v711, %v710
  %v846 = vpack.c.b16 %v713, %v712
  %v847 = vpack.c.b16 %v715, %v714
  %v848 = vpack.c.b16 %v717, %v716
  %v849 = vpack.c.b16 %v719, %v718
  %v850 = vpack.c.b16 %v721, %v720
  %v851 = vpack.c.b16 %v723, %v722
  %v852 = vpack.c.b16 %v725, %v724
  %v853 = vpack.c.b16 %v727, %v726
  %v854 = vpack.c.b16 %v729, %v728
  %v855 = vpack.c.b16 %v731, %v730
  %v856 = vpack.c.b16 %v733, %v732
  %v857 = vpack.c.b16 %v735, %v734
  %v858 = vpack.c.b16 %v737, %v736
  %v859 = vpack.c.b16 %v739, %v738
  %v860 = vpack.c.b16 %v741, %v740
  %v861 = vpack.c.b16 %v743, %v742
  %v862 = vpack.c.b16 %v745, %v744
  %v863 = vpack.c.b16 %v747, %v746
  %v864 = vpack.c.b16 %v749, %v748
  %v865 = vpack.c.b16 %v751, %v750
  %v866 = vpack.c.b16 %v753, %v752
  %v867 = vpack.c.b16 %v755, %v754
  %v868 = vpack.c.b16 %v757, %v756
  %v869 = vpack.c.b16 %v759, %v758
  %v870 = vpack.c.b16 %v761, %v760
  %v871 = vpack.c.b16 %v763, %v762
  %v872 = vpack.c.b16 %v765, %v764
  %v873 = vpack.c.b16 %v767, %v766
  %v874 = vpack.c.b16 %v769, %v768
  %v875 = vpack.c.b16 %v771, %v770
  %v876 = vpack.c.b16 %v773, %v772
  %v877 = vpack.c.b16 %v775, %v774
  %v878 = vpack.c.b16 %v777, %v776
  %v879 = vpack.c.b16 %v779, %v778
  %vm980 = vcmask 523264
  %v982 = vsel %vm980, %v342, 0
  %v985 = vsel %vm980, %v355, 0
  %987 = vmatprep.subr.bf16.mxu0 0
  %988 = vmatpush1.bf16.msra.mxu0 %v787
  %989 = vmatprep.subr.bf16.mxu0 0
  %990 = vmatpush1.bf16.msra.mxu0 %v786
  %991 = vmatprep.subr.bf16.mxu0 0
  %992 = vmatpush1.bf16.msra.mxu0 %v785
  %993 = vmatprep.subr.bf16.mxu0 0
  %994 = vmatpush1.bf16.msra.mxu0 %v784
  %995 = vmatprep.subr.bf16.mxu0 0
  %996 = vmatpush1.bf16.msra.mxu0 %v783
  %997 = vmatprep.subr.bf16.mxu0 0
  %998 = vmatpush1.bf16.msra.mxu0 %v782
  %999 = vmatprep.subr.bf16.mxu0 0
  %1000 = vmatpush1.bf16.msra.mxu0 %v781
  %1001 = vmatprep.subr.bf16.mxu0 0
  %1002 = vmatpush1.bf16.msra.mxu0 %v780
  %1003 = vmatprep.subr.bf16.mxu0 0
  %1004 = vmatpush2.bf16.msra.mxu0 %v795
  %1005 = vmatprep.subr.bf16.mxu0 0
  %1006 = vmatpush2.bf16.msra.mxu0 %v794
  %1007 = vmatprep.subr.bf16.mxu0 0
  %1008 = vmatpush2.bf16.msra.mxu0 %v793
  %1009 = vmatprep.subr.bf16.mxu0 0
  %1010 = vmatpush2.bf16.msra.mxu0 %v792
  %1011 = vmatprep.subr.bf16.mxu0 0
  %1012 = vmatpush2.bf16.msra.mxu0 %v791
  %1013 = vmatprep.subr.bf16.mxu0 0
  %1014 = vmatpush2.bf16.msra.mxu0 %v790
  %1015 = vmatprep.subr.bf16.mxu0 0
  %1016 = vmatpush2.bf16.msra.mxu0 %v789
  %1017 = vmatprep.subr.bf16.mxu0 0
  %1018 = vmatpush2.bf16.msra.mxu0 %v788
  %1019 = vmatprep.mubr.bf16.mxu0 %v331
  %1020 = vmatmul.mubr.bf16.gmra.mxu0 %v330
  %v1021 = vpop.f32.mrf.mxu0
  %v1022 = vadd.f32 %v248, %v1021
  %v1023 = vpop.f32.mrf.mxu0
  %v1024 = vpop.f32.mrf.mxu0
  %v1025 = vadd.f32 %v248, %v1024
  %v1026 = vpop.f32.mrf.mxu0
  %1027 = vmatprep.mubr.bf16.mxu0 %v344
  %1028 = vmatmul.mubr.bf16.gmra.mxu0 %v343
  %v1029 = vpop.f32.mrf.mxu0
  %v1030 = vadd.f32 %v248, %v1029
  %v1031 = vpop.f32.mrf.mxu0
  %v1032 = vpop.f32.mrf.mxu0
  %v1033 = vadd.f32 %v248, %v1032
  %v1034 = vpop.f32.mrf.mxu0
  %1035 = vdwg.mxu0
  %1036 = vmatprep.subr.bf16.mxu0 0
  %1037 = vmatpush1.bf16.msra.mxu0 %v803
  %1038 = vmatprep.subr.bf16.mxu0 0
  %1039 = vmatpush1.bf16.msra.mxu0 %v802
  %1040 = vmatprep.subr.bf16.mxu0 0
  %1041 = vmatpush1.bf16.msra.mxu0 %v801
  %1042 = vmatprep.subr.bf16.mxu0 0
  %1043 = vmatpush1.bf16.msra.mxu0 %v800
  %1044 = vmatprep.subr.bf16.mxu0 0
  %1045 = vmatpush1.bf16.msra.mxu0 %v799
  %1046 = vmatprep.subr.bf16.mxu0 0
  %1047 = vmatpush1.bf16.msra.mxu0 %v798
  %1048 = vmatprep.subr.bf16.mxu0 0
  %1049 = vmatpush1.bf16.msra.mxu0 %v797
  %1050 = vmatprep.subr.bf16.mxu0 0
  %1051 = vmatpush1.bf16.msra.mxu0 %v796
  %1052 = vmatprep.subr.bf16.mxu0 0
  %1053 = vmatpush2.bf16.msra.mxu0 %v811
  %1054 = vmatprep.subr.bf16.mxu0 0
  %1055 = vmatpush2.bf16.msra.mxu0 %v810
  %1056 = vmatprep.subr.bf16.mxu0 0
  %1057 = vmatpush2.bf16.msra.mxu0 %v809
  %1058 = vmatprep.subr.bf16.mxu0 0
  %1059 = vmatpush2.bf16.msra.mxu0 %v808
  %1060 = vmatprep.subr.bf16.mxu0 0
  %1061 = vmatpush2.bf16.msra.mxu0 %v807
  %1062 = vmatprep.subr.bf16.mxu0 0
  %1063 = vmatpush2.bf16.msra.mxu0 %v806
  %1064 = vmatprep.subr.bf16.mxu0 0
  %1065 = vmatpush2.bf16.msra.mxu0 %v805
  %1066 = vmatprep.subr.bf16.mxu0 0
  %1067 = vmatpush2.bf16.msra.mxu0 %v804
  %1068 = vmatprep.mubr.bf16.mxu0 %v333
  %1069 = vmatmul.mubr.bf16.gmra.mxu0 %v332
  %v1070 = vpop.f32.mrf.mxu0
  %v1071 = vadd.f32 %v1022, %v1070
  %v1072 = vpop.f32.mrf.mxu0
  %v1073 = vpop.f32.mrf.mxu0
  %v1074 = vadd.f32 %v1025, %v1073
  %v1075 = vpop.f32.mrf.mxu0
  %1076 = vmatprep.mubr.bf16.mxu0 %v346
  %1077 = vmatmul.mubr.bf16.gmra.mxu0 %v345
  %v1078 = vpop.f32.mrf.mxu0
  %v1079 = vadd.f32 %v1030, %v1078
  %v1080 = vpop.f32.mrf.mxu0
  %v1081 = vpop.f32.mrf.mxu0
  %v1082 = vadd.f32 %v1033, %v1081
  %v1083 = vpop.f32.mrf.mxu0
  %1084 = vdwg.mxu0
  %1085 = vmatprep.subr.bf16.mxu0 0
  %1086 = vmatpush1.bf16.msra.mxu0 %v819
  %1087 = vmatprep.subr.bf16.mxu0 0
  %1088 = vmatpush1.bf16.msra.mxu0 %v818
  %1089 = vmatprep.subr.bf16.mxu0 0
  %1090 = vmatpush1.bf16.msra.mxu0 %v817
  %1091 = vmatprep.subr.bf16.mxu0 0
  %1092 = vmatpush1.bf16.msra.mxu0 %v816
  %1093 = vmatprep.subr.bf16.mxu0 0
  %1094 = vmatpush1.bf16.msra.mxu0 %v815
  %1095 = vmatprep.subr.bf16.mxu0 0
  %1096 = vmatpush1.bf16.msra.mxu0 %v814
  %1097 = vmatprep.subr.bf16.mxu0 0
  %1098 = vmatpush1.bf16.msra.mxu0 %v813
  %1099 = vmatprep.subr.bf16.mxu0 0
  %1100 = vmatpush1.bf16.msra.mxu0 %v812
  %1101 = vmatprep.subr.bf16.mxu0 0
  %1102 = vmatpush2.bf16.msra.mxu0 %v827
  %1103 = vmatprep.subr.bf16.mxu0 0
  %1104 = vmatpush2.bf16.msra.mxu0 %v826
  %1105 = vmatprep.subr.bf16.mxu0 0
  %1106 = vmatpush2.bf16.msra.mxu0 %v825
  %1107 = vmatprep.subr.bf16.mxu0 0
  %1108 = vmatpush2.bf16.msra.mxu0 %v824
  %1109 = vmatprep.subr.bf16.mxu0 0
  %1110 = vmatpush2.bf16.msra.mxu0 %v823
  %1111 = vmatprep.subr.bf16.mxu0 0
  %1112 = vmatpush2.bf16.msra.mxu0 %v822
  %1113 = vmatprep.subr.bf16.mxu0 0
  %1114 = vmatpush2.bf16.msra.mxu0 %v821
  %1115 = vmatprep.subr.bf16.mxu0 0
  %1116 = vmatpush2.bf16.msra.mxu0 %v820
  %1117 = vmatprep.mubr.bf16.mxu0 %v335
  %1118 = vmatmul.mubr.bf16.gmra.mxu0 %v334
  %v1119 = vpop.f32.mrf.mxu0
  %v1120 = vadd.f32 %v1071, %v1119
  %v1121 = vpop.f32.mrf.mxu0
  %v1122 = vpop.f32.mrf.mxu0
  %v1123 = vadd.f32 %v1074, %v1122
  %v1124 = vpop.f32.mrf.mxu0
  %1125 = vmatprep.mubr.bf16.mxu0 %v348
  %1126 = vmatmul.mubr.bf16.gmra.mxu0 %v347
  %v1127 = vpop.f32.mrf.mxu0
  %v1128 = vadd.f32 %v1079, %v1127
  %v1129 = vpop.f32.mrf.mxu0
  %v1130 = vpop.f32.mrf.mxu0
  %v1131 = vadd.f32 %v1082, %v1130
  %v1132 = vpop.f32.mrf.mxu0
  %1133 = vdwg.mxu0
  %1134 = vmatprep.subr.bf16.mxu0 0
  %1135 = vmatpush1.bf16.msra.mxu0 %v835
  %1136 = vmatprep.subr.bf16.mxu0 0
  %1137 = vmatpush1.bf16.msra.mxu0 %v834
  %1138 = vmatprep.subr.bf16.mxu0 0
  %1139 = vmatpush1.bf16.msra.mxu0 %v833
  %1140 = vmatprep.subr.bf16.mxu0 0
  %1141 = vmatpush1.bf16.msra.mxu0 %v832
  %1142 = vmatprep.subr.bf16.mxu0 0
  %1143 = vmatpush1.bf16.msra.mxu0 %v831
  %1144 = vmatprep.subr.bf16.mxu0 0
  %1145 = vmatpush1.bf16.msra.mxu0 %v830
  %1146 = vmatprep.subr.bf16.mxu0 0
  %1147 = vmatpush1.bf16.msra.mxu0 %v829
  %1148 = vmatprep.subr.bf16.mxu0 0
  %1149 = vmatpush1.bf16.msra.mxu0 %v828
  %1150 = vmatprep.subr.bf16.mxu0 0
  %1151 = vmatpush2.bf16.msra.mxu0 %v843
  %1152 = vmatprep.subr.bf16.mxu0 0
  %1153 = vmatpush2.bf16.msra.mxu0 %v842
  %1154 = vmatprep.subr.bf16.mxu0 0
  %1155 = vmatpush2.bf16.msra.mxu0 %v841
  %1156 = vmatprep.subr.bf16.mxu0 0
  %1157 = vmatpush2.bf16.msra.mxu0 %v840
  %1158 = vmatprep.subr.bf16.mxu0 0
  %1159 = vmatpush2.bf16.msra.mxu0 %v839
  %1160 = vmatprep.subr.bf16.mxu0 0
  %1161 = vmatpush2.bf16.msra.mxu0 %v838
  %1162 = vmatprep.subr.bf16.mxu0 0
  %1163 = vmatpush2.bf16.msra.mxu0 %v837
  %1164 = vmatprep.subr.bf16.mxu0 0
  %1165 = vmatpush2.bf16.msra.mxu0 %v836
  %1166 = vmatprep.mubr.bf16.mxu0 %v337
  %1167 = vmatmul.mubr.bf16.gmra.mxu0 %v336
  %v1168 = vpop.f32.mrf.mxu0
  %v1169 = vadd.f32 %v1120, %v1168
  %v1170 = vpop.f32.mrf.mxu0
  %v1171 = vpop.f32.mrf.mxu0
  %v1172 = vadd.f32 %v1123, %v1171
  %v1173 = vpop.f32.mrf.mxu0
  %1174 = vmatprep.mubr.bf16.mxu0 %v350
  %1175 = vmatmul.mubr.bf16.gmra.mxu0 %v349
  %v1176 = vpop.f32.mrf.mxu0
  %v1177 = vadd.f32 %v1128, %v1176
  %v1178 = vpop.f32.mrf.mxu0
  %v1179 = vpop.f32.mrf.mxu0
  %v1180 = vadd.f32 %v1131, %v1179
  %v1181 = vpop.f32.mrf.mxu0
  %1182 = vdwg.mxu0
  %1183 = vmatprep.subr.bf16.mxu0 0
  %1184 = vmatpush1.bf16.msra.mxu0 %v851
  %1185 = vmatprep.subr.bf16.mxu0 0
  %1186 = vmatpush1.bf16.msra.mxu0 %v850
  %1187 = vmatprep.subr.bf16.mxu0 0
  %1188 = vmatpush1.bf16.msra.mxu0 %v849
  %1189 = vmatprep.subr.bf16.mxu0 0
  %1190 = vmatpush1.bf16.msra.mxu0 %v848
  %1191 = vmatprep.subr.bf16.mxu0 0
  %1192 = vmatpush1.bf16.msra.mxu0 %v847
  %1193 = vmatprep.subr.bf16.mxu0 0
  %1194 = vmatpush1.bf16.msra.mxu0 %v846
  %1195 = vmatprep.subr.bf16.mxu0 0
  %1196 = vmatpush1.bf16.msra.mxu0 %v845
  %1197 = vmatprep.subr.bf16.mxu0 0
  %1198 = vmatpush1.bf16.msra.mxu0 %v844
  %1199 = vmatprep.subr.bf16.mxu0 0
  %1200 = vmatpush2.bf16.msra.mxu0 %v859
  %1201 = vmatprep.subr.bf16.mxu0 0
  %1202 = vmatpush2.bf16.msra.mxu0 %v858
  %1203 = vmatprep.subr.bf16.mxu0 0
  %1204 = vmatpush2.bf16.msra.mxu0 %v857
  %1205 = vmatprep.subr.bf16.mxu0 0
  %1206 = vmatpush2.bf16.msra.mxu0 %v856
  %1207 = vmatprep.subr.bf16.mxu0 0
  %1208 = vmatpush2.bf16.msra.mxu0 %v855
  %1209 = vmatprep.subr.bf16.mxu0 0
  %1210 = vmatpush2.bf16.msra.mxu0 %v854
  %1211 = vmatprep.subr.bf16.mxu0 0
  %1212 = vmatpush2.bf16.msra.mxu0 %v853
  %1213 = vmatprep.subr.bf16.mxu0 0
  %1214 = vmatpush2.bf16.msra.mxu0 %v852
  %1215 = vmatprep.mubr.bf16.mxu0 %v339
  %1216 = vmatmul.mubr.bf16.gmra.mxu0 %v338
  %v1217 = vpop.f32.mrf.mxu0
  %v1218 = vadd.f32 %v1169, %v1217
  %v1219 = vpop.f32.mrf.mxu0
  %v1220 = vpop.f32.mrf.mxu0
  %v1221 = vadd.f32 %v1172, %v1220
  %v1222 = vpop.f32.mrf.mxu0
  %1223 = vmatprep.mubr.bf16.mxu0 %v352
  %1224 = vmatmul.mubr.bf16.gmra.mxu0 %v351
  %v1225 = vpop.f32.mrf.mxu0
  %v1226 = vadd.f32 %v1177, %v1225
  %v1227 = vpop.f32.mrf.mxu0
  %v1228 = vpop.f32.mrf.mxu0
  %v1229 = vadd.f32 %v1180, %v1228
  %v1230 = vpop.f32.mrf.mxu0
  %1231 = vdwg.mxu0
  %1232 = vmatprep.subr.bf16.mxu0 0
  %1233 = vmatpush1.bf16.msra.mxu0 %v867
  %1234 = vmatprep.subr.bf16.mxu0 0
  %1235 = vmatpush1.bf16.msra.mxu0 %v866
  %1236 = vmatprep.subr.bf16.mxu0 0
  %1237 = vmatpush1.bf16.msra.mxu0 %v865
  %1238 = vmatprep.subr.bf16.mxu0 0
  %1239 = vmatpush1.bf16.msra.mxu0 %v864
  %1240 = vmatprep.subr.bf16.mxu0 0
  %1241 = vmatpush1.bf16.msra.mxu0 %v863
  %1242 = vmatprep.subr.bf16.mxu0 0
  %1243 = vmatpush1.bf16.msra.mxu0 %v862
  %1244 = vmatprep.subr.bf16.mxu0 0
  %1245 = vmatpush1.bf16.msra.mxu0 %v861
  %1246 = vmatprep.subr.bf16.mxu0 0
  %1247 = vmatpush1.bf16.msra.mxu0 %v860
  %1248 = vmatprep.subr.bf16.mxu0 0
  %1249 = vmatpush2.bf16.msra.mxu0 %v875
  %1250 = vmatprep.subr.bf16.mxu0 0
  %1251 = vmatpush2.bf16.msra.mxu0 %v874
  %1252 = vmatprep.subr.bf16.mxu0 0
  %1253 = vmatpush2.bf16.msra.mxu0 %v873
  %1254 = vmatprep.subr.bf16.mxu0 0
  %1255 = vmatpush2.bf16.msra.mxu0 %v872
  %1256 = vmatprep.subr.bf16.mxu0 0
  %1257 = vmatpush2.bf16.msra.mxu0 %v871
  %1258 = vmatprep.subr.bf16.mxu0 0
  %1259 = vmatpush2.bf16.msra.mxu0 %v870
  %1260 = vmatprep.subr.bf16.mxu0 0
  %1261 = vmatpush2.bf16.msra.mxu0 %v869
  %1262 = vmatprep.subr.bf16.mxu0 0
  %1263 = vmatpush2.bf16.msra.mxu0 %v868
  %1264 = vmatprep.mubr.bf16.mxu0 %v341
  %1265 = vmatmul.mubr.bf16.gmra.mxu0 %v340
  %v1266 = vpop.f32.mrf.mxu0
  %v1267 = vadd.f32 %v1218, %v1266
  %v1268 = vpop.f32.mrf.mxu0
  %v1269 = vpop.f32.mrf.mxu0
  %v1270 = vadd.f32 %v1221, %v1269
  %v1271 = vpop.f32.mrf.mxu0
  %1272 = vmatprep.mubr.bf16.mxu0 %v354
  %1273 = vmatmul.mubr.bf16.gmra.mxu0 %v353
  %v1274 = vpop.f32.mrf.mxu0
  %v1275 = vadd.f32 %v1226, %v1274
  %v1276 = vpop.f32.mrf.mxu0
  %v1277 = vpop.f32.mrf.mxu0
  %v1278 = vadd.f32 %v1229, %v1277
  %v1279 = vpop.f32.mrf.mxu0
  %1280 = vdwg.mxu0
  %1281 = vmatprep.subr.bf16.mxu0 0
  %1282 = vmatpush1.bf16.msra.mxu0 0
  %1283 = vmatprep.subr.bf16.mxu0 0
  %1284 = vmatpush1.bf16.msra.mxu0 0
  %1285 = vmatprep.subr.bf16.mxu0 0
  %1286 = vmatpush1.bf16.msra.mxu0 0
  %1287 = vmatprep.subr.bf16.mxu0 0
  %1288 = vmatpush1.bf16.msra.mxu0 0
  %1289 = vmatprep.subr.bf16.mxu0 0
  %1290 = vmatpush1.bf16.msra.mxu0 %v879
  %1291 = vmatprep.subr.bf16.mxu0 0
  %1292 = vmatpush1.bf16.msra.mxu0 %v878
  %1293 = vmatprep.subr.bf16.mxu0 0
  %1294 = vmatpush1.bf16.msra.mxu0 %v877
  %1295 = vmatprep.subr.bf16.mxu0 0
  %1296 = vmatpush1.bf16.msra.mxu0 %v876
  %1297 = vmatprep.subr.bf16.mxu0 0
  %1298 = vmatpush2.bf16.msra.mxu0 0
  %1299 = vmatprep.subr.bf16.mxu0 0
  %1300 = vmatpush2.bf16.msra.mxu0 0
  %1301 = vmatprep.subr.bf16.mxu0 0
  %1302 = vmatpush2.bf16.msra.mxu0 0
  %1303 = vmatprep.subr.bf16.mxu0 0
  %1304 = vmatpush2.bf16.msra.mxu0 0
  %1305 = vmatprep.subr.bf16.mxu0 0
  %1306 = vmatpush2.bf16.msra.mxu0 0
  %1307 = vmatprep.subr.bf16.mxu0 0
  %1308 = vmatpush2.bf16.msra.mxu0 0
  %1309 = vmatprep.subr.bf16.mxu0 0
  %1310 = vmatpush2.bf16.msra.mxu0 0
  %1311 = vmatprep.subr.bf16.mxu0 0
  %1312 = vmatpush2.bf16.msra.mxu0 0
  %1313 = vmatprep.mubr.bf16.mxu0 0
  %1314 = vmatmul.mubr.bf16.gmra.mxu0 %v982
  %v1315 = vpop.f32.mrf.mxu0
  %v1316 = vadd.f32 %v1267, %v1315
  %v1317 = vpop.f32.mrf.mxu0
  %v1318 = vpop.f32.mrf.mxu0
  %v1319 = vadd.f32 %v1270, %v1318
  %v1320 = vpop.f32.mrf.mxu0
  %1321 = vmatprep.mubr.bf16.mxu0 0
  %1322 = vmatmul.mubr.bf16.gmra.mxu0 %v985
  %v1323 = vpop.f32.mrf.mxu0
  %v1324 = vadd.f32 %v1275, %v1323
  %v1325 = vpop.f32.mrf.mxu0
  %v1326 = vpop.f32.mrf.mxu0
  %v1327 = vadd.f32 %v1278, %v1326
  %v1328 = vpop.f32.mrf.mxu0
  %1329 = vdwg.mxu0
  %v1330 = vmax.f32 %v1316, 0.0
  %v1331 = vmax.f32 %v1319, 0.0
  %v1332 = vmax.f32 %v1324, 0.0
  %v1333 = vmax.f32 %v1327, 0.0
  %v1334 = vpack.c.bf16 %v1331, %v1330
  %v1335 = vpack.c.bf16 %v1333, %v1332
  %v1338 = vunpack.c.l.b16 %v1334
  %v1339 = vunpack.c.h.b16 %v1334
  %v1340 = vunpack.c.l.b16 %v1335
  %v1341 = vunpack.c.h.b16 %v1335
  %v1342 = vpack.c.b16 %v1338, %v1338
  %v1343 = vpack.c.b16 %v1339, %v1339
  %v1344 = vpack.c.b16 %v1340, %v1340
  %v1345 = vpack.c.b16 %v1341, %v1341
  %1350 = vst [vmem:[%s3] sm:$0xf] %v1342
  %1351 = vst [vmem:[%s3 + $0x4] sm:$0xf] %v1343
  %1352 = vst [vmem:[%s3 + $0x8] sm:$0xf] %v1344
  %1353 = vst [vmem:[%s3 + $0xc] sm:$0xf] %v1345
  // Predicated region
  $region14: #{gmlp_res_multi_conv35_forward.10} parent=0 // pred_check
    _
  $region15: #{gmlp_res_multi_conv35_forward.10} parent=0 // pred_check_branch
    %1355 = sbr.rel (0) target = $region17
  $region16: #{gmlp_res_multi_conv35_forward.10} parent=0 // pred_region
    _
  $region17: #{gmlp_res_multi_conv35_forward.10} parent=0 // pred_fallthru
    _
  // Predicated region
  $region18: #{gmlp_res_multi_conv35_forward.10} parent=0 // pred_check
    _
  $region19: #{gmlp_res_multi_conv35_forward.10} parent=0 // pred_check_branch
    %1357 = sbr.rel (0) target = $region21
  $region20: #{gmlp_res_multi_conv35_forward.10} parent=0 // pred_region
    _
  $region21: #{gmlp_res_multi_conv35_forward.10} parent=0 // pred_fallthru
    _

// kernel: gmlp_res_multi_conv35_forward.11
$region0: #{gmlp_res_multi_conv35_forward.11}
  #allocation0 [shape = 'u32[]', space=smem, size = 0x4, offset = 0x4, fixed_abs, tag = 'smem constant byte address 0x4 - core index']
  #allocation1 [shape = 'u32[144,128]{1,0:T(1,128)}', space=vmem, size = 0x12000, scoped, tag = 'internal scratch']
  %s0 = inlined_call_operand.vmem [shape: bf16[32,3200], index: 0, kind: input, shape index: {}]
  %s1 = inlined_call_operand.vmem [shape: bf16[3200,128], index: 1, kind: input, shape index: {}]
  %s2 = inlined_call_operand.vmem [shape: f32[1,128], index: 2, kind: input, shape index: {}]
  %s3 = inlined_call_operand.vmem [shape: bf16[32,128], index: 3, kind: output, shape index: {}]
  %s4 = sld [smem:[#allocation0]]
  $region22: #{gmlp_res_multi_conv35_forward.11} parent=0
    _
  %s6 = ssub.s32 1, %s4
  %s7 = scalar_select 0, %s6, %s4
  // Predicated region
  $region2: #{gmlp_res_multi_conv35_forward.11} parent=0 // pred_check
    _
  $region3: #{gmlp_res_multi_conv35_forward.11} parent=0 // pred_check_branch
    %9 = sbr.rel (0) target = $region5
  $region4: #{gmlp_res_multi_conv35_forward.11} parent=0 // pred_region
    _
  $region5: #{gmlp_res_multi_conv35_forward.11} parent=0 // pred_fallthru
    _
  // Predicated region
  $region6: #{gmlp_res_multi_conv35_forward.11} parent=0 // pred_check
    _
  $region7: #{gmlp_res_multi_conv35_forward.11} parent=0 // pred_check_branch
    %11 = sbr.rel (0) target = $region9
  $region8: #{gmlp_res_multi_conv35_forward.11} parent=0 // pred_region
    _
  $region9: #{gmlp_res_multi_conv35_forward.11} parent=0 // pred_fallthru
    _
  // Predicated region
  $region10: #{gmlp_res_multi_conv35_forward.11} parent=0 // pred_check
    _
  $region11: #{gmlp_res_multi_conv35_forward.11} parent=0 // pred_check_branch
    %13 = sbr.rel (0) target = $region13
  $region12: #{gmlp_res_multi_conv35_forward.11} parent=0 // pred_region
    _
  $region13: #{gmlp_res_multi_conv35_forward.11} parent=0 // pred_fallthru
    _
  %v15 = vld [vmem:[%s0] sm:$0xff]
  %v16 = vld [vmem:[%s0 + $0x8] sm:$0xff]
  %v17 = vld [vmem:[%s0 + $0x10] sm:$0xff]
  %v18 = vld [vmem:[%s0 + $0x18] sm:$0xff]
  %v19 = vld [vmem:[%s0 + $0x20] sm:$0xff]
  %v20 = vld [vmem:[%s0 + $0x28] sm:$0xff]
  %v21 = vld [vmem:[%s0 + $0x30] sm:$0xff]
  %v22 = vld [vmem:[%s0 + $0x38] sm:$0xff]
  %v23 = vld [vmem:[%s0 + $0x40] sm:$0xff]
  %v24 = vld [vmem:[%s0 + $0x48] sm:$0xff]
  %v25 = vld [vmem:[%s0 + $0x50] sm:$0xff]
  %v26 = vld [vmem:[%s0 + $0x58] sm:$0xff]
  %v27 = vld [vmem:[%s0 + $0x60] sm:$0xf]
  %v28 = vld [vmem:[%s0 + $0x64] sm:$0xff]
  %v29 = vld [vmem:[%s0 + $0x6c] sm:$0xff]
  %v30 = vld [vmem:[%s0 + $0x74] sm:$0xff]
  %v31 = vld [vmem:[%s0 + $0x7c] sm:$0xff]
  %v32 = vld [vmem:[%s0 + $0x84] sm:$0xff]
  %v33 = vld [vmem:[%s0 + $0x8c] sm:$0xff]
  %v34 = vld [vmem:[%s0 + $0x94] sm:$0xff]
  %v35 = vld [vmem:[%s0 + $0x9c] sm:$0xff]
  %v36 = vld [vmem:[%s0 + $0xa4] sm:$0xff]
  %v37 = vld [vmem:[%s0 + $0xac] sm:$0xff]
  %v38 = vld [vmem:[%s0 + $0xb4] sm:$0xff]
  %v39 = vld [vmem:[%s0 + $0xbc] sm:$0xff]
  %v40 = vld [vmem:[%s0 + $0xc4] sm:$0xf]
  %v41 = vld [vmem:[%s0 + $0xc8] sm:$0xff]
  %v42 = vld [vmem:[%s0 + $0xd0] sm:$0xff]
  %v43 = vld [vmem:[%s0 + $0xd8] sm:$0xff]
  %v44 = vld [vmem:[%s0 + $0xe0] sm:$0xff]
  %v45 = vld [vmem:[%s0 + $0xe8] sm:$0xff]
  %v46 = vld [vmem:[%s0 + $0xf0] sm:$0xff]
  %v47 = vld [vmem:[%s0 + $0xf8] sm:$0xff]
  %v48 = vld [vmem:[%s0 + $0x100] sm:$0xff]
  %v49 = vld [vmem:[%s0 + $0x108] sm:$0xff]
  %v50 = vld [vmem:[%s0 + $0x110] sm:$0xff]
  %v51 = vld [vmem:[%s0 + $0x118] sm:$0xff]
  %v52 = vld [vmem:[%s0 + $0x120] sm:$0xff]
  %v53 = vld [vmem:[%s0 + $0x128] sm:$0xf]
  %v54 = vld [vmem:[%s0 + $0x12c] sm:$0xff]
  %v55 = vld [vmem:[%s0 + $0x134] sm:$0xff]
  %v56 = vld [vmem:[%s0 + $0x13c] sm:$0xff]
  %v57 = vld [vmem:[%s0 + $0x144] sm:$0xff]
  %v58 = vld [vmem:[%s0 + $0x14c] sm:$0xff]
  %v59 = vld [vmem:[%s0 + $0x154] sm:$0xff]
  %v60 = vld [vmem:[%s0 + $0x15c] sm:$0xff]
  %v61 = vld [vmem:[%s0 + $0x164] sm:$0xff]
  %v62 = vld [vmem:[%s0 + $0x16c] sm:$0xff]
  %v63 = vld [vmem:[%s0 + $0x174] sm:$0xff]
  %v64 = vld [vmem:[%s0 + $0x17c] sm:$0xff]
  %v65 = vld [vmem:[%s0 + $0x184] sm:$0xff]
  %v66 = vld [vmem:[%s0 + $0x18c] sm:$0xf]
  %v67 = vld [vmem:[%s1] sm:$0xf]
  %v68 = vld [vmem:[%s1 + $0x4] sm:$0xf]
  %v69 = vld [vmem:[%s1 + $0x8] sm:$0xf]
  %v70 = vld [vmem:[%s1 + $0xc] sm:$0xf]
  %v71 = vld [vmem:[%s1 + $0x10] sm:$0xf]
  %v72 = vld [vmem:[%s1 + $0x14] sm:$0xf]
  %v73 = vld [vmem:[%s1 + $0x18] sm:$0xf]
  %v74 = vld [vmem:[%s1 + $0x1c] sm:$0xf]
  %v75 = vld [vmem:[%s1 + $0x20] sm:$0xf]
  %v76 = vld [vmem:[%s1 + $0x24] sm:$0xf]
  %v77 = vld [vmem:[%s1 + $0x28] sm:$0xf]
  %v78 = vld [vmem:[%s1 + $0x2c] sm:$0xf]
  %v79 = vld [vmem:[%s1 + $0x30] sm:$0xf]
  %v80 = vld [vmem:[%s1 + $0x34] sm:$0xf]
  %v81 = vld [vmem:[%s1 + $0x38] sm:$0xf]
  %v82 = vld [vmem:[%s1 + $0x3c] sm:$0xf]
  %v83 = vld [vmem:[%s1 + $0x40] sm:$0xf]
  %v84 = vld [vmem:[%s1 + $0x44] sm:$0xf]
  %v85 = vld [vmem:[%s1 + $0x48] sm:$0xf]
  %v86 = vld [vmem:[%s1 + $0x4c] sm:$0xf]
  %v87 = vld [vmem:[%s1 + $0x50] sm:$0xf]
  %v88 = vld [vmem:[%s1 + $0x54] sm:$0xf]
  %v89 = vld [vmem:[%s1 + $0x58] sm:$0xf]
  %v90 = vld [vmem:[%s1 + $0x5c] sm:$0xf]
  %v91 = vld [vmem:[%s1 + $0x60] sm:$0xf]
  %v92 = vld [vmem:[%s1 + $0x64] sm:$0xf]
  %v93 = vld [vmem:[%s1 + $0x68] sm:$0xf]
  %v94 = vld [vmem:[%s1 + $0x6c] sm:$0xf]
  %v95 = vld [vmem:[%s1 + $0x70] sm:$0xf]
  %v96 = vld [vmem:[%s1 + $0x74] sm:$0xf]
  %v97 = vld [vmem:[%s1 + $0x78] sm:$0xf]
  %v98 = vld [vmem:[%s1 + $0x7c] sm:$0xf]
  %v99 = vld [vmem:[%s1 + $0x80] sm:$0xf]
  %v100 = vld [vmem:[%s1 + $0x84] sm:$0xf]
  %v101 = vld [vmem:[%s1 + $0x88] sm:$0xf]
  %v102 = vld [vmem:[%s1 + $0x8c] sm:$0xf]
  %v103 = vld [vmem:[%s1 + $0x90] sm:$0xf]
  %v104 = vld [vmem:[%s1 + $0x94] sm:$0xf]
  %v105 = vld [vmem:[%s1 + $0x98] sm:$0xf]
  %v106 = vld [vmem:[%s1 + $0x9c] sm:$0xf]
  %v107 = vld [vmem:[%s1 + $0xa0] sm:$0xf]
  %v108 = vld [vmem:[%s1 + $0xa4] sm:$0xf]
  %v109 = vld [vmem:[%s1 + $0xa8] sm:$0xf]
  %v110 = vld [vmem:[%s1 + $0xac] sm:$0xf]
  %v111 = vld [vmem:[%s1 + $0xb0] sm:$0xf]
  %v112 = vld [vmem:[%s1 + $0xb4] sm:$0xf]
  %v113 = vld [vmem:[%s1 + $0xb8] sm:$0xf]
  %v114 = vld [vmem:[%s1 + $0xbc] sm:$0xf]
  %v115 = vld [vmem:[%s1 + $0xc0] sm:$0xf]
  %v116 = vld [vmem:[%s1 + $0xc4] sm:$0xf]
  %v117 = vld [vmem:[%s1 + $0xc8] sm:$0xf]
  %v118 = vld [vmem:[%s1 + $0xcc] sm:$0xf]
  %v119 = vld [vmem:[%s1 + $0xd0] sm:$0xf]
  %v120 = vld [vmem:[%s1 + $0xd4] sm:$0xf]
  %v121 = vld [vmem:[%s1 + $0xd8] sm:$0xf]
  %v122 = vld [vmem:[%s1 + $0xdc] sm:$0xf]
  %v123 = vld [vmem:[%s1 + $0xe0] sm:$0xf]
  %v124 = vld [vmem:[%s1 + $0xe4] sm:$0xf]
  %v125 = vld [vmem:[%s1 + $0xe8] sm:$0xf]
  %v126 = vld [vmem:[%s1 + $0xec] sm:$0xf]
  %v127 = vld [vmem:[%s1 + $0xf0] sm:$0xf]
  %v128 = vld [vmem:[%s1 + $0xf4] sm:$0xf]
  %v129 = vld [vmem:[%s1 + $0xf8] sm:$0xf]
  %v130 = vld [vmem:[%s1 + $0xfc] sm:$0xf]
  %v131 = vld [vmem:[%s1 + $0x100] sm:$0xf]
  %v132 = vld [vmem:[%s1 + $0x104] sm:$0xf]
  %v133 = vld [vmem:[%s1 + $0x108] sm:$0xf]
  %v134 = vld [vmem:[%s1 + $0x10c] sm:$0xf]
  %v135 = vld [vmem:[%s1 + $0x110] sm:$0xf]
  %v136 = vld [vmem:[%s1 + $0x114] sm:$0xf]
  %v137 = vld [vmem:[%s1 + $0x118] sm:$0xf]
  %v138 = vld [vmem:[%s1 + $0x11c] sm:$0xf]
  %v139 = vld [vmem:[%s1 + $0x120] sm:$0xf]
  %v140 = vld [vmem:[%s1 + $0x124] sm:$0xf]
  %v141 = vld [vmem:[%s1 + $0x128] sm:$0xf]
  %v142 = vld [vmem:[%s1 + $0x12c] sm:$0xf]
  %v143 = vld [vmem:[%s1 + $0x130] sm:$0xf]
  %v144 = vld [vmem:[%s1 + $0x134] sm:$0xf]
  %v145 = vld [vmem:[%s1 + $0x138] sm:$0xf]
  %v146 = vld [vmem:[%s1 + $0x13c] sm:$0xf]
  %v147 = vld [vmem:[%s1 + $0x140] sm:$0xf]
  %v148 = vld [vmem:[%s1 + $0x144] sm:$0xf]
  %v149 = vld [vmem:[%s1 + $0x148] sm:$0xf]
  %v150 = vld [vmem:[%s1 + $0x14c] sm:$0xf]
  %v151 = vld [vmem:[%s1 + $0x150] sm:$0xf]
  %v152 = vld [vmem:[%s1 + $0x154] sm:$0xf]
  %v153 = vld [vmem:[%s1 + $0x158] sm:$0xf]
  %v154 = vld [vmem:[%s1 + $0x15c] sm:$0xf]
  %v155 = vld [vmem:[%s1 + $0x160] sm:$0xf]
  %v156 = vld [vmem:[%s1 + $0x164] sm:$0xf]
  %v157 = vld [vmem:[%s1 + $0x168] sm:$0xf]
  %v158 = vld [vmem:[%s1 + $0x16c] sm:$0xf]
  %v159 = vld [vmem:[%s1 + $0x170] sm:$0xf]
  %v160 = vld [vmem:[%s1 + $0x174] sm:$0xf]
  %v161 = vld [vmem:[%s1 + $0x178] sm:$0xf]
  %v162 = vld [vmem:[%s1 + $0x17c] sm:$0xf]
  %v163 = vld [vmem:[%s1 + $0x180] sm:$0xf]
  %v164 = vld [vmem:[%s1 + $0x184] sm:$0xf]
  %v165 = vld [vmem:[%s1 + $0x188] sm:$0xf]
  %v166 = vld [vmem:[%s1 + $0x18c] sm:$0xf]
  %v167 = vld [vmem:[%s1 + $0x190] sm:$0xf]
  %v168 = vld [vmem:[%s1 + $0x194] sm:$0xf]
  %v169 = vld [vmem:[%s1 + $0x198] sm:$0xf]
  %v170 = vld [vmem:[%s1 + $0x19c] sm:$0xf]
  %v171 = vld [vmem:[%s1 + $0x1a0] sm:$0xf]
  %v172 = vld [vmem:[%s1 + $0x1a4] sm:$0xf]
  %v173 = vld [vmem:[%s1 + $0x1a8] sm:$0xf]
  %v174 = vld [vmem:[%s1 + $0x1ac] sm:$0xf]
  %v175 = vld [vmem:[%s1 + $0x1b0] sm:$0xf]
  %v176 = vld [vmem:[%s1 + $0x1b4] sm:$0xf]
  %v177 = vld [vmem:[%s1 + $0x1b8] sm:$0xf]
  %v178 = vld [vmem:[%s1 + $0x1bc] sm:$0xf]
  %v179 = vld [vmem:[%s1 + $0x1c0] sm:$0xf]
  %v180 = vld [vmem:[%s1 + $0x1c4] sm:$0xf]
  %v181 = vld [vmem:[%s1 + $0x1c8] sm:$0xf]
  %v182 = vld [vmem:[%s1 + $0x1cc] sm:$0xf]
  %v183 = vld [vmem:[%s1 + $0x1d0] sm:$0xf]
  %v184 = vld [vmem:[%s1 + $0x1d4] sm:$0xf]
  %v185 = vld [vmem:[%s1 + $0x1d8] sm:$0xf]
  %v186 = vld [vmem:[%s1 + $0x1dc] sm:$0xf]
  %v187 = vld [vmem:[%s1 + $0x1e0] sm:$0xf]
  %v188 = vld [vmem:[%s1 + $0x1e4] sm:$0xf]
  %v189 = vld [vmem:[%s1 + $0x1e8] sm:$0xf]
  %v190 = vld [vmem:[%s1 + $0x1ec] sm:$0xf]
  %v191 = vld [vmem:[%s1 + $0x1f0] sm:$0xf]
  %v192 = vld [vmem:[%s1 + $0x1f4] sm:$0xf]
  %v193 = vld [vmem:[%s1 + $0x1f8] sm:$0xf]
  %v194 = vld [vmem:[%s1 + $0x1fc] sm:$0xf]
  %v195 = vld [vmem:[%s1 + $0x200] sm:$0xf]
  %v196 = vld [vmem:[%s1 + $0x204] sm:$0xf]
  %v197 = vld [vmem:[%s1 + $0x208] sm:$0xf]
  %v198 = vld [vmem:[%s1 + $0x20c] sm:$0xf]
  %v199 = vld [vmem:[%s1 + $0x210] sm:$0xf]
  %v200 = vld [vmem:[%s1 + $0x214] sm:$0xf]
  %v201 = vld [vmem:[%s1 + $0x218] sm:$0xf]
  %v202 = vld [vmem:[%s1 + $0x21c] sm:$0xf]
  %v203 = vld [vmem:[%s1 + $0x220] sm:$0xf]
  %v204 = vld [vmem:[%s1 + $0x224] sm:$0xf]
  %v205 = vld [vmem:[%s1 + $0x228] sm:$0xf]
  %v206 = vld [vmem:[%s1 + $0x22c] sm:$0xf]
  %v207 = vld [vmem:[%s1 + $0x230] sm:$0xf]
  %v208 = vld [vmem:[%s1 + $0x234] sm:$0xf]
  %v209 = vld [vmem:[%s1 + $0x238] sm:$0xf]
  %v210 = vld [vmem:[%s1 + $0x23c] sm:$0xf]
  %v211 = vld [vmem:[%s1 + $0x240] sm:$0xf]
  %v212 = vld [vmem:[%s1 + $0x244] sm:$0xf]
  %v213 = vld [vmem:[%s1 + $0x248] sm:$0xf]
  %v214 = vld [vmem:[%s1 + $0x24c] sm:$0xf]
  %v215 = vld [vmem:[%s1 + $0x250] sm:$0xf]
  %v216 = vld [vmem:[%s1 + $0x254] sm:$0xf]
  %v217 = vld [vmem:[%s1 + $0x258] sm:$0xf]
  %v218 = vld [vmem:[%s1 + $0x25c] sm:$0xf]
  %v219 = vld [vmem:[%s1 + $0x260] sm:$0xf]
  %v220 = vld [vmem:[%s1 + $0x264] sm:$0xf]
  %v221 = vld [vmem:[%s1 + $0x268] sm:$0xf]
  %v222 = vld [vmem:[%s1 + $0x26c] sm:$0xf]
  %v223 = vld [vmem:[%s1 + $0x270] sm:$0xf]
  %v224 = vld [vmem:[%s1 + $0x274] sm:$0xf]
  %v225 = vld [vmem:[%s1 + $0x278] sm:$0xf]
  %v226 = vld [vmem:[%s1 + $0x27c] sm:$0xf]
  %v227 = vld [vmem:[%s1 + $0x280] sm:$0xf]
  %v228 = vld [vmem:[%s1 + $0x284] sm:$0xf]
  %v229 = vld [vmem:[%s1 + $0x288] sm:$0xf]
  %v230 = vld [vmem:[%s1 + $0x28c] sm:$0xf]
  %v231 = vld [vmem:[%s1 + $0x290] sm:$0xf]
  %v232 = vld [vmem:[%s1 + $0x294] sm:$0xf]
  %v233 = vld [vmem:[%s1 + $0x298] sm:$0xf]
  %v234 = vld [vmem:[%s1 + $0x29c] sm:$0xf]
  %v235 = vld [vmem:[%s1 + $0x2a0] sm:$0xf]
  %v236 = vld [vmem:[%s1 + $0x2a4] sm:$0xf]
  %v237 = vld [vmem:[%s1 + $0x2a8] sm:$0xf]
  %v238 = vld [vmem:[%s1 + $0x2ac] sm:$0xf]
  %v239 = vld [vmem:[%s1 + $0x2b0] sm:$0xf]
  %v240 = vld [vmem:[%s1 + $0x2b4] sm:$0xf]
  %v241 = vld [vmem:[%s1 + $0x2b8] sm:$0xf]
  %v242 = vld [vmem:[%s1 + $0x2bc] sm:$0xf]
  %v243 = vld [vmem:[%s1 + $0x2c0] sm:$0xf]
  %v244 = vld [vmem:[%s1 + $0x2c4] sm:$0xf]
  %v245 = vld [vmem:[%s1 + $0x2c8] sm:$0xf]
  %v246 = vld [vmem:[%s1 + $0x2cc] sm:$0xf]
  %v247 = vld [vmem:[%s1 + $0x2d0] sm:$0xf]
  %v248 = vld [vmem:[%s1 + $0x2d4] sm:$0xf]
  %v249 = vld [vmem:[%s1 + $0x2d8] sm:$0xf]
  %v250 = vld [vmem:[%s1 + $0x2dc] sm:$0xf]
  %v251 = vld [vmem:[%s1 + $0x2e0] sm:$0xf]
  %v252 = vld [vmem:[%s1 + $0x2e4] sm:$0xf]
  %v253 = vld [vmem:[%s1 + $0x2e8] sm:$0xf]
  %v254 = vld [vmem:[%s1 + $0x2ec] sm:$0xf]
  %v255 = vld [vmem:[%s1 + $0x2f0] sm:$0xf]
  %v256 = vld [vmem:[%s1 + $0x2f4] sm:$0xf]
  %v257 = vld [vmem:[%s1 + $0x2f8] sm:$0xf]
  %v258 = vld [vmem:[%s1 + $0x2fc] sm:$0xf]
  %v259 = vld [vmem:[%s1 + $0x300] sm:$0xf]
  %v260 = vld [vmem:[%s1 + $0x304] sm:$0xf]
  %v261 = vld [vmem:[%s1 + $0x308] sm:$0xf]
  %v262 = vld [vmem:[%s1 + $0x30c] sm:$0xf]
  %v263 = vld [vmem:[%s1 + $0x310] sm:$0xf]
  %v264 = vld [vmem:[%s1 + $0x314] sm:$0xf]
  %v265 = vld [vmem:[%s1 + $0x318] sm:$0xf]
  %v266 = vld [vmem:[%s1 + $0x31c] sm:$0xf]
  %v267 = vld [vmem:[%s1 + $0x320] sm:$0xf]
  %v268 = vld [vmem:[%s1 + $0x324] sm:$0xf]
  %v269 = vld [vmem:[%s1 + $0x328] sm:$0xf]
  %v270 = vld [vmem:[%s1 + $0x32c] sm:$0xf]
  %v271 = vld [vmem:[%s1 + $0x330] sm:$0xf]
  %v272 = vld [vmem:[%s1 + $0x334] sm:$0xf]
  %v273 = vld [vmem:[%s1 + $0x338] sm:$0xf]
  %v274 = vld [vmem:[%s1 + $0x33c] sm:$0xf]
  %v275 = vld [vmem:[%s1 + $0x340] sm:$0xf]
  %v276 = vld [vmem:[%s1 + $0x344] sm:$0xf]
  %v277 = vld [vmem:[%s1 + $0x348] sm:$0xf]
  %v278 = vld [vmem:[%s1 + $0x34c] sm:$0xf]
  %v279 = vld [vmem:[%s1 + $0x350] sm:$0xf]
  %v280 = vld [vmem:[%s1 + $0x354] sm:$0xf]
  %v281 = vld [vmem:[%s1 + $0x358] sm:$0xf]
  %v282 = vld [vmem:[%s1 + $0x35c] sm:$0xf]
  %v283 = vld [vmem:[%s1 + $0x360] sm:$0xf]
  %v284 = vld [vmem:[%s1 + $0x364] sm:$0xf]
  %v285 = vld [vmem:[%s1 + $0x368] sm:$0xf]
  %v286 = vld [vmem:[%s1 + $0x36c] sm:$0xf]
  %v287 = vld [vmem:[%s1 + $0x370] sm:$0xf]
  %v288 = vld [vmem:[%s1 + $0x374] sm:$0xf]
  %v289 = vld [vmem:[%s1 + $0x378] sm:$0xf]
  %v290 = vld [vmem:[%s1 + $0x37c] sm:$0xf]
  %v291 = vld [vmem:[%s1 + $0x380] sm:$0xf]
  %v292 = vld [vmem:[%s1 + $0x384] sm:$0xf]
  %v293 = vld [vmem:[%s1 + $0x388] sm:$0xf]
  %v294 = vld [vmem:[%s1 + $0x38c] sm:$0xf]
  %v295 = vld [vmem:[%s1 + $0x390] sm:$0xf]
  %v296 = vld [vmem:[%s1 + $0x394] sm:$0xf]
  %v297 = vld [vmem:[%s1 + $0x398] sm:$0xf]
  %v298 = vld [vmem:[%s1 + $0x39c] sm:$0xf]
  %v299 = vld [vmem:[%s1 + $0x3a0] sm:$0xf]
  %v300 = vld [vmem:[%s1 + $0x3a4] sm:$0xf]
  %v301 = vld [vmem:[%s1 + $0x3a8] sm:$0xf]
  %v302 = vld [vmem:[%s1 + $0x3ac] sm:$0xf]
  %v303 = vld [vmem:[%s1 + $0x3b0] sm:$0xf]
  %v304 = vld [vmem:[%s1 + $0x3b4] sm:$0xf]
  %v305 = vld [vmem:[%s1 + $0x3b8] sm:$0xf]
  %v306 = vld [vmem:[%s1 + $0x3bc] sm:$0xf]
  %v307 = vld [vmem:[%s1 + $0x3c0] sm:$0xf]
  %v308 = vld [vmem:[%s1 + $0x3c4] sm:$0xf]
  %v309 = vld [vmem:[%s1 + $0x3c8] sm:$0xf]
  %v310 = vld [vmem:[%s1 + $0x3cc] sm:$0xf]
  %v311 = vld [vmem:[%s1 + $0x3d0] sm:$0xf]
  %v312 = vld [vmem:[%s1 + $0x3d4] sm:$0xf]
  %v313 = vld [vmem:[%s1 + $0x3d8] sm:$0xf]
  %v314 = vld [vmem:[%s1 + $0x3dc] sm:$0xf]
  %v315 = vld [vmem:[%s1 + $0x3e0] sm:$0xf]
  %v316 = vld [vmem:[%s1 + $0x3e4] sm:$0xf]
  %v317 = vld [vmem:[%s1 + $0x3e8] sm:$0xf]
  %v318 = vld [vmem:[%s1 + $0x3ec] sm:$0xf]
  %v319 = vld [vmem:[%s1 + $0x3f0] sm:$0xf]
  %v320 = vld [vmem:[%s1 + $0x3f4] sm:$0xf]
  %v321 = vld [vmem:[%s1 + $0x3f8] sm:$0xf]
  %v322 = vld [vmem:[%s1 + $0x3fc] sm:$0xf]
  %v323 = vld [vmem:[%s1 + $0x400] sm:$0xf]
  %v324 = vld [vmem:[%s1 + $0x404] sm:$0xf]
  %v325 = vld [vmem:[%s1 + $0x408] sm:$0xf]
  %v326 = vld [vmem:[%s1 + $0x40c] sm:$0xf]
  %v327 = vld [vmem:[%s1 + $0x410] sm:$0xf]
  %v328 = vld [vmem:[%s1 + $0x414] sm:$0xf]
  %v329 = vld [vmem:[%s1 + $0x418] sm:$0xf]
  %v330 = vld [vmem:[%s1 + $0x41c] sm:$0xf]
  %v331 = vld [vmem:[%s1 + $0x420] sm:$0xf]
  %v332 = vld [vmem:[%s1 + $0x424] sm:$0xf]
  %v333 = vld [vmem:[%s1 + $0x428] sm:$0xf]
  %v334 = vld [vmem:[%s1 + $0x42c] sm:$0xf]
  %v335 = vld [vmem:[%s1 + $0x430] sm:$0xf]
  %v336 = vld [vmem:[%s1 + $0x434] sm:$0xf]
  %v337 = vld [vmem:[%s1 + $0x438] sm:$0xf]
  %v338 = vld [vmem:[%s1 + $0x43c] sm:$0xf]
  %v339 = vld [vmem:[%s1 + $0x440] sm:$0xf]
  %v340 = vld [vmem:[%s1 + $0x444] sm:$0xf]
  %v341 = vld [vmem:[%s1 + $0x448] sm:$0xf]
  %v342 = vld [vmem:[%s1 + $0x44c] sm:$0xf]
  %v343 = vld [vmem:[%s1 + $0x450] sm:$0xf]
  %v344 = vld [vmem:[%s1 + $0x454] sm:$0xf]
  %v345 = vld [vmem:[%s1 + $0x458] sm:$0xf]
  %v346 = vld [vmem:[%s1 + $0x45c] sm:$0xf]
  %v347 = vld [vmem:[%s1 + $0x460] sm:$0xf]
  %v348 = vld [vmem:[%s1 + $0x464] sm:$0xf]
  %v349 = vld [vmem:[%s1 + $0x468] sm:$0xf]
  %v350 = vld [vmem:[%s1 + $0x46c] sm:$0xf]
  %v351 = vld [vmem:[%s1 + $0x470] sm:$0xf]
  %v352 = vld [vmem:[%s1 + $0x474] sm:$0xf]
  %v353 = vld [vmem:[%s1 + $0x478] sm:$0xf]
  %v354 = vld [vmem:[%s1 + $0x47c] sm:$0xf]
  %v355 = vld [vmem:[%s1 + $0x480] sm:$0xf]
  %v356 = vld [vmem:[%s1 + $0x484] sm:$0xf]
  %v357 = vld [vmem:[%s1 + $0x488] sm:$0xf]
  %v358 = vld [vmem:[%s1 + $0x48c] sm:$0xf]
  %v359 = vld [vmem:[%s1 + $0x490] sm:$0xf]
  %v360 = vld [vmem:[%s1 + $0x494] sm:$0xf]
  %v361 = vld [vmem:[%s1 + $0x498] sm:$0xf]
  %v362 = vld [vmem:[%s1 + $0x49c] sm:$0xf]
  %v363 = vld [vmem:[%s1 + $0x4a0] sm:$0xf]
  %v364 = vld [vmem:[%s1 + $0x4a4] sm:$0xf]
  %v365 = vld [vmem:[%s1 + $0x4a8] sm:$0xf]
  %v366 = vld [vmem:[%s1 + $0x4ac] sm:$0xf]
  %v367 = vld [vmem:[%s1 + $0x4b0] sm:$0xf]
  %v368 = vld [vmem:[%s1 + $0x4b4] sm:$0xf]
  %v369 = vld [vmem:[%s1 + $0x4b8] sm:$0xf]
  %v370 = vld [vmem:[%s1 + $0x4bc] sm:$0xf]
  %v371 = vld [vmem:[%s1 + $0x4c0] sm:$0xf]
  %v372 = vld [vmem:[%s1 + $0x4c4] sm:$0xf]
  %v373 = vld [vmem:[%s1 + $0x4c8] sm:$0xf]
  %v374 = vld [vmem:[%s1 + $0x4cc] sm:$0xf]
  %v375 = vld [vmem:[%s1 + $0x4d0] sm:$0xf]
  %v376 = vld [vmem:[%s1 + $0x4d4] sm:$0xf]
  %v377 = vld [vmem:[%s1 + $0x4d8] sm:$0xf]
  %v378 = vld [vmem:[%s1 + $0x4dc] sm:$0xf]
  %v379 = vld [vmem:[%s1 + $0x4e0] sm:$0xf]
  %v380 = vld [vmem:[%s1 + $0x4e4] sm:$0xf]
  %v381 = vld [vmem:[%s1 + $0x4e8] sm:$0xf]
  %v382 = vld [vmem:[%s1 + $0x4ec] sm:$0xf]
  %v383 = vld [vmem:[%s1 + $0x4f0] sm:$0xf]
  %v384 = vld [vmem:[%s1 + $0x4f4] sm:$0xf]
  %v385 = vld [vmem:[%s1 + $0x4f8] sm:$0xf]
  %v386 = vld [vmem:[%s1 + $0x4fc] sm:$0xf]
  %v387 = vld [vmem:[%s1 + $0x500] sm:$0xf]
  %v388 = vld [vmem:[%s1 + $0x504] sm:$0xf]
  %v389 = vld [vmem:[%s1 + $0x508] sm:$0xf]
  %v390 = vld [vmem:[%s1 + $0x50c] sm:$0xf]
  %v391 = vld [vmem:[%s1 + $0x510] sm:$0xf]
  %v392 = vld [vmem:[%s1 + $0x514] sm:$0xf]
  %v393 = vld [vmem:[%s1 + $0x518] sm:$0xf]
  %v394 = vld [vmem:[%s1 + $0x51c] sm:$0xf]
  %v395 = vld [vmem:[%s1 + $0x520] sm:$0xf]
  %v396 = vld [vmem:[%s1 + $0x524] sm:$0xf]
  %v397 = vld [vmem:[%s1 + $0x528] sm:$0xf]
  %v398 = vld [vmem:[%s1 + $0x52c] sm:$0xf]
  %v399 = vld [vmem:[%s1 + $0x530] sm:$0xf]
  %v400 = vld [vmem:[%s1 + $0x534] sm:$0xf]
  %v401 = vld [vmem:[%s1 + $0x538] sm:$0xf]
  %v402 = vld [vmem:[%s1 + $0x53c] sm:$0xf]
  %v403 = vld [vmem:[%s1 + $0x540] sm:$0xf]
  %v404 = vld [vmem:[%s1 + $0x544] sm:$0xf]
  %v405 = vld [vmem:[%s1 + $0x548] sm:$0xf]
  %v406 = vld [vmem:[%s1 + $0x54c] sm:$0xf]
  %v407 = vld [vmem:[%s1 + $0x550] sm:$0xf]
  %v408 = vld [vmem:[%s1 + $0x554] sm:$0xf]
  %v409 = vld [vmem:[%s1 + $0x558] sm:$0xf]
  %v410 = vld [vmem:[%s1 + $0x55c] sm:$0xf]
  %v411 = vld [vmem:[%s1 + $0x560] sm:$0xf]
  %v412 = vld [vmem:[%s1 + $0x564] sm:$0xf]
  %v413 = vld [vmem:[%s1 + $0x568] sm:$0xf]
  %v414 = vld [vmem:[%s1 + $0x56c] sm:$0xf]
  %v415 = vld [vmem:[%s1 + $0x570] sm:$0xf]
  %v416 = vld [vmem:[%s1 + $0x574] sm:$0xf]
  %v417 = vld [vmem:[%s1 + $0x578] sm:$0xf]
  %v418 = vld [vmem:[%s1 + $0x57c] sm:$0xf]
  %v419 = vld [vmem:[%s1 + $0x580] sm:$0xf]
  %v420 = vld [vmem:[%s1 + $0x584] sm:$0xf]
  %v421 = vld [vmem:[%s1 + $0x588] sm:$0xf]
  %v422 = vld [vmem:[%s1 + $0x58c] sm:$0xf]
  %v423 = vld [vmem:[%s1 + $0x590] sm:$0xf]
  %v424 = vld [vmem:[%s1 + $0x594] sm:$0xf]
  %v425 = vld [vmem:[%s1 + $0x598] sm:$0xf]
  %v426 = vld [vmem:[%s1 + $0x59c] sm:$0xf]
  %v427 = vld [vmem:[%s1 + $0x5a0] sm:$0xf]
  %v428 = vld [vmem:[%s1 + $0x5a4] sm:$0xf]
  %v429 = vld [vmem:[%s1 + $0x5a8] sm:$0xf]
  %v430 = vld [vmem:[%s1 + $0x5ac] sm:$0xf]
  %v431 = vld [vmem:[%s1 + $0x5b0] sm:$0xf]
  %v432 = vld [vmem:[%s1 + $0x5b4] sm:$0xf]
  %v433 = vld [vmem:[%s1 + $0x5b8] sm:$0xf]
  %v434 = vld [vmem:[%s1 + $0x5bc] sm:$0xf]
  %v435 = vld [vmem:[%s1 + $0x5c0] sm:$0xf]
  %v436 = vld [vmem:[%s1 + $0x5c4] sm:$0xf]
  %v437 = vld [vmem:[%s1 + $0x5c8] sm:$0xf]
  %v438 = vld [vmem:[%s1 + $0x5cc] sm:$0xf]
  %v439 = vld [vmem:[%s1 + $0x5d0] sm:$0xf]
  %v440 = vld [vmem:[%s1 + $0x5d4] sm:$0xf]
  %v441 = vld [vmem:[%s1 + $0x5d8] sm:$0xf]
  %v442 = vld [vmem:[%s1 + $0x5dc] sm:$0xf]
  %v443 = vld [vmem:[%s1 + $0x5e0] sm:$0xf]
  %v444 = vld [vmem:[%s1 + $0x5e4] sm:$0xf]
  %v445 = vld [vmem:[%s1 + $0x5e8] sm:$0xf]
  %v446 = vld [vmem:[%s1 + $0x5ec] sm:$0xf]
  %v447 = vld [vmem:[%s1 + $0x5f0] sm:$0xf]
  %v448 = vld [vmem:[%s1 + $0x5f4] sm:$0xf]
  %v449 = vld [vmem:[%s1 + $0x5f8] sm:$0xf]
  %v450 = vld [vmem:[%s1 + $0x5fc] sm:$0xf]
  %v451 = vld [vmem:[%s1 + $0x600] sm:$0xf]
  %v452 = vld [vmem:[%s1 + $0x604] sm:$0xf]
  %v453 = vld [vmem:[%s1 + $0x608] sm:$0xf]
  %v454 = vld [vmem:[%s1 + $0x60c] sm:$0xf]
  %v455 = vld [vmem:[%s1 + $0x610] sm:$0xf]
  %v456 = vld [vmem:[%s1 + $0x614] sm:$0xf]
  %v457 = vld [vmem:[%s1 + $0x618] sm:$0xf]
  %v458 = vld [vmem:[%s1 + $0x61c] sm:$0xf]
  %v459 = vld [vmem:[%s1 + $0x620] sm:$0xf]
  %v460 = vld [vmem:[%s1 + $0x624] sm:$0xf]
  %v461 = vld [vmem:[%s1 + $0x628] sm:$0xf]
  %v462 = vld [vmem:[%s1 + $0x62c] sm:$0xf]
  %v463 = vld [vmem:[%s1 + $0x630] sm:$0xf]
  %v464 = vld [vmem:[%s1 + $0x634] sm:$0xf]
  %v465 = vld [vmem:[%s1 + $0x638] sm:$0xf]
  %v466 = vld [vmem:[%s1 + $0x63c] sm:$0xf]
  %v467 = vld [vmem:[%s2] sm:$0x1]
  %v469 = vlaneseq
  %v470 = vshrl.u32 %v469, 7
  %v471 = vsub.s32 0, %v470
  %v472 = vrot.slane %v467, %v471
  %v526 = vunpack.c.l.b16 %v15
  %v527 = vunpack.c.h.b16 %v15
  %v528 = vunpack.c.l.b16 %v16
  %v529 = vunpack.c.h.b16 %v16
  %v530 = vunpack.c.l.b16 %v17
  %v531 = vunpack.c.h.b16 %v17
  %v532 = vunpack.c.l.b16 %v18
  %v533 = vunpack.c.h.b16 %v18
  %v534 = vunpack.c.l.b16 %v19
  %v535 = vunpack.c.h.b16 %v19
  %v536 = vunpack.c.l.b16 %v20
  %v537 = vunpack.c.h.b16 %v20
  %v538 = vunpack.c.l.b16 %v21
  %v539 = vunpack.c.h.b16 %v21
  %v540 = vunpack.c.l.b16 %v22
  %v541 = vunpack.c.h.b16 %v22
  %v542 = vunpack.c.l.b16 %v23
  %v543 = vunpack.c.h.b16 %v23
  %v544 = vunpack.c.l.b16 %v24
  %v545 = vunpack.c.h.b16 %v24
  %v546 = vunpack.c.l.b16 %v25
  %v547 = vunpack.c.h.b16 %v25
  %v548 = vunpack.c.l.b16 %v26
  %v549 = vunpack.c.h.b16 %v26
  %v550 = vunpack.c.l.b16 %v27
  %v551 = vunpack.c.l.b16 %v28
  %v552 = vunpack.c.h.b16 %v28
  %v553 = vunpack.c.l.b16 %v29
  %v554 = vunpack.c.h.b16 %v29
  %v555 = vunpack.c.l.b16 %v30
  %v556 = vunpack.c.h.b16 %v30
  %v557 = vunpack.c.l.b16 %v31
  %v558 = vunpack.c.h.b16 %v31
  %v559 = vunpack.c.l.b16 %v32
  %v560 = vunpack.c.h.b16 %v32
  %v561 = vunpack.c.l.b16 %v33
  %v562 = vunpack.c.h.b16 %v33
  %v563 = vunpack.c.l.b16 %v34
  %v564 = vunpack.c.h.b16 %v34
  %v565 = vunpack.c.l.b16 %v35
  %v566 = vunpack.c.h.b16 %v35
  %v567 = vunpack.c.l.b16 %v36
  %v568 = vunpack.c.h.b16 %v36
  %v569 = vunpack.c.l.b16 %v37
  %v570 = vunpack.c.h.b16 %v37
  %v571 = vunpack.c.l.b16 %v38
  %v572 = vunpack.c.h.b16 %v38
  %v573 = vunpack.c.l.b16 %v39
  %v574 = vunpack.c.h.b16 %v39
  %v575 = vunpack.c.l.b16 %v40
  %v576 = vunpack.c.l.b16 %v41
  %v577 = vunpack.c.h.b16 %v41
  %v578 = vunpack.c.l.b16 %v42
  %v579 = vunpack.c.h.b16 %v42
  %v580 = vunpack.c.l.b16 %v43
  %v581 = vunpack.c.h.b16 %v43
  %v582 = vunpack.c.l.b16 %v44
  %v583 = vunpack.c.h.b16 %v44
  %v584 = vunpack.c.l.b16 %v45
  %v585 = vunpack.c.h.b16 %v45
  %v586 = vunpack.c.l.b16 %v46
  %v587 = vunpack.c.h.b16 %v46
  %v588 = vunpack.c.l.b16 %v47
  %v589 = vunpack.c.h.b16 %v47
  %v590 = vunpack.c.l.b16 %v48
  %v591 = vunpack.c.h.b16 %v48
  %v592 = vunpack.c.l.b16 %v49
  %v593 = vunpack.c.h.b16 %v49
  %v594 = vunpack.c.l.b16 %v50
  %v595 = vunpack.c.h.b16 %v50
  %v596 = vunpack.c.l.b16 %v51
  %v597 = vunpack.c.h.b16 %v51
  %v598 = vunpack.c.l.b16 %v52
  %v599 = vunpack.c.h.b16 %v52
  %v600 = vunpack.c.l.b16 %v53
  %v601 = vunpack.c.l.b16 %v54
  %v602 = vunpack.c.h.b16 %v54
  %v603 = vunpack.c.l.b16 %v55
  %v604 = vunpack.c.h.b16 %v55
  %v605 = vunpack.c.l.b16 %v56
  %v606 = vunpack.c.h.b16 %v56
  %v607 = vunpack.c.l.b16 %v57
  %v608 = vunpack.c.h.b16 %v57
  %v609 = vunpack.c.l.b16 %v58
  %v610 = vunpack.c.h.b16 %v58
  %v611 = vunpack.c.l.b16 %v59
  %v612 = vunpack.c.h.b16 %v59
  %v613 = vunpack.c.l.b16 %v60
  %v614 = vunpack.c.h.b16 %v60
  %v615 = vunpack.c.l.b16 %v61
  %v616 = vunpack.c.h.b16 %v61
  %v617 = vunpack.c.l.b16 %v62
  %v618 = vunpack.c.h.b16 %v62
  %v619 = vunpack.c.l.b16 %v63
  %v620 = vunpack.c.h.b16 %v63
  %v621 = vunpack.c.l.b16 %v64
  %v622 = vunpack.c.h.b16 %v64
  %v623 = vunpack.c.l.b16 %v65
  %v624 = vunpack.c.h.b16 %v65
  %v625 = vunpack.c.l.b16 %v66
  %v626 = vpack.c.b16 %v551, %v526
  %v627 = vpack.c.b16 %v552, %v527
  %v628 = vpack.c.b16 %v553, %v528
  %v629 = vpack.c.b16 %v554, %v529
  %v630 = vpack.c.b16 %v555, %v530
  %v631 = vpack.c.b16 %v556, %v531
  %v632 = vpack.c.b16 %v557, %v532
  %v633 = vpack.c.b16 %v558, %v533
  %v634 = vpack.c.b16 %v559, %v534
  %v635 = vpack.c.b16 %v560, %v535
  %v636 = vpack.c.b16 %v561, %v536
  %v637 = vpack.c.b16 %v562, %v537
  %v638 = vpack.c.b16 %v563, %v538
  %v639 = vpack.c.b16 %v564, %v539
  %v640 = vpack.c.b16 %v565, %v540
  %v641 = vpack.c.b16 %v566, %v541
  %v642 = vpack.c.b16 %v567, %v542
  %v643 = vpack.c.b16 %v568, %v543
  %v644 = vpack.c.b16 %v569, %v544
  %v645 = vpack.c.b16 %v570, %v545
  %v646 = vpack.c.b16 %v571, %v546
  %v647 = vpack.c.b16 %v572, %v547
  %v648 = vpack.c.b16 %v573, %v548
  %v649 = vpack.c.b16 %v574, %v549
  %v650 = vpack.c.b16 %v575, %v550
  %v651 = vpack.c.b16 %v601, %v576
  %v652 = vpack.c.b16 %v602, %v577
  %v653 = vpack.c.b16 %v603, %v578
  %v654 = vpack.c.b16 %v604, %v579
  %v655 = vpack.c.b16 %v605, %v580
  %v656 = vpack.c.b16 %v606, %v581
  %v657 = vpack.c.b16 %v607, %v582
  %v658 = vpack.c.b16 %v608, %v583
  %v659 = vpack.c.b16 %v609, %v584
  %v660 = vpack.c.b16 %v610, %v585
  %v661 = vpack.c.b16 %v611, %v586
  %v662 = vpack.c.b16 %v612, %v587
  %v663 = vpack.c.b16 %v613, %v588
  %v664 = vpack.c.b16 %v614, %v589
  %v665 = vpack.c.b16 %v615, %v590
  %v666 = vpack.c.b16 %v616, %v591
  %v667 = vpack.c.b16 %v617, %v592
  %v668 = vpack.c.b16 %v618, %v593
  %v669 = vpack.c.b16 %v619, %v594
  %v670 = vpack.c.b16 %v620, %v595
  %v671 = vpack.c.b16 %v621, %v596
  %v672 = vpack.c.b16 %v622, %v597
  %v673 = vpack.c.b16 %v623, %v598
  %v674 = vpack.c.b16 %v624, %v599
  %v675 = vpack.c.b16 %v625, %v600
  %v1126 = vunpack.c.l.b16 %v67
  %v1127 = vunpack.c.l.b16 %v68
  %v1128 = vunpack.c.l.b16 %v69
  %v1129 = vunpack.c.l.b16 %v70
  %v1130 = vunpack.c.l.b16 %v71
  %v1131 = vunpack.c.l.b16 %v72
  %v1132 = vunpack.c.l.b16 %v73
  %v1133 = vunpack.c.l.b16 %v74
  %v1134 = vunpack.c.l.b16 %v75
  %v1135 = vunpack.c.l.b16 %v76
  %v1136 = vunpack.c.l.b16 %v77
  %v1137 = vunpack.c.l.b16 %v78
  %v1138 = vunpack.c.l.b16 %v79
  %v1139 = vunpack.c.l.b16 %v80
  %v1140 = vunpack.c.l.b16 %v81
  %v1141 = vunpack.c.l.b16 %v82
  %v1142 = vunpack.c.l.b16 %v83
  %v1143 = vunpack.c.l.b16 %v84
  %v1144 = vunpack.c.l.b16 %v85
  %v1145 = vunpack.c.l.b16 %v86
  %v1146 = vunpack.c.l.b16 %v87
  %v1147 = vunpack.c.l.b16 %v88
  %v1148 = vunpack.c.l.b16 %v89
  %v1149 = vunpack.c.l.b16 %v90
  %v1150 = vunpack.c.l.b16 %v91
  %v1151 = vunpack.c.l.b16 %v92
  %v1152 = vunpack.c.l.b16 %v93
  %v1153 = vunpack.c.l.b16 %v94
  %v1154 = vunpack.c.l.b16 %v95
  %v1155 = vunpack.c.l.b16 %v96
  %v1156 = vunpack.c.l.b16 %v97
  %v1157 = vunpack.c.l.b16 %v98
  %v1158 = vunpack.c.l.b16 %v99
  %v1159 = vunpack.c.l.b16 %v100
  %v1160 = vunpack.c.l.b16 %v101
  %v1161 = vunpack.c.l.b16 %v102
  %v1162 = vunpack.c.l.b16 %v103
  %v1163 = vunpack.c.l.b16 %v104
  %v1164 = vunpack.c.l.b16 %v105
  %v1165 = vunpack.c.l.b16 %v106
  %v1166 = vunpack.c.l.b16 %v107
  %v1167 = vunpack.c.l.b16 %v108
  %v1168 = vunpack.c.l.b16 %v109
  %v1169 = vunpack.c.l.b16 %v110
  %v1170 = vunpack.c.l.b16 %v111
  %v1171 = vunpack.c.l.b16 %v112
  %v1172 = vunpack.c.l.b16 %v113
  %v1173 = vunpack.c.l.b16 %v114
  %v1174 = vunpack.c.l.b16 %v115
  %v1175 = vunpack.c.l.b16 %v116
  %v1176 = vunpack.c.l.b16 %v117
  %v1177 = vunpack.c.l.b16 %v118
  %v1178 = vunpack.c.l.b16 %v119
  %v1179 = vunpack.c.l.b16 %v120
  %v1180 = vunpack.c.l.b16 %v121
  %v1181 = vunpack.c.l.b16 %v122
  %v1182 = vunpack.c.l.b16 %v123
  %v1183 = vunpack.c.l.b16 %v124
  %v1184 = vunpack.c.l.b16 %v125
  %v1185 = vunpack.c.l.b16 %v126
  %v1186 = vunpack.c.l.b16 %v127
  %v1187 = vunpack.c.l.b16 %v128
  %v1188 = vunpack.c.l.b16 %v129
  %v1189 = vunpack.c.l.b16 %v130
  %v1190 = vunpack.c.l.b16 %v131
  %v1191 = vunpack.c.l.b16 %v132
  %v1192 = vunpack.c.l.b16 %v133
  %v1193 = vunpack.c.l.b16 %v134
  %v1194 = vunpack.c.l.b16 %v135
  %v1195 = vunpack.c.l.b16 %v136
  %v1196 = vunpack.c.l.b16 %v137
  %v1197 = vunpack.c.l.b16 %v138
  %v1198 = vunpack.c.l.b16 %v139
  %v1199 = vunpack.c.l.b16 %v140
  %v1200 = vunpack.c.l.b16 %v141
  %v1201 = vunpack.c.l.b16 %v142
  %v1202 = vunpack.c.l.b16 %v143
  %v1203 = vunpack.c.l.b16 %v144
  %v1204 = vunpack.c.l.b16 %v145
  %v1205 = vunpack.c.l.b16 %v146
  %v1206 = vunpack.c.l.b16 %v147
  %v1207 = vunpack.c.l.b16 %v148
  %v1208 = vunpack.c.l.b16 %v149
  %v1209 = vunpack.c.l.b16 %v150
  %v1210 = vunpack.c.l.b16 %v151
  %v1211 = vunpack.c.l.b16 %v152
  %v1212 = vunpack.c.l.b16 %v153
  %v1213 = vunpack.c.l.b16 %v154
  %v1214 = vunpack.c.l.b16 %v155
  %v1215 = vunpack.c.l.b16 %v156
  %v1216 = vunpack.c.l.b16 %v157
  %v1217 = vunpack.c.l.b16 %v158
  %v1218 = vunpack.c.l.b16 %v159
  %v1219 = vunpack.c.l.b16 %v160
  %v1220 = vunpack.c.l.b16 %v161
  %v1221 = vunpack.c.l.b16 %v162
  %v1222 = vunpack.c.l.b16 %v163
  %v1223 = vunpack.c.l.b16 %v164
  %v1224 = vunpack.c.l.b16 %v165
  %v1225 = vunpack.c.l.b16 %v166
  %v1226 = vunpack.c.l.b16 %v167
  %v1227 = vunpack.c.l.b16 %v168
  %v1228 = vunpack.c.l.b16 %v169
  %v1229 = vunpack.c.l.b16 %v170
  %v1230 = vunpack.c.l.b16 %v171
  %v1231 = vunpack.c.l.b16 %v172
  %v1232 = vunpack.c.l.b16 %v173
  %v1233 = vunpack.c.l.b16 %v174
  %v1234 = vunpack.c.l.b16 %v175
  %v1235 = vunpack.c.l.b16 %v176
  %v1236 = vunpack.c.l.b16 %v177
  %v1237 = vunpack.c.l.b16 %v178
  %v1238 = vunpack.c.l.b16 %v179
  %v1239 = vunpack.c.l.b16 %v180
  %v1240 = vunpack.c.l.b16 %v181
  %v1241 = vunpack.c.l.b16 %v182
  %v1242 = vunpack.c.l.b16 %v183
  %v1243 = vunpack.c.l.b16 %v184
  %v1244 = vunpack.c.l.b16 %v185
  %v1245 = vunpack.c.l.b16 %v186
  %v1246 = vunpack.c.l.b16 %v187
  %v1247 = vunpack.c.l.b16 %v188
  %v1248 = vunpack.c.l.b16 %v189
  %v1249 = vunpack.c.l.b16 %v190
  %v1250 = vunpack.c.l.b16 %v191
  %v1251 = vunpack.c.l.b16 %v192
  %v1252 = vunpack.c.l.b16 %v193
  %v1253 = vunpack.c.l.b16 %v194
  %v1254 = vunpack.c.l.b16 %v195
  %v1255 = vunpack.c.l.b16 %v196
  %v1256 = vunpack.c.l.b16 %v197
  %v1257 = vunpack.c.l.b16 %v198
  %v1258 = vunpack.c.l.b16 %v199
  %v1259 = vunpack.c.l.b16 %v200
  %v1260 = vunpack.c.l.b16 %v201
  %v1261 = vunpack.c.l.b16 %v202
  %v1262 = vunpack.c.l.b16 %v203
  %v1263 = vunpack.c.l.b16 %v204
  %v1264 = vunpack.c.l.b16 %v205
  %v1265 = vunpack.c.l.b16 %v206
  %v1266 = vunpack.c.l.b16 %v207
  %v1267 = vunpack.c.l.b16 %v208
  %v1268 = vunpack.c.l.b16 %v209
  %v1269 = vunpack.c.l.b16 %v210
  %v1270 = vunpack.c.l.b16 %v211
  %v1271 = vunpack.c.l.b16 %v212
  %v1272 = vunpack.c.l.b16 %v213
  %v1273 = vunpack.c.l.b16 %v214
  %v1274 = vunpack.c.l.b16 %v215
  %v1275 = vunpack.c.l.b16 %v216
  %v1276 = vunpack.c.l.b16 %v217
  %v1277 = vunpack.c.l.b16 %v218
  %v1278 = vunpack.c.l.b16 %v219
  %v1279 = vunpack.c.l.b16 %v220
  %v1280 = vunpack.c.l.b16 %v221
  %v1281 = vunpack.c.l.b16 %v222
  %v1282 = vunpack.c.l.b16 %v223
  %v1283 = vunpack.c.l.b16 %v224
  %v1284 = vunpack.c.l.b16 %v225
  %v1285 = vunpack.c.l.b16 %v226
  %v1286 = vunpack.c.l.b16 %v227
  %v1287 = vunpack.c.l.b16 %v228
  %v1288 = vunpack.c.l.b16 %v229
  %v1289 = vunpack.c.l.b16 %v230
  %v1290 = vunpack.c.l.b16 %v231
  %v1291 = vunpack.c.l.b16 %v232
  %v1292 = vunpack.c.l.b16 %v233
  %v1293 = vunpack.c.l.b16 %v234
  %v1294 = vunpack.c.l.b16 %v235
  %v1295 = vunpack.c.l.b16 %v236
  %v1296 = vunpack.c.l.b16 %v237
  %v1297 = vunpack.c.l.b16 %v238
  %v1298 = vunpack.c.l.b16 %v239
  %v1299 = vunpack.c.l.b16 %v240
  %v1300 = vunpack.c.l.b16 %v241
  %v1301 = vunpack.c.l.b16 %v242
  %v1302 = vunpack.c.l.b16 %v243
  %v1303 = vunpack.c.l.b16 %v244
  %v1304 = vunpack.c.l.b16 %v245
  %v1305 = vunpack.c.l.b16 %v246
  %v1306 = vunpack.c.l.b16 %v247
  %v1307 = vunpack.c.l.b16 %v248
  %v1308 = vunpack.c.l.b16 %v249
  %v1309 = vunpack.c.l.b16 %v250
  %v1310 = vunpack.c.l.b16 %v251
  %v1311 = vunpack.c.l.b16 %v252
  %v1312 = vunpack.c.l.b16 %v253
  %v1313 = vunpack.c.l.b16 %v254
  %v1314 = vunpack.c.l.b16 %v255
  %v1315 = vunpack.c.l.b16 %v256
  %v1316 = vunpack.c.l.b16 %v257
  %v1317 = vunpack.c.l.b16 %v258
  %v1318 = vunpack.c.l.b16 %v259
  %v1319 = vunpack.c.l.b16 %v260
  %v1320 = vunpack.c.l.b16 %v261
  %v1321 = vunpack.c.l.b16 %v262
  %v1322 = vunpack.c.l.b16 %v263
  %v1323 = vunpack.c.l.b16 %v264
  %v1324 = vunpack.c.l.b16 %v265
  %v1325 = vunpack.c.l.b16 %v266
  %v1326 = vunpack.c.l.b16 %v267
  %v1327 = vunpack.c.l.b16 %v268
  %v1328 = vunpack.c.l.b16 %v269
  %v1329 = vunpack.c.l.b16 %v270
  %v1330 = vunpack.c.l.b16 %v271
  %v1331 = vunpack.c.l.b16 %v272
  %v1332 = vunpack.c.l.b16 %v273
  %v1333 = vunpack.c.l.b16 %v274
  %v1334 = vunpack.c.l.b16 %v275
  %v1335 = vunpack.c.l.b16 %v276
  %v1336 = vunpack.c.l.b16 %v277
  %v1337 = vunpack.c.l.b16 %v278
  %v1338 = vunpack.c.l.b16 %v279
  %v1339 = vunpack.c.l.b16 %v280
  %v1340 = vunpack.c.l.b16 %v281
  %v1341 = vunpack.c.l.b16 %v282
  %v1342 = vunpack.c.l.b16 %v283
  %v1343 = vunpack.c.l.b16 %v284
  %v1344 = vunpack.c.l.b16 %v285
  %v1345 = vunpack.c.l.b16 %v286
  %v1346 = vunpack.c.l.b16 %v287
  %v1347 = vunpack.c.l.b16 %v288
  %v1348 = vunpack.c.l.b16 %v289
  %v1349 = vunpack.c.l.b16 %v290
  %v1350 = vunpack.c.l.b16 %v291
  %v1351 = vunpack.c.l.b16 %v292
  %v1352 = vunpack.c.l.b16 %v293
  %v1353 = vunpack.c.l.b16 %v294
  %v1354 = vunpack.c.l.b16 %v295
  %v1355 = vunpack.c.l.b16 %v296
  %v1356 = vunpack.c.l.b16 %v297
  %v1357 = vunpack.c.l.b16 %v298
  %v1358 = vunpack.c.l.b16 %v299
  %v1359 = vunpack.c.l.b16 %v300
  %v1360 = vunpack.c.l.b16 %v301
  %v1361 = vunpack.c.l.b16 %v302
  %v1362 = vunpack.c.l.b16 %v303
  %v1363 = vunpack.c.l.b16 %v304
  %v1364 = vunpack.c.l.b16 %v305
  %v1365 = vunpack.c.l.b16 %v306
  %v1366 = vunpack.c.l.b16 %v307
  %v1367 = vunpack.c.l.b16 %v308
  %v1368 = vunpack.c.l.b16 %v309
  %v1369 = vunpack.c.l.b16 %v310
  %v1370 = vunpack.c.l.b16 %v311
  %v1371 = vunpack.c.l.b16 %v312
  %v1372 = vunpack.c.l.b16 %v313
  %v1373 = vunpack.c.l.b16 %v314
  %v1374 = vunpack.c.l.b16 %v315
  %v1375 = vunpack.c.l.b16 %v316
  %v1376 = vunpack.c.l.b16 %v317
  %v1377 = vunpack.c.l.b16 %v318
  %v1378 = vunpack.c.l.b16 %v319
  %v1379 = vunpack.c.l.b16 %v320
  %v1380 = vunpack.c.l.b16 %v321
  %v1381 = vunpack.c.l.b16 %v322
  %v1382 = vunpack.c.l.b16 %v323
  %v1383 = vunpack.c.l.b16 %v324
  %v1384 = vunpack.c.l.b16 %v325
  %v1385 = vunpack.c.l.b16 %v326
  %v1386 = vunpack.c.l.b16 %v327
  %v1387 = vunpack.c.l.b16 %v328
  %v1388 = vunpack.c.l.b16 %v329
  %v1389 = vunpack.c.l.b16 %v330
  %v1390 = vunpack.c.l.b16 %v331
  %v1391 = vunpack.c.l.b16 %v332
  %v1392 = vunpack.c.l.b16 %v333
  %v1393 = vunpack.c.l.b16 %v334
  %v1394 = vunpack.c.l.b16 %v335
  %v1395 = vunpack.c.l.b16 %v336
  %v1396 = vunpack.c.l.b16 %v337
  %v1397 = vunpack.c.l.b16 %v338
  %v1398 = vunpack.c.l.b16 %v339
  %v1399 = vunpack.c.l.b16 %v340
  %v1400 = vunpack.c.l.b16 %v341
  %v1401 = vunpack.c.l.b16 %v342
  %v1402 = vunpack.c.l.b16 %v343
  %v1403 = vunpack.c.l.b16 %v344
  %v1404 = vunpack.c.l.b16 %v345
  %v1405 = vunpack.c.l.b16 %v346
  %v1406 = vunpack.c.l.b16 %v347
  %v1407 = vunpack.c.l.b16 %v348
  %v1408 = vunpack.c.l.b16 %v349
  %v1409 = vunpack.c.l.b16 %v350
  %v1410 = vunpack.c.l.b16 %v351
  %v1411 = vunpack.c.l.b16 %v352
  %v1412 = vunpack.c.l.b16 %v353
  %v1413 = vunpack.c.l.b16 %v354
  %v1414 = vunpack.c.l.b16 %v355
  %v1415 = vunpack.c.l.b16 %v356
  %v1416 = vunpack.c.l.b16 %v357
  %v1417 = vunpack.c.l.b16 %v358
  %v1418 = vunpack.c.l.b16 %v359
  %v1419 = vunpack.c.l.b16 %v360
  %v1420 = vunpack.c.l.b16 %v361
  %v1421 = vunpack.c.l.b16 %v362
  %v1422 = vunpack.c.l.b16 %v363
  %v1423 = vunpack.c.l.b16 %v364
  %v1424 = vunpack.c.l.b16 %v365
  %v1425 = vunpack.c.l.b16 %v366
  %v1426 = vunpack.c.l.b16 %v367
  %v1427 = vunpack.c.l.b16 %v368
  %v1428 = vunpack.c.l.b16 %v369
  %v1429 = vunpack.c.l.b16 %v370
  %v1430 = vunpack.c.l.b16 %v371
  %v1431 = vunpack.c.l.b16 %v372
  %v1432 = vunpack.c.l.b16 %v373
  %v1433 = vunpack.c.l.b16 %v374
  %v1434 = vunpack.c.l.b16 %v375
  %v1435 = vunpack.c.l.b16 %v376
  %v1436 = vunpack.c.l.b16 %v377
  %v1437 = vunpack.c.l.b16 %v378
  %v1438 = vunpack.c.l.b16 %v379
  %v1439 = vunpack.c.l.b16 %v380
  %v1440 = vunpack.c.l.b16 %v381
  %v1441 = vunpack.c.l.b16 %v382
  %v1442 = vunpack.c.l.b16 %v383
  %v1443 = vunpack.c.l.b16 %v384
  %v1444 = vunpack.c.l.b16 %v385
  %v1445 = vunpack.c.l.b16 %v386
  %v1446 = vunpack.c.l.b16 %v387
  %v1447 = vunpack.c.l.b16 %v388
  %v1448 = vunpack.c.l.b16 %v389
  %v1449 = vunpack.c.l.b16 %v390
  %v1450 = vunpack.c.l.b16 %v391
  %v1451 = vunpack.c.l.b16 %v392
  %v1452 = vunpack.c.l.b16 %v393
  %v1453 = vunpack.c.l.b16 %v394
  %v1454 = vunpack.c.l.b16 %v395
  %v1455 = vunpack.c.l.b16 %v396
  %v1456 = vunpack.c.l.b16 %v397
  %v1457 = vunpack.c.l.b16 %v398
  %v1458 = vunpack.c.l.b16 %v399
  %v1459 = vunpack.c.l.b16 %v400
  %v1460 = vunpack.c.l.b16 %v401
  %v1461 = vunpack.c.l.b16 %v402
  %v1462 = vunpack.c.l.b16 %v403
  %v1463 = vunpack.c.l.b16 %v404
  %v1464 = vunpack.c.l.b16 %v405
  %v1465 = vunpack.c.l.b16 %v406
  %v1466 = vunpack.c.l.b16 %v407
  %v1467 = vunpack.c.l.b16 %v408
  %v1468 = vunpack.c.l.b16 %v409
  %v1469 = vunpack.c.l.b16 %v410
  %v1470 = vunpack.c.l.b16 %v411
  %v1471 = vunpack.c.l.b16 %v412
  %v1472 = vunpack.c.l.b16 %v413
  %v1473 = vunpack.c.l.b16 %v414
  %v1474 = vunpack.c.l.b16 %v415
  %v1475 = vunpack.c.l.b16 %v416
  %v1476 = vunpack.c.l.b16 %v417
  %v1477 = vunpack.c.l.b16 %v418
  %v1478 = vunpack.c.l.b16 %v419
  %v1479 = vunpack.c.l.b16 %v420
  %v1480 = vunpack.c.l.b16 %v421
  %v1481 = vunpack.c.l.b16 %v422
  %v1482 = vunpack.c.l.b16 %v423
  %v1483 = vunpack.c.l.b16 %v424
  %v1484 = vunpack.c.l.b16 %v425
  %v1485 = vunpack.c.l.b16 %v426
  %v1486 = vunpack.c.l.b16 %v427
  %v1487 = vunpack.c.l.b16 %v428
  %v1488 = vunpack.c.l.b16 %v429
  %v1489 = vunpack.c.l.b16 %v430
  %v1490 = vunpack.c.l.b16 %v431
  %v1491 = vunpack.c.l.b16 %v432
  %v1492 = vunpack.c.l.b16 %v433
  %v1493 = vunpack.c.l.b16 %v434
  %v1494 = vunpack.c.l.b16 %v435
  %v1495 = vunpack.c.l.b16 %v436
  %v1496 = vunpack.c.l.b16 %v437
  %v1497 = vunpack.c.l.b16 %v438
  %v1498 = vunpack.c.l.b16 %v439
  %v1499 = vunpack.c.l.b16 %v440
  %v1500 = vunpack.c.l.b16 %v441
  %v1501 = vunpack.c.l.b16 %v442
  %v1502 = vunpack.c.l.b16 %v443
  %v1503 = vunpack.c.l.b16 %v444
  %v1504 = vunpack.c.l.b16 %v445
  %v1505 = vunpack.c.l.b16 %v446
  %v1506 = vunpack.c.l.b16 %v447
  %v1507 = vunpack.c.l.b16 %v448
  %v1508 = vunpack.c.l.b16 %v449
  %v1509 = vunpack.c.l.b16 %v450
  %v1510 = vunpack.c.l.b16 %v451
  %v1511 = vunpack.c.l.b16 %v452
  %v1512 = vunpack.c.l.b16 %v453
  %v1513 = vunpack.c.l.b16 %v454
  %v1514 = vunpack.c.l.b16 %v455
  %v1515 = vunpack.c.l.b16 %v456
  %v1516 = vunpack.c.l.b16 %v457
  %v1517 = vunpack.c.l.b16 %v458
  %v1518 = vunpack.c.l.b16 %v459
  %v1519 = vunpack.c.l.b16 %v460
  %v1520 = vunpack.c.l.b16 %v461
  %v1521 = vunpack.c.l.b16 %v462
  %v1522 = vunpack.c.l.b16 %v463
  %v1523 = vunpack.c.l.b16 %v464
  %v1524 = vunpack.c.l.b16 %v465
  %v1525 = vunpack.c.l.b16 %v466
  %v1526 = vpack.c.b16 %v1127, %v1126
  %v1527 = vpack.c.b16 %v1129, %v1128
  %v1528 = vpack.c.b16 %v1131, %v1130
  %v1529 = vpack.c.b16 %v1133, %v1132
  %v1530 = vpack.c.b16 %v1135, %v1134
  %v1531 = vpack.c.b16 %v1137, %v1136
  %v1532 = vpack.c.b16 %v1139, %v1138
  %v1533 = vpack.c.b16 %v1141, %v1140
  %v1534 = vpack.c.b16 %v1143, %v1142
  %v1535 = vpack.c.b16 %v1145, %v1144
  %v1536 = vpack.c.b16 %v1147, %v1146
  %v1537 = vpack.c.b16 %v1149, %v1148
  %v1538 = vpack.c.b16 %v1151, %v1150
  %v1539 = vpack.c.b16 %v1153, %v1152
  %v1540 = vpack.c.b16 %v1155, %v1154
  %v1541 = vpack.c.b16 %v1157, %v1156
  %v1542 = vpack.c.b16 %v1159, %v1158
  %v1543 = vpack.c.b16 %v1161, %v1160
  %v1544 = vpack.c.b16 %v1163, %v1162
  %v1545 = vpack.c.b16 %v1165, %v1164
  %v1546 = vpack.c.b16 %v1167, %v1166
  %v1547 = vpack.c.b16 %v1169, %v1168
  %v1548 = vpack.c.b16 %v1171, %v1170
  %v1549 = vpack.c.b16 %v1173, %v1172
  %v1550 = vpack.c.b16 %v1175, %v1174
  %v1551 = vpack.c.b16 %v1177, %v1176
  %v1552 = vpack.c.b16 %v1179, %v1178
  %v1553 = vpack.c.b16 %v1181, %v1180
  %v1554 = vpack.c.b16 %v1183, %v1182
  %v1555 = vpack.c.b16 %v1185, %v1184
  %v1556 = vpack.c.b16 %v1187, %v1186
  %v1557 = vpack.c.b16 %v1189, %v1188
  %v1558 = vpack.c.b16 %v1191, %v1190
  %v1559 = vpack.c.b16 %v1193, %v1192
  %v1560 = vpack.c.b16 %v1195, %v1194
  %v1561 = vpack.c.b16 %v1197, %v1196
  %v1562 = vpack.c.b16 %v1199, %v1198
  %v1563 = vpack.c.b16 %v1201, %v1200
  %v1564 = vpack.c.b16 %v1203, %v1202
  %v1565 = vpack.c.b16 %v1205, %v1204
  %v1566 = vpack.c.b16 %v1207, %v1206
  %v1567 = vpack.c.b16 %v1209, %v1208
  %v1568 = vpack.c.b16 %v1211, %v1210
  %v1569 = vpack.c.b16 %v1213, %v1212
  %v1570 = vpack.c.b16 %v1215, %v1214
  %v1571 = vpack.c.b16 %v1217, %v1216
  %v1572 = vpack.c.b16 %v1219, %v1218
  %v1573 = vpack.c.b16 %v1221, %v1220
  %v1574 = vpack.c.b16 %v1223, %v1222
  %v1575 = vpack.c.b16 %v1225, %v1224
  %v1576 = vpack.c.b16 %v1227, %v1226
  %v1577 = vpack.c.b16 %v1229, %v1228
  %v1578 = vpack.c.b16 %v1231, %v1230
  %v1579 = vpack.c.b16 %v1233, %v1232
  %v1580 = vpack.c.b16 %v1235, %v1234
  %v1581 = vpack.c.b16 %v1237, %v1236
  %v1582 = vpack.c.b16 %v1239, %v1238
  %v1583 = vpack.c.b16 %v1241, %v1240
  %v1584 = vpack.c.b16 %v1243, %v1242
  %v1585 = vpack.c.b16 %v1245, %v1244
  %v1586 = vpack.c.b16 %v1247, %v1246
  %v1587 = vpack.c.b16 %v1249, %v1248
  %v1588 = vpack.c.b16 %v1251, %v1250
  %v1589 = vpack.c.b16 %v1253, %v1252
  %v1590 = vpack.c.b16 %v1255, %v1254
  %v1591 = vpack.c.b16 %v1257, %v1256
  %v1592 = vpack.c.b16 %v1259, %v1258
  %v1593 = vpack.c.b16 %v1261, %v1260
  %v1594 = vpack.c.b16 %v1263, %v1262
  %v1595 = vpack.c.b16 %v1265, %v1264
  %v1596 = vpack.c.b16 %v1267, %v1266
  %v1597 = vpack.c.b16 %v1269, %v1268
  %v1598 = vpack.c.b16 %v1271, %v1270
  %v1599 = vpack.c.b16 %v1273, %v1272
  %v1600 = vpack.c.b16 %v1275, %v1274
  %v1601 = vpack.c.b16 %v1277, %v1276
  %v1602 = vpack.c.b16 %v1279, %v1278
  %v1603 = vpack.c.b16 %v1281, %v1280
  %v1604 = vpack.c.b16 %v1283, %v1282
  %v1605 = vpack.c.b16 %v1285, %v1284
  %v1606 = vpack.c.b16 %v1287, %v1286
  %v1607 = vpack.c.b16 %v1289, %v1288
  %v1608 = vpack.c.b16 %v1291, %v1290
  %v1609 = vpack.c.b16 %v1293, %v1292
  %v1610 = vpack.c.b16 %v1295, %v1294
  %v1611 = vpack.c.b16 %v1297, %v1296
  %v1612 = vpack.c.b16 %v1299, %v1298
  %v1613 = vpack.c.b16 %v1301, %v1300
  %v1614 = vpack.c.b16 %v1303, %v1302
  %v1615 = vpack.c.b16 %v1305, %v1304
  %v1616 = vpack.c.b16 %v1307, %v1306
  %v1617 = vpack.c.b16 %v1309, %v1308
  %v1618 = vpack.c.b16 %v1311, %v1310
  %v1619 = vpack.c.b16 %v1313, %v1312
  %v1620 = vpack.c.b16 %v1315, %v1314
  %v1621 = vpack.c.b16 %v1317, %v1316
  %v1622 = vpack.c.b16 %v1319, %v1318
  %v1623 = vpack.c.b16 %v1321, %v1320
  %v1624 = vpack.c.b16 %v1323, %v1322
  %v1625 = vpack.c.b16 %v1325, %v1324
  %v1626 = vpack.c.b16 %v1327, %v1326
  %v1627 = vpack.c.b16 %v1329, %v1328
  %v1628 = vpack.c.b16 %v1331, %v1330
  %v1629 = vpack.c.b16 %v1333, %v1332
  %v1630 = vpack.c.b16 %v1335, %v1334
  %v1631 = vpack.c.b16 %v1337, %v1336
  %v1632 = vpack.c.b16 %v1339, %v1338
  %v1633 = vpack.c.b16 %v1341, %v1340
  %v1634 = vpack.c.b16 %v1343, %v1342
  %v1635 = vpack.c.b16 %v1345, %v1344
  %v1636 = vpack.c.b16 %v1347, %v1346
  %v1637 = vpack.c.b16 %v1349, %v1348
  %v1638 = vpack.c.b16 %v1351, %v1350
  %v1639 = vpack.c.b16 %v1353, %v1352
  %v1640 = vpack.c.b16 %v1355, %v1354
  %v1641 = vpack.c.b16 %v1357, %v1356
  %v1642 = vpack.c.b16 %v1359, %v1358
  %v1643 = vpack.c.b16 %v1361, %v1360
  %v1644 = vpack.c.b16 %v1363, %v1362
  %v1645 = vpack.c.b16 %v1365, %v1364
  %v1646 = vpack.c.b16 %v1367, %v1366
  %v1647 = vpack.c.b16 %v1369, %v1368
  %v1648 = vpack.c.b16 %v1371, %v1370
  %v1649 = vpack.c.b16 %v1373, %v1372
  %v1650 = vpack.c.b16 %v1375, %v1374
  %v1651 = vpack.c.b16 %v1377, %v1376
  %v1652 = vpack.c.b16 %v1379, %v1378
  %v1653 = vpack.c.b16 %v1381, %v1380
  %v1654 = vpack.c.b16 %v1383, %v1382
  %v1655 = vpack.c.b16 %v1385, %v1384
  %v1656 = vpack.c.b16 %v1387, %v1386
  %v1657 = vpack.c.b16 %v1389, %v1388
  %v1658 = vpack.c.b16 %v1391, %v1390
  %v1659 = vpack.c.b16 %v1393, %v1392
  %v1660 = vpack.c.b16 %v1395, %v1394
  %v1661 = vpack.c.b16 %v1397, %v1396
  %v1662 = vpack.c.b16 %v1399, %v1398
  %v1663 = vpack.c.b16 %v1401, %v1400
  %v1664 = vpack.c.b16 %v1403, %v1402
  %v1665 = vpack.c.b16 %v1405, %v1404
  %v1666 = vpack.c.b16 %v1407, %v1406
  %v1667 = vpack.c.b16 %v1409, %v1408
  %v1668 = vpack.c.b16 %v1411, %v1410
  %v1669 = vpack.c.b16 %v1413, %v1412
  %v1670 = vpack.c.b16 %v1415, %v1414
  %v1671 = vpack.c.b16 %v1417, %v1416
  %v1672 = vpack.c.b16 %v1419, %v1418
  %v1673 = vpack.c.b16 %v1421, %v1420
  %v1674 = vpack.c.b16 %v1423, %v1422
  %v1675 = vpack.c.b16 %v1425, %v1424
  %v1676 = vpack.c.b16 %v1427, %v1426
  %v1677 = vpack.c.b16 %v1429, %v1428
  %v1678 = vpack.c.b16 %v1431, %v1430
  %v1679 = vpack.c.b16 %v1433, %v1432
  %v1680 = vpack.c.b16 %v1435, %v1434
  %v1681 = vpack.c.b16 %v1437, %v1436
  %v1682 = vpack.c.b16 %v1439, %v1438
  %v1683 = vpack.c.b16 %v1441, %v1440
  %v1684 = vpack.c.b16 %v1443, %v1442
  %v1685 = vpack.c.b16 %v1445, %v1444
  %v1686 = vpack.c.b16 %v1447, %v1446
  %v1687 = vpack.c.b16 %v1449, %v1448
  %v1688 = vpack.c.b16 %v1451, %v1450
  %v1689 = vpack.c.b16 %v1453, %v1452
  %v1690 = vpack.c.b16 %v1455, %v1454
  %v1691 = vpack.c.b16 %v1457, %v1456
  %v1692 = vpack.c.b16 %v1459, %v1458
  %v1693 = vpack.c.b16 %v1461, %v1460
  %v1694 = vpack.c.b16 %v1463, %v1462
  %v1695 = vpack.c.b16 %v1465, %v1464
  %v1696 = vpack.c.b16 %v1467, %v1466
  %v1697 = vpack.c.b16 %v1469, %v1468
  %v1698 = vpack.c.b16 %v1471, %v1470
  %v1699 = vpack.c.b16 %v1473, %v1472
  %v1700 = vpack.c.b16 %v1475, %v1474
  %v1701 = vpack.c.b16 %v1477, %v1476
  %v1702 = vpack.c.b16 %v1479, %v1478
  %v1703 = vpack.c.b16 %v1481, %v1480
  %v1704 = vpack.c.b16 %v1483, %v1482
  %v1705 = vpack.c.b16 %v1485, %v1484
  %v1706 = vpack.c.b16 %v1487, %v1486
  %v1707 = vpack.c.b16 %v1489, %v1488
  %v1708 = vpack.c.b16 %v1491, %v1490
  %v1709 = vpack.c.b16 %v1493, %v1492
  %v1710 = vpack.c.b16 %v1495, %v1494
  %v1711 = vpack.c.b16 %v1497, %v1496
  %v1712 = vpack.c.b16 %v1499, %v1498
  %v1713 = vpack.c.b16 %v1501, %v1500
  %v1714 = vpack.c.b16 %v1503, %v1502
  %v1715 = vpack.c.b16 %v1505, %v1504
  %v1716 = vpack.c.b16 %v1507, %v1506
  %v1717 = vpack.c.b16 %v1509, %v1508
  %v1718 = vpack.c.b16 %v1511, %v1510
  %v1719 = vpack.c.b16 %v1513, %v1512
  %v1720 = vpack.c.b16 %v1515, %v1514
  %v1721 = vpack.c.b16 %v1517, %v1516
  %v1722 = vpack.c.b16 %v1519, %v1518
  %v1723 = vpack.c.b16 %v1521, %v1520
  %v1724 = vpack.c.b16 %v1523, %v1522
  %v1725 = vpack.c.b16 %v1525, %v1524
  %1926 = vmatprep.subr.bf16.mxu0 0
  %1927 = vmatpush1.bf16.msra.mxu0 %v1533
  %1928 = vmatprep.subr.bf16.mxu0 0
  %1929 = vmatpush1.bf16.msra.mxu0 %v1532
  %1930 = vmatprep.subr.bf16.mxu0 0
  %1931 = vmatpush1.bf16.msra.mxu0 %v1531
  %1932 = vmatprep.subr.bf16.mxu0 0
  %1933 = vmatpush1.bf16.msra.mxu0 %v1530
  %1934 = vmatprep.subr.bf16.mxu0 0
  %1935 = vmatpush1.bf16.msra.mxu0 %v1529
  %1936 = vmatprep.subr.bf16.mxu0 0
  %1937 = vmatpush1.bf16.msra.mxu0 %v1528
  %1938 = vmatprep.subr.bf16.mxu0 0
  %1939 = vmatpush1.bf16.msra.mxu0 %v1527
  %1940 = vmatprep.subr.bf16.mxu0 0
  %1941 = vmatpush1.bf16.msra.mxu0 %v1526
  %1942 = vmatprep.subr.bf16.mxu0 0
  %1943 = vmatpush2.bf16.msra.mxu0 %v1541
  %1944 = vmatprep.subr.bf16.mxu0 0
  %1945 = vmatpush2.bf16.msra.mxu0 %v1540
  %1946 = vmatprep.subr.bf16.mxu0 0
  %1947 = vmatpush2.bf16.msra.mxu0 %v1539
  %1948 = vmatprep.subr.bf16.mxu0 0
  %1949 = vmatpush2.bf16.msra.mxu0 %v1538
  %1950 = vmatprep.subr.bf16.mxu0 0
  %1951 = vmatpush2.bf16.msra.mxu0 %v1537
  %1952 = vmatprep.subr.bf16.mxu0 0
  %1953 = vmatpush2.bf16.msra.mxu0 %v1536
  %1954 = vmatprep.subr.bf16.mxu0 0
  %1955 = vmatpush2.bf16.msra.mxu0 %v1535
  %1956 = vmatprep.subr.bf16.mxu0 0
  %1957 = vmatpush2.bf16.msra.mxu0 %v1534
  %1958 = vmatprep.mubr.bf16.mxu0 %v627
  %1959 = vmatmul.mubr.bf16.gmra.mxu0 %v626
  %v1960 = vpop.f32.mrf.mxu0
  %v1961 = vadd.f32 %v472, %v1960
  %v1962 = vpop.f32.mrf.mxu0
  %v1963 = vpop.f32.mrf.mxu0
  %v1964 = vadd.f32 %v472, %v1963
  %v1965 = vpop.f32.mrf.mxu0
  %1966 = vmatprep.mubr.bf16.mxu0 %v652
  %1967 = vmatmul.mubr.bf16.gmra.mxu0 %v651
  %v1968 = vpop.f32.mrf.mxu0
  %v1969 = vadd.f32 %v472, %v1968
  %v1970 = vpop.f32.mrf.mxu0
  %v1971 = vpop.f32.mrf.mxu0
  %v1972 = vadd.f32 %v472, %v1971
  %v1973 = vpop.f32.mrf.mxu0
  %1974 = vdwg.mxu0
  %1975 = vmatprep.subr.bf16.mxu0 0
  %1976 = vmatpush1.bf16.msra.mxu0 %v1549
  %1977 = vmatprep.subr.bf16.mxu0 0
  %1978 = vmatpush1.bf16.msra.mxu0 %v1548
  %1979 = vmatprep.subr.bf16.mxu0 0
  %1980 = vmatpush1.bf16.msra.mxu0 %v1547
  %1981 = vmatprep.subr.bf16.mxu0 0
  %1982 = vmatpush1.bf16.msra.mxu0 %v1546
  %1983 = vmatprep.subr.bf16.mxu0 0
  %1984 = vmatpush1.bf16.msra.mxu0 %v1545
  %1985 = vmatprep.subr.bf16.mxu0 0
  %1986 = vmatpush1.bf16.msra.mxu0 %v1544
  %1987 = vmatprep.subr.bf16.mxu0 0
  %1988 = vmatpush1.bf16.msra.mxu0 %v1543
  %1989 = vmatprep.subr.bf16.mxu0 0
  %1990 = vmatpush1.bf16.msra.mxu0 %v1542
  %1991 = vmatprep.subr.bf16.mxu0 0
  %1992 = vmatpush2.bf16.msra.mxu0 %v1557
  %1993 = vmatprep.subr.bf16.mxu0 0
  %1994 = vmatpush2.bf16.msra.mxu0 %v1556
  %1995 = vmatprep.subr.bf16.mxu0 0
  %1996 = vmatpush2.bf16.msra.mxu0 %v1555
  %1997 = vmatprep.subr.bf16.mxu0 0
  %1998 = vmatpush2.bf16.msra.mxu0 %v1554
  %1999 = vmatprep.subr.bf16.mxu0 0
  %2000 = vmatpush2.bf16.msra.mxu0 %v1553
  %2001 = vmatprep.subr.bf16.mxu0 0
  %2002 = vmatpush2.bf16.msra.mxu0 %v1552
  %2003 = vmatprep.subr.bf16.mxu0 0
  %2004 = vmatpush2.bf16.msra.mxu0 %v1551
  %2005 = vmatprep.subr.bf16.mxu0 0
  %2006 = vmatpush2.bf16.msra.mxu0 %v1550
  %2007 = vmatprep.mubr.bf16.mxu0 %v629
  %2008 = vmatmul.mubr.bf16.gmra.mxu0 %v628
  %v2009 = vpop.f32.mrf.mxu0
  %v2010 = vadd.f32 %v1961, %v2009
  %v2011 = vpop.f32.mrf.mxu0
  %v2012 = vpop.f32.mrf.mxu0
  %v2013 = vadd.f32 %v1964, %v2012
  %v2014 = vpop.f32.mrf.mxu0
  %2015 = vmatprep.mubr.bf16.mxu0 %v654
  %2016 = vmatmul.mubr.bf16.gmra.mxu0 %v653
  %v2017 = vpop.f32.mrf.mxu0
  %v2018 = vadd.f32 %v1969, %v2017
  %v2019 = vpop.f32.mrf.mxu0
  %v2020 = vpop.f32.mrf.mxu0
  %v2021 = vadd.f32 %v1972, %v2020
  %v2022 = vpop.f32.mrf.mxu0
  %2023 = vdwg.mxu0
  %2024 = vmatprep.subr.bf16.mxu0 0
  %2025 = vmatpush1.bf16.msra.mxu0 %v1565
  %2026 = vmatprep.subr.bf16.mxu0 0
  %2027 = vmatpush1.bf16.msra.mxu0 %v1564
  %2028 = vmatprep.subr.bf16.mxu0 0
  %2029 = vmatpush1.bf16.msra.mxu0 %v1563
  %2030 = vmatprep.subr.bf16.mxu0 0
  %2031 = vmatpush1.bf16.msra.mxu0 %v1562
  %2032 = vmatprep.subr.bf16.mxu0 0
  %2033 = vmatpush1.bf16.msra.mxu0 %v1561
  %2034 = vmatprep.subr.bf16.mxu0 0
  %2035 = vmatpush1.bf16.msra.mxu0 %v1560
  %2036 = vmatprep.subr.bf16.mxu0 0
  %2037 = vmatpush1.bf16.msra.mxu0 %v1559
  %2038 = vmatprep.subr.bf16.mxu0 0
  %2039 = vmatpush1.bf16.msra.mxu0 %v1558
  %2040 = vmatprep.subr.bf16.mxu0 0
  %2041 = vmatpush2.bf16.msra.mxu0 %v1573
  %2042 = vmatprep.subr.bf16.mxu0 0
  %2043 = vmatpush2.bf16.msra.mxu0 %v1572
  %2044 = vmatprep.subr.bf16.mxu0 0
  %2045 = vmatpush2.bf16.msra.mxu0 %v1571
  %2046 = vmatprep.subr.bf16.mxu0 0
  %2047 = vmatpush2.bf16.msra.mxu0 %v1570
  %2048 = vmatprep.subr.bf16.mxu0 0
  %2049 = vmatpush2.bf16.msra.mxu0 %v1569
  %2050 = vmatprep.subr.bf16.mxu0 0
  %2051 = vmatpush2.bf16.msra.mxu0 %v1568
  %2052 = vmatprep.subr.bf16.mxu0 0
  %2053 = vmatpush2.bf16.msra.mxu0 %v1567
  %2054 = vmatprep.subr.bf16.mxu0 0
  %2055 = vmatpush2.bf16.msra.mxu0 %v1566
  %2056 = vmatprep.mubr.bf16.mxu0 %v631
  %2057 = vmatmul.mubr.bf16.gmra.mxu0 %v630
  %v2058 = vpop.f32.mrf.mxu0
  %v2059 = vadd.f32 %v2010, %v2058
  %v2060 = vpop.f32.mrf.mxu0
  %v2061 = vpop.f32.mrf.mxu0
  %v2062 = vadd.f32 %v2013, %v2061
  %v2063 = vpop.f32.mrf.mxu0
  %2064 = vmatprep.mubr.bf16.mxu0 %v656
  %2065 = vmatmul.mubr.bf16.gmra.mxu0 %v655
  %v2066 = vpop.f32.mrf.mxu0
  %v2067 = vadd.f32 %v2018, %v2066
  %v2068 = vpop.f32.mrf.mxu0
  %v2069 = vpop.f32.mrf.mxu0
  %v2070 = vadd.f32 %v2021, %v2069
  %v2071 = vpop.f32.mrf.mxu0
  %2072 = vdwg.mxu0
  %2073 = vmatprep.subr.bf16.mxu0 0
  %2074 = vmatpush1.bf16.msra.mxu0 %v1581
  %2075 = vmatprep.subr.bf16.mxu0 0
  %2076 = vmatpush1.bf16.msra.mxu0 %v1580
  %2077 = vmatprep.subr.bf16.mxu0 0
  %2078 = vmatpush1.bf16.msra.mxu0 %v1579
  %2079 = vmatprep.subr.bf16.mxu0 0
  %2080 = vmatpush1.bf16.msra.mxu0 %v1578
  %2081 = vmatprep.subr.bf16.mxu0 0
  %2082 = vmatpush1.bf16.msra.mxu0 %v1577
  %2083 = vmatprep.subr.bf16.mxu0 0
  %2084 = vmatpush1.bf16.msra.mxu0 %v1576
  %2085 = vmatprep.subr.bf16.mxu0 0
  %2086 = vmatpush1.bf16.msra.mxu0 %v1575
  %2087 = vmatprep.subr.bf16.mxu0 0
  %2088 = vmatpush1.bf16.msra.mxu0 %v1574
  %2089 = vmatprep.subr.bf16.mxu0 0
  %2090 = vmatpush2.bf16.msra.mxu0 %v1589
  %2091 = vmatprep.subr.bf16.mxu0 0
  %2092 = vmatpush2.bf16.msra.mxu0 %v1588
  %2093 = vmatprep.subr.bf16.mxu0 0
  %2094 = vmatpush2.bf16.msra.mxu0 %v1587
  %2095 = vmatprep.subr.bf16.mxu0 0
  %2096 = vmatpush2.bf16.msra.mxu0 %v1586
  %2097 = vmatprep.subr.bf16.mxu0 0
  %2098 = vmatpush2.bf16.msra.mxu0 %v1585
  %2099 = vmatprep.subr.bf16.mxu0 0
  %2100 = vmatpush2.bf16.msra.mxu0 %v1584
  %2101 = vmatprep.subr.bf16.mxu0 0
  %2102 = vmatpush2.bf16.msra.mxu0 %v1583
  %2103 = vmatprep.subr.bf16.mxu0 0
  %2104 = vmatpush2.bf16.msra.mxu0 %v1582
  %2105 = vmatprep.mubr.bf16.mxu0 %v633
  %2106 = vmatmul.mubr.bf16.gmra.mxu0 %v632
  %v2107 = vpop.f32.mrf.mxu0
  %v2108 = vadd.f32 %v2059, %v2107
  %v2109 = vpop.f32.mrf.mxu0
  %v2110 = vpop.f32.mrf.mxu0
  %v2111 = vadd.f32 %v2062, %v2110
  %v2112 = vpop.f32.mrf.mxu0
  %2113 = vmatprep.mubr.bf16.mxu0 %v658
  %2114 = vmatmul.mubr.bf16.gmra.mxu0 %v657
  %v2115 = vpop.f32.mrf.mxu0
  %v2116 = vadd.f32 %v2067, %v2115
  %v2117 = vpop.f32.mrf.mxu0
  %v2118 = vpop.f32.mrf.mxu0
  %v2119 = vadd.f32 %v2070, %v2118
  %v2120 = vpop.f32.mrf.mxu0
  %2121 = vdwg.mxu0
  %2122 = vmatprep.subr.bf16.mxu0 0
  %2123 = vmatpush1.bf16.msra.mxu0 %v1597
  %2124 = vmatprep.subr.bf16.mxu0 0
  %2125 = vmatpush1.bf16.msra.mxu0 %v1596
  %2126 = vmatprep.subr.bf16.mxu0 0
  %2127 = vmatpush1.bf16.msra.mxu0 %v1595
  %2128 = vmatprep.subr.bf16.mxu0 0
  %2129 = vmatpush1.bf16.msra.mxu0 %v1594
  %2130 = vmatprep.subr.bf16.mxu0 0
  %2131 = vmatpush1.bf16.msra.mxu0 %v1593
  %2132 = vmatprep.subr.bf16.mxu0 0
  %2133 = vmatpush1.bf16.msra.mxu0 %v1592
  %2134 = vmatprep.subr.bf16.mxu0 0
  %2135 = vmatpush1.bf16.msra.mxu0 %v1591
  %2136 = vmatprep.subr.bf16.mxu0 0
  %2137 = vmatpush1.bf16.msra.mxu0 %v1590
  %2138 = vmatprep.subr.bf16.mxu0 0
  %2139 = vmatpush2.bf16.msra.mxu0 %v1605
  %2140 = vmatprep.subr.bf16.mxu0 0
  %2141 = vmatpush2.bf16.msra.mxu0 %v1604
  %2142 = vmatprep.subr.bf16.mxu0 0
  %2143 = vmatpush2.bf16.msra.mxu0 %v1603
  %2144 = vmatprep.subr.bf16.mxu0 0
  %2145 = vmatpush2.bf16.msra.mxu0 %v1602
  %2146 = vmatprep.subr.bf16.mxu0 0
  %2147 = vmatpush2.bf16.msra.mxu0 %v1601
  %2148 = vmatprep.subr.bf16.mxu0 0
  %2149 = vmatpush2.bf16.msra.mxu0 %v1600
  %2150 = vmatprep.subr.bf16.mxu0 0
  %2151 = vmatpush2.bf16.msra.mxu0 %v1599
  %2152 = vmatprep.subr.bf16.mxu0 0
  %2153 = vmatpush2.bf16.msra.mxu0 %v1598
  %2154 = vmatprep.mubr.bf16.mxu0 %v635
  %2155 = vmatmul.mubr.bf16.gmra.mxu0 %v634
  %v2156 = vpop.f32.mrf.mxu0
  %v2157 = vadd.f32 %v2108, %v2156
  %v2158 = vpop.f32.mrf.mxu0
  %v2159 = vpop.f32.mrf.mxu0
  %v2160 = vadd.f32 %v2111, %v2159
  %v2161 = vpop.f32.mrf.mxu0
  %2162 = vmatprep.mubr.bf16.mxu0 %v660
  %2163 = vmatmul.mubr.bf16.gmra.mxu0 %v659
  %v2164 = vpop.f32.mrf.mxu0
  %v2165 = vadd.f32 %v2116, %v2164
  %v2166 = vpop.f32.mrf.mxu0
  %v2167 = vpop.f32.mrf.mxu0
  %v2168 = vadd.f32 %v2119, %v2167
  %v2169 = vpop.f32.mrf.mxu0
  %2170 = vdwg.mxu0
  %2171 = vmatprep.subr.bf16.mxu0 0
  %2172 = vmatpush1.bf16.msra.mxu0 %v1613
  %2173 = vmatprep.subr.bf16.mxu0 0
  %2174 = vmatpush1.bf16.msra.mxu0 %v1612
  %2175 = vmatprep.subr.bf16.mxu0 0
  %2176 = vmatpush1.bf16.msra.mxu0 %v1611
  %2177 = vmatprep.subr.bf16.mxu0 0
  %2178 = vmatpush1.bf16.msra.mxu0 %v1610
  %2179 = vmatprep.subr.bf16.mxu0 0
  %2180 = vmatpush1.bf16.msra.mxu0 %v1609
  %2181 = vmatprep.subr.bf16.mxu0 0
  %2182 = vmatpush1.bf16.msra.mxu0 %v1608
  %2183 = vmatprep.subr.bf16.mxu0 0
  %2184 = vmatpush1.bf16.msra.mxu0 %v1607
  %2185 = vmatprep.subr.bf16.mxu0 0
  %2186 = vmatpush1.bf16.msra.mxu0 %v1606
  %2187 = vmatprep.subr.bf16.mxu0 0
  %2188 = vmatpush2.bf16.msra.mxu0 %v1621
  %2189 = vmatprep.subr.bf16.mxu0 0
  %2190 = vmatpush2.bf16.msra.mxu0 %v1620
  %2191 = vmatprep.subr.bf16.mxu0 0
  %2192 = vmatpush2.bf16.msra.mxu0 %v1619
  %2193 = vmatprep.subr.bf16.mxu0 0
  %2194 = vmatpush2.bf16.msra.mxu0 %v1618
  %2195 = vmatprep.subr.bf16.mxu0 0
  %2196 = vmatpush2.bf16.msra.mxu0 %v1617
  %2197 = vmatprep.subr.bf16.mxu0 0
  %2198 = vmatpush2.bf16.msra.mxu0 %v1616
  %2199 = vmatprep.subr.bf16.mxu0 0
  %2200 = vmatpush2.bf16.msra.mxu0 %v1615
  %2201 = vmatprep.subr.bf16.mxu0 0
  %2202 = vmatpush2.bf16.msra.mxu0 %v1614
  %2203 = vmatprep.mubr.bf16.mxu0 %v637
  %2204 = vmatmul.mubr.bf16.gmra.mxu0 %v636
  %v2205 = vpop.f32.mrf.mxu0
  %v2206 = vadd.f32 %v2157, %v2205
  %v2207 = vpop.f32.mrf.mxu0
  %v2208 = vpop.f32.mrf.mxu0
  %v2209 = vadd.f32 %v2160, %v2208
  %v2210 = vpop.f32.mrf.mxu0
  %2211 = vmatprep.mubr.bf16.mxu0 %v662
  %2212 = vmatmul.mubr.bf16.gmra.mxu0 %v661
  %v2213 = vpop.f32.mrf.mxu0
  %v2214 = vadd.f32 %v2165, %v2213
  %v2215 = vpop.f32.mrf.mxu0
  %v2216 = vpop.f32.mrf.mxu0
  %v2217 = vadd.f32 %v2168, %v2216
  %v2218 = vpop.f32.mrf.mxu0
  %2219 = vdwg.mxu0
  %2220 = vmatprep.subr.bf16.mxu0 0
  %2221 = vmatpush1.bf16.msra.mxu0 %v1629
  %2222 = vmatprep.subr.bf16.mxu0 0
  %2223 = vmatpush1.bf16.msra.mxu0 %v1628
  %2224 = vmatprep.subr.bf16.mxu0 0
  %2225 = vmatpush1.bf16.msra.mxu0 %v1627
  %2226 = vmatprep.subr.bf16.mxu0 0
  %2227 = vmatpush1.bf16.msra.mxu0 %v1626
  %2228 = vmatprep.subr.bf16.mxu0 0
  %2229 = vmatpush1.bf16.msra.mxu0 %v1625
  %2230 = vmatprep.subr.bf16.mxu0 0
  %2231 = vmatpush1.bf16.msra.mxu0 %v1624
  %2232 = vmatprep.subr.bf16.mxu0 0
  %2233 = vmatpush1.bf16.msra.mxu0 %v1623
  %2234 = vmatprep.subr.bf16.mxu0 0
  %2235 = vmatpush1.bf16.msra.mxu0 %v1622
  %2236 = vmatprep.subr.bf16.mxu0 0
  %2237 = vmatpush2.bf16.msra.mxu0 %v1637
  %2238 = vmatprep.subr.bf16.mxu0 0
  %2239 = vmatpush2.bf16.msra.mxu0 %v1636
  %2240 = vmatprep.subr.bf16.mxu0 0
  %2241 = vmatpush2.bf16.msra.mxu0 %v1635
  %2242 = vmatprep.subr.bf16.mxu0 0
  %2243 = vmatpush2.bf16.msra.mxu0 %v1634
  %2244 = vmatprep.subr.bf16.mxu0 0
  %2245 = vmatpush2.bf16.msra.mxu0 %v1633
  %2246 = vmatprep.subr.bf16.mxu0 0
  %2247 = vmatpush2.bf16.msra.mxu0 %v1632
  %2248 = vmatprep.subr.bf16.mxu0 0
  %2249 = vmatpush2.bf16.msra.mxu0 %v1631
  %2250 = vmatprep.subr.bf16.mxu0 0
  %2251 = vmatpush2.bf16.msra.mxu0 %v1630
  %2252 = vmatprep.mubr.bf16.mxu0 %v639
  %2253 = vmatmul.mubr.bf16.gmra.mxu0 %v638
  %v2254 = vpop.f32.mrf.mxu0
  %v2255 = vadd.f32 %v2206, %v2254
  %v2256 = vpop.f32.mrf.mxu0
  %v2257 = vpop.f32.mrf.mxu0
  %v2258 = vadd.f32 %v2209, %v2257
  %v2259 = vpop.f32.mrf.mxu0
  %2260 = vmatprep.mubr.bf16.mxu0 %v664
  %2261 = vmatmul.mubr.bf16.gmra.mxu0 %v663
  %v2262 = vpop.f32.mrf.mxu0
  %v2263 = vadd.f32 %v2214, %v2262
  %v2264 = vpop.f32.mrf.mxu0
  %v2265 = vpop.f32.mrf.mxu0
  %v2266 = vadd.f32 %v2217, %v2265
  %v2267 = vpop.f32.mrf.mxu0
  %2268 = vdwg.mxu0
  %2269 = vmatprep.subr.bf16.mxu0 0
  %2270 = vmatpush1.bf16.msra.mxu0 %v1645
  %2271 = vmatprep.subr.bf16.mxu0 0
  %2272 = vmatpush1.bf16.msra.mxu0 %v1644
  %2273 = vmatprep.subr.bf16.mxu0 0
  %2274 = vmatpush1.bf16.msra.mxu0 %v1643
  %2275 = vmatprep.subr.bf16.mxu0 0
  %2276 = vmatpush1.bf16.msra.mxu0 %v1642
  %2277 = vmatprep.subr.bf16.mxu0 0
  %2278 = vmatpush1.bf16.msra.mxu0 %v1641
  %2279 = vmatprep.subr.bf16.mxu0 0
  %2280 = vmatpush1.bf16.msra.mxu0 %v1640
  %2281 = vmatprep.subr.bf16.mxu0 0
  %2282 = vmatpush1.bf16.msra.mxu0 %v1639
  %2283 = vmatprep.subr.bf16.mxu0 0
  %2284 = vmatpush1.bf16.msra.mxu0 %v1638
  %2285 = vmatprep.subr.bf16.mxu0 0
  %2286 = vmatpush2.bf16.msra.mxu0 %v1653
  %2287 = vmatprep.subr.bf16.mxu0 0
  %2288 = vmatpush2.bf16.msra.mxu0 %v1652
  %2289 = vmatprep.subr.bf16.mxu0 0
  %2290 = vmatpush2.bf16.msra.mxu0 %v1651
  %2291 = vmatprep.subr.bf16.mxu0 0
  %2292 = vmatpush2.bf16.msra.mxu0 %v1650
  %2293 = vmatprep.subr.bf16.mxu0 0
  %2294 = vmatpush2.bf16.msra.mxu0 %v1649
  %2295 = vmatprep.subr.bf16.mxu0 0
  %2296 = vmatpush2.bf16.msra.mxu0 %v1648
  %2297 = vmatprep.subr.bf16.mxu0 0
  %2298 = vmatpush2.bf16.msra.mxu0 %v1647
  %2299 = vmatprep.subr.bf16.mxu0 0
  %2300 = vmatpush2.bf16.msra.mxu0 %v1646
  %2301 = vmatprep.mubr.bf16.mxu0 %v641
  %2302 = vmatmul.mubr.bf16.gmra.mxu0 %v640
  %v2303 = vpop.f32.mrf.mxu0
  %v2304 = vadd.f32 %v2255, %v2303
  %v2305 = vpop.f32.mrf.mxu0
  %v2306 = vpop.f32.mrf.mxu0
  %v2307 = vadd.f32 %v2258, %v2306
  %v2308 = vpop.f32.mrf.mxu0
  %2309 = vmatprep.mubr.bf16.mxu0 %v666
  %2310 = vmatmul.mubr.bf16.gmra.mxu0 %v665
  %v2311 = vpop.f32.mrf.mxu0
  %v2312 = vadd.f32 %v2263, %v2311
  %v2313 = vpop.f32.mrf.mxu0
  %v2314 = vpop.f32.mrf.mxu0
  %v2315 = vadd.f32 %v2266, %v2314
  %v2316 = vpop.f32.mrf.mxu0
  %2317 = vdwg.mxu0
  %2318 = vmatprep.subr.bf16.mxu0 0
  %2319 = vmatpush1.bf16.msra.mxu0 %v1661
  %2320 = vmatprep.subr.bf16.mxu0 0
  %2321 = vmatpush1.bf16.msra.mxu0 %v1660
  %2322 = vmatprep.subr.bf16.mxu0 0
  %2323 = vmatpush1.bf16.msra.mxu0 %v1659
  %2324 = vmatprep.subr.bf16.mxu0 0
  %2325 = vmatpush1.bf16.msra.mxu0 %v1658
  %2326 = vmatprep.subr.bf16.mxu0 0
  %2327 = vmatpush1.bf16.msra.mxu0 %v1657
  %2328 = vmatprep.subr.bf16.mxu0 0
  %2329 = vmatpush1.bf16.msra.mxu0 %v1656
  %2330 = vmatprep.subr.bf16.mxu0 0
  %2331 = vmatpush1.bf16.msra.mxu0 %v1655
  %2332 = vmatprep.subr.bf16.mxu0 0
  %2333 = vmatpush1.bf16.msra.mxu0 %v1654
  %2334 = vmatprep.subr.bf16.mxu0 0
  %2335 = vmatpush2.bf16.msra.mxu0 %v1669
  %2336 = vmatprep.subr.bf16.mxu0 0
  %2337 = vmatpush2.bf16.msra.mxu0 %v1668
  %2338 = vmatprep.subr.bf16.mxu0 0
  %2339 = vmatpush2.bf16.msra.mxu0 %v1667
  %2340 = vmatprep.subr.bf16.mxu0 0
  %2341 = vmatpush2.bf16.msra.mxu0 %v1666
  %2342 = vmatprep.subr.bf16.mxu0 0
  %2343 = vmatpush2.bf16.msra.mxu0 %v1665
  %2344 = vmatprep.subr.bf16.mxu0 0
  %2345 = vmatpush2.bf16.msra.mxu0 %v1664
  %2346 = vmatprep.subr.bf16.mxu0 0
  %2347 = vmatpush2.bf16.msra.mxu0 %v1663
  %2348 = vmatprep.subr.bf16.mxu0 0
  %2349 = vmatpush2.bf16.msra.mxu0 %v1662
  %2350 = vmatprep.mubr.bf16.mxu0 %v643
  %2351 = vmatmul.mubr.bf16.gmra.mxu0 %v642
  %v2352 = vpop.f32.mrf.mxu0
  %v2353 = vadd.f32 %v2304, %v2352
  %v2354 = vpop.f32.mrf.mxu0
  %v2355 = vpop.f32.mrf.mxu0
  %v2356 = vadd.f32 %v2307, %v2355
  %v2357 = vpop.f32.mrf.mxu0
  %2358 = vmatprep.mubr.bf16.mxu0 %v668
  %2359 = vmatmul.mubr.bf16.gmra.mxu0 %v667
  %v2360 = vpop.f32.mrf.mxu0
  %v2361 = vadd.f32 %v2312, %v2360
  %v2362 = vpop.f32.mrf.mxu0
  %v2363 = vpop.f32.mrf.mxu0
  %v2364 = vadd.f32 %v2315, %v2363
  %v2365 = vpop.f32.mrf.mxu0
  %2366 = vdwg.mxu0
  %2367 = vmatprep.subr.bf16.mxu0 0
  %2368 = vmatpush1.bf16.msra.mxu0 %v1677
  %2369 = vmatprep.subr.bf16.mxu0 0
  %2370 = vmatpush1.bf16.msra.mxu0 %v1676
  %2371 = vmatprep.subr.bf16.mxu0 0
  %2372 = vmatpush1.bf16.msra.mxu0 %v1675
  %2373 = vmatprep.subr.bf16.mxu0 0
  %2374 = vmatpush1.bf16.msra.mxu0 %v1674
  %2375 = vmatprep.subr.bf16.mxu0 0
  %2376 = vmatpush1.bf16.msra.mxu0 %v1673
  %2377 = vmatprep.subr.bf16.mxu0 0
  %2378 = vmatpush1.bf16.msra.mxu0 %v1672
  %2379 = vmatprep.subr.bf16.mxu0 0
  %2380 = vmatpush1.bf16.msra.mxu0 %v1671
  %2381 = vmatprep.subr.bf16.mxu0 0
  %2382 = vmatpush1.bf16.msra.mxu0 %v1670
  %2383 = vmatprep.subr.bf16.mxu0 0
  %2384 = vmatpush2.bf16.msra.mxu0 %v1685
  %2385 = vmatprep.subr.bf16.mxu0 0
  %2386 = vmatpush2.bf16.msra.mxu0 %v1684
  %2387 = vmatprep.subr.bf16.mxu0 0
  %2388 = vmatpush2.bf16.msra.mxu0 %v1683
  %2389 = vmatprep.subr.bf16.mxu0 0
  %2390 = vmatpush2.bf16.msra.mxu0 %v1682
  %2391 = vmatprep.subr.bf16.mxu0 0
  %2392 = vmatpush2.bf16.msra.mxu0 %v1681
  %2393 = vmatprep.subr.bf16.mxu0 0
  %2394 = vmatpush2.bf16.msra.mxu0 %v1680
  %2395 = vmatprep.subr.bf16.mxu0 0
  %2396 = vmatpush2.bf16.msra.mxu0 %v1679
  %2397 = vmatprep.subr.bf16.mxu0 0
  %2398 = vmatpush2.bf16.msra.mxu0 %v1678
  %2399 = vmatprep.mubr.bf16.mxu0 %v645
  %2400 = vmatmul.mubr.bf16.gmra.mxu0 %v644
  %v2401 = vpop.f32.mrf.mxu0
  %v2402 = vadd.f32 %v2353, %v2401
  %v2403 = vpop.f32.mrf.mxu0
  %v2404 = vpop.f32.mrf.mxu0
  %v2405 = vadd.f32 %v2356, %v2404
  %v2406 = vpop.f32.mrf.mxu0
  %2407 = vmatprep.mubr.bf16.mxu0 %v670
  %2408 = vmatmul.mubr.bf16.gmra.mxu0 %v669
  %v2409 = vpop.f32.mrf.mxu0
  %v2410 = vadd.f32 %v2361, %v2409
  %v2411 = vpop.f32.mrf.mxu0
  %v2412 = vpop.f32.mrf.mxu0
  %v2413 = vadd.f32 %v2364, %v2412
  %v2414 = vpop.f32.mrf.mxu0
  %2415 = vdwg.mxu0
  %2416 = vmatprep.subr.bf16.mxu0 0
  %2417 = vmatpush1.bf16.msra.mxu0 %v1693
  %2418 = vmatprep.subr.bf16.mxu0 0
  %2419 = vmatpush1.bf16.msra.mxu0 %v1692
  %2420 = vmatprep.subr.bf16.mxu0 0
  %2421 = vmatpush1.bf16.msra.mxu0 %v1691
  %2422 = vmatprep.subr.bf16.mxu0 0
  %2423 = vmatpush1.bf16.msra.mxu0 %v1690
  %2424 = vmatprep.subr.bf16.mxu0 0
  %2425 = vmatpush1.bf16.msra.mxu0 %v1689
  %2426 = vmatprep.subr.bf16.mxu0 0
  %2427 = vmatpush1.bf16.msra.mxu0 %v1688
  %2428 = vmatprep.subr.bf16.mxu0 0
  %2429 = vmatpush1.bf16.msra.mxu0 %v1687
  %2430 = vmatprep.subr.bf16.mxu0 0
  %2431 = vmatpush1.bf16.msra.mxu0 %v1686
  %2432 = vmatprep.subr.bf16.mxu0 0
  %2433 = vmatpush2.bf16.msra.mxu0 %v1701
  %2434 = vmatprep.subr.bf16.mxu0 0
  %2435 = vmatpush2.bf16.msra.mxu0 %v1700
  %2436 = vmatprep.subr.bf16.mxu0 0
  %2437 = vmatpush2.bf16.msra.mxu0 %v1699
  %2438 = vmatprep.subr.bf16.mxu0 0
  %2439 = vmatpush2.bf16.msra.mxu0 %v1698
  %2440 = vmatprep.subr.bf16.mxu0 0
  %2441 = vmatpush2.bf16.msra.mxu0 %v1697
  %2442 = vmatprep.subr.bf16.mxu0 0
  %2443 = vmatpush2.bf16.msra.mxu0 %v1696
  %2444 = vmatprep.subr.bf16.mxu0 0
  %2445 = vmatpush2.bf16.msra.mxu0 %v1695
  %2446 = vmatprep.subr.bf16.mxu0 0
  %2447 = vmatpush2.bf16.msra.mxu0 %v1694
  %2448 = vmatprep.mubr.bf16.mxu0 %v647
  %2449 = vmatmul.mubr.bf16.gmra.mxu0 %v646
  %v2450 = vpop.f32.mrf.mxu0
  %v2451 = vadd.f32 %v2402, %v2450
  %v2452 = vpop.f32.mrf.mxu0
  %v2453 = vpop.f32.mrf.mxu0
  %v2454 = vadd.f32 %v2405, %v2453
  %v2455 = vpop.f32.mrf.mxu0
  %2456 = vmatprep.mubr.bf16.mxu0 %v672
  %2457 = vmatmul.mubr.bf16.gmra.mxu0 %v671
  %v2458 = vpop.f32.mrf.mxu0
  %v2459 = vadd.f32 %v2410, %v2458
  %v2460 = vpop.f32.mrf.mxu0
  %v2461 = vpop.f32.mrf.mxu0
  %v2462 = vadd.f32 %v2413, %v2461
  %v2463 = vpop.f32.mrf.mxu0
  %2464 = vdwg.mxu0
  %2465 = vmatprep.subr.bf16.mxu0 0
  %2466 = vmatpush1.bf16.msra.mxu0 %v1709
  %2467 = vmatprep.subr.bf16.mxu0 0
  %2468 = vmatpush1.bf16.msra.mxu0 %v1708
  %2469 = vmatprep.subr.bf16.mxu0 0
  %2470 = vmatpush1.bf16.msra.mxu0 %v1707
  %2471 = vmatprep.subr.bf16.mxu0 0
  %2472 = vmatpush1.bf16.msra.mxu0 %v1706
  %2473 = vmatprep.subr.bf16.mxu0 0
  %2474 = vmatpush1.bf16.msra.mxu0 %v1705
  %2475 = vmatprep.subr.bf16.mxu0 0
  %2476 = vmatpush1.bf16.msra.mxu0 %v1704
  %2477 = vmatprep.subr.bf16.mxu0 0
  %2478 = vmatpush1.bf16.msra.mxu0 %v1703
  %2479 = vmatprep.subr.bf16.mxu0 0
  %2480 = vmatpush1.bf16.msra.mxu0 %v1702
  %2481 = vmatprep.subr.bf16.mxu0 0
  %2482 = vmatpush2.bf16.msra.mxu0 %v1717
  %2483 = vmatprep.subr.bf16.mxu0 0
  %2484 = vmatpush2.bf16.msra.mxu0 %v1716
  %2485 = vmatprep.subr.bf16.mxu0 0
  %2486 = vmatpush2.bf16.msra.mxu0 %v1715
  %2487 = vmatprep.subr.bf16.mxu0 0
  %2488 = vmatpush2.bf16.msra.mxu0 %v1714
  %2489 = vmatprep.subr.bf16.mxu0 0
  %2490 = vmatpush2.bf16.msra.mxu0 %v1713
  %2491 = vmatprep.subr.bf16.mxu0 0
  %2492 = vmatpush2.bf16.msra.mxu0 %v1712
  %2493 = vmatprep.subr.bf16.mxu0 0
  %2494 = vmatpush2.bf16.msra.mxu0 %v1711
  %2495 = vmatprep.subr.bf16.mxu0 0
  %2496 = vmatpush2.bf16.msra.mxu0 %v1710
  %2497 = vmatprep.mubr.bf16.mxu0 %v649
  %2498 = vmatmul.mubr.bf16.gmra.mxu0 %v648
  %v2499 = vpop.f32.mrf.mxu0
  %v2500 = vadd.f32 %v2451, %v2499
  %v2501 = vpop.f32.mrf.mxu0
  %v2502 = vpop.f32.mrf.mxu0
  %v2503 = vadd.f32 %v2454, %v2502
  %v2504 = vpop.f32.mrf.mxu0
  %2505 = vmatprep.mubr.bf16.mxu0 %v674
  %2506 = vmatmul.mubr.bf16.gmra.mxu0 %v673
  %v2507 = vpop.f32.mrf.mxu0
  %v2508 = vadd.f32 %v2459, %v2507
  %v2509 = vpop.f32.mrf.mxu0
  %v2510 = vpop.f32.mrf.mxu0
  %v2511 = vadd.f32 %v2462, %v2510
  %v2512 = vpop.f32.mrf.mxu0
  %2513 = vdwg.mxu0
  %2514 = vmatprep.subr.bf16.mxu0 0
  %2515 = vmatpush1.bf16.msra.mxu0 %v1725
  %2516 = vmatprep.subr.bf16.mxu0 0
  %2517 = vmatpush1.bf16.msra.mxu0 %v1724
  %2518 = vmatprep.subr.bf16.mxu0 0
  %2519 = vmatpush1.bf16.msra.mxu0 %v1723
  %2520 = vmatprep.subr.bf16.mxu0 0
  %2521 = vmatpush1.bf16.msra.mxu0 %v1722
  %2522 = vmatprep.subr.bf16.mxu0 0
  %2523 = vmatpush1.bf16.msra.mxu0 %v1721
  %2524 = vmatprep.subr.bf16.mxu0 0
  %2525 = vmatpush1.bf16.msra.mxu0 %v1720
  %2526 = vmatprep.subr.bf16.mxu0 0
  %2527 = vmatpush1.bf16.msra.mxu0 %v1719
  %2528 = vmatprep.subr.bf16.mxu0 0
  %2529 = vmatpush1.bf16.msra.mxu0 %v1718
  %2530 = vmatprep.subr.bf16.mxu0 0
  %2531 = vmatpush2.bf16.msra.mxu0 0
  %2532 = vmatprep.subr.bf16.mxu0 0
  %2533 = vmatpush2.bf16.msra.mxu0 0
  %2534 = vmatprep.subr.bf16.mxu0 0
  %2535 = vmatpush2.bf16.msra.mxu0 0
  %2536 = vmatprep.subr.bf16.mxu0 0
  %2537 = vmatpush2.bf16.msra.mxu0 0
  %2538 = vmatprep.subr.bf16.mxu0 0
  %2539 = vmatpush2.bf16.msra.mxu0 0
  %2540 = vmatprep.subr.bf16.mxu0 0
  %2541 = vmatpush2.bf16.msra.mxu0 0
  %2542 = vmatprep.subr.bf16.mxu0 0
  %2543 = vmatpush2.bf16.msra.mxu0 0
  %2544 = vmatprep.subr.bf16.mxu0 0
  %2545 = vmatpush2.bf16.msra.mxu0 0
  %2546 = vmatprep.mubr.bf16.mxu0 0
  %2547 = vmatmul.mubr.bf16.gmra.mxu0 %v650
  %v2548 = vpop.f32.mrf.mxu0
  %v2549 = vadd.f32 %v2500, %v2548
  %v2550 = vpop.f32.mrf.mxu0
  %v2551 = vpop.f32.mrf.mxu0
  %v2552 = vadd.f32 %v2503, %v2551
  %v2553 = vpop.f32.mrf.mxu0
  %2554 = vmatprep.mubr.bf16.mxu0 0
  %2555 = vmatmul.mubr.bf16.gmra.mxu0 %v675
  %v2556 = vpop.f32.mrf.mxu0
  %v2557 = vadd.f32 %v2508, %v2556
  %v2558 = vpop.f32.mrf.mxu0
  %v2559 = vpop.f32.mrf.mxu0
  %v2560 = vadd.f32 %v2511, %v2559
  %v2561 = vpop.f32.mrf.mxu0
  %2562 = vdwg.mxu0
  %v2563 = vmax.f32 %v2549, 0.0
  %v2564 = vmax.f32 %v2552, 0.0
  %v2565 = vmax.f32 %v2557, 0.0
  %v2566 = vmax.f32 %v2560, 0.0
  %v2567 = vpack.c.bf16 %v2564, %v2563
  %v2568 = vpack.c.bf16 %v2566, %v2565
  %v2571 = vunpack.c.l.b16 %v2567
  %v2572 = vunpack.c.h.b16 %v2567
  %v2573 = vunpack.c.l.b16 %v2568
  %v2574 = vunpack.c.h.b16 %v2568
  %v2575 = vpack.c.b16 %v2571, %v2571
  %v2576 = vpack.c.b16 %v2572, %v2572
  %v2577 = vpack.c.b16 %v2573, %v2573
  %v2578 = vpack.c.b16 %v2574, %v2574
  %2583 = vst [vmem:[%s3] sm:$0xf] %v2575
  %2584 = vst [vmem:[%s3 + $0x4] sm:$0xf] %v2576
  %2585 = vst [vmem:[%s3 + $0x8] sm:$0xf] %v2577
  %2586 = vst [vmem:[%s3 + $0xc] sm:$0xf] %v2578
  // Predicated region
  $region14: #{gmlp_res_multi_conv35_forward.11} parent=0 // pred_check
    _
  $region15: #{gmlp_res_multi_conv35_forward.11} parent=0 // pred_check_branch
    %2588 = sbr.rel (0) target = $region17
  $region16: #{gmlp_res_multi_conv35_forward.11} parent=0 // pred_region
    _
  $region17: #{gmlp_res_multi_conv35_forward.11} parent=0 // pred_fallthru
    _
  // Predicated region
  $region18: #{gmlp_res_multi_conv35_forward.11} parent=0 // pred_check
    _
  $region19: #{gmlp_res_multi_conv35_forward.11} parent=0 // pred_check_branch
    %2590 = sbr.rel (0) target = $region21
  $region20: #{gmlp_res_multi_conv35_forward.11} parent=0 // pred_region
    _
  $region21: #{gmlp_res_multi_conv35_forward.11} parent=0 // pred_fallthru
    _

// kernel: gmlp_res_multi_conv35_forward.12
$region0: #{gmlp_res_multi_conv35_forward.12}
  #allocation0 [shape = 'u32[]', space=smem, size = 0x4, offset = 0x4, fixed_abs, tag = 'smem constant byte address 0x4 - core index']
  #allocation1 [shape = 'u32[144,128]{1,0:T(1,128)}', space=vmem, size = 0x12000, scoped, tag = 'internal scratch']
  %s0 = inlined_call_operand.vmem [shape: bf16[2,128,128], index: 0, kind: input, shape index: {}]
  %s1 = inlined_call_operand.vmem [shape: f32[1,128], index: 1, kind: input, shape index: {}]
  %s2 = inlined_call_operand.vmem [shape: f32[1,128], index: 2, kind: input, shape index: {}]
  %s3 = inlined_call_operand.vmem [shape: bf16[128,128], index: 3, kind: input, shape index: {}]
  %s4 = inlined_call_operand.vmem [shape: f32[1,128], index: 4, kind: input, shape index: {}]
  %s5 = inlined_call_operand.vmem [shape: bf16[128,128], index: 5, kind: input, shape index: {}]
  %s6 = inlined_call_operand.vmem [shape: f32[1,128], index: 6, kind: input, shape index: {}]
  %s7 = inlined_call_operand.vmem [shape: f32[1,128], index: 7, kind: input, shape index: {}]
  %s8 = inlined_call_operand.vmem [shape: f32[1,128], index: 8, kind: input, shape index: {}]
  %s9 = inlined_call_operand.vmem [shape: bf16[128,128], index: 9, kind: input, shape index: {}]
  %s10 = inlined_call_operand.vmem [shape: f32[128,1], index: 10, kind: input, shape index: {}]
  %s11 = inlined_call_operand.vmem [shape: bf16[128,128], index: 11, kind: input, shape index: {}]
  %s12 = inlined_call_operand.vmem [shape: f32[1,128], index: 12, kind: input, shape index: {}]
  %s13 = inlined_call_operand.vmem [shape: bf16[2,128,128], index: 13, kind: output, shape index: {}]
  %s14 = sld [smem:[#allocation0]]
  $region62: #{gmlp_res_multi_conv35_forward.12} parent=0
    _
  %s16 = ssub.s32 1, %s14
  %s17 = scalar_select 0, %s16, %s14
  // Predicated region
  $region2: #{gmlp_res_multi_conv35_forward.12} parent=0 // pred_check
    _
  $region3: #{gmlp_res_multi_conv35_forward.12} parent=0 // pred_check_branch
    %19 = sbr.rel (0) target = $region5
  $region4: #{gmlp_res_multi_conv35_forward.12} parent=0 // pred_region
    _
  $region5: #{gmlp_res_multi_conv35_forward.12} parent=0 // pred_fallthru
    _
  // Predicated region
  $region6: #{gmlp_res_multi_conv35_forward.12} parent=0 // pred_check
    _
  $region7: #{gmlp_res_multi_conv35_forward.12} parent=0 // pred_check_branch
    %21 = sbr.rel (0) target = $region9
  $region8: #{gmlp_res_multi_conv35_forward.12} parent=0 // pred_region
    _
  $region9: #{gmlp_res_multi_conv35_forward.12} parent=0 // pred_fallthru
    _
  // Predicated region
  $region10: #{gmlp_res_multi_conv35_forward.12} parent=0 // pred_check
    _
  $region11: #{gmlp_res_multi_conv35_forward.12} parent=0 // pred_check_branch
    %23 = sbr.rel (0) target = $region13
  $region12: #{gmlp_res_multi_conv35_forward.12} parent=0 // pred_region
    _
  $region13: #{gmlp_res_multi_conv35_forward.12} parent=0 // pred_fallthru
    _
  // Predicated region
  $region14: #{gmlp_res_multi_conv35_forward.12} parent=0 // pred_check
    _
  $region15: #{gmlp_res_multi_conv35_forward.12} parent=0 // pred_check_branch
    %25 = sbr.rel (0) target = $region17
  $region16: #{gmlp_res_multi_conv35_forward.12} parent=0 // pred_region
    _
  $region17: #{gmlp_res_multi_conv35_forward.12} parent=0 // pred_fallthru
    _
  // Predicated region
  $region18: #{gmlp_res_multi_conv35_forward.12} parent=0 // pred_check
    _
  $region19: #{gmlp_res_multi_conv35_forward.12} parent=0 // pred_check_branch
    %27 = sbr.rel (0) target = $region21
  $region20: #{gmlp_res_multi_conv35_forward.12} parent=0 // pred_region
    _
  $region21: #{gmlp_res_multi_conv35_forward.12} parent=0 // pred_fallthru
    _
  // Predicated region
  $region22: #{gmlp_res_multi_conv35_forward.12} parent=0 // pred_check
    _
  $region23: #{gmlp_res_multi_conv35_forward.12} parent=0 // pred_check_branch
    %29 = sbr.rel (0) target = $region25
  $region24: #{gmlp_res_multi_conv35_forward.12} parent=0 // pred_region
    _
  $region25: #{gmlp_res_multi_conv35_forward.12} parent=0 // pred_fallthru
    _
  // Predicated region
  $region26: #{gmlp_res_multi_conv35_forward.12} parent=0 // pred_check
    _
  $region27: #{gmlp_res_multi_conv35_forward.12} parent=0 // pred_check_branch
    %31 = sbr.rel (0) target = $region29
  $region28: #{gmlp_res_multi_conv35_forward.12} parent=0 // pred_region
    _
  $region29: #{gmlp_res_multi_conv35_forward.12} parent=0 // pred_fallthru
    _
  // Predicated region
  $region30: #{gmlp_res_multi_conv35_forward.12} parent=0 // pred_check
    _
  $region31: #{gmlp_res_multi_conv35_forward.12} parent=0 // pred_check_branch
    %33 = sbr.rel (0) target = $region33
  $region32: #{gmlp_res_multi_conv35_forward.12} parent=0 // pred_region
    _
  $region33: #{gmlp_res_multi_conv35_forward.12} parent=0 // pred_fallthru
    _
  // Predicated region
  $region34: #{gmlp_res_multi_conv35_forward.12} parent=0 // pred_check
    _
  $region35: #{gmlp_res_multi_conv35_forward.12} parent=0 // pred_check_branch
    %35 = sbr.rel (0) target = $region37
  $region36: #{gmlp_res_multi_conv35_forward.12} parent=0 // pred_region
    _
  $region37: #{gmlp_res_multi_conv35_forward.12} parent=0 // pred_fallthru
    _
  // Predicated region
  $region38: #{gmlp_res_multi_conv35_forward.12} parent=0 // pred_check
    _
  $region39: #{gmlp_res_multi_conv35_forward.12} parent=0 // pred_check_branch
    %37 = sbr.rel (0) target = $region41
  $region40: #{gmlp_res_multi_conv35_forward.12} parent=0 // pred_region
    _
  $region41: #{gmlp_res_multi_conv35_forward.12} parent=0 // pred_fallthru
    _
  // Predicated region
  $region42: #{gmlp_res_multi_conv35_forward.12} parent=0 // pred_check
    _
  $region43: #{gmlp_res_multi_conv35_forward.12} parent=0 // pred_check_branch
    %39 = sbr.rel (0) target = $region45
  $region44: #{gmlp_res_multi_conv35_forward.12} parent=0 // pred_region
    _
  $region45: #{gmlp_res_multi_conv35_forward.12} parent=0 // pred_fallthru
    _
  // Predicated region
  $region46: #{gmlp_res_multi_conv35_forward.12} parent=0 // pred_check
    _
  $region47: #{gmlp_res_multi_conv35_forward.12} parent=0 // pred_check_branch
    %41 = sbr.rel (0) target = $region49
  $region48: #{gmlp_res_multi_conv35_forward.12} parent=0 // pred_region
    _
  $region49: #{gmlp_res_multi_conv35_forward.12} parent=0 // pred_fallthru
    _
  // Predicated region
  $region50: #{gmlp_res_multi_conv35_forward.12} parent=0 // pred_check
    _
  $region51: #{gmlp_res_multi_conv35_forward.12} parent=0 // pred_check_branch
    %43 = sbr.rel (0) target = $region53
  $region52: #{gmlp_res_multi_conv35_forward.12} parent=0 // pred_region
    _
  $region53: #{gmlp_res_multi_conv35_forward.12} parent=0 // pred_fallthru
    _
  %v45 = vld [vmem:[%s0] sm:$0xf]
  %v46 = vld [vmem:[%s0 + $0x4] sm:$0xf]
  %v47 = vld [vmem:[%s0 + $0x8] sm:$0xf]
  %v48 = vld [vmem:[%s0 + $0xc] sm:$0xf]
  %v49 = vld [vmem:[%s0 + $0x10] sm:$0xf]
  %v50 = vld [vmem:[%s0 + $0x14] sm:$0xf]
  %v51 = vld [vmem:[%s0 + $0x18] sm:$0xf]
  %v52 = vld [vmem:[%s0 + $0x1c] sm:$0xf]
  %v53 = vld [vmem:[%s0 + $0x20] sm:$0xf]
  %v54 = vld [vmem:[%s0 + $0x24] sm:$0xf]
  %v55 = vld [vmem:[%s0 + $0x28] sm:$0xf]
  %v56 = vld [vmem:[%s0 + $0x2c] sm:$0xf]
  %v57 = vld [vmem:[%s0 + $0x30] sm:$0xf]
  %v58 = vld [vmem:[%s0 + $0x34] sm:$0xf]
  %v59 = vld [vmem:[%s0 + $0x38] sm:$0xf]
  %v60 = vld [vmem:[%s0 + $0x3c] sm:$0xf]
  %v61 = vld [vmem:[%s0 + $0x40] sm:$0xf]
  %v62 = vld [vmem:[%s0 + $0x44] sm:$0xf]
  %v63 = vld [vmem:[%s0 + $0x48] sm:$0xf]
  %v64 = vld [vmem:[%s0 + $0x4c] sm:$0xf]
  %v65 = vld [vmem:[%s0 + $0x50] sm:$0xf]
  %v66 = vld [vmem:[%s0 + $0x54] sm:$0xf]
  %v67 = vld [vmem:[%s0 + $0x58] sm:$0xf]
  %v68 = vld [vmem:[%s0 + $0x5c] sm:$0xf]
  %v69 = vld [vmem:[%s0 + $0x60] sm:$0xf]
  %v70 = vld [vmem:[%s0 + $0x64] sm:$0xf]
  %v71 = vld [vmem:[%s0 + $0x68] sm:$0xf]
  %v72 = vld [vmem:[%s0 + $0x6c] sm:$0xf]
  %v73 = vld [vmem:[%s0 + $0x70] sm:$0xf]
  %v74 = vld [vmem:[%s0 + $0x74] sm:$0xf]
  %v75 = vld [vmem:[%s0 + $0x78] sm:$0xf]
  %v76 = vld [vmem:[%s0 + $0x7c] sm:$0xf]
  %v77 = vunpack.c.l.bf16 %v45
  %v78 = vunpack.c.l.bf16 %v46
  %v79 = vunpack.c.l.bf16 %v47
  %v80 = vunpack.c.l.bf16 %v48
  %v81 = vunpack.c.l.bf16 %v49
  %v82 = vunpack.c.l.bf16 %v50
  %v83 = vunpack.c.l.bf16 %v51
  %v84 = vunpack.c.l.bf16 %v52
  %v85 = vunpack.c.l.bf16 %v53
  %v86 = vunpack.c.l.bf16 %v54
  %v87 = vunpack.c.l.bf16 %v55
  %v88 = vunpack.c.l.bf16 %v56
  %v89 = vunpack.c.l.bf16 %v57
  %v90 = vunpack.c.l.bf16 %v58
  %v91 = vunpack.c.l.bf16 %v59
  %v92 = vunpack.c.l.bf16 %v60
  %v93 = vunpack.c.l.bf16 %v61
  %v94 = vunpack.c.l.bf16 %v62
  %v95 = vunpack.c.l.bf16 %v63
  %v96 = vunpack.c.l.bf16 %v64
  %v97 = vunpack.c.l.bf16 %v65
  %v98 = vunpack.c.l.bf16 %v66
  %v99 = vunpack.c.l.bf16 %v67
  %v100 = vunpack.c.l.bf16 %v68
  %v101 = vunpack.c.l.bf16 %v69
  %v102 = vunpack.c.l.bf16 %v70
  %v103 = vunpack.c.l.bf16 %v71
  %v104 = vunpack.c.l.bf16 %v72
  %v105 = vunpack.c.l.bf16 %v73
  %v106 = vunpack.c.l.bf16 %v74
  %v107 = vunpack.c.l.bf16 %v75
  %v108 = vunpack.c.l.bf16 %v76
  %109 = vadd.xlane.f32.xlu0 %v77
  %v110 = vpop.xlane.xlu0 %109
  %111 = vadd.xlane.f32.xlu0 %v78
  %v112 = vpop.xlane.xlu0 %111
  %113 = vadd.xlane.f32.xlu0 %v79
  %v114 = vpop.xlane.xlu0 %113
  %115 = vadd.xlane.f32.xlu0 %v80
  %v116 = vpop.xlane.xlu0 %115
  %117 = vadd.xlane.f32.xlu0 %v81
  %v118 = vpop.xlane.xlu0 %117
  %119 = vadd.xlane.f32.xlu0 %v82
  %v120 = vpop.xlane.xlu0 %119
  %121 = vadd.xlane.f32.xlu0 %v83
  %v122 = vpop.xlane.xlu0 %121
  %123 = vadd.xlane.f32.xlu0 %v84
  %v124 = vpop.xlane.xlu0 %123
  %125 = vadd.xlane.f32.xlu0 %v85
  %v126 = vpop.xlane.xlu0 %125
  %127 = vadd.xlane.f32.xlu0 %v86
  %v128 = vpop.xlane.xlu0 %127
  %129 = vadd.xlane.f32.xlu0 %v87
  %v130 = vpop.xlane.xlu0 %129
  %131 = vadd.xlane.f32.xlu0 %v88
  %v132 = vpop.xlane.xlu0 %131
  %133 = vadd.xlane.f32.xlu0 %v89
  %v134 = vpop.xlane.xlu0 %133
  %135 = vadd.xlane.f32.xlu0 %v90
  %v136 = vpop.xlane.xlu0 %135
  %137 = vadd.xlane.f32.xlu0 %v91
  %v138 = vpop.xlane.xlu0 %137
  %139 = vadd.xlane.f32.xlu0 %v92
  %v140 = vpop.xlane.xlu0 %139
  %141 = vadd.xlane.f32.xlu0 %v93
  %v142 = vpop.xlane.xlu0 %141
  %143 = vadd.xlane.f32.xlu0 %v94
  %v144 = vpop.xlane.xlu0 %143
  %145 = vadd.xlane.f32.xlu0 %v95
  %v146 = vpop.xlane.xlu0 %145
  %147 = vadd.xlane.f32.xlu0 %v96
  %v148 = vpop.xlane.xlu0 %147
  %149 = vadd.xlane.f32.xlu0 %v97
  %v150 = vpop.xlane.xlu0 %149
  %151 = vadd.xlane.f32.xlu0 %v98
  %v152 = vpop.xlane.xlu0 %151
  %153 = vadd.xlane.f32.xlu0 %v99
  %v154 = vpop.xlane.xlu0 %153
  %155 = vadd.xlane.f32.xlu0 %v100
  %v156 = vpop.xlane.xlu0 %155
  %157 = vadd.xlane.f32.xlu0 %v101
  %v158 = vpop.xlane.xlu0 %157
  %159 = vadd.xlane.f32.xlu0 %v102
  %v160 = vpop.xlane.xlu0 %159
  %161 = vadd.xlane.f32.xlu0 %v103
  %v162 = vpop.xlane.xlu0 %161
  %163 = vadd.xlane.f32.xlu0 %v104
  %v164 = vpop.xlane.xlu0 %163
  %165 = vadd.xlane.f32.xlu0 %v105
  %v166 = vpop.xlane.xlu0 %165
  %167 = vadd.xlane.f32.xlu0 %v106
  %v168 = vpop.xlane.xlu0 %167
  %169 = vadd.xlane.f32.xlu0 %v107
  %v170 = vpop.xlane.xlu0 %169
  %171 = vadd.xlane.f32.xlu0 %v108
  %v172 = vpop.xlane.xlu0 %171
  %v173 = vmul.f32 %v110, 0.0625
  %v174 = vmul.f32 %v112, 0.0625
  %v175 = vmul.f32 %v114, 0.0625
  %v176 = vmul.f32 %v116, 0.0625
  %v177 = vmul.f32 %v118, 0.0625
  %v178 = vmul.f32 %v120, 0.0625
  %v179 = vmul.f32 %v122, 0.0625
  %v180 = vmul.f32 %v124, 0.0625
  %v181 = vmul.f32 %v126, 0.0625
  %v182 = vmul.f32 %v128, 0.0625
  %v183 = vmul.f32 %v130, 0.0625
  %v184 = vmul.f32 %v132, 0.0625
  %v185 = vmul.f32 %v134, 0.0625
  %v186 = vmul.f32 %v136, 0.0625
  %v187 = vmul.f32 %v138, 0.0625
  %v188 = vmul.f32 %v140, 0.0625
  %v189 = vmul.f32 %v142, 0.0625
  %v190 = vmul.f32 %v144, 0.0625
  %v191 = vmul.f32 %v146, 0.0625
  %v192 = vmul.f32 %v148, 0.0625
  %v193 = vmul.f32 %v150, 0.0625
  %v194 = vmul.f32 %v152, 0.0625
  %v195 = vmul.f32 %v154, 0.0625
  %v196 = vmul.f32 %v156, 0.0625
  %v197 = vmul.f32 %v158, 0.0625
  %v198 = vmul.f32 %v160, 0.0625
  %v199 = vmul.f32 %v162, 0.0625
  %v200 = vmul.f32 %v164, 0.0625
  %v201 = vmul.f32 %v166, 0.0625
  %v202 = vmul.f32 %v168, 0.0625
  %v203 = vmul.f32 %v170, 0.0625
  %v204 = vmul.f32 %v172, 0.0625
  %v205 = vmul.f32 %v77, %v77
  %v206 = vmul.f32 %v78, %v78
  %v207 = vmul.f32 %v79, %v79
  %v208 = vmul.f32 %v80, %v80
  %v209 = vmul.f32 %v81, %v81
  %v210 = vmul.f32 %v82, %v82
  %v211 = vmul.f32 %v83, %v83
  %v212 = vmul.f32 %v84, %v84
  %v213 = vmul.f32 %v85, %v85
  %v214 = vmul.f32 %v86, %v86
  %v215 = vmul.f32 %v87, %v87
  %v216 = vmul.f32 %v88, %v88
  %v217 = vmul.f32 %v89, %v89
  %v218 = vmul.f32 %v90, %v90
  %v219 = vmul.f32 %v91, %v91
  %v220 = vmul.f32 %v92, %v92
  %v221 = vmul.f32 %v93, %v93
  %v222 = vmul.f32 %v94, %v94
  %v223 = vmul.f32 %v95, %v95
  %v224 = vmul.f32 %v96, %v96
  %v225 = vmul.f32 %v97, %v97
  %v226 = vmul.f32 %v98, %v98
  %v227 = vmul.f32 %v99, %v99
  %v228 = vmul.f32 %v100, %v100
  %v229 = vmul.f32 %v101, %v101
  %v230 = vmul.f32 %v102, %v102
  %v231 = vmul.f32 %v103, %v103
  %v232 = vmul.f32 %v104, %v104
  %v233 = vmul.f32 %v105, %v105
  %v234 = vmul.f32 %v106, %v106
  %v235 = vmul.f32 %v107, %v107
  %v236 = vmul.f32 %v108, %v108
  %237 = vadd.xlane.f32.xlu0 %v205
  %v238 = vpop.xlane.xlu0 %237
  %239 = vadd.xlane.f32.xlu0 %v206
  %v240 = vpop.xlane.xlu0 %239
  %241 = vadd.xlane.f32.xlu0 %v207
  %v242 = vpop.xlane.xlu0 %241
  %243 = vadd.xlane.f32.xlu0 %v208
  %v244 = vpop.xlane.xlu0 %243
  %245 = vadd.xlane.f32.xlu0 %v209
  %v246 = vpop.xlane.xlu0 %245
  %247 = vadd.xlane.f32.xlu0 %v210
  %v248 = vpop.xlane.xlu0 %247
  %249 = vadd.xlane.f32.xlu0 %v211
  %v250 = vpop.xlane.xlu0 %249
  %251 = vadd.xlane.f32.xlu0 %v212
  %v252 = vpop.xlane.xlu0 %251
  %253 = vadd.xlane.f32.xlu0 %v213
  %v254 = vpop.xlane.xlu0 %253
  %255 = vadd.xlane.f32.xlu0 %v214
  %v256 = vpop.xlane.xlu0 %255
  %257 = vadd.xlane.f32.xlu0 %v215
  %v258 = vpop.xlane.xlu0 %257
  %259 = vadd.xlane.f32.xlu0 %v216
  %v260 = vpop.xlane.xlu0 %259
  %261 = vadd.xlane.f32.xlu0 %v217
  %v262 = vpop.xlane.xlu0 %261
  %263 = vadd.xlane.f32.xlu0 %v218
  %v264 = vpop.xlane.xlu0 %263
  %265 = vadd.xlane.f32.xlu0 %v219
  %v266 = vpop.xlane.xlu0 %265
  %267 = vadd.xlane.f32.xlu0 %v220
  %v268 = vpop.xlane.xlu0 %267
  %269 = vadd.xlane.f32.xlu0 %v221
  %v270 = vpop.xlane.xlu0 %269
  %271 = vadd.xlane.f32.xlu0 %v222
  %v272 = vpop.xlane.xlu0 %271
  %273 = vadd.xlane.f32.xlu0 %v223
  %v274 = vpop.xlane.xlu0 %273
  %275 = vadd.xlane.f32.xlu0 %v224
  %v276 = vpop.xlane.xlu0 %275
  %277 = vadd.xlane.f32.xlu0 %v225
  %v278 = vpop.xlane.xlu0 %277
  %279 = vadd.xlane.f32.xlu0 %v226
  %v280 = vpop.xlane.xlu0 %279
  %281 = vadd.xlane.f32.xlu0 %v227
  %v282 = vpop.xlane.xlu0 %281
  %283 = vadd.xlane.f32.xlu0 %v228
  %v284 = vpop.xlane.xlu0 %283
  %285 = vadd.xlane.f32.xlu0 %v229
  %v286 = vpop.xlane.xlu0 %285
  %287 = vadd.xlane.f32.xlu0 %v230
  %v288 = vpop.xlane.xlu0 %287
  %289 = vadd.xlane.f32.xlu0 %v231
  %v290 = vpop.xlane.xlu0 %289
  %291 = vadd.xlane.f32.xlu0 %v232
  %v292 = vpop.xlane.xlu0 %291
  %293 = vadd.xlane.f32.xlu0 %v233
  %v294 = vpop.xlane.xlu0 %293
  %295 = vadd.xlane.f32.xlu0 %v234
  %v296 = vpop.xlane.xlu0 %295
  %297 = vadd.xlane.f32.xlu0 %v235
  %v298 = vpop.xlane.xlu0 %297
  %299 = vadd.xlane.f32.xlu0 %v236
  %v300 = vpop.xlane.xlu0 %299
  %v301 = vmul.f32 %v238, 0.0625
  %v302 = vmul.f32 %v240, 0.0625
  %v303 = vmul.f32 %v242, 0.0625
  %v304 = vmul.f32 %v244, 0.0625
  %v305 = vmul.f32 %v246, 0.0625
  %v306 = vmul.f32 %v248, 0.0625
  %v307 = vmul.f32 %v250, 0.0625
  %v308 = vmul.f32 %v252, 0.0625
  %v309 = vmul.f32 %v254, 0.0625
  %v310 = vmul.f32 %v256, 0.0625
  %v311 = vmul.f32 %v258, 0.0625
  %v312 = vmul.f32 %v260, 0.0625
  %v313 = vmul.f32 %v262, 0.0625
  %v314 = vmul.f32 %v264, 0.0625
  %v315 = vmul.f32 %v266, 0.0625
  %v316 = vmul.f32 %v268, 0.0625
  %v317 = vmul.f32 %v270, 0.0625
  %v318 = vmul.f32 %v272, 0.0625
  %v319 = vmul.f32 %v274, 0.0625
  %v320 = vmul.f32 %v276, 0.0625
  %v321 = vmul.f32 %v278, 0.0625
  %v322 = vmul.f32 %v280, 0.0625
  %v323 = vmul.f32 %v282, 0.0625
  %v324 = vmul.f32 %v284, 0.0625
  %v325 = vmul.f32 %v286, 0.0625
  %v326 = vmul.f32 %v288, 0.0625
  %v327 = vmul.f32 %v290, 0.0625
  %v328 = vmul.f32 %v292, 0.0625
  %v329 = vmul.f32 %v294, 0.0625
  %v330 = vmul.f32 %v296, 0.0625
  %v331 = vmul.f32 %v298, 0.0625
  %v332 = vmul.f32 %v300, 0.0625
  %v333 = vmul.f32 %v173, %v173
  %v334 = vmul.f32 %v174, %v174
  %v335 = vmul.f32 %v175, %v175
  %v336 = vmul.f32 %v176, %v176
  %v337 = vmul.f32 %v177, %v177
  %v338 = vmul.f32 %v178, %v178
  %v339 = vmul.f32 %v179, %v179
  %v340 = vmul.f32 %v180, %v180
  %v341 = vmul.f32 %v181, %v181
  %v342 = vmul.f32 %v182, %v182
  %v343 = vmul.f32 %v183, %v183
  %v344 = vmul.f32 %v184, %v184
  %v345 = vmul.f32 %v185, %v185
  %v346 = vmul.f32 %v186, %v186
  %v347 = vmul.f32 %v187, %v187
  %v348 = vmul.f32 %v188, %v188
  %v349 = vmul.f32 %v189, %v189
  %v350 = vmul.f32 %v190, %v190
  %v351 = vmul.f32 %v191, %v191
  %v352 = vmul.f32 %v192, %v192
  %v353 = vmul.f32 %v193, %v193
  %v354 = vmul.f32 %v194, %v194
  %v355 = vmul.f32 %v195, %v195
  %v356 = vmul.f32 %v196, %v196
  %v357 = vmul.f32 %v197, %v197
  %v358 = vmul.f32 %v198, %v198
  %v359 = vmul.f32 %v199, %v199
  %v360 = vmul.f32 %v200, %v200
  %v361 = vmul.f32 %v201, %v201
  %v362 = vmul.f32 %v202, %v202
  %v363 = vmul.f32 %v203, %v203
  %v364 = vmul.f32 %v204, %v204
  %v365 = vsub.f32 %v301, %v333
  %v366 = vsub.f32 %v302, %v334
  %v367 = vsub.f32 %v303, %v335
  %v368 = vsub.f32 %v304, %v336
  %v369 = vsub.f32 %v305, %v337
  %v370 = vsub.f32 %v306, %v338
  %v371 = vsub.f32 %v307, %v339
  %v372 = vsub.f32 %v308, %v340
  %v373 = vsub.f32 %v309, %v341
  %v374 = vsub.f32 %v310, %v342
  %v375 = vsub.f32 %v311, %v343
  %v376 = vsub.f32 %v312, %v344
  %v377 = vsub.f32 %v313, %v345
  %v378 = vsub.f32 %v314, %v346
  %v379 = vsub.f32 %v315, %v347
  %v380 = vsub.f32 %v316, %v348
  %v381 = vsub.f32 %v317, %v349
  %v382 = vsub.f32 %v318, %v350
  %v383 = vsub.f32 %v319, %v351
  %v384 = vsub.f32 %v320, %v352
  %v385 = vsub.f32 %v321, %v353
  %v386 = vsub.f32 %v322, %v354
  %v387 = vsub.f32 %v323, %v355
  %v388 = vsub.f32 %v324, %v356
  %v389 = vsub.f32 %v325, %v357
  %v390 = vsub.f32 %v326, %v358
  %v391 = vsub.f32 %v327, %v359
  %v392 = vsub.f32 %v328, %v360
  %v393 = vsub.f32 %v329, %v361
  %v394 = vsub.f32 %v330, %v362
  %v395 = vsub.f32 %v331, %v363
  %v396 = vsub.f32 %v332, %v364
  %v397 = vsub.f32 %v77, %v173
  %v398 = vsub.f32 %v78, %v174
  %v399 = vsub.f32 %v79, %v175
  %v400 = vsub.f32 %v80, %v176
  %v401 = vsub.f32 %v81, %v177
  %v402 = vsub.f32 %v82, %v178
  %v403 = vsub.f32 %v83, %v179
  %v404 = vsub.f32 %v84, %v180
  %v405 = vsub.f32 %v85, %v181
  %v406 = vsub.f32 %v86, %v182
  %v407 = vsub.f32 %v87, %v183
  %v408 = vsub.f32 %v88, %v184
  %v409 = vsub.f32 %v89, %v185
  %v410 = vsub.f32 %v90, %v186
  %v411 = vsub.f32 %v91, %v187
  %v412 = vsub.f32 %v92, %v188
  %v413 = vsub.f32 %v93, %v189
  %v414 = vsub.f32 %v94, %v190
  %v415 = vsub.f32 %v95, %v191
  %v416 = vsub.f32 %v96, %v192
  %v417 = vsub.f32 %v97, %v193
  %v418 = vsub.f32 %v98, %v194
  %v419 = vsub.f32 %v99, %v195
  %v420 = vsub.f32 %v100, %v196
  %v421 = vsub.f32 %v101, %v197
  %v422 = vsub.f32 %v102, %v198
  %v423 = vsub.f32 %v103, %v199
  %v424 = vsub.f32 %v104, %v200
  %v425 = vsub.f32 %v105, %v201
  %v426 = vsub.f32 %v106, %v202
  %v427 = vsub.f32 %v107, %v203
  %v428 = vsub.f32 %v108, %v204
  %v429 = vadd.f32 %v365, 1e-05
  %v430 = vadd.f32 %v366, 1e-05
  %v431 = vadd.f32 %v367, 1e-05
  %v432 = vadd.f32 %v368, 1e-05
  %v433 = vadd.f32 %v369, 1e-05
  %v434 = vadd.f32 %v370, 1e-05
  %v435 = vadd.f32 %v371, 1e-05
  %v436 = vadd.f32 %v372, 1e-05
  %v437 = vadd.f32 %v373, 1e-05
  %v438 = vadd.f32 %v374, 1e-05
  %v439 = vadd.f32 %v375, 1e-05
  %v440 = vadd.f32 %v376, 1e-05
  %v441 = vadd.f32 %v377, 1e-05
  %v442 = vadd.f32 %v378, 1e-05
  %v443 = vadd.f32 %v379, 1e-05
  %v444 = vadd.f32 %v380, 1e-05
  %v445 = vadd.f32 %v381, 1e-05
  %v446 = vadd.f32 %v382, 1e-05
  %v447 = vadd.f32 %v383, 1e-05
  %v448 = vadd.f32 %v384, 1e-05
  %v449 = vadd.f32 %v385, 1e-05
  %v450 = vadd.f32 %v386, 1e-05
  %v451 = vadd.f32 %v387, 1e-05
  %v452 = vadd.f32 %v388, 1e-05
  %v453 = vadd.f32 %v389, 1e-05
  %v454 = vadd.f32 %v390, 1e-05
  %v455 = vadd.f32 %v391, 1e-05
  %v456 = vadd.f32 %v392, 1e-05
  %v457 = vadd.f32 %v393, 1e-05
  %v458 = vadd.f32 %v394, 1e-05
  %v459 = vadd.f32 %v395, 1e-05
  %v460 = vadd.f32 %v396, 1e-05
  %v461 = vrsqrt.pop %v429
  %v462 = vrsqrt.pop %v430
  %v463 = vrsqrt.pop %v431
  %v464 = vrsqrt.pop %v432
  %v465 = vrsqrt.pop %v433
  %v466 = vrsqrt.pop %v434
  %v467 = vrsqrt.pop %v435
  %v468 = vrsqrt.pop %v436
  %v469 = vrsqrt.pop %v437
  %v470 = vrsqrt.pop %v438
  %v471 = vrsqrt.pop %v439
  %v472 = vrsqrt.pop %v440
  %v473 = vrsqrt.pop %v441
  %v474 = vrsqrt.pop %v442
  %v475 = vrsqrt.pop %v443
  %v476 = vrsqrt.pop %v444
  %v477 = vrsqrt.pop %v445
  %v478 = vrsqrt.pop %v446
  %v479 = vrsqrt.pop %v447
  %v480 = vrsqrt.pop %v448
  %v481 = vrsqrt.pop %v449
  %v482 = vrsqrt.pop %v450
  %v483 = vrsqrt.pop %v451
  %v484 = vrsqrt.pop %v452
  %v485 = vrsqrt.pop %v453
  %v486 = vrsqrt.pop %v454
  %v487 = vrsqrt.pop %v455
  %v488 = vrsqrt.pop %v456
  %v489 = vrsqrt.pop %v457
  %v490 = vrsqrt.pop %v458
  %v491 = vrsqrt.pop %v459
  %v492 = vrsqrt.pop %v460
  %v493 = vmul.f32 %v397, %v461
  %v494 = vmul.f32 %v398, %v462
  %v495 = vmul.f32 %v399, %v463
  %v496 = vmul.f32 %v400, %v464
  %v497 = vmul.f32 %v401, %v465
  %v498 = vmul.f32 %v402, %v466
  %v499 = vmul.f32 %v403, %v467
  %v500 = vmul.f32 %v404, %v468
  %v501 = vmul.f32 %v405, %v469
  %v502 = vmul.f32 %v406, %v470
  %v503 = vmul.f32 %v407, %v471
  %v504 = vmul.f32 %v408, %v472
  %v505 = vmul.f32 %v409, %v473
  %v506 = vmul.f32 %v410, %v474
  %v507 = vmul.f32 %v411, %v475
  %v508 = vmul.f32 %v412, %v476
  %v509 = vmul.f32 %v413, %v477
  %v510 = vmul.f32 %v414, %v478
  %v511 = vmul.f32 %v415, %v479
  %v512 = vmul.f32 %v416, %v480
  %v513 = vmul.f32 %v417, %v481
  %v514 = vmul.f32 %v418, %v482
  %v515 = vmul.f32 %v419, %v483
  %v516 = vmul.f32 %v420, %v484
  %v517 = vmul.f32 %v421, %v485
  %v518 = vmul.f32 %v422, %v486
  %v519 = vmul.f32 %v423, %v487
  %v520 = vmul.f32 %v424, %v488
  %v521 = vmul.f32 %v425, %v489
  %v522 = vmul.f32 %v426, %v490
  %v523 = vmul.f32 %v427, %v491
  %v524 = vmul.f32 %v428, %v492
  %v525 = vld [vmem:[%s1] sm:$0x1]
  %v527 = vlaneseq
  %v528 = vshrl.u32 %v527, 7
  %v529 = vsub.s32 0, %v528
  %v530 = vrot.slane %v525, %v529
  %v532 = vmul.f32 %v493, %v530
  %v533 = vmul.f32 %v494, %v530
  %v534 = vmul.f32 %v495, %v530
  %v535 = vmul.f32 %v496, %v530
  %v536 = vmul.f32 %v497, %v530
  %v537 = vmul.f32 %v498, %v530
  %v538 = vmul.f32 %v499, %v530
  %v539 = vmul.f32 %v500, %v530
  %v540 = vmul.f32 %v501, %v530
  %v541 = vmul.f32 %v502, %v530
  %v542 = vmul.f32 %v503, %v530
  %v543 = vmul.f32 %v504, %v530
  %v544 = vmul.f32 %v505, %v530
  %v545 = vmul.f32 %v506, %v530
  %v546 = vmul.f32 %v507, %v530
  %v547 = vmul.f32 %v508, %v530
  %v548 = vmul.f32 %v509, %v530
  %v549 = vmul.f32 %v510, %v530
  %v550 = vmul.f32 %v511, %v530
  %v551 = vmul.f32 %v512, %v530
  %v552 = vmul.f32 %v513, %v530
  %v553 = vmul.f32 %v514, %v530
  %v554 = vmul.f32 %v515, %v530
  %v555 = vmul.f32 %v516, %v530
  %v556 = vmul.f32 %v517, %v530
  %v557 = vmul.f32 %v518, %v530
  %v558 = vmul.f32 %v519, %v530
  %v559 = vmul.f32 %v520, %v530
  %v560 = vmul.f32 %v521, %v530
  %v561 = vmul.f32 %v522, %v530
  %v562 = vmul.f32 %v523, %v530
  %v563 = vmul.f32 %v524, %v530
  %v564 = vld [vmem:[%s2] sm:$0x1]
  %v566 = vlaneseq
  %v567 = vshrl.u32 %v566, 7
  %v568 = vsub.s32 0, %v567
  %v569 = vrot.slane %v564, %v568
  %v571 = vadd.f32 %v532, %v569
  %v572 = vadd.f32 %v533, %v569
  %v573 = vadd.f32 %v534, %v569
  %v574 = vadd.f32 %v535, %v569
  %v575 = vadd.f32 %v536, %v569
  %v576 = vadd.f32 %v537, %v569
  %v577 = vadd.f32 %v538, %v569
  %v578 = vadd.f32 %v539, %v569
  %v579 = vadd.f32 %v540, %v569
  %v580 = vadd.f32 %v541, %v569
  %v581 = vadd.f32 %v542, %v569
  %v582 = vadd.f32 %v543, %v569
  %v583 = vadd.f32 %v544, %v569
  %v584 = vadd.f32 %v545, %v569
  %v585 = vadd.f32 %v546, %v569
  %v586 = vadd.f32 %v547, %v569
  %v587 = vadd.f32 %v548, %v569
  %v588 = vadd.f32 %v549, %v569
  %v589 = vadd.f32 %v550, %v569
  %v590 = vadd.f32 %v551, %v569
  %v591 = vadd.f32 %v552, %v569
  %v592 = vadd.f32 %v553, %v569
  %v593 = vadd.f32 %v554, %v569
  %v594 = vadd.f32 %v555, %v569
  %v595 = vadd.f32 %v556, %v569
  %v596 = vadd.f32 %v557, %v569
  %v597 = vadd.f32 %v558, %v569
  %v598 = vadd.f32 %v559, %v569
  %v599 = vadd.f32 %v560, %v569
  %v600 = vadd.f32 %v561, %v569
  %v601 = vadd.f32 %v562, %v569
  %v602 = vadd.f32 %v563, %v569
  %v603 = vpack.c.bf16 %v572, %v571
  %v604 = vpack.c.bf16 %v574, %v573
  %v605 = vpack.c.bf16 %v576, %v575
  %v606 = vpack.c.bf16 %v578, %v577
  %v607 = vpack.c.bf16 %v580, %v579
  %v608 = vpack.c.bf16 %v582, %v581
  %v609 = vpack.c.bf16 %v584, %v583
  %v610 = vpack.c.bf16 %v586, %v585
  %v611 = vpack.c.bf16 %v588, %v587
  %v612 = vpack.c.bf16 %v590, %v589
  %v613 = vpack.c.bf16 %v592, %v591
  %v614 = vpack.c.bf16 %v594, %v593
  %v615 = vpack.c.bf16 %v596, %v595
  %v616 = vpack.c.bf16 %v598, %v597
  %v617 = vpack.c.bf16 %v600, %v599
  %v618 = vpack.c.bf16 %v602, %v601
  %v619 = vld [vmem:[%s3] sm:$0xf]
  %v620 = vld [vmem:[%s3 + $0x4] sm:$0xf]
  %v621 = vld [vmem:[%s3 + $0x8] sm:$0xf]
  %v622 = vld [vmem:[%s3 + $0xc] sm:$0xf]
  %v623 = vld [vmem:[%s3 + $0x10] sm:$0xf]
  %v624 = vld [vmem:[%s3 + $0x14] sm:$0xf]
  %v625 = vld [vmem:[%s3 + $0x18] sm:$0xf]
  %v626 = vld [vmem:[%s3 + $0x1c] sm:$0xf]
  %v627 = vld [vmem:[%s3 + $0x20] sm:$0xf]
  %v628 = vld [vmem:[%s3 + $0x24] sm:$0xf]
  %v629 = vld [vmem:[%s3 + $0x28] sm:$0xf]
  %v630 = vld [vmem:[%s3 + $0x2c] sm:$0xf]
  %v631 = vld [vmem:[%s3 + $0x30] sm:$0xf]
  %v632 = vld [vmem:[%s3 + $0x34] sm:$0xf]
  %v633 = vld [vmem:[%s3 + $0x38] sm:$0xf]
  %v634 = vld [vmem:[%s3 + $0x3c] sm:$0xf]
  %v635 = vld [vmem:[%s4] sm:$0x1]
  %v637 = vlaneseq
  %v638 = vshrl.u32 %v637, 7
  %v639 = vsub.s32 0, %v638
  %v640 = vrot.slane %v635, %v639
  %v658 = vunpack.c.l.b16 %v619
  %v659 = vunpack.c.l.b16 %v620
  %v660 = vunpack.c.l.b16 %v621
  %v661 = vunpack.c.l.b16 %v622
  %v662 = vunpack.c.l.b16 %v623
  %v663 = vunpack.c.l.b16 %v624
  %v664 = vunpack.c.l.b16 %v625
  %v665 = vunpack.c.l.b16 %v626
  %v666 = vunpack.c.l.b16 %v627
  %v667 = vunpack.c.l.b16 %v628
  %v668 = vunpack.c.l.b16 %v629
  %v669 = vunpack.c.l.b16 %v630
  %v670 = vunpack.c.l.b16 %v631
  %v671 = vunpack.c.l.b16 %v632
  %v672 = vunpack.c.l.b16 %v633
  %v673 = vunpack.c.l.b16 %v634
  %v674 = vpack.c.b16 %v659, %v658
  %v675 = vpack.c.b16 %v661, %v660
  %v676 = vpack.c.b16 %v663, %v662
  %v677 = vpack.c.b16 %v665, %v664
  %v678 = vpack.c.b16 %v667, %v666
  %v679 = vpack.c.b16 %v669, %v668
  %v680 = vpack.c.b16 %v671, %v670
  %v681 = vpack.c.b16 %v673, %v672
  %690 = vmatprep.subr.bf16.mxu0 0
  %691 = vmatpush1.bf16.msra.mxu0 %v681
  %692 = vmatprep.subr.bf16.mxu0 0
  %693 = vmatpush1.bf16.msra.mxu0 %v680
  %694 = vmatprep.subr.bf16.mxu0 0
  %695 = vmatpush1.bf16.msra.mxu0 %v679
  %696 = vmatprep.subr.bf16.mxu0 0
  %697 = vmatpush1.bf16.msra.mxu0 %v678
  %698 = vmatprep.subr.bf16.mxu0 0
  %699 = vmatpush1.bf16.msra.mxu0 %v677
  %700 = vmatprep.subr.bf16.mxu0 0
  %701 = vmatpush1.bf16.msra.mxu0 %v676
  %702 = vmatprep.subr.bf16.mxu0 0
  %703 = vmatpush1.bf16.msra.mxu0 %v675
  %704 = vmatprep.subr.bf16.mxu0 0
  %705 = vmatpush1.bf16.msra.mxu0 %v674
  %706 = vmatprep.subr.bf16.mxu0 0
  %707 = vmatpush2.bf16.msra.mxu0 0
  %708 = vmatprep.subr.bf16.mxu0 0
  %709 = vmatpush2.bf16.msra.mxu0 0
  %710 = vmatprep.subr.bf16.mxu0 0
  %711 = vmatpush2.bf16.msra.mxu0 0
  %712 = vmatprep.subr.bf16.mxu0 0
  %713 = vmatpush2.bf16.msra.mxu0 0
  %714 = vmatprep.subr.bf16.mxu0 0
  %715 = vmatpush2.bf16.msra.mxu0 0
  %716 = vmatprep.subr.bf16.mxu0 0
  %717 = vmatpush2.bf16.msra.mxu0 0
  %718 = vmatprep.subr.bf16.mxu0 0
  %719 = vmatpush2.bf16.msra.mxu0 0
  %720 = vmatprep.subr.bf16.mxu0 0
  %721 = vmatpush2.bf16.msra.mxu0 0
  %722 = vmatprep.mubr.bf16.mxu0 0
  %723 = vmatmul.mubr.bf16.gmra.mxu0 %v603
  %v724 = vpop.f32.mrf.mxu0
  %v725 = vadd.f32 %v640, %v724
  %v726 = vpop.f32.mrf.mxu0
  %v727 = vpop.f32.mrf.mxu0
  %v728 = vadd.f32 %v640, %v727
  %v729 = vpop.f32.mrf.mxu0
  %730 = vmatprep.mubr.bf16.mxu0 0
  %731 = vmatmul.mubr.bf16.gmra.mxu0 %v604
  %v732 = vpop.f32.mrf.mxu0
  %v733 = vadd.f32 %v640, %v732
  %v734 = vpop.f32.mrf.mxu0
  %v735 = vpop.f32.mrf.mxu0
  %v736 = vadd.f32 %v640, %v735
  %v737 = vpop.f32.mrf.mxu0
  %738 = vmatprep.mubr.bf16.mxu0 0
  %739 = vmatmul.mubr.bf16.gmra.mxu0 %v605
  %v740 = vpop.f32.mrf.mxu0
  %v741 = vadd.f32 %v640, %v740
  %v742 = vpop.f32.mrf.mxu0
  %v743 = vpop.f32.mrf.mxu0
  %v744 = vadd.f32 %v640, %v743
  %v745 = vpop.f32.mrf.mxu0
  %746 = vmatprep.mubr.bf16.mxu0 0
  %747 = vmatmul.mubr.bf16.gmra.mxu0 %v606
  %v748 = vpop.f32.mrf.mxu0
  %v749 = vadd.f32 %v640, %v748
  %v750 = vpop.f32.mrf.mxu0
  %v751 = vpop.f32.mrf.mxu0
  %v752 = vadd.f32 %v640, %v751
  %v753 = vpop.f32.mrf.mxu0
  %754 = vmatprep.mubr.bf16.mxu0 0
  %755 = vmatmul.mubr.bf16.gmra.mxu0 %v607
  %v756 = vpop.f32.mrf.mxu0
  %v757 = vadd.f32 %v640, %v756
  %v758 = vpop.f32.mrf.mxu0
  %v759 = vpop.f32.mrf.mxu0
  %v760 = vadd.f32 %v640, %v759
  %v761 = vpop.f32.mrf.mxu0
  %762 = vmatprep.mubr.bf16.mxu0 0
  %763 = vmatmul.mubr.bf16.gmra.mxu0 %v608
  %v764 = vpop.f32.mrf.mxu0
  %v765 = vadd.f32 %v640, %v764
  %v766 = vpop.f32.mrf.mxu0
  %v767 = vpop.f32.mrf.mxu0
  %v768 = vadd.f32 %v640, %v767
  %v769 = vpop.f32.mrf.mxu0
  %770 = vmatprep.mubr.bf16.mxu0 0
  %771 = vmatmul.mubr.bf16.gmra.mxu0 %v609
  %v772 = vpop.f32.mrf.mxu0
  %v773 = vadd.f32 %v640, %v772
  %v774 = vpop.f32.mrf.mxu0
  %v775 = vpop.f32.mrf.mxu0
  %v776 = vadd.f32 %v640, %v775
  %v777 = vpop.f32.mrf.mxu0
  %778 = vmatprep.mubr.bf16.mxu0 0
  %779 = vmatmul.mubr.bf16.gmra.mxu0 %v610
  %v780 = vpop.f32.mrf.mxu0
  %v781 = vadd.f32 %v640, %v780
  %v782 = vpop.f32.mrf.mxu0
  %v783 = vpop.f32.mrf.mxu0
  %v784 = vadd.f32 %v640, %v783
  %v785 = vpop.f32.mrf.mxu0
  %786 = vmatprep.mubr.bf16.mxu0 0
  %787 = vmatmul.mubr.bf16.gmra.mxu0 %v611
  %v788 = vpop.f32.mrf.mxu0
  %v789 = vadd.f32 %v640, %v788
  %v790 = vpop.f32.mrf.mxu0
  %v791 = vpop.f32.mrf.mxu0
  %v792 = vadd.f32 %v640, %v791
  %v793 = vpop.f32.mrf.mxu0
  %794 = vmatprep.mubr.bf16.mxu0 0
  %795 = vmatmul.mubr.bf16.gmra.mxu0 %v612
  %v796 = vpop.f32.mrf.mxu0
  %v797 = vadd.f32 %v640, %v796
  %v798 = vpop.f32.mrf.mxu0
  %v799 = vpop.f32.mrf.mxu0
  %v800 = vadd.f32 %v640, %v799
  %v801 = vpop.f32.mrf.mxu0
  %802 = vmatprep.mubr.bf16.mxu0 0
  %803 = vmatmul.mubr.bf16.gmra.mxu0 %v613
  %v804 = vpop.f32.mrf.mxu0
  %v805 = vadd.f32 %v640, %v804
  %v806 = vpop.f32.mrf.mxu0
  %v807 = vpop.f32.mrf.mxu0
  %v808 = vadd.f32 %v640, %v807
  %v809 = vpop.f32.mrf.mxu0
  %810 = vmatprep.mubr.bf16.mxu0 0
  %811 = vmatmul.mubr.bf16.gmra.mxu0 %v614
  %v812 = vpop.f32.mrf.mxu0
  %v813 = vadd.f32 %v640, %v812
  %v814 = vpop.f32.mrf.mxu0
  %v815 = vpop.f32.mrf.mxu0
  %v816 = vadd.f32 %v640, %v815
  %v817 = vpop.f32.mrf.mxu0
  %818 = vmatprep.mubr.bf16.mxu0 0
  %819 = vmatmul.mubr.bf16.gmra.mxu0 %v615
  %v820 = vpop.f32.mrf.mxu0
  %v821 = vadd.f32 %v640, %v820
  %v822 = vpop.f32.mrf.mxu0
  %v823 = vpop.f32.mrf.mxu0
  %v824 = vadd.f32 %v640, %v823
  %v825 = vpop.f32.mrf.mxu0
  %826 = vmatprep.mubr.bf16.mxu0 0
  %827 = vmatmul.mubr.bf16.gmra.mxu0 %v616
  %v828 = vpop.f32.mrf.mxu0
  %v829 = vadd.f32 %v640, %v828
  %v830 = vpop.f32.mrf.mxu0
  %v831 = vpop.f32.mrf.mxu0
  %v832 = vadd.f32 %v640, %v831
  %v833 = vpop.f32.mrf.mxu0
  %834 = vmatprep.mubr.bf16.mxu0 0
  %835 = vmatmul.mubr.bf16.gmra.mxu0 %v617
  %v836 = vpop.f32.mrf.mxu0
  %v837 = vadd.f32 %v640, %v836
  %v838 = vpop.f32.mrf.mxu0
  %v839 = vpop.f32.mrf.mxu0
  %v840 = vadd.f32 %v640, %v839
  %v841 = vpop.f32.mrf.mxu0
  %842 = vmatprep.mubr.bf16.mxu0 0
  %843 = vmatmul.mubr.bf16.gmra.mxu0 %v618
  %v844 = vpop.f32.mrf.mxu0
  %v845 = vadd.f32 %v640, %v844
  %v846 = vpop.f32.mrf.mxu0
  %v847 = vpop.f32.mrf.mxu0
  %v848 = vadd.f32 %v640, %v847
  %v849 = vpop.f32.mrf.mxu0
  %850 = vdwg.mxu0
  %v851 = vmul.f32 %v725, %v725
  %v852 = vmul.f32 %v728, %v728
  %v853 = vmul.f32 %v733, %v733
  %v854 = vmul.f32 %v736, %v736
  %v855 = vmul.f32 %v741, %v741
  %v856 = vmul.f32 %v744, %v744
  %v857 = vmul.f32 %v749, %v749
  %v858 = vmul.f32 %v752, %v752
  %v859 = vmul.f32 %v757, %v757
  %v860 = vmul.f32 %v760, %v760
  %v861 = vmul.f32 %v765, %v765
  %v862 = vmul.f32 %v768, %v768
  %v863 = vmul.f32 %v773, %v773
  %v864 = vmul.f32 %v776, %v776
  %v865 = vmul.f32 %v781, %v781
  %v866 = vmul.f32 %v784, %v784
  %v867 = vmul.f32 %v789, %v789
  %v868 = vmul.f32 %v792, %v792
  %v869 = vmul.f32 %v797, %v797
  %v870 = vmul.f32 %v800, %v800
  %v871 = vmul.f32 %v805, %v805
  %v872 = vmul.f32 %v808, %v808
  %v873 = vmul.f32 %v813, %v813
  %v874 = vmul.f32 %v816, %v816
  %v875 = vmul.f32 %v821, %v821
  %v876 = vmul.f32 %v824, %v824
  %v877 = vmul.f32 %v829, %v829
  %v878 = vmul.f32 %v832, %v832
  %v879 = vmul.f32 %v837, %v837
  %v880 = vmul.f32 %v840, %v840
  %v881 = vmul.f32 %v845, %v845
  %v882 = vmul.f32 %v848, %v848
  %v883 = vmul.f32 %v725, %v851
  %v884 = vmul.f32 %v728, %v852
  %v885 = vmul.f32 %v733, %v853
  %v886 = vmul.f32 %v736, %v854
  %v887 = vmul.f32 %v741, %v855
  %v888 = vmul.f32 %v744, %v856
  %v889 = vmul.f32 %v749, %v857
  %v890 = vmul.f32 %v752, %v858
  %v891 = vmul.f32 %v757, %v859
  %v892 = vmul.f32 %v760, %v860
  %v893 = vmul.f32 %v765, %v861
  %v894 = vmul.f32 %v768, %v862
  %v895 = vmul.f32 %v773, %v863
  %v896 = vmul.f32 %v776, %v864
  %v897 = vmul.f32 %v781, %v865
  %v898 = vmul.f32 %v784, %v866
  %v899 = vmul.f32 %v789, %v867
  %v900 = vmul.f32 %v792, %v868
  %v901 = vmul.f32 %v797, %v869
  %v902 = vmul.f32 %v800, %v870
  %v903 = vmul.f32 %v805, %v871
  %v904 = vmul.f32 %v808, %v872
  %v905 = vmul.f32 %v813, %v873
  %v906 = vmul.f32 %v816, %v874
  %v907 = vmul.f32 %v821, %v875
  %v908 = vmul.f32 %v824, %v876
  %v909 = vmul.f32 %v829, %v877
  %v910 = vmul.f32 %v832, %v878
  %v911 = vmul.f32 %v837, %v879
  %v912 = vmul.f32 %v840, %v880
  %v913 = vmul.f32 %v845, %v881
  %v914 = vmul.f32 %v848, %v882
  %v915 = vmul.f32 %v883, 0.044715
  %v916 = vmul.f32 %v884, 0.044715
  %v917 = vmul.f32 %v885, 0.044715
  %v918 = vmul.f32 %v886, 0.044715
  %v919 = vmul.f32 %v887, 0.044715
  %v920 = vmul.f32 %v888, 0.044715
  %v921 = vmul.f32 %v889, 0.044715
  %v922 = vmul.f32 %v890, 0.044715
  %v923 = vmul.f32 %v891, 0.044715
  %v924 = vmul.f32 %v892, 0.044715
  %v925 = vmul.f32 %v893, 0.044715
  %v926 = vmul.f32 %v894, 0.044715
  %v927 = vmul.f32 %v895, 0.044715
  %v928 = vmul.f32 %v896, 0.044715
  %v929 = vmul.f32 %v897, 0.044715
  %v930 = vmul.f32 %v898, 0.044715
  %v931 = vmul.f32 %v899, 0.044715
  %v932 = vmul.f32 %v900, 0.044715
  %v933 = vmul.f32 %v901, 0.044715
  %v934 = vmul.f32 %v902, 0.044715
  %v935 = vmul.f32 %v903, 0.044715
  %v936 = vmul.f32 %v904, 0.044715
  %v937 = vmul.f32 %v905, 0.044715
  %v938 = vmul.f32 %v906, 0.044715
  %v939 = vmul.f32 %v907, 0.044715
  %v940 = vmul.f32 %v908, 0.044715
  %v941 = vmul.f32 %v909, 0.044715
  %v942 = vmul.f32 %v910, 0.044715
  %v943 = vmul.f32 %v911, 0.044715
  %v944 = vmul.f32 %v912, 0.044715
  %v945 = vmul.f32 %v913, 0.044715
  %v946 = vmul.f32 %v914, 0.044715
  %v947 = vadd.f32 %v725, %v915
  %v948 = vadd.f32 %v728, %v916
  %v949 = vadd.f32 %v733, %v917
  %v950 = vadd.f32 %v736, %v918
  %v951 = vadd.f32 %v741, %v919
  %v952 = vadd.f32 %v744, %v920
  %v953 = vadd.f32 %v749, %v921
  %v954 = vadd.f32 %v752, %v922
  %v955 = vadd.f32 %v757, %v923
  %v956 = vadd.f32 %v760, %v924
  %v957 = vadd.f32 %v765, %v925
  %v958 = vadd.f32 %v768, %v926
  %v959 = vadd.f32 %v773, %v927
  %v960 = vadd.f32 %v776, %v928
  %v961 = vadd.f32 %v781, %v929
  %v962 = vadd.f32 %v784, %v930
  %v963 = vadd.f32 %v789, %v931
  %v964 = vadd.f32 %v792, %v932
  %v965 = vadd.f32 %v797, %v933
  %v966 = vadd.f32 %v800, %v934
  %v967 = vadd.f32 %v805, %v935
  %v968 = vadd.f32 %v808, %v936
  %v969 = vadd.f32 %v813, %v937
  %v970 = vadd.f32 %v816, %v938
  %v971 = vadd.f32 %v821, %v939
  %v972 = vadd.f32 %v824, %v940
  %v973 = vadd.f32 %v829, %v941
  %v974 = vadd.f32 %v832, %v942
  %v975 = vadd.f32 %v837, %v943
  %v976 = vadd.f32 %v840, %v944
  %v977 = vadd.f32 %v845, %v945
  %v978 = vadd.f32 %v848, %v946
  %v979 = vmul.f32 %v947, 0.7978846
  %v980 = vmul.f32 %v948, 0.7978846
  %v981 = vmul.f32 %v949, 0.7978846
  %v982 = vmul.f32 %v950, 0.7978846
  %v983 = vmul.f32 %v951, 0.7978846
  %v984 = vmul.f32 %v952, 0.7978846
  %v985 = vmul.f32 %v953, 0.7978846
  %v986 = vmul.f32 %v954, 0.7978846
  %v987 = vmul.f32 %v955, 0.7978846
  %v988 = vmul.f32 %v956, 0.7978846
  %v989 = vmul.f32 %v957, 0.7978846
  %v990 = vmul.f32 %v958, 0.7978846
  %v991 = vmul.f32 %v959, 0.7978846
  %v992 = vmul.f32 %v960, 0.7978846
  %v993 = vmul.f32 %v961, 0.7978846
  %v994 = vmul.f32 %v962, 0.7978846
  %v995 = vmul.f32 %v963, 0.7978846
  %v996 = vmul.f32 %v964, 0.7978846
  %v997 = vmul.f32 %v965, 0.7978846
  %v998 = vmul.f32 %v966, 0.7978846
  %v999 = vmul.f32 %v967, 0.7978846
  %v1000 = vmul.f32 %v968, 0.7978846
  %v1001 = vmul.f32 %v969, 0.7978846
  %v1002 = vmul.f32 %v970, 0.7978846
  %v1003 = vmul.f32 %v971, 0.7978846
  %v1004 = vmul.f32 %v972, 0.7978846
  %v1005 = vmul.f32 %v973, 0.7978846
  %v1006 = vmul.f32 %v974, 0.7978846
  %v1007 = vmul.f32 %v975, 0.7978846
  %v1008 = vmul.f32 %v976, 0.7978846
  %v1009 = vmul.f32 %v977, 0.7978846
  %v1010 = vmul.f32 %v978, 0.7978846
  %v1011 = vtanh.pop %v979
  %v1012 = vtanh.pop %v980
  %v1013 = vtanh.pop %v981
  %v1014 = vtanh.pop %v982
  %v1015 = vtanh.pop %v983
  %v1016 = vtanh.pop %v984
  %v1017 = vtanh.pop %v985
  %v1018 = vtanh.pop %v986
  %v1019 = vtanh.pop %v987
  %v1020 = vtanh.pop %v988
  %v1021 = vtanh.pop %v989
  %v1022 = vtanh.pop %v990
  %v1023 = vtanh.pop %v991
  %v1024 = vtanh.pop %v992
  %v1025 = vtanh.pop %v993
  %v1026 = vtanh.pop %v994
  %v1027 = vtanh.pop %v995
  %v1028 = vtanh.pop %v996
  %v1029 = vtanh.pop %v997
  %v1030 = vtanh.pop %v998
  %v1031 = vtanh.pop %v999
  %v1032 = vtanh.pop %v1000
  %v1033 = vtanh.pop %v1001
  %v1034 = vtanh.pop %v1002
  %v1035 = vtanh.pop %v1003
  %v1036 = vtanh.pop %v1004
  %v1037 = vtanh.pop %v1005
  %v1038 = vtanh.pop %v1006
  %v1039 = vtanh.pop %v1007
  %v1040 = vtanh.pop %v1008
  %v1041 = vtanh.pop %v1009
  %v1042 = vtanh.pop %v1010
  %v1043 = vadd.f32 %v1011, 1.0
  %v1044 = vadd.f32 %v1012, 1.0
  %v1045 = vadd.f32 %v1013, 1.0
  %v1046 = vadd.f32 %v1014, 1.0
  %v1047 = vadd.f32 %v1015, 1.0
  %v1048 = vadd.f32 %v1016, 1.0
  %v1049 = vadd.f32 %v1017, 1.0
  %v1050 = vadd.f32 %v1018, 1.0
  %v1051 = vadd.f32 %v1019, 1.0
  %v1052 = vadd.f32 %v1020, 1.0
  %v1053 = vadd.f32 %v1021, 1.0
  %v1054 = vadd.f32 %v1022, 1.0
  %v1055 = vadd.f32 %v1023, 1.0
  %v1056 = vadd.f32 %v1024, 1.0
  %v1057 = vadd.f32 %v1025, 1.0
  %v1058 = vadd.f32 %v1026, 1.0
  %v1059 = vadd.f32 %v1027, 1.0
  %v1060 = vadd.f32 %v1028, 1.0
  %v1061 = vadd.f32 %v1029, 1.0
  %v1062 = vadd.f32 %v1030, 1.0
  %v1063 = vadd.f32 %v1031, 1.0
  %v1064 = vadd.f32 %v1032, 1.0
  %v1065 = vadd.f32 %v1033, 1.0
  %v1066 = vadd.f32 %v1034, 1.0
  %v1067 = vadd.f32 %v1035, 1.0
  %v1068 = vadd.f32 %v1036, 1.0
  %v1069 = vadd.f32 %v1037, 1.0
  %v1070 = vadd.f32 %v1038, 1.0
  %v1071 = vadd.f32 %v1039, 1.0
  %v1072 = vadd.f32 %v1040, 1.0
  %v1073 = vadd.f32 %v1041, 1.0
  %v1074 = vadd.f32 %v1042, 1.0
  %v1075 = vmul.f32 %v1043, 0.5
  %v1076 = vmul.f32 %v1044, 0.5
  %v1077 = vmul.f32 %v1045, 0.5
  %v1078 = vmul.f32 %v1046, 0.5
  %v1079 = vmul.f32 %v1047, 0.5
  %v1080 = vmul.f32 %v1048, 0.5
  %v1081 = vmul.f32 %v1049, 0.5
  %v1082 = vmul.f32 %v1050, 0.5
  %v1083 = vmul.f32 %v1051, 0.5
  %v1084 = vmul.f32 %v1052, 0.5
  %v1085 = vmul.f32 %v1053, 0.5
  %v1086 = vmul.f32 %v1054, 0.5
  %v1087 = vmul.f32 %v1055, 0.5
  %v1088 = vmul.f32 %v1056, 0.5
  %v1089 = vmul.f32 %v1057, 0.5
  %v1090 = vmul.f32 %v1058, 0.5
  %v1091 = vmul.f32 %v1059, 0.5
  %v1092 = vmul.f32 %v1060, 0.5
  %v1093 = vmul.f32 %v1061, 0.5
  %v1094 = vmul.f32 %v1062, 0.5
  %v1095 = vmul.f32 %v1063, 0.5
  %v1096 = vmul.f32 %v1064, 0.5
  %v1097 = vmul.f32 %v1065, 0.5
  %v1098 = vmul.f32 %v1066, 0.5
  %v1099 = vmul.f32 %v1067, 0.5
  %v1100 = vmul.f32 %v1068, 0.5
  %v1101 = vmul.f32 %v1069, 0.5
  %v1102 = vmul.f32 %v1070, 0.5
  %v1103 = vmul.f32 %v1071, 0.5
  %v1104 = vmul.f32 %v1072, 0.5
  %v1105 = vmul.f32 %v1073, 0.5
  %v1106 = vmul.f32 %v1074, 0.5
  %v1107 = vmul.f32 %v725, %v1075
  %v1108 = vmul.f32 %v728, %v1076
  %v1109 = vmul.f32 %v733, %v1077
  %v1110 = vmul.f32 %v736, %v1078
  %v1111 = vmul.f32 %v741, %v1079
  %v1112 = vmul.f32 %v744, %v1080
  %v1113 = vmul.f32 %v749, %v1081
  %v1114 = vmul.f32 %v752, %v1082
  %v1115 = vmul.f32 %v757, %v1083
  %v1116 = vmul.f32 %v760, %v1084
  %v1117 = vmul.f32 %v765, %v1085
  %v1118 = vmul.f32 %v768, %v1086
  %v1119 = vmul.f32 %v773, %v1087
  %v1120 = vmul.f32 %v776, %v1088
  %v1121 = vmul.f32 %v781, %v1089
  %v1122 = vmul.f32 %v784, %v1090
  %v1123 = vmul.f32 %v789, %v1091
  %v1124 = vmul.f32 %v792, %v1092
  %v1125 = vmul.f32 %v797, %v1093
  %v1126 = vmul.f32 %v800, %v1094
  %v1127 = vmul.f32 %v805, %v1095
  %v1128 = vmul.f32 %v808, %v1096
  %v1129 = vmul.f32 %v813, %v1097
  %v1130 = vmul.f32 %v816, %v1098
  %v1131 = vmul.f32 %v821, %v1099
  %v1132 = vmul.f32 %v824, %v1100
  %v1133 = vmul.f32 %v829, %v1101
  %v1134 = vmul.f32 %v832, %v1102
  %v1135 = vmul.f32 %v837, %v1103
  %v1136 = vmul.f32 %v840, %v1104
  %v1137 = vmul.f32 %v845, %v1105
  %v1138 = vmul.f32 %v848, %v1106
  %v1139 = vld [vmem:[%s5] sm:$0xf]
  %v1140 = vld [vmem:[%s5 + $0x4] sm:$0xf]
  %v1141 = vld [vmem:[%s5 + $0x8] sm:$0xf]
  %v1142 = vld [vmem:[%s5 + $0xc] sm:$0xf]
  %v1143 = vld [vmem:[%s5 + $0x10] sm:$0xf]
  %v1144 = vld [vmem:[%s5 + $0x14] sm:$0xf]
  %v1145 = vld [vmem:[%s5 + $0x18] sm:$0xf]
  %v1146 = vld [vmem:[%s5 + $0x1c] sm:$0xf]
  %v1147 = vld [vmem:[%s5 + $0x20] sm:$0xf]
  %v1148 = vld [vmem:[%s5 + $0x24] sm:$0xf]
  %v1149 = vld [vmem:[%s5 + $0x28] sm:$0xf]
  %v1150 = vld [vmem:[%s5 + $0x2c] sm:$0xf]
  %v1151 = vld [vmem:[%s5 + $0x30] sm:$0xf]
  %v1152 = vld [vmem:[%s5 + $0x34] sm:$0xf]
  %v1153 = vld [vmem:[%s5 + $0x38] sm:$0xf]
  %v1154 = vld [vmem:[%s5 + $0x3c] sm:$0xf]
  %v1155 = vld [vmem:[%s6] sm:$0x1]
  %v1157 = vlaneseq
  %v1158 = vshrl.u32 %v1157, 7
  %v1159 = vsub.s32 0, %v1158
  %v1160 = vrot.slane %v1155, %v1159
  %v1178 = vunpack.c.l.b16 %v1139
  %v1179 = vunpack.c.l.b16 %v1140
  %v1180 = vunpack.c.l.b16 %v1141
  %v1181 = vunpack.c.l.b16 %v1142
  %v1182 = vunpack.c.l.b16 %v1143
  %v1183 = vunpack.c.l.b16 %v1144
  %v1184 = vunpack.c.l.b16 %v1145
  %v1185 = vunpack.c.l.b16 %v1146
  %v1186 = vunpack.c.l.b16 %v1147
  %v1187 = vunpack.c.l.b16 %v1148
  %v1188 = vunpack.c.l.b16 %v1149
  %v1189 = vunpack.c.l.b16 %v1150
  %v1190 = vunpack.c.l.b16 %v1151
  %v1191 = vunpack.c.l.b16 %v1152
  %v1192 = vunpack.c.l.b16 %v1153
  %v1193 = vunpack.c.l.b16 %v1154
  %v1194 = vpack.c.b16 %v1179, %v1178
  %v1195 = vpack.c.b16 %v1181, %v1180
  %v1196 = vpack.c.b16 %v1183, %v1182
  %v1197 = vpack.c.b16 %v1185, %v1184
  %v1198 = vpack.c.b16 %v1187, %v1186
  %v1199 = vpack.c.b16 %v1189, %v1188
  %v1200 = vpack.c.b16 %v1191, %v1190
  %v1201 = vpack.c.b16 %v1193, %v1192
  %1210 = vmatprep.subr.bf16.mxu0 0
  %1211 = vmatpush1.bf16.msra.mxu0 %v1201
  %1212 = vmatprep.subr.bf16.mxu0 0
  %1213 = vmatpush1.bf16.msra.mxu0 %v1200
  %1214 = vmatprep.subr.bf16.mxu0 0
  %1215 = vmatpush1.bf16.msra.mxu0 %v1199
  %1216 = vmatprep.subr.bf16.mxu0 0
  %1217 = vmatpush1.bf16.msra.mxu0 %v1198
  %1218 = vmatprep.subr.bf16.mxu0 0
  %1219 = vmatpush1.bf16.msra.mxu0 %v1197
  %1220 = vmatprep.subr.bf16.mxu0 0
  %1221 = vmatpush1.bf16.msra.mxu0 %v1196
  %1222 = vmatprep.subr.bf16.mxu0 0
  %1223 = vmatpush1.bf16.msra.mxu0 %v1195
  %1224 = vmatprep.subr.bf16.mxu0 0
  %1225 = vmatpush1.bf16.msra.mxu0 %v1194
  %1226 = vmatprep.subr.bf16.mxu0 0
  %1227 = vmatpush2.bf16.msra.mxu0 0
  %1228 = vmatprep.subr.bf16.mxu0 0
  %1229 = vmatpush2.bf16.msra.mxu0 0
  %1230 = vmatprep.subr.bf16.mxu0 0
  %1231 = vmatpush2.bf16.msra.mxu0 0
  %1232 = vmatprep.subr.bf16.mxu0 0
  %1233 = vmatpush2.bf16.msra.mxu0 0
  %1234 = vmatprep.subr.bf16.mxu0 0
  %1235 = vmatpush2.bf16.msra.mxu0 0
  %1236 = vmatprep.subr.bf16.mxu0 0
  %1237 = vmatpush2.bf16.msra.mxu0 0
  %1238 = vmatprep.subr.bf16.mxu0 0
  %1239 = vmatpush2.bf16.msra.mxu0 0
  %1240 = vmatprep.subr.bf16.mxu0 0
  %1241 = vmatpush2.bf16.msra.mxu0 0
  %1242 = vmatprep.mubr.bf16.mxu0 0
  %1243 = vmatmul.mubr.bf16.gmra.mxu0 %v603
  %v1244 = vpop.f32.mrf.mxu0
  %v1245 = vadd.f32 %v1160, %v1244
  %v1246 = vpop.f32.mrf.mxu0
  %v1247 = vpop.f32.mrf.mxu0
  %v1248 = vadd.f32 %v1160, %v1247
  %v1249 = vpop.f32.mrf.mxu0
  %1250 = vmatprep.mubr.bf16.mxu0 0
  %1251 = vmatmul.mubr.bf16.gmra.mxu0 %v604
  %v1252 = vpop.f32.mrf.mxu0
  %v1253 = vadd.f32 %v1160, %v1252
  %v1254 = vpop.f32.mrf.mxu0
  %v1255 = vpop.f32.mrf.mxu0
  %v1256 = vadd.f32 %v1160, %v1255
  %v1257 = vpop.f32.mrf.mxu0
  %1258 = vmatprep.mubr.bf16.mxu0 0
  %1259 = vmatmul.mubr.bf16.gmra.mxu0 %v605
  %v1260 = vpop.f32.mrf.mxu0
  %v1261 = vadd.f32 %v1160, %v1260
  %v1262 = vpop.f32.mrf.mxu0
  %v1263 = vpop.f32.mrf.mxu0
  %v1264 = vadd.f32 %v1160, %v1263
  %v1265 = vpop.f32.mrf.mxu0
  %1266 = vmatprep.mubr.bf16.mxu0 0
  %1267 = vmatmul.mubr.bf16.gmra.mxu0 %v606
  %v1268 = vpop.f32.mrf.mxu0
  %v1269 = vadd.f32 %v1160, %v1268
  %v1270 = vpop.f32.mrf.mxu0
  %v1271 = vpop.f32.mrf.mxu0
  %v1272 = vadd.f32 %v1160, %v1271
  %v1273 = vpop.f32.mrf.mxu0
  %1274 = vmatprep.mubr.bf16.mxu0 0
  %1275 = vmatmul.mubr.bf16.gmra.mxu0 %v607
  %v1276 = vpop.f32.mrf.mxu0
  %v1277 = vadd.f32 %v1160, %v1276
  %v1278 = vpop.f32.mrf.mxu0
  %v1279 = vpop.f32.mrf.mxu0
  %v1280 = vadd.f32 %v1160, %v1279
  %v1281 = vpop.f32.mrf.mxu0
  %1282 = vmatprep.mubr.bf16.mxu0 0
  %1283 = vmatmul.mubr.bf16.gmra.mxu0 %v608
  %v1284 = vpop.f32.mrf.mxu0
  %v1285 = vadd.f32 %v1160, %v1284
  %v1286 = vpop.f32.mrf.mxu0
  %v1287 = vpop.f32.mrf.mxu0
  %v1288 = vadd.f32 %v1160, %v1287
  %v1289 = vpop.f32.mrf.mxu0
  %1290 = vmatprep.mubr.bf16.mxu0 0
  %1291 = vmatmul.mubr.bf16.gmra.mxu0 %v609
  %v1292 = vpop.f32.mrf.mxu0
  %v1293 = vadd.f32 %v1160, %v1292
  %v1294 = vpop.f32.mrf.mxu0
  %v1295 = vpop.f32.mrf.mxu0
  %v1296 = vadd.f32 %v1160, %v1295
  %v1297 = vpop.f32.mrf.mxu0
  %1298 = vmatprep.mubr.bf16.mxu0 0
  %1299 = vmatmul.mubr.bf16.gmra.mxu0 %v610
  %v1300 = vpop.f32.mrf.mxu0
  %v1301 = vadd.f32 %v1160, %v1300
  %v1302 = vpop.f32.mrf.mxu0
  %v1303 = vpop.f32.mrf.mxu0
  %v1304 = vadd.f32 %v1160, %v1303
  %v1305 = vpop.f32.mrf.mxu0
  %1306 = vmatprep.mubr.bf16.mxu0 0
  %1307 = vmatmul.mubr.bf16.gmra.mxu0 %v611
  %v1308 = vpop.f32.mrf.mxu0
  %v1309 = vadd.f32 %v1160, %v1308
  %v1310 = vpop.f32.mrf.mxu0
  %v1311 = vpop.f32.mrf.mxu0
  %v1312 = vadd.f32 %v1160, %v1311
  %v1313 = vpop.f32.mrf.mxu0
  %1314 = vmatprep.mubr.bf16.mxu0 0
  %1315 = vmatmul.mubr.bf16.gmra.mxu0 %v612
  %v1316 = vpop.f32.mrf.mxu0
  %v1317 = vadd.f32 %v1160, %v1316
  %v1318 = vpop.f32.mrf.mxu0
  %v1319 = vpop.f32.mrf.mxu0
  %v1320 = vadd.f32 %v1160, %v1319
  %v1321 = vpop.f32.mrf.mxu0
  %1322 = vmatprep.mubr.bf16.mxu0 0
  %1323 = vmatmul.mubr.bf16.gmra.mxu0 %v613
  %v1324 = vpop.f32.mrf.mxu0
  %v1325 = vadd.f32 %v1160, %v1324
  %v1326 = vpop.f32.mrf.mxu0
  %v1327 = vpop.f32.mrf.mxu0
  %v1328 = vadd.f32 %v1160, %v1327
  %v1329 = vpop.f32.mrf.mxu0
  %1330 = vmatprep.mubr.bf16.mxu0 0
  %1331 = vmatmul.mubr.bf16.gmra.mxu0 %v614
  %v1332 = vpop.f32.mrf.mxu0
  %v1333 = vadd.f32 %v1160, %v1332
  %v1334 = vpop.f32.mrf.mxu0
  %v1335 = vpop.f32.mrf.mxu0
  %v1336 = vadd.f32 %v1160, %v1335
  %v1337 = vpop.f32.mrf.mxu0
  %1338 = vmatprep.mubr.bf16.mxu0 0
  %1339 = vmatmul.mubr.bf16.gmra.mxu0 %v615
  %v1340 = vpop.f32.mrf.mxu0
  %v1341 = vadd.f32 %v1160, %v1340
  %v1342 = vpop.f32.mrf.mxu0
  %v1343 = vpop.f32.mrf.mxu0
  %v1344 = vadd.f32 %v1160, %v1343
  %v1345 = vpop.f32.mrf.mxu0
  %1346 = vmatprep.mubr.bf16.mxu0 0
  %1347 = vmatmul.mubr.bf16.gmra.mxu0 %v616
  %v1348 = vpop.f32.mrf.mxu0
  %v1349 = vadd.f32 %v1160, %v1348
  %v1350 = vpop.f32.mrf.mxu0
  %v1351 = vpop.f32.mrf.mxu0
  %v1352 = vadd.f32 %v1160, %v1351
  %v1353 = vpop.f32.mrf.mxu0
  %1354 = vmatprep.mubr.bf16.mxu0 0
  %1355 = vmatmul.mubr.bf16.gmra.mxu0 %v617
  %v1356 = vpop.f32.mrf.mxu0
  %v1357 = vadd.f32 %v1160, %v1356
  %v1358 = vpop.f32.mrf.mxu0
  %v1359 = vpop.f32.mrf.mxu0
  %v1360 = vadd.f32 %v1160, %v1359
  %v1361 = vpop.f32.mrf.mxu0
  %1362 = vmatprep.mubr.bf16.mxu0 0
  %1363 = vmatmul.mubr.bf16.gmra.mxu0 %v618
  %v1364 = vpop.f32.mrf.mxu0
  %v1365 = vadd.f32 %v1160, %v1364
  %v1366 = vpop.f32.mrf.mxu0
  %v1367 = vpop.f32.mrf.mxu0
  %v1368 = vadd.f32 %v1160, %v1367
  %v1369 = vpop.f32.mrf.mxu0
  %1370 = vdwg.mxu0
  %v1371 = vmul.f32 %v1245, %v1245
  %v1372 = vmul.f32 %v1248, %v1248
  %v1373 = vmul.f32 %v1253, %v1253
  %v1374 = vmul.f32 %v1256, %v1256
  %v1375 = vmul.f32 %v1261, %v1261
  %v1376 = vmul.f32 %v1264, %v1264
  %v1377 = vmul.f32 %v1269, %v1269
  %v1378 = vmul.f32 %v1272, %v1272
  %v1379 = vmul.f32 %v1277, %v1277
  %v1380 = vmul.f32 %v1280, %v1280
  %v1381 = vmul.f32 %v1285, %v1285
  %v1382 = vmul.f32 %v1288, %v1288
  %v1383 = vmul.f32 %v1293, %v1293
  %v1384 = vmul.f32 %v1296, %v1296
  %v1385 = vmul.f32 %v1301, %v1301
  %v1386 = vmul.f32 %v1304, %v1304
  %v1387 = vmul.f32 %v1309, %v1309
  %v1388 = vmul.f32 %v1312, %v1312
  %v1389 = vmul.f32 %v1317, %v1317
  %v1390 = vmul.f32 %v1320, %v1320
  %v1391 = vmul.f32 %v1325, %v1325
  %v1392 = vmul.f32 %v1328, %v1328
  %v1393 = vmul.f32 %v1333, %v1333
  %v1394 = vmul.f32 %v1336, %v1336
  %v1395 = vmul.f32 %v1341, %v1341
  %v1396 = vmul.f32 %v1344, %v1344
  %v1397 = vmul.f32 %v1349, %v1349
  %v1398 = vmul.f32 %v1352, %v1352
  %v1399 = vmul.f32 %v1357, %v1357
  %v1400 = vmul.f32 %v1360, %v1360
  %v1401 = vmul.f32 %v1365, %v1365
  %v1402 = vmul.f32 %v1368, %v1368
  %v1403 = vmul.f32 %v1245, %v1371
  %v1404 = vmul.f32 %v1248, %v1372
  %v1405 = vmul.f32 %v1253, %v1373
  %v1406 = vmul.f32 %v1256, %v1374
  %v1407 = vmul.f32 %v1261, %v1375
  %v1408 = vmul.f32 %v1264, %v1376
  %v1409 = vmul.f32 %v1269, %v1377
  %v1410 = vmul.f32 %v1272, %v1378
  %v1411 = vmul.f32 %v1277, %v1379
  %v1412 = vmul.f32 %v1280, %v1380
  %v1413 = vmul.f32 %v1285, %v1381
  %v1414 = vmul.f32 %v1288, %v1382
  %v1415 = vmul.f32 %v1293, %v1383
  %v1416 = vmul.f32 %v1296, %v1384
  %v1417 = vmul.f32 %v1301, %v1385
  %v1418 = vmul.f32 %v1304, %v1386
  %v1419 = vmul.f32 %v1309, %v1387
  %v1420 = vmul.f32 %v1312, %v1388
  %v1421 = vmul.f32 %v1317, %v1389
  %v1422 = vmul.f32 %v1320, %v1390
  %v1423 = vmul.f32 %v1325, %v1391
  %v1424 = vmul.f32 %v1328, %v1392
  %v1425 = vmul.f32 %v1333, %v1393
  %v1426 = vmul.f32 %v1336, %v1394
  %v1427 = vmul.f32 %v1341, %v1395
  %v1428 = vmul.f32 %v1344, %v1396
  %v1429 = vmul.f32 %v1349, %v1397
  %v1430 = vmul.f32 %v1352, %v1398
  %v1431 = vmul.f32 %v1357, %v1399
  %v1432 = vmul.f32 %v1360, %v1400
  %v1433 = vmul.f32 %v1365, %v1401
  %v1434 = vmul.f32 %v1368, %v1402
  %v1435 = vmul.f32 %v1403, 0.044715
  %v1436 = vmul.f32 %v1404, 0.044715
  %v1437 = vmul.f32 %v1405, 0.044715
  %v1438 = vmul.f32 %v1406, 0.044715
  %v1439 = vmul.f32 %v1407, 0.044715
  %v1440 = vmul.f32 %v1408, 0.044715
  %v1441 = vmul.f32 %v1409, 0.044715
  %v1442 = vmul.f32 %v1410, 0.044715
  %v1443 = vmul.f32 %v1411, 0.044715
  %v1444 = vmul.f32 %v1412, 0.044715
  %v1445 = vmul.f32 %v1413, 0.044715
  %v1446 = vmul.f32 %v1414, 0.044715
  %v1447 = vmul.f32 %v1415, 0.044715
  %v1448 = vmul.f32 %v1416, 0.044715
  %v1449 = vmul.f32 %v1417, 0.044715
  %v1450 = vmul.f32 %v1418, 0.044715
  %v1451 = vmul.f32 %v1419, 0.044715
  %v1452 = vmul.f32 %v1420, 0.044715
  %v1453 = vmul.f32 %v1421, 0.044715
  %v1454 = vmul.f32 %v1422, 0.044715
  %v1455 = vmul.f32 %v1423, 0.044715
  %v1456 = vmul.f32 %v1424, 0.044715
  %v1457 = vmul.f32 %v1425, 0.044715
  %v1458 = vmul.f32 %v1426, 0.044715
  %v1459 = vmul.f32 %v1427, 0.044715
  %v1460 = vmul.f32 %v1428, 0.044715
  %v1461 = vmul.f32 %v1429, 0.044715
  %v1462 = vmul.f32 %v1430, 0.044715
  %v1463 = vmul.f32 %v1431, 0.044715
  %v1464 = vmul.f32 %v1432, 0.044715
  %v1465 = vmul.f32 %v1433, 0.044715
  %v1466 = vmul.f32 %v1434, 0.044715
  %v1467 = vadd.f32 %v1245, %v1435
  %v1468 = vadd.f32 %v1248, %v1436
  %v1469 = vadd.f32 %v1253, %v1437
  %v1470 = vadd.f32 %v1256, %v1438
  %v1471 = vadd.f32 %v1261, %v1439
  %v1472 = vadd.f32 %v1264, %v1440
  %v1473 = vadd.f32 %v1269, %v1441
  %v1474 = vadd.f32 %v1272, %v1442
  %v1475 = vadd.f32 %v1277, %v1443
  %v1476 = vadd.f32 %v1280, %v1444
  %v1477 = vadd.f32 %v1285, %v1445
  %v1478 = vadd.f32 %v1288, %v1446
  %v1479 = vadd.f32 %v1293, %v1447
  %v1480 = vadd.f32 %v1296, %v1448
  %v1481 = vadd.f32 %v1301, %v1449
  %v1482 = vadd.f32 %v1304, %v1450
  %v1483 = vadd.f32 %v1309, %v1451
  %v1484 = vadd.f32 %v1312, %v1452
  %v1485 = vadd.f32 %v1317, %v1453
  %v1486 = vadd.f32 %v1320, %v1454
  %v1487 = vadd.f32 %v1325, %v1455
  %v1488 = vadd.f32 %v1328, %v1456
  %v1489 = vadd.f32 %v1333, %v1457
  %v1490 = vadd.f32 %v1336, %v1458
  %v1491 = vadd.f32 %v1341, %v1459
  %v1492 = vadd.f32 %v1344, %v1460
  %v1493 = vadd.f32 %v1349, %v1461
  %v1494 = vadd.f32 %v1352, %v1462
  %v1495 = vadd.f32 %v1357, %v1463
  %v1496 = vadd.f32 %v1360, %v1464
  %v1497 = vadd.f32 %v1365, %v1465
  %v1498 = vadd.f32 %v1368, %v1466
  %v1499 = vmul.f32 %v1467, 0.7978846
  %v1500 = vmul.f32 %v1468, 0.7978846
  %v1501 = vmul.f32 %v1469, 0.7978846
  %v1502 = vmul.f32 %v1470, 0.7978846
  %v1503 = vmul.f32 %v1471, 0.7978846
  %v1504 = vmul.f32 %v1472, 0.7978846
  %v1505 = vmul.f32 %v1473, 0.7978846
  %v1506 = vmul.f32 %v1474, 0.7978846
  %v1507 = vmul.f32 %v1475, 0.7978846
  %v1508 = vmul.f32 %v1476, 0.7978846
  %v1509 = vmul.f32 %v1477, 0.7978846
  %v1510 = vmul.f32 %v1478, 0.7978846
  %v1511 = vmul.f32 %v1479, 0.7978846
  %v1512 = vmul.f32 %v1480, 0.7978846
  %v1513 = vmul.f32 %v1481, 0.7978846
  %v1514 = vmul.f32 %v1482, 0.7978846
  %v1515 = vmul.f32 %v1483, 0.7978846
  %v1516 = vmul.f32 %v1484, 0.7978846
  %v1517 = vmul.f32 %v1485, 0.7978846
  %v1518 = vmul.f32 %v1486, 0.7978846
  %v1519 = vmul.f32 %v1487, 0.7978846
  %v1520 = vmul.f32 %v1488, 0.7978846
  %v1521 = vmul.f32 %v1489, 0.7978846
  %v1522 = vmul.f32 %v1490, 0.7978846
  %v1523 = vmul.f32 %v1491, 0.7978846
  %v1524 = vmul.f32 %v1492, 0.7978846
  %v1525 = vmul.f32 %v1493, 0.7978846
  %v1526 = vmul.f32 %v1494, 0.7978846
  %v1527 = vmul.f32 %v1495, 0.7978846
  %v1528 = vmul.f32 %v1496, 0.7978846
  %v1529 = vmul.f32 %v1497, 0.7978846
  %v1530 = vmul.f32 %v1498, 0.7978846
  %v1531 = vtanh.pop %v1499
  %v1532 = vtanh.pop %v1500
  %v1533 = vtanh.pop %v1501
  %v1534 = vtanh.pop %v1502
  %v1535 = vtanh.pop %v1503
  %v1536 = vtanh.pop %v1504
  %v1537 = vtanh.pop %v1505
  %v1538 = vtanh.pop %v1506
  %v1539 = vtanh.pop %v1507
  %v1540 = vtanh.pop %v1508
  %v1541 = vtanh.pop %v1509
  %v1542 = vtanh.pop %v1510
  %v1543 = vtanh.pop %v1511
  %v1544 = vtanh.pop %v1512
  %v1545 = vtanh.pop %v1513
  %v1546 = vtanh.pop %v1514
  %v1547 = vtanh.pop %v1515
  %v1548 = vtanh.pop %v1516
  %v1549 = vtanh.pop %v1517
  %v1550 = vtanh.pop %v1518
  %v1551 = vtanh.pop %v1519
  %v1552 = vtanh.pop %v1520
  %v1553 = vtanh.pop %v1521
  %v1554 = vtanh.pop %v1522
  %v1555 = vtanh.pop %v1523
  %v1556 = vtanh.pop %v1524
  %v1557 = vtanh.pop %v1525
  %v1558 = vtanh.pop %v1526
  %v1559 = vtanh.pop %v1527
  %v1560 = vtanh.pop %v1528
  %v1561 = vtanh.pop %v1529
  %v1562 = vtanh.pop %v1530
  %v1563 = vadd.f32 %v1531, 1.0
  %v1564 = vadd.f32 %v1532, 1.0
  %v1565 = vadd.f32 %v1533, 1.0
  %v1566 = vadd.f32 %v1534, 1.0
  %v1567 = vadd.f32 %v1535, 1.0
  %v1568 = vadd.f32 %v1536, 1.0
  %v1569 = vadd.f32 %v1537, 1.0
  %v1570 = vadd.f32 %v1538, 1.0
  %v1571 = vadd.f32 %v1539, 1.0
  %v1572 = vadd.f32 %v1540, 1.0
  %v1573 = vadd.f32 %v1541, 1.0
  %v1574 = vadd.f32 %v1542, 1.0
  %v1575 = vadd.f32 %v1543, 1.0
  %v1576 = vadd.f32 %v1544, 1.0
  %v1577 = vadd.f32 %v1545, 1.0
  %v1578 = vadd.f32 %v1546, 1.0
  %v1579 = vadd.f32 %v1547, 1.0
  %v1580 = vadd.f32 %v1548, 1.0
  %v1581 = vadd.f32 %v1549, 1.0
  %v1582 = vadd.f32 %v1550, 1.0
  %v1583 = vadd.f32 %v1551, 1.0
  %v1584 = vadd.f32 %v1552, 1.0
  %v1585 = vadd.f32 %v1553, 1.0
  %v1586 = vadd.f32 %v1554, 1.0
  %v1587 = vadd.f32 %v1555, 1.0
  %v1588 = vadd.f32 %v1556, 1.0
  %v1589 = vadd.f32 %v1557, 1.0
  %v1590 = vadd.f32 %v1558, 1.0
  %v1591 = vadd.f32 %v1559, 1.0
  %v1592 = vadd.f32 %v1560, 1.0
  %v1593 = vadd.f32 %v1561, 1.0
  %v1594 = vadd.f32 %v1562, 1.0
  %v1595 = vmul.f32 %v1563, 0.5
  %v1596 = vmul.f32 %v1564, 0.5
  %v1597 = vmul.f32 %v1565, 0.5
  %v1598 = vmul.f32 %v1566, 0.5
  %v1599 = vmul.f32 %v1567, 0.5
  %v1600 = vmul.f32 %v1568, 0.5
  %v1601 = vmul.f32 %v1569, 0.5
  %v1602 = vmul.f32 %v1570, 0.5
  %v1603 = vmul.f32 %v1571, 0.5
  %v1604 = vmul.f32 %v1572, 0.5
  %v1605 = vmul.f32 %v1573, 0.5
  %v1606 = vmul.f32 %v1574, 0.5
  %v1607 = vmul.f32 %v1575, 0.5
  %v1608 = vmul.f32 %v1576, 0.5
  %v1609 = vmul.f32 %v1577, 0.5
  %v1610 = vmul.f32 %v1578, 0.5
  %v1611 = vmul.f32 %v1579, 0.5
  %v1612 = vmul.f32 %v1580, 0.5
  %v1613 = vmul.f32 %v1581, 0.5
  %v1614 = vmul.f32 %v1582, 0.5
  %v1615 = vmul.f32 %v1583, 0.5
  %v1616 = vmul.f32 %v1584, 0.5
  %v1617 = vmul.f32 %v1585, 0.5
  %v1618 = vmul.f32 %v1586, 0.5
  %v1619 = vmul.f32 %v1587, 0.5
  %v1620 = vmul.f32 %v1588, 0.5
  %v1621 = vmul.f32 %v1589, 0.5
  %v1622 = vmul.f32 %v1590, 0.5
  %v1623 = vmul.f32 %v1591, 0.5
  %v1624 = vmul.f32 %v1592, 0.5
  %v1625 = vmul.f32 %v1593, 0.5
  %v1626 = vmul.f32 %v1594, 0.5
  %v1627 = vmul.f32 %v1245, %v1595
  %v1628 = vmul.f32 %v1248, %v1596
  %v1629 = vmul.f32 %v1253, %v1597
  %v1630 = vmul.f32 %v1256, %v1598
  %v1631 = vmul.f32 %v1261, %v1599
  %v1632 = vmul.f32 %v1264, %v1600
  %v1633 = vmul.f32 %v1269, %v1601
  %v1634 = vmul.f32 %v1272, %v1602
  %v1635 = vmul.f32 %v1277, %v1603
  %v1636 = vmul.f32 %v1280, %v1604
  %v1637 = vmul.f32 %v1285, %v1605
  %v1638 = vmul.f32 %v1288, %v1606
  %v1639 = vmul.f32 %v1293, %v1607
  %v1640 = vmul.f32 %v1296, %v1608
  %v1641 = vmul.f32 %v1301, %v1609
  %v1642 = vmul.f32 %v1304, %v1610
  %v1643 = vmul.f32 %v1309, %v1611
  %v1644 = vmul.f32 %v1312, %v1612
  %v1645 = vmul.f32 %v1317, %v1613
  %v1646 = vmul.f32 %v1320, %v1614
  %v1647 = vmul.f32 %v1325, %v1615
  %v1648 = vmul.f32 %v1328, %v1616
  %v1649 = vmul.f32 %v1333, %v1617
  %v1650 = vmul.f32 %v1336, %v1618
  %v1651 = vmul.f32 %v1341, %v1619
  %v1652 = vmul.f32 %v1344, %v1620
  %v1653 = vmul.f32 %v1349, %v1621
  %v1654 = vmul.f32 %v1352, %v1622
  %v1655 = vmul.f32 %v1357, %v1623
  %v1656 = vmul.f32 %v1360, %v1624
  %v1657 = vmul.f32 %v1365, %v1625
  %v1658 = vmul.f32 %v1368, %v1626
  %1659 = vadd.xlane.f32.xlu0 %v1627
  %v1660 = vpop.xlane.xlu0 %1659
  %1661 = vadd.xlane.f32.xlu0 %v1628
  %v1662 = vpop.xlane.xlu0 %1661
  %1663 = vadd.xlane.f32.xlu0 %v1629
  %v1664 = vpop.xlane.xlu0 %1663
  %1665 = vadd.xlane.f32.xlu0 %v1630
  %v1666 = vpop.xlane.xlu0 %1665
  %1667 = vadd.xlane.f32.xlu0 %v1631
  %v1668 = vpop.xlane.xlu0 %1667
  %1669 = vadd.xlane.f32.xlu0 %v1632
  %v1670 = vpop.xlane.xlu0 %1669
  %1671 = vadd.xlane.f32.xlu0 %v1633
  %v1672 = vpop.xlane.xlu0 %1671
  %1673 = vadd.xlane.f32.xlu0 %v1634
  %v1674 = vpop.xlane.xlu0 %1673
  %1675 = vadd.xlane.f32.xlu0 %v1635
  %v1676 = vpop.xlane.xlu0 %1675
  %1677 = vadd.xlane.f32.xlu0 %v1636
  %v1678 = vpop.xlane.xlu0 %1677
  %1679 = vadd.xlane.f32.xlu0 %v1637
  %v1680 = vpop.xlane.xlu0 %1679
  %1681 = vadd.xlane.f32.xlu0 %v1638
  %v1682 = vpop.xlane.xlu0 %1681
  %1683 = vadd.xlane.f32.xlu0 %v1639
  %v1684 = vpop.xlane.xlu0 %1683
  %1685 = vadd.xlane.f32.xlu0 %v1640
  %v1686 = vpop.xlane.xlu0 %1685
  %1687 = vadd.xlane.f32.xlu0 %v1641
  %v1688 = vpop.xlane.xlu0 %1687
  %1689 = vadd.xlane.f32.xlu0 %v1642
  %v1690 = vpop.xlane.xlu0 %1689
  %1691 = vadd.xlane.f32.xlu0 %v1643
  %v1692 = vpop.xlane.xlu0 %1691
  %1693 = vadd.xlane.f32.xlu0 %v1644
  %v1694 = vpop.xlane.xlu0 %1693
  %1695 = vadd.xlane.f32.xlu0 %v1645
  %v1696 = vpop.xlane.xlu0 %1695
  %1697 = vadd.xlane.f32.xlu0 %v1646
  %v1698 = vpop.xlane.xlu0 %1697
  %1699 = vadd.xlane.f32.xlu0 %v1647
  %v1700 = vpop.xlane.xlu0 %1699
  %1701 = vadd.xlane.f32.xlu0 %v1648
  %v1702 = vpop.xlane.xlu0 %1701
  %1703 = vadd.xlane.f32.xlu0 %v1649
  %v1704 = vpop.xlane.xlu0 %1703
  %1705 = vadd.xlane.f32.xlu0 %v1650
  %v1706 = vpop.xlane.xlu0 %1705
  %1707 = vadd.xlane.f32.xlu0 %v1651
  %v1708 = vpop.xlane.xlu0 %1707
  %1709 = vadd.xlane.f32.xlu0 %v1652
  %v1710 = vpop.xlane.xlu0 %1709
  %1711 = vadd.xlane.f32.xlu0 %v1653
  %v1712 = vpop.xlane.xlu0 %1711
  %1713 = vadd.xlane.f32.xlu0 %v1654
  %v1714 = vpop.xlane.xlu0 %1713
  %1715 = vadd.xlane.f32.xlu0 %v1655
  %v1716 = vpop.xlane.xlu0 %1715
  %1717 = vadd.xlane.f32.xlu0 %v1656
  %v1718 = vpop.xlane.xlu0 %1717
  %1719 = vadd.xlane.f32.xlu0 %v1657
  %v1720 = vpop.xlane.xlu0 %1719
  %1721 = vadd.xlane.f32.xlu0 %v1658
  %v1722 = vpop.xlane.xlu0 %1721
  %v1723 = vmul.f32 %v1660, 0.03125
  %v1724 = vmul.f32 %v1662, 0.03125
  %v1725 = vmul.f32 %v1664, 0.03125
  %v1726 = vmul.f32 %v1666, 0.03125
  %v1727 = vmul.f32 %v1668, 0.03125
  %v1728 = vmul.f32 %v1670, 0.03125
  %v1729 = vmul.f32 %v1672, 0.03125
  %v1730 = vmul.f32 %v1674, 0.03125
  %v1731 = vmul.f32 %v1676, 0.03125
  %v1732 = vmul.f32 %v1678, 0.03125
  %v1733 = vmul.f32 %v1680, 0.03125
  %v1734 = vmul.f32 %v1682, 0.03125
  %v1735 = vmul.f32 %v1684, 0.03125
  %v1736 = vmul.f32 %v1686, 0.03125
  %v1737 = vmul.f32 %v1688, 0.03125
  %v1738 = vmul.f32 %v1690, 0.03125
  %v1739 = vmul.f32 %v1692, 0.03125
  %v1740 = vmul.f32 %v1694, 0.03125
  %v1741 = vmul.f32 %v1696, 0.03125
  %v1742 = vmul.f32 %v1698, 0.03125
  %v1743 = vmul.f32 %v1700, 0.03125
  %v1744 = vmul.f32 %v1702, 0.03125
  %v1745 = vmul.f32 %v1704, 0.03125
  %v1746 = vmul.f32 %v1706, 0.03125
  %v1747 = vmul.f32 %v1708, 0.03125
  %v1748 = vmul.f32 %v1710, 0.03125
  %v1749 = vmul.f32 %v1712, 0.03125
  %v1750 = vmul.f32 %v1714, 0.03125
  %v1751 = vmul.f32 %v1716, 0.03125
  %v1752 = vmul.f32 %v1718, 0.03125
  %v1753 = vmul.f32 %v1720, 0.03125
  %v1754 = vmul.f32 %v1722, 0.03125
  %v1755 = vmul.f32 %v1627, %v1627
  %v1756 = vmul.f32 %v1628, %v1628
  %v1757 = vmul.f32 %v1629, %v1629
  %v1758 = vmul.f32 %v1630, %v1630
  %v1759 = vmul.f32 %v1631, %v1631
  %v1760 = vmul.f32 %v1632, %v1632
  %v1761 = vmul.f32 %v1633, %v1633
  %v1762 = vmul.f32 %v1634, %v1634
  %v1763 = vmul.f32 %v1635, %v1635
  %v1764 = vmul.f32 %v1636, %v1636
  %v1765 = vmul.f32 %v1637, %v1637
  %v1766 = vmul.f32 %v1638, %v1638
  %v1767 = vmul.f32 %v1639, %v1639
  %v1768 = vmul.f32 %v1640, %v1640
  %v1769 = vmul.f32 %v1641, %v1641
  %v1770 = vmul.f32 %v1642, %v1642
  %v1771 = vmul.f32 %v1643, %v1643
  %v1772 = vmul.f32 %v1644, %v1644
  %v1773 = vmul.f32 %v1645, %v1645
  %v1774 = vmul.f32 %v1646, %v1646
  %v1775 = vmul.f32 %v1647, %v1647
  %v1776 = vmul.f32 %v1648, %v1648
  %v1777 = vmul.f32 %v1649, %v1649
  %v1778 = vmul.f32 %v1650, %v1650
  %v1779 = vmul.f32 %v1651, %v1651
  %v1780 = vmul.f32 %v1652, %v1652
  %v1781 = vmul.f32 %v1653, %v1653
  %v1782 = vmul.f32 %v1654, %v1654
  %v1783 = vmul.f32 %v1655, %v1655
  %v1784 = vmul.f32 %v1656, %v1656
  %v1785 = vmul.f32 %v1657, %v1657
  %v1786 = vmul.f32 %v1658, %v1658
  %1787 = vadd.xlane.f32.xlu0 %v1755
  %v1788 = vpop.xlane.xlu0 %1787
  %1789 = vadd.xlane.f32.xlu0 %v1756
  %v1790 = vpop.xlane.xlu0 %1789
  %1791 = vadd.xlane.f32.xlu0 %v1757
  %v1792 = vpop.xlane.xlu0 %1791
  %1793 = vadd.xlane.f32.xlu0 %v1758
  %v1794 = vpop.xlane.xlu0 %1793
  %1795 = vadd.xlane.f32.xlu0 %v1759
  %v1796 = vpop.xlane.xlu0 %1795
  %1797 = vadd.xlane.f32.xlu0 %v1760
  %v1798 = vpop.xlane.xlu0 %1797
  %1799 = vadd.xlane.f32.xlu0 %v1761
  %v1800 = vpop.xlane.xlu0 %1799
  %1801 = vadd.xlane.f32.xlu0 %v1762
  %v1802 = vpop.xlane.xlu0 %1801
  %1803 = vadd.xlane.f32.xlu0 %v1763
  %v1804 = vpop.xlane.xlu0 %1803
  %1805 = vadd.xlane.f32.xlu0 %v1764
  %v1806 = vpop.xlane.xlu0 %1805
  %1807 = vadd.xlane.f32.xlu0 %v1765
  %v1808 = vpop.xlane.xlu0 %1807
  %1809 = vadd.xlane.f32.xlu0 %v1766
  %v1810 = vpop.xlane.xlu0 %1809
  %1811 = vadd.xlane.f32.xlu0 %v1767
  %v1812 = vpop.xlane.xlu0 %1811
  %1813 = vadd.xlane.f32.xlu0 %v1768
  %v1814 = vpop.xlane.xlu0 %1813
  %1815 = vadd.xlane.f32.xlu0 %v1769
  %v1816 = vpop.xlane.xlu0 %1815
  %1817 = vadd.xlane.f32.xlu0 %v1770
  %v1818 = vpop.xlane.xlu0 %1817
  %1819 = vadd.xlane.f32.xlu0 %v1771
  %v1820 = vpop.xlane.xlu0 %1819
  %1821 = vadd.xlane.f32.xlu0 %v1772
  %v1822 = vpop.xlane.xlu0 %1821
  %1823 = vadd.xlane.f32.xlu0 %v1773
  %v1824 = vpop.xlane.xlu0 %1823
  %1825 = vadd.xlane.f32.xlu0 %v1774
  %v1826 = vpop.xlane.xlu0 %1825
  %1827 = vadd.xlane.f32.xlu0 %v1775
  %v1828 = vpop.xlane.xlu0 %1827
  %1829 = vadd.xlane.f32.xlu0 %v1776
  %v1830 = vpop.xlane.xlu0 %1829
  %1831 = vadd.xlane.f32.xlu0 %v1777
  %v1832 = vpop.xlane.xlu0 %1831
  %1833 = vadd.xlane.f32.xlu0 %v1778
  %v1834 = vpop.xlane.xlu0 %1833
  %1835 = vadd.xlane.f32.xlu0 %v1779
  %v1836 = vpop.xlane.xlu0 %1835
  %1837 = vadd.xlane.f32.xlu0 %v1780
  %v1838 = vpop.xlane.xlu0 %1837
  %1839 = vadd.xlane.f32.xlu0 %v1781
  %v1840 = vpop.xlane.xlu0 %1839
  %1841 = vadd.xlane.f32.xlu0 %v1782
  %v1842 = vpop.xlane.xlu0 %1841
  %1843 = vadd.xlane.f32.xlu0 %v1783
  %v1844 = vpop.xlane.xlu0 %1843
  %1845 = vadd.xlane.f32.xlu0 %v1784
  %v1846 = vpop.xlane.xlu0 %1845
  %1847 = vadd.xlane.f32.xlu0 %v1785
  %v1848 = vpop.xlane.xlu0 %1847
  %1849 = vadd.xlane.f32.xlu0 %v1786
  %v1850 = vpop.xlane.xlu0 %1849
  %v1851 = vmul.f32 %v1788, 0.03125
  %v1852 = vmul.f32 %v1790, 0.03125
  %v1853 = vmul.f32 %v1792, 0.03125
  %v1854 = vmul.f32 %v1794, 0.03125
  %v1855 = vmul.f32 %v1796, 0.03125
  %v1856 = vmul.f32 %v1798, 0.03125
  %v1857 = vmul.f32 %v1800, 0.03125
  %v1858 = vmul.f32 %v1802, 0.03125
  %v1859 = vmul.f32 %v1804, 0.03125
  %v1860 = vmul.f32 %v1806, 0.03125
  %v1861 = vmul.f32 %v1808, 0.03125
  %v1862 = vmul.f32 %v1810, 0.03125
  %v1863 = vmul.f32 %v1812, 0.03125
  %v1864 = vmul.f32 %v1814, 0.03125
  %v1865 = vmul.f32 %v1816, 0.03125
  %v1866 = vmul.f32 %v1818, 0.03125
  %v1867 = vmul.f32 %v1820, 0.03125
  %v1868 = vmul.f32 %v1822, 0.03125
  %v1869 = vmul.f32 %v1824, 0.03125
  %v1870 = vmul.f32 %v1826, 0.03125
  %v1871 = vmul.f32 %v1828, 0.03125
  %v1872 = vmul.f32 %v1830, 0.03125
  %v1873 = vmul.f32 %v1832, 0.03125
  %v1874 = vmul.f32 %v1834, 0.03125
  %v1875 = vmul.f32 %v1836, 0.03125
  %v1876 = vmul.f32 %v1838, 0.03125
  %v1877 = vmul.f32 %v1840, 0.03125
  %v1878 = vmul.f32 %v1842, 0.03125
  %v1879 = vmul.f32 %v1844, 0.03125
  %v1880 = vmul.f32 %v1846, 0.03125
  %v1881 = vmul.f32 %v1848, 0.03125
  %v1882 = vmul.f32 %v1850, 0.03125
  %v1883 = vmul.f32 %v1723, %v1723
  %v1884 = vmul.f32 %v1724, %v1724
  %v1885 = vmul.f32 %v1725, %v1725
  %v1886 = vmul.f32 %v1726, %v1726
  %v1887 = vmul.f32 %v1727, %v1727
  %v1888 = vmul.f32 %v1728, %v1728
  %v1889 = vmul.f32 %v1729, %v1729
  %v1890 = vmul.f32 %v1730, %v1730
  %v1891 = vmul.f32 %v1731, %v1731
  %v1892 = vmul.f32 %v1732, %v1732
  %v1893 = vmul.f32 %v1733, %v1733
  %v1894 = vmul.f32 %v1734, %v1734
  %v1895 = vmul.f32 %v1735, %v1735
  %v1896 = vmul.f32 %v1736, %v1736
  %v1897 = vmul.f32 %v1737, %v1737
  %v1898 = vmul.f32 %v1738, %v1738
  %v1899 = vmul.f32 %v1739, %v1739
  %v1900 = vmul.f32 %v1740, %v1740
  %v1901 = vmul.f32 %v1741, %v1741
  %v1902 = vmul.f32 %v1742, %v1742
  %v1903 = vmul.f32 %v1743, %v1743
  %v1904 = vmul.f32 %v1744, %v1744
  %v1905 = vmul.f32 %v1745, %v1745
  %v1906 = vmul.f32 %v1746, %v1746
  %v1907 = vmul.f32 %v1747, %v1747
  %v1908 = vmul.f32 %v1748, %v1748
  %v1909 = vmul.f32 %v1749, %v1749
  %v1910 = vmul.f32 %v1750, %v1750
  %v1911 = vmul.f32 %v1751, %v1751
  %v1912 = vmul.f32 %v1752, %v1752
  %v1913 = vmul.f32 %v1753, %v1753
  %v1914 = vmul.f32 %v1754, %v1754
  %v1915 = vsub.f32 %v1851, %v1883
  %v1916 = vsub.f32 %v1852, %v1884
  %v1917 = vsub.f32 %v1853, %v1885
  %v1918 = vsub.f32 %v1854, %v1886
  %v1919 = vsub.f32 %v1855, %v1887
  %v1920 = vsub.f32 %v1856, %v1888
  %v1921 = vsub.f32 %v1857, %v1889
  %v1922 = vsub.f32 %v1858, %v1890
  %v1923 = vsub.f32 %v1859, %v1891
  %v1924 = vsub.f32 %v1860, %v1892
  %v1925 = vsub.f32 %v1861, %v1893
  %v1926 = vsub.f32 %v1862, %v1894
  %v1927 = vsub.f32 %v1863, %v1895
  %v1928 = vsub.f32 %v1864, %v1896
  %v1929 = vsub.f32 %v1865, %v1897
  %v1930 = vsub.f32 %v1866, %v1898
  %v1931 = vsub.f32 %v1867, %v1899
  %v1932 = vsub.f32 %v1868, %v1900
  %v1933 = vsub.f32 %v1869, %v1901
  %v1934 = vsub.f32 %v1870, %v1902
  %v1935 = vsub.f32 %v1871, %v1903
  %v1936 = vsub.f32 %v1872, %v1904
  %v1937 = vsub.f32 %v1873, %v1905
  %v1938 = vsub.f32 %v1874, %v1906
  %v1939 = vsub.f32 %v1875, %v1907
  %v1940 = vsub.f32 %v1876, %v1908
  %v1941 = vsub.f32 %v1877, %v1909
  %v1942 = vsub.f32 %v1878, %v1910
  %v1943 = vsub.f32 %v1879, %v1911
  %v1944 = vsub.f32 %v1880, %v1912
  %v1945 = vsub.f32 %v1881, %v1913
  %v1946 = vsub.f32 %v1882, %v1914
  %v1947 = vsub.f32 %v1627, %v1723
  %v1948 = vsub.f32 %v1628, %v1724
  %v1949 = vsub.f32 %v1629, %v1725
  %v1950 = vsub.f32 %v1630, %v1726
  %v1951 = vsub.f32 %v1631, %v1727
  %v1952 = vsub.f32 %v1632, %v1728
  %v1953 = vsub.f32 %v1633, %v1729
  %v1954 = vsub.f32 %v1634, %v1730
  %v1955 = vsub.f32 %v1635, %v1731
  %v1956 = vsub.f32 %v1636, %v1732
  %v1957 = vsub.f32 %v1637, %v1733
  %v1958 = vsub.f32 %v1638, %v1734
  %v1959 = vsub.f32 %v1639, %v1735
  %v1960 = vsub.f32 %v1640, %v1736
  %v1961 = vsub.f32 %v1641, %v1737
  %v1962 = vsub.f32 %v1642, %v1738
  %v1963 = vsub.f32 %v1643, %v1739
  %v1964 = vsub.f32 %v1644, %v1740
  %v1965 = vsub.f32 %v1645, %v1741
  %v1966 = vsub.f32 %v1646, %v1742
  %v1967 = vsub.f32 %v1647, %v1743
  %v1968 = vsub.f32 %v1648, %v1744
  %v1969 = vsub.f32 %v1649, %v1745
  %v1970 = vsub.f32 %v1650, %v1746
  %v1971 = vsub.f32 %v1651, %v1747
  %v1972 = vsub.f32 %v1652, %v1748
  %v1973 = vsub.f32 %v1653, %v1749
  %v1974 = vsub.f32 %v1654, %v1750
  %v1975 = vsub.f32 %v1655, %v1751
  %v1976 = vsub.f32 %v1656, %v1752
  %v1977 = vsub.f32 %v1657, %v1753
  %v1978 = vsub.f32 %v1658, %v1754
  %v1979 = vadd.f32 %v1915, 1e-05
  %v1980 = vadd.f32 %v1916, 1e-05
  %v1981 = vadd.f32 %v1917, 1e-05
  %v1982 = vadd.f32 %v1918, 1e-05
  %v1983 = vadd.f32 %v1919, 1e-05
  %v1984 = vadd.f32 %v1920, 1e-05
  %v1985 = vadd.f32 %v1921, 1e-05
  %v1986 = vadd.f32 %v1922, 1e-05
  %v1987 = vadd.f32 %v1923, 1e-05
  %v1988 = vadd.f32 %v1924, 1e-05
  %v1989 = vadd.f32 %v1925, 1e-05
  %v1990 = vadd.f32 %v1926, 1e-05
  %v1991 = vadd.f32 %v1927, 1e-05
  %v1992 = vadd.f32 %v1928, 1e-05
  %v1993 = vadd.f32 %v1929, 1e-05
  %v1994 = vadd.f32 %v1930, 1e-05
  %v1995 = vadd.f32 %v1931, 1e-05
  %v1996 = vadd.f32 %v1932, 1e-05
  %v1997 = vadd.f32 %v1933, 1e-05
  %v1998 = vadd.f32 %v1934, 1e-05
  %v1999 = vadd.f32 %v1935, 1e-05
  %v2000 = vadd.f32 %v1936, 1e-05
  %v2001 = vadd.f32 %v1937, 1e-05
  %v2002 = vadd.f32 %v1938, 1e-05
  %v2003 = vadd.f32 %v1939, 1e-05
  %v2004 = vadd.f32 %v1940, 1e-05
  %v2005 = vadd.f32 %v1941, 1e-05
  %v2006 = vadd.f32 %v1942, 1e-05
  %v2007 = vadd.f32 %v1943, 1e-05
  %v2008 = vadd.f32 %v1944, 1e-05
  %v2009 = vadd.f32 %v1945, 1e-05
  %v2010 = vadd.f32 %v1946, 1e-05
  %v2011 = vrsqrt.pop %v1979
  %v2012 = vrsqrt.pop %v1980
  %v2013 = vrsqrt.pop %v1981
  %v2014 = vrsqrt.pop %v1982
  %v2015 = vrsqrt.pop %v1983
  %v2016 = vrsqrt.pop %v1984
  %v2017 = vrsqrt.pop %v1985
  %v2018 = vrsqrt.pop %v1986
  %v2019 = vrsqrt.pop %v1987
  %v2020 = vrsqrt.pop %v1988
  %v2021 = vrsqrt.pop %v1989
  %v2022 = vrsqrt.pop %v1990
  %v2023 = vrsqrt.pop %v1991
  %v2024 = vrsqrt.pop %v1992
  %v2025 = vrsqrt.pop %v1993
  %v2026 = vrsqrt.pop %v1994
  %v2027 = vrsqrt.pop %v1995
  %v2028 = vrsqrt.pop %v1996
  %v2029 = vrsqrt.pop %v1997
  %v2030 = vrsqrt.pop %v1998
  %v2031 = vrsqrt.pop %v1999
  %v2032 = vrsqrt.pop %v2000
  %v2033 = vrsqrt.pop %v2001
  %v2034 = vrsqrt.pop %v2002
  %v2035 = vrsqrt.pop %v2003
  %v2036 = vrsqrt.pop %v2004
  %v2037 = vrsqrt.pop %v2005
  %v2038 = vrsqrt.pop %v2006
  %v2039 = vrsqrt.pop %v2007
  %v2040 = vrsqrt.pop %v2008
  %v2041 = vrsqrt.pop %v2009
  %v2042 = vrsqrt.pop %v2010
  %v2043 = vmul.f32 %v1947, %v2011
  %v2044 = vmul.f32 %v1948, %v2012
  %v2045 = vmul.f32 %v1949, %v2013
  %v2046 = vmul.f32 %v1950, %v2014
  %v2047 = vmul.f32 %v1951, %v2015
  %v2048 = vmul.f32 %v1952, %v2016
  %v2049 = vmul.f32 %v1953, %v2017
  %v2050 = vmul.f32 %v1954, %v2018
  %v2051 = vmul.f32 %v1955, %v2019
  %v2052 = vmul.f32 %v1956, %v2020
  %v2053 = vmul.f32 %v1957, %v2021
  %v2054 = vmul.f32 %v1958, %v2022
  %v2055 = vmul.f32 %v1959, %v2023
  %v2056 = vmul.f32 %v1960, %v2024
  %v2057 = vmul.f32 %v1961, %v2025
  %v2058 = vmul.f32 %v1962, %v2026
  %v2059 = vmul.f32 %v1963, %v2027
  %v2060 = vmul.f32 %v1964, %v2028
  %v2061 = vmul.f32 %v1965, %v2029
  %v2062 = vmul.f32 %v1966, %v2030
  %v2063 = vmul.f32 %v1967, %v2031
  %v2064 = vmul.f32 %v1968, %v2032
  %v2065 = vmul.f32 %v1969, %v2033
  %v2066 = vmul.f32 %v1970, %v2034
  %v2067 = vmul.f32 %v1971, %v2035
  %v2068 = vmul.f32 %v1972, %v2036
  %v2069 = vmul.f32 %v1973, %v2037
  %v2070 = vmul.f32 %v1974, %v2038
  %v2071 = vmul.f32 %v1975, %v2039
  %v2072 = vmul.f32 %v1976, %v2040
  %v2073 = vmul.f32 %v1977, %v2041
  %v2074 = vmul.f32 %v1978, %v2042
  %v2075 = vld [vmem:[%s7] sm:$0x1]
  %v2077 = vlaneseq
  %v2078 = vshrl.u32 %v2077, 7
  %v2079 = vsub.s32 0, %v2078
  %v2080 = vrot.slane %v2075, %v2079
  %v2082 = vmul.f32 %v2043, %v2080
  %v2083 = vmul.f32 %v2044, %v2080
  %v2084 = vmul.f32 %v2045, %v2080
  %v2085 = vmul.f32 %v2046, %v2080
  %v2086 = vmul.f32 %v2047, %v2080
  %v2087 = vmul.f32 %v2048, %v2080
  %v2088 = vmul.f32 %v2049, %v2080
  %v2089 = vmul.f32 %v2050, %v2080
  %v2090 = vmul.f32 %v2051, %v2080
  %v2091 = vmul.f32 %v2052, %v2080
  %v2092 = vmul.f32 %v2053, %v2080
  %v2093 = vmul.f32 %v2054, %v2080
  %v2094 = vmul.f32 %v2055, %v2080
  %v2095 = vmul.f32 %v2056, %v2080
  %v2096 = vmul.f32 %v2057, %v2080
  %v2097 = vmul.f32 %v2058, %v2080
  %v2098 = vmul.f32 %v2059, %v2080
  %v2099 = vmul.f32 %v2060, %v2080
  %v2100 = vmul.f32 %v2061, %v2080
  %v2101 = vmul.f32 %v2062, %v2080
  %v2102 = vmul.f32 %v2063, %v2080
  %v2103 = vmul.f32 %v2064, %v2080
  %v2104 = vmul.f32 %v2065, %v2080
  %v2105 = vmul.f32 %v2066, %v2080
  %v2106 = vmul.f32 %v2067, %v2080
  %v2107 = vmul.f32 %v2068, %v2080
  %v2108 = vmul.f32 %v2069, %v2080
  %v2109 = vmul.f32 %v2070, %v2080
  %v2110 = vmul.f32 %v2071, %v2080
  %v2111 = vmul.f32 %v2072, %v2080
  %v2112 = vmul.f32 %v2073, %v2080
  %v2113 = vmul.f32 %v2074, %v2080
  %v2114 = vld [vmem:[%s8] sm:$0x1]
  %v2116 = vlaneseq
  %v2117 = vshrl.u32 %v2116, 7
  %v2118 = vsub.s32 0, %v2117
  %v2119 = vrot.slane %v2114, %v2118
  %v2121 = vadd.f32 %v2082, %v2119
  %v2122 = vadd.f32 %v2083, %v2119
  %v2123 = vadd.f32 %v2084, %v2119
  %v2124 = vadd.f32 %v2085, %v2119
  %v2125 = vadd.f32 %v2086, %v2119
  %v2126 = vadd.f32 %v2087, %v2119
  %v2127 = vadd.f32 %v2088, %v2119
  %v2128 = vadd.f32 %v2089, %v2119
  %v2129 = vadd.f32 %v2090, %v2119
  %v2130 = vadd.f32 %v2091, %v2119
  %v2131 = vadd.f32 %v2092, %v2119
  %v2132 = vadd.f32 %v2093, %v2119
  %v2133 = vadd.f32 %v2094, %v2119
  %v2134 = vadd.f32 %v2095, %v2119
  %v2135 = vadd.f32 %v2096, %v2119
  %v2136 = vadd.f32 %v2097, %v2119
  %v2137 = vadd.f32 %v2098, %v2119
  %v2138 = vadd.f32 %v2099, %v2119
  %v2139 = vadd.f32 %v2100, %v2119
  %v2140 = vadd.f32 %v2101, %v2119
  %v2141 = vadd.f32 %v2102, %v2119
  %v2142 = vadd.f32 %v2103, %v2119
  %v2143 = vadd.f32 %v2104, %v2119
  %v2144 = vadd.f32 %v2105, %v2119
  %v2145 = vadd.f32 %v2106, %v2119
  %v2146 = vadd.f32 %v2107, %v2119
  %v2147 = vadd.f32 %v2108, %v2119
  %v2148 = vadd.f32 %v2109, %v2119
  %v2149 = vadd.f32 %v2110, %v2119
  %v2150 = vadd.f32 %v2111, %v2119
  %v2151 = vadd.f32 %v2112, %v2119
  %v2152 = vadd.f32 %v2113, %v2119
  %v2153 = vpack.c.bf16 %v2122, %v2121
  %v2154 = vpack.c.bf16 %v2124, %v2123
  %v2155 = vpack.c.bf16 %v2126, %v2125
  %v2156 = vpack.c.bf16 %v2128, %v2127
  %v2157 = vpack.c.bf16 %v2130, %v2129
  %v2158 = vpack.c.bf16 %v2132, %v2131
  %v2159 = vpack.c.bf16 %v2134, %v2133
  %v2160 = vpack.c.bf16 %v2136, %v2135
  %v2161 = vpack.c.bf16 %v2138, %v2137
  %v2162 = vpack.c.bf16 %v2140, %v2139
  %v2163 = vpack.c.bf16 %v2142, %v2141
  %v2164 = vpack.c.bf16 %v2144, %v2143
  %v2165 = vpack.c.bf16 %v2146, %v2145
  %v2166 = vpack.c.bf16 %v2148, %v2147
  %v2167 = vpack.c.bf16 %v2150, %v2149
  %v2168 = vpack.c.bf16 %v2152, %v2151
  %v2169 = vld [vmem:[%s9] sm:$0xf]
  %v2170 = vld [vmem:[%s9 + $0x4] sm:$0xf]
  %v2171 = vld [vmem:[%s9 + $0x8] sm:$0xf]
  %v2172 = vld [vmem:[%s9 + $0xc] sm:$0xf]
  %v2173 = vld [vmem:[%s9 + $0x10] sm:$0xf]
  %v2174 = vld [vmem:[%s9 + $0x14] sm:$0xf]
  %v2175 = vld [vmem:[%s9 + $0x18] sm:$0xf]
  %v2176 = vld [vmem:[%s9 + $0x1c] sm:$0xf]
  %v2177 = vld [vmem:[%s9 + $0x20] sm:$0xf]
  %v2178 = vld [vmem:[%s9 + $0x24] sm:$0xf]
  %v2179 = vld [vmem:[%s9 + $0x28] sm:$0xf]
  %v2180 = vld [vmem:[%s9 + $0x2c] sm:$0xf]
  %v2181 = vld [vmem:[%s9 + $0x30] sm:$0xf]
  %v2182 = vld [vmem:[%s9 + $0x34] sm:$0xf]
  %v2183 = vld [vmem:[%s9 + $0x38] sm:$0xf]
  %v2184 = vld [vmem:[%s9 + $0x3c] sm:$0xf]
  %v2185 = vld [vmem:[%s10] sm:$0xff]
  %v2186 = vld [vmem:[%s10 + $0x8] sm:$0xff]
  %v2187 = vld [vmem:[%s10 + $0x10] sm:$0xff]
  %v2188 = vld [vmem:[%s10 + $0x18] sm:$0xff]
  %v2189 = vld [vmem:[%s10 + $0x20] sm:$0xff]
  %v2190 = vld [vmem:[%s10 + $0x28] sm:$0xff]
  %v2191 = vld [vmem:[%s10 + $0x30] sm:$0xff]
  %v2192 = vld [vmem:[%s10 + $0x38] sm:$0xff]
  %v2193 = vld [vmem:[%s10 + $0x40] sm:$0xff]
  %v2194 = vld [vmem:[%s10 + $0x48] sm:$0xff]
  %v2195 = vld [vmem:[%s10 + $0x50] sm:$0xff]
  %v2196 = vld [vmem:[%s10 + $0x58] sm:$0xff]
  %v2197 = vld [vmem:[%s10 + $0x60] sm:$0xff]
  %v2198 = vld [vmem:[%s10 + $0x68] sm:$0xff]
  %v2199 = vld [vmem:[%s10 + $0x70] sm:$0xff]
  %v2200 = vld [vmem:[%s10 + $0x78] sm:$0xff]
  %2202 = vset.pattern.permute.xlu0 0
  %2203 = vperm.xlu0 %2202, %v2185
  %v2204 = vpop.permute.xlu0 %2203
  %2207 = vset.pattern.permute.xlu0 0
  %2208 = vperm.xlu0 %2207, %v2186
  %v2209 = vpop.permute.xlu0 %2208
  %2212 = vset.pattern.permute.xlu0 0
  %2213 = vperm.xlu0 %2212, %v2187
  %v2214 = vpop.permute.xlu0 %2213
  %2217 = vset.pattern.permute.xlu0 0
  %2218 = vperm.xlu0 %2217, %v2188
  %v2219 = vpop.permute.xlu0 %2218
  %2222 = vset.pattern.permute.xlu0 0
  %2223 = vperm.xlu0 %2222, %v2189
  %v2224 = vpop.permute.xlu0 %2223
  %2227 = vset.pattern.permute.xlu0 0
  %2228 = vperm.xlu0 %2227, %v2190
  %v2229 = vpop.permute.xlu0 %2228
  %2232 = vset.pattern.permute.xlu0 0
  %2233 = vperm.xlu0 %2232, %v2191
  %v2234 = vpop.permute.xlu0 %2233
  %2237 = vset.pattern.permute.xlu0 0
  %2238 = vperm.xlu0 %2237, %v2192
  %v2239 = vpop.permute.xlu0 %2238
  %2242 = vset.pattern.permute.xlu0 0
  %2243 = vperm.xlu0 %2242, %v2193
  %v2244 = vpop.permute.xlu0 %2243
  %2247 = vset.pattern.permute.xlu0 0
  %2248 = vperm.xlu0 %2247, %v2194
  %v2249 = vpop.permute.xlu0 %2248
  %2252 = vset.pattern.permute.xlu0 0
  %2253 = vperm.xlu0 %2252, %v2195
  %v2254 = vpop.permute.xlu0 %2253
  %2257 = vset.pattern.permute.xlu0 0
  %2258 = vperm.xlu0 %2257, %v2196
  %v2259 = vpop.permute.xlu0 %2258
  %2262 = vset.pattern.permute.xlu0 0
  %2263 = vperm.xlu0 %2262, %v2197
  %v2264 = vpop.permute.xlu0 %2263
  %2267 = vset.pattern.permute.xlu0 0
  %2268 = vperm.xlu0 %2267, %v2198
  %v2269 = vpop.permute.xlu0 %2268
  %2272 = vset.pattern.permute.xlu0 0
  %2273 = vperm.xlu0 %2272, %v2199
  %v2274 = vpop.permute.xlu0 %2273
  %2277 = vset.pattern.permute.xlu0 0
  %2278 = vperm.xlu0 %2277, %v2200
  %v2279 = vpop.permute.xlu0 %2278
  %v2297 = vunpack.c.l.b16 %v2169
  %v2298 = vunpack.c.l.b16 %v2170
  %v2299 = vunpack.c.l.b16 %v2171
  %v2300 = vunpack.c.l.b16 %v2172
  %v2301 = vunpack.c.l.b16 %v2173
  %v2302 = vunpack.c.l.b16 %v2174
  %v2303 = vunpack.c.l.b16 %v2175
  %v2304 = vunpack.c.l.b16 %v2176
  %v2305 = vunpack.c.l.b16 %v2177
  %v2306 = vunpack.c.l.b16 %v2178
  %v2307 = vunpack.c.l.b16 %v2179
  %v2308 = vunpack.c.l.b16 %v2180
  %v2309 = vunpack.c.l.b16 %v2181
  %v2310 = vunpack.c.l.b16 %v2182
  %v2311 = vunpack.c.l.b16 %v2183
  %v2312 = vunpack.c.l.b16 %v2184
  %v2313 = vpack.c.b16 %v2298, %v2297
  %v2314 = vpack.c.b16 %v2300, %v2299
  %v2315 = vpack.c.b16 %v2302, %v2301
  %v2316 = vpack.c.b16 %v2304, %v2303
  %v2317 = vpack.c.b16 %v2306, %v2305
  %v2318 = vpack.c.b16 %v2308, %v2307
  %v2319 = vpack.c.b16 %v2310, %v2309
  %v2320 = vpack.c.b16 %v2312, %v2311
  %2329 = vmatprep.subr.bf16.mxu0 0
  %2330 = vmatpush1.bf16.msra.mxu0 %v2160
  %2331 = vmatprep.subr.bf16.mxu0 0
  %2332 = vmatpush1.bf16.msra.mxu0 %v2159
  %2333 = vmatprep.subr.bf16.mxu0 0
  %2334 = vmatpush1.bf16.msra.mxu0 %v2158
  %2335 = vmatprep.subr.bf16.mxu0 0
  %2336 = vmatpush1.bf16.msra.mxu0 %v2157
  %2337 = vmatprep.subr.bf16.mxu0 0
  %2338 = vmatpush1.bf16.msra.mxu0 %v2156
  %2339 = vmatprep.subr.bf16.mxu0 0
  %2340 = vmatpush1.bf16.msra.mxu0 %v2155
  %2341 = vmatprep.subr.bf16.mxu0 0
  %2342 = vmatpush1.bf16.msra.mxu0 %v2154
  %2343 = vmatprep.subr.bf16.mxu0 0
  %2344 = vmatpush1.bf16.msra.mxu0 %v2153
  %2345 = vmatprep.subr.bf16.mxu0 0
  %2346 = vmatpush2.bf16.msra.mxu0 0
  %2347 = vmatprep.subr.bf16.mxu0 0
  %2348 = vmatpush2.bf16.msra.mxu0 0
  %2349 = vmatprep.subr.bf16.mxu0 0
  %2350 = vmatpush2.bf16.msra.mxu0 0
  %2351 = vmatprep.subr.bf16.mxu0 0
  %2352 = vmatpush2.bf16.msra.mxu0 0
  %2353 = vmatprep.subr.bf16.mxu0 0
  %2354 = vmatpush2.bf16.msra.mxu0 0
  %2355 = vmatprep.subr.bf16.mxu0 0
  %2356 = vmatpush2.bf16.msra.mxu0 0
  %2357 = vmatprep.subr.bf16.mxu0 0
  %2358 = vmatpush2.bf16.msra.mxu0 0
  %2359 = vmatprep.subr.bf16.mxu0 0
  %2360 = vmatpush2.bf16.msra.mxu0 0
  %2361 = vmatprep.mubr.bf16.mxu0 0
  %2362 = vmatmul.mubr.bf16.gmra.mxu0 %v2313
  %v2363 = vpop.f32.mrf.mxu0
  %v2364 = vadd.f32 %v2204, %v2363
  %v2365 = vpop.f32.mrf.mxu0
  %v2366 = vpop.f32.mrf.mxu0
  %v2367 = vadd.f32 %v2209, %v2366
  %v2368 = vpop.f32.mrf.mxu0
  %2369 = vmatprep.mubr.bf16.mxu0 0
  %2370 = vmatmul.mubr.bf16.gmra.mxu0 %v2314
  %v2371 = vpop.f32.mrf.mxu0
  %v2372 = vadd.f32 %v2214, %v2371
  %v2373 = vpop.f32.mrf.mxu0
  %v2374 = vpop.f32.mrf.mxu0
  %v2375 = vadd.f32 %v2219, %v2374
  %v2376 = vpop.f32.mrf.mxu0
  %2377 = vmatprep.mubr.bf16.mxu0 0
  %2378 = vmatmul.mubr.bf16.gmra.mxu0 %v2315
  %v2379 = vpop.f32.mrf.mxu0
  %v2380 = vadd.f32 %v2224, %v2379
  %v2381 = vpop.f32.mrf.mxu0
  %v2382 = vpop.f32.mrf.mxu0
  %v2383 = vadd.f32 %v2229, %v2382
  %v2384 = vpop.f32.mrf.mxu0
  %2385 = vmatprep.mubr.bf16.mxu0 0
  %2386 = vmatmul.mubr.bf16.gmra.mxu0 %v2316
  %v2387 = vpop.f32.mrf.mxu0
  %v2388 = vadd.f32 %v2234, %v2387
  %v2389 = vpop.f32.mrf.mxu0
  %v2390 = vpop.f32.mrf.mxu0
  %v2391 = vadd.f32 %v2239, %v2390
  %v2392 = vpop.f32.mrf.mxu0
  %2393 = vmatprep.mubr.bf16.mxu0 0
  %2394 = vmatmul.mubr.bf16.gmra.mxu0 %v2317
  %v2395 = vpop.f32.mrf.mxu0
  %v2396 = vadd.f32 %v2244, %v2395
  %v2397 = vpop.f32.mrf.mxu0
  %v2398 = vpop.f32.mrf.mxu0
  %v2399 = vadd.f32 %v2249, %v2398
  %v2400 = vpop.f32.mrf.mxu0
  %2401 = vmatprep.mubr.bf16.mxu0 0
  %2402 = vmatmul.mubr.bf16.gmra.mxu0 %v2318
  %v2403 = vpop.f32.mrf.mxu0
  %v2404 = vadd.f32 %v2254, %v2403
  %v2405 = vpop.f32.mrf.mxu0
  %v2406 = vpop.f32.mrf.mxu0
  %v2407 = vadd.f32 %v2259, %v2406
  %v2408 = vpop.f32.mrf.mxu0
  %2409 = vmatprep.mubr.bf16.mxu0 0
  %2410 = vmatmul.mubr.bf16.gmra.mxu0 %v2319
  %v2411 = vpop.f32.mrf.mxu0
  %v2412 = vadd.f32 %v2264, %v2411
  %v2413 = vpop.f32.mrf.mxu0
  %v2414 = vpop.f32.mrf.mxu0
  %v2415 = vadd.f32 %v2269, %v2414
  %v2416 = vpop.f32.mrf.mxu0
  %2417 = vmatprep.mubr.bf16.mxu0 0
  %2418 = vmatmul.mubr.bf16.gmra.mxu0 %v2320
  %v2419 = vpop.f32.mrf.mxu0
  %v2420 = vadd.f32 %v2274, %v2419
  %v2421 = vpop.f32.mrf.mxu0
  %v2422 = vpop.f32.mrf.mxu0
  %v2423 = vadd.f32 %v2279, %v2422
  %v2424 = vpop.f32.mrf.mxu0
  %2425 = vdwg.mxu0
  %v2426 = vtanh.pop %v2364
  %v2427 = vtanh.pop %v2367
  %v2428 = vtanh.pop %v2372
  %v2429 = vtanh.pop %v2375
  %v2430 = vtanh.pop %v2380
  %v2431 = vtanh.pop %v2383
  %v2432 = vtanh.pop %v2388
  %v2433 = vtanh.pop %v2391
  %v2434 = vtanh.pop %v2396
  %v2435 = vtanh.pop %v2399
  %v2436 = vtanh.pop %v2404
  %v2437 = vtanh.pop %v2407
  %v2438 = vtanh.pop %v2412
  %v2439 = vtanh.pop %v2415
  %v2440 = vtanh.pop %v2420
  %v2441 = vtanh.pop %v2423
  %2442 = vmatprep.subr.bf16.mxu0 0
  %2443 = vmatpush1.bf16.msra.mxu0 %v2168
  %2444 = vmatprep.subr.bf16.mxu0 0
  %2445 = vmatpush1.bf16.msra.mxu0 %v2167
  %2446 = vmatprep.subr.bf16.mxu0 0
  %2447 = vmatpush1.bf16.msra.mxu0 %v2166
  %2448 = vmatprep.subr.bf16.mxu0 0
  %2449 = vmatpush1.bf16.msra.mxu0 %v2165
  %2450 = vmatprep.subr.bf16.mxu0 0
  %2451 = vmatpush1.bf16.msra.mxu0 %v2164
  %2452 = vmatprep.subr.bf16.mxu0 0
  %2453 = vmatpush1.bf16.msra.mxu0 %v2163
  %2454 = vmatprep.subr.bf16.mxu0 0
  %2455 = vmatpush1.bf16.msra.mxu0 %v2162
  %2456 = vmatprep.subr.bf16.mxu0 0
  %2457 = vmatpush1.bf16.msra.mxu0 %v2161
  %2458 = vmatprep.subr.bf16.mxu0 0
  %2459 = vmatpush2.bf16.msra.mxu0 0
  %2460 = vmatprep.subr.bf16.mxu0 0
  %2461 = vmatpush2.bf16.msra.mxu0 0
  %2462 = vmatprep.subr.bf16.mxu0 0
  %2463 = vmatpush2.bf16.msra.mxu0 0
  %2464 = vmatprep.subr.bf16.mxu0 0
  %2465 = vmatpush2.bf16.msra.mxu0 0
  %2466 = vmatprep.subr.bf16.mxu0 0
  %2467 = vmatpush2.bf16.msra.mxu0 0
  %2468 = vmatprep.subr.bf16.mxu0 0
  %2469 = vmatpush2.bf16.msra.mxu0 0
  %2470 = vmatprep.subr.bf16.mxu0 0
  %2471 = vmatpush2.bf16.msra.mxu0 0
  %2472 = vmatprep.subr.bf16.mxu0 0
  %2473 = vmatpush2.bf16.msra.mxu0 0
  %2474 = vmatprep.mubr.bf16.mxu0 0
  %2475 = vmatmul.mubr.bf16.gmra.mxu0 %v2313
  %v2476 = vpop.f32.mrf.mxu0
  %v2477 = vadd.f32 %v2204, %v2476
  %v2478 = vpop.f32.mrf.mxu0
  %v2479 = vpop.f32.mrf.mxu0
  %v2480 = vadd.f32 %v2209, %v2479
  %v2481 = vpop.f32.mrf.mxu0
  %2482 = vmatprep.mubr.bf16.mxu0 0
  %2483 = vmatmul.mubr.bf16.gmra.mxu0 %v2314
  %v2484 = vpop.f32.mrf.mxu0
  %v2485 = vadd.f32 %v2214, %v2484
  %v2486 = vpop.f32.mrf.mxu0
  %v2487 = vpop.f32.mrf.mxu0
  %v2488 = vadd.f32 %v2219, %v2487
  %v2489 = vpop.f32.mrf.mxu0
  %2490 = vmatprep.mubr.bf16.mxu0 0
  %2491 = vmatmul.mubr.bf16.gmra.mxu0 %v2315
  %v2492 = vpop.f32.mrf.mxu0
  %v2493 = vadd.f32 %v2224, %v2492
  %v2494 = vpop.f32.mrf.mxu0
  %v2495 = vpop.f32.mrf.mxu0
  %v2496 = vadd.f32 %v2229, %v2495
  %v2497 = vpop.f32.mrf.mxu0
  %2498 = vmatprep.mubr.bf16.mxu0 0
  %2499 = vmatmul.mubr.bf16.gmra.mxu0 %v2316
  %v2500 = vpop.f32.mrf.mxu0
  %v2501 = vadd.f32 %v2234, %v2500
  %v2502 = vpop.f32.mrf.mxu0
  %v2503 = vpop.f32.mrf.mxu0
  %v2504 = vadd.f32 %v2239, %v2503
  %v2505 = vpop.f32.mrf.mxu0
  %2506 = vmatprep.mubr.bf16.mxu0 0
  %2507 = vmatmul.mubr.bf16.gmra.mxu0 %v2317
  %v2508 = vpop.f32.mrf.mxu0
  %v2509 = vadd.f32 %v2244, %v2508
  %v2510 = vpop.f32.mrf.mxu0
  %v2511 = vpop.f32.mrf.mxu0
  %v2512 = vadd.f32 %v2249, %v2511
  %v2513 = vpop.f32.mrf.mxu0
  %2514 = vmatprep.mubr.bf16.mxu0 0
  %2515 = vmatmul.mubr.bf16.gmra.mxu0 %v2318
  %v2516 = vpop.f32.mrf.mxu0
  %v2517 = vadd.f32 %v2254, %v2516
  %v2518 = vpop.f32.mrf.mxu0
  %v2519 = vpop.f32.mrf.mxu0
  %v2520 = vadd.f32 %v2259, %v2519
  %v2521 = vpop.f32.mrf.mxu0
  %2522 = vmatprep.mubr.bf16.mxu0 0
  %2523 = vmatmul.mubr.bf16.gmra.mxu0 %v2319
  %v2524 = vpop.f32.mrf.mxu0
  %v2525 = vadd.f32 %v2264, %v2524
  %v2526 = vpop.f32.mrf.mxu0
  %v2527 = vpop.f32.mrf.mxu0
  %v2528 = vadd.f32 %v2269, %v2527
  %v2529 = vpop.f32.mrf.mxu0
  %2530 = vmatprep.mubr.bf16.mxu0 0
  %2531 = vmatmul.mubr.bf16.gmra.mxu0 %v2320
  %v2532 = vpop.f32.mrf.mxu0
  %v2533 = vadd.f32 %v2274, %v2532
  %v2534 = vpop.f32.mrf.mxu0
  %v2535 = vpop.f32.mrf.mxu0
  %v2536 = vadd.f32 %v2279, %v2535
  %v2537 = vpop.f32.mrf.mxu0
  %2538 = vdwg.mxu0
  %v2539 = vtanh.pop %v2477
  %v2540 = vtanh.pop %v2480
  %v2541 = vtanh.pop %v2485
  %v2542 = vtanh.pop %v2488
  %v2543 = vtanh.pop %v2493
  %v2544 = vtanh.pop %v2496
  %v2545 = vtanh.pop %v2501
  %v2546 = vtanh.pop %v2504
  %v2547 = vtanh.pop %v2509
  %v2548 = vtanh.pop %v2512
  %v2549 = vtanh.pop %v2517
  %v2550 = vtanh.pop %v2520
  %v2551 = vtanh.pop %v2525
  %v2552 = vtanh.pop %v2528
  %v2553 = vtanh.pop %v2533
  %v2554 = vtanh.pop %v2536
  %v2555 = vmul.f32 %v2426, %v1107
  %v2556 = vmul.f32 %v2427, %v1108
  %v2557 = vmul.f32 %v2428, %v1109
  %v2558 = vmul.f32 %v2429, %v1110
  %v2559 = vmul.f32 %v2430, %v1111
  %v2560 = vmul.f32 %v2431, %v1112
  %v2561 = vmul.f32 %v2432, %v1113
  %v2562 = vmul.f32 %v2433, %v1114
  %v2563 = vmul.f32 %v2434, %v1115
  %v2564 = vmul.f32 %v2435, %v1116
  %v2565 = vmul.f32 %v2436, %v1117
  %v2566 = vmul.f32 %v2437, %v1118
  %v2567 = vmul.f32 %v2438, %v1119
  %v2568 = vmul.f32 %v2439, %v1120
  %v2569 = vmul.f32 %v2440, %v1121
  %v2570 = vmul.f32 %v2441, %v1122
  %v2571 = vmul.f32 %v2539, %v1123
  %v2572 = vmul.f32 %v2540, %v1124
  %v2573 = vmul.f32 %v2541, %v1125
  %v2574 = vmul.f32 %v2542, %v1126
  %v2575 = vmul.f32 %v2543, %v1127
  %v2576 = vmul.f32 %v2544, %v1128
  %v2577 = vmul.f32 %v2545, %v1129
  %v2578 = vmul.f32 %v2546, %v1130
  %v2579 = vmul.f32 %v2547, %v1131
  %v2580 = vmul.f32 %v2548, %v1132
  %v2581 = vmul.f32 %v2549, %v1133
  %v2582 = vmul.f32 %v2550, %v1134
  %v2583 = vmul.f32 %v2551, %v1135
  %v2584 = vmul.f32 %v2552, %v1136
  %v2585 = vmul.f32 %v2553, %v1137
  %v2586 = vmul.f32 %v2554, %v1138
  %v2587 = vpack.c.bf16 %v2556, %v2555
  %v2588 = vpack.c.bf16 %v2558, %v2557
  %v2589 = vpack.c.bf16 %v2560, %v2559
  %v2590 = vpack.c.bf16 %v2562, %v2561
  %v2591 = vpack.c.bf16 %v2564, %v2563
  %v2592 = vpack.c.bf16 %v2566, %v2565
  %v2593 = vpack.c.bf16 %v2568, %v2567
  %v2594 = vpack.c.bf16 %v2570, %v2569
  %v2595 = vpack.c.bf16 %v2572, %v2571
  %v2596 = vpack.c.bf16 %v2574, %v2573
  %v2597 = vpack.c.bf16 %v2576, %v2575
  %v2598 = vpack.c.bf16 %v2578, %v2577
  %v2599 = vpack.c.bf16 %v2580, %v2579
  %v2600 = vpack.c.bf16 %v2582, %v2581
  %v2601 = vpack.c.bf16 %v2584, %v2583
  %v2602 = vpack.c.bf16 %v2586, %v2585
  %v2603 = vld [vmem:[%s11] sm:$0xf]
  %v2604 = vld [vmem:[%s11 + $0x4] sm:$0xf]
  %v2605 = vld [vmem:[%s11 + $0x8] sm:$0xf]
  %v2606 = vld [vmem:[%s11 + $0xc] sm:$0xf]
  %v2607 = vld [vmem:[%s11 + $0x10] sm:$0xf]
  %v2608 = vld [vmem:[%s11 + $0x14] sm:$0xf]
  %v2609 = vld [vmem:[%s11 + $0x18] sm:$0xf]
  %v2610 = vld [vmem:[%s11 + $0x1c] sm:$0xf]
  %v2611 = vld [vmem:[%s11 + $0x20] sm:$0xf]
  %v2612 = vld [vmem:[%s11 + $0x24] sm:$0xf]
  %v2613 = vld [vmem:[%s11 + $0x28] sm:$0xf]
  %v2614 = vld [vmem:[%s11 + $0x2c] sm:$0xf]
  %v2615 = vld [vmem:[%s11 + $0x30] sm:$0xf]
  %v2616 = vld [vmem:[%s11 + $0x34] sm:$0xf]
  %v2617 = vld [vmem:[%s11 + $0x38] sm:$0xf]
  %v2618 = vld [vmem:[%s11 + $0x3c] sm:$0xf]
  %v2619 = vld [vmem:[%s12] sm:$0x1]
  %v2621 = vlaneseq
  %v2622 = vshrl.u32 %v2621, 7
  %v2623 = vsub.s32 0, %v2622
  %v2624 = vrot.slane %v2619, %v2623
  %v2642 = vunpack.c.l.b16 %v2603
  %v2643 = vunpack.c.l.b16 %v2604
  %v2644 = vunpack.c.l.b16 %v2605
  %v2645 = vunpack.c.l.b16 %v2606
  %v2646 = vunpack.c.l.b16 %v2607
  %v2647 = vunpack.c.l.b16 %v2608
  %v2648 = vunpack.c.l.b16 %v2609
  %v2649 = vunpack.c.l.b16 %v2610
  %v2650 = vunpack.c.l.b16 %v2611
  %v2651 = vunpack.c.l.b16 %v2612
  %v2652 = vunpack.c.l.b16 %v2613
  %v2653 = vunpack.c.l.b16 %v2614
  %v2654 = vunpack.c.l.b16 %v2615
  %v2655 = vunpack.c.l.b16 %v2616
  %v2656 = vunpack.c.l.b16 %v2617
  %v2657 = vunpack.c.l.b16 %v2618
  %v2658 = vpack.c.b16 %v2643, %v2642
  %v2659 = vpack.c.b16 %v2645, %v2644
  %v2660 = vpack.c.b16 %v2647, %v2646
  %v2661 = vpack.c.b16 %v2649, %v2648
  %v2662 = vpack.c.b16 %v2651, %v2650
  %v2663 = vpack.c.b16 %v2653, %v2652
  %v2664 = vpack.c.b16 %v2655, %v2654
  %v2665 = vpack.c.b16 %v2657, %v2656
  %2674 = vmatprep.subr.bf16.mxu0 0
  %2675 = vmatpush1.bf16.msra.mxu0 %v2665
  %2676 = vmatprep.subr.bf16.mxu0 0
  %2677 = vmatpush1.bf16.msra.mxu0 %v2664
  %2678 = vmatprep.subr.bf16.mxu0 0
  %2679 = vmatpush1.bf16.msra.mxu0 %v2663
  %2680 = vmatprep.subr.bf16.mxu0 0
  %2681 = vmatpush1.bf16.msra.mxu0 %v2662
  %2682 = vmatprep.subr.bf16.mxu0 0
  %2683 = vmatpush1.bf16.msra.mxu0 %v2661
  %2684 = vmatprep.subr.bf16.mxu0 0
  %2685 = vmatpush1.bf16.msra.mxu0 %v2660
  %2686 = vmatprep.subr.bf16.mxu0 0
  %2687 = vmatpush1.bf16.msra.mxu0 %v2659
  %2688 = vmatprep.subr.bf16.mxu0 0
  %2689 = vmatpush1.bf16.msra.mxu0 %v2658
  %2690 = vmatprep.subr.bf16.mxu0 0
  %2691 = vmatpush2.bf16.msra.mxu0 0
  %2692 = vmatprep.subr.bf16.mxu0 0
  %2693 = vmatpush2.bf16.msra.mxu0 0
  %2694 = vmatprep.subr.bf16.mxu0 0
  %2695 = vmatpush2.bf16.msra.mxu0 0
  %2696 = vmatprep.subr.bf16.mxu0 0
  %2697 = vmatpush2.bf16.msra.mxu0 0
  %2698 = vmatprep.subr.bf16.mxu0 0
  %2699 = vmatpush2.bf16.msra.mxu0 0
  %2700 = vmatprep.subr.bf16.mxu0 0
  %2701 = vmatpush2.bf16.msra.mxu0 0
  %2702 = vmatprep.subr.bf16.mxu0 0
  %2703 = vmatpush2.bf16.msra.mxu0 0
  %2704 = vmatprep.subr.bf16.mxu0 0
  %2705 = vmatpush2.bf16.msra.mxu0 0
  %2706 = vmatprep.mubr.bf16.mxu0 0
  %2707 = vmatmul.mubr.bf16.gmra.mxu0 %v2587
  %v2708 = vpop.f32.mrf.mxu0
  %v2709 = vadd.f32 %v2624, %v2708
  %v2710 = vpop.f32.mrf.mxu0
  %v2711 = vpop.f32.mrf.mxu0
  %v2712 = vadd.f32 %v2624, %v2711
  %v2713 = vpop.f32.mrf.mxu0
  %2714 = vmatprep.mubr.bf16.mxu0 0
  %2715 = vmatmul.mubr.bf16.gmra.mxu0 %v2588
  %v2716 = vpop.f32.mrf.mxu0
  %v2717 = vadd.f32 %v2624, %v2716
  %v2718 = vpop.f32.mrf.mxu0
  %v2719 = vpop.f32.mrf.mxu0
  %v2720 = vadd.f32 %v2624, %v2719
  %v2721 = vpop.f32.mrf.mxu0
  %2722 = vmatprep.mubr.bf16.mxu0 0
  %2723 = vmatmul.mubr.bf16.gmra.mxu0 %v2589
  %v2724 = vpop.f32.mrf.mxu0
  %v2725 = vadd.f32 %v2624, %v2724
  %v2726 = vpop.f32.mrf.mxu0
  %v2727 = vpop.f32.mrf.mxu0
  %v2728 = vadd.f32 %v2624, %v2727
  %v2729 = vpop.f32.mrf.mxu0
  %2730 = vmatprep.mubr.bf16.mxu0 0
  %2731 = vmatmul.mubr.bf16.gmra.mxu0 %v2590
  %v2732 = vpop.f32.mrf.mxu0
  %v2733 = vadd.f32 %v2624, %v2732
  %v2734 = vpop.f32.mrf.mxu0
  %v2735 = vpop.f32.mrf.mxu0
  %v2736 = vadd.f32 %v2624, %v2735
  %v2737 = vpop.f32.mrf.mxu0
  %2738 = vmatprep.mubr.bf16.mxu0 0
  %2739 = vmatmul.mubr.bf16.gmra.mxu0 %v2591
  %v2740 = vpop.f32.mrf.mxu0
  %v2741 = vadd.f32 %v2624, %v2740
  %v2742 = vpop.f32.mrf.mxu0
  %v2743 = vpop.f32.mrf.mxu0
  %v2744 = vadd.f32 %v2624, %v2743
  %v2745 = vpop.f32.mrf.mxu0
  %2746 = vmatprep.mubr.bf16.mxu0 0
  %2747 = vmatmul.mubr.bf16.gmra.mxu0 %v2592
  %v2748 = vpop.f32.mrf.mxu0
  %v2749 = vadd.f32 %v2624, %v2748
  %v2750 = vpop.f32.mrf.mxu0
  %v2751 = vpop.f32.mrf.mxu0
  %v2752 = vadd.f32 %v2624, %v2751
  %v2753 = vpop.f32.mrf.mxu0
  %2754 = vmatprep.mubr.bf16.mxu0 0
  %2755 = vmatmul.mubr.bf16.gmra.mxu0 %v2593
  %v2756 = vpop.f32.mrf.mxu0
  %v2757 = vadd.f32 %v2624, %v2756
  %v2758 = vpop.f32.mrf.mxu0
  %v2759 = vpop.f32.mrf.mxu0
  %v2760 = vadd.f32 %v2624, %v2759
  %v2761 = vpop.f32.mrf.mxu0
  %2762 = vmatprep.mubr.bf16.mxu0 0
  %2763 = vmatmul.mubr.bf16.gmra.mxu0 %v2594
  %v2764 = vpop.f32.mrf.mxu0
  %v2765 = vadd.f32 %v2624, %v2764
  %v2766 = vpop.f32.mrf.mxu0
  %v2767 = vpop.f32.mrf.mxu0
  %v2768 = vadd.f32 %v2624, %v2767
  %v2769 = vpop.f32.mrf.mxu0
  %2770 = vmatprep.mubr.bf16.mxu0 0
  %2771 = vmatmul.mubr.bf16.gmra.mxu0 %v2595
  %v2772 = vpop.f32.mrf.mxu0
  %v2773 = vadd.f32 %v2624, %v2772
  %v2774 = vpop.f32.mrf.mxu0
  %v2775 = vpop.f32.mrf.mxu0
  %v2776 = vadd.f32 %v2624, %v2775
  %v2777 = vpop.f32.mrf.mxu0
  %2778 = vmatprep.mubr.bf16.mxu0 0
  %2779 = vmatmul.mubr.bf16.gmra.mxu0 %v2596
  %v2780 = vpop.f32.mrf.mxu0
  %v2781 = vadd.f32 %v2624, %v2780
  %v2782 = vpop.f32.mrf.mxu0
  %v2783 = vpop.f32.mrf.mxu0
  %v2784 = vadd.f32 %v2624, %v2783
  %v2785 = vpop.f32.mrf.mxu0
  %2786 = vmatprep.mubr.bf16.mxu0 0
  %2787 = vmatmul.mubr.bf16.gmra.mxu0 %v2597
  %v2788 = vpop.f32.mrf.mxu0
  %v2789 = vadd.f32 %v2624, %v2788
  %v2790 = vpop.f32.mrf.mxu0
  %v2791 = vpop.f32.mrf.mxu0
  %v2792 = vadd.f32 %v2624, %v2791
  %v2793 = vpop.f32.mrf.mxu0
  %2794 = vmatprep.mubr.bf16.mxu0 0
  %2795 = vmatmul.mubr.bf16.gmra.mxu0 %v2598
  %v2796 = vpop.f32.mrf.mxu0
  %v2797 = vadd.f32 %v2624, %v2796
  %v2798 = vpop.f32.mrf.mxu0
  %v2799 = vpop.f32.mrf.mxu0
  %v2800 = vadd.f32 %v2624, %v2799
  %v2801 = vpop.f32.mrf.mxu0
  %2802 = vmatprep.mubr.bf16.mxu0 0
  %2803 = vmatmul.mubr.bf16.gmra.mxu0 %v2599
  %v2804 = vpop.f32.mrf.mxu0
  %v2805 = vadd.f32 %v2624, %v2804
  %v2806 = vpop.f32.mrf.mxu0
  %v2807 = vpop.f32.mrf.mxu0
  %v2808 = vadd.f32 %v2624, %v2807
  %v2809 = vpop.f32.mrf.mxu0
  %2810 = vmatprep.mubr.bf16.mxu0 0
  %2811 = vmatmul.mubr.bf16.gmra.mxu0 %v2600
  %v2812 = vpop.f32.mrf.mxu0
  %v2813 = vadd.f32 %v2624, %v2812
  %v2814 = vpop.f32.mrf.mxu0
  %v2815 = vpop.f32.mrf.mxu0
  %v2816 = vadd.f32 %v2624, %v2815
  %v2817 = vpop.f32.mrf.mxu0
  %2818 = vmatprep.mubr.bf16.mxu0 0
  %2819 = vmatmul.mubr.bf16.gmra.mxu0 %v2601
  %v2820 = vpop.f32.mrf.mxu0
  %v2821 = vadd.f32 %v2624, %v2820
  %v2822 = vpop.f32.mrf.mxu0
  %v2823 = vpop.f32.mrf.mxu0
  %v2824 = vadd.f32 %v2624, %v2823
  %v2825 = vpop.f32.mrf.mxu0
  %2826 = vmatprep.mubr.bf16.mxu0 0
  %2827 = vmatmul.mubr.bf16.gmra.mxu0 %v2602
  %v2828 = vpop.f32.mrf.mxu0
  %v2829 = vadd.f32 %v2624, %v2828
  %v2830 = vpop.f32.mrf.mxu0
  %v2831 = vpop.f32.mrf.mxu0
  %v2832 = vadd.f32 %v2624, %v2831
  %v2833 = vpop.f32.mrf.mxu0
  %2834 = vdwg.mxu0
  %v2835 = vadd.f32 %v77, %v2709
  %v2836 = vadd.f32 %v78, %v2712
  %v2837 = vadd.f32 %v79, %v2717
  %v2838 = vadd.f32 %v80, %v2720
  %v2839 = vadd.f32 %v81, %v2725
  %v2840 = vadd.f32 %v82, %v2728
  %v2841 = vadd.f32 %v83, %v2733
  %v2842 = vadd.f32 %v84, %v2736
  %v2843 = vadd.f32 %v85, %v2741
  %v2844 = vadd.f32 %v86, %v2744
  %v2845 = vadd.f32 %v87, %v2749
  %v2846 = vadd.f32 %v88, %v2752
  %v2847 = vadd.f32 %v89, %v2757
  %v2848 = vadd.f32 %v90, %v2760
  %v2849 = vadd.f32 %v91, %v2765
  %v2850 = vadd.f32 %v92, %v2768
  %v2851 = vadd.f32 %v93, %v2773
  %v2852 = vadd.f32 %v94, %v2776
  %v2853 = vadd.f32 %v95, %v2781
  %v2854 = vadd.f32 %v96, %v2784
  %v2855 = vadd.f32 %v97, %v2789
  %v2856 = vadd.f32 %v98, %v2792
  %v2857 = vadd.f32 %v99, %v2797
  %v2858 = vadd.f32 %v100, %v2800
  %v2859 = vadd.f32 %v101, %v2805
  %v2860 = vadd.f32 %v102, %v2808
  %v2861 = vadd.f32 %v103, %v2813
  %v2862 = vadd.f32 %v104, %v2816
  %v2863 = vadd.f32 %v105, %v2821
  %v2864 = vadd.f32 %v106, %v2824
  %v2865 = vadd.f32 %v107, %v2829
  %v2866 = vadd.f32 %v108, %v2832
  %v2867 = vmax.f32 %v2835, 0.0
  %v2868 = vmax.f32 %v2836, 0.0
  %v2869 = vmax.f32 %v2837, 0.0
  %v2870 = vmax.f32 %v2838, 0.0
  %v2871 = vmax.f32 %v2839, 0.0
  %v2872 = vmax.f32 %v2840, 0.0
  %v2873 = vmax.f32 %v2841, 0.0
  %v2874 = vmax.f32 %v2842, 0.0
  %v2875 = vmax.f32 %v2843, 0.0
  %v2876 = vmax.f32 %v2844, 0.0
  %v2877 = vmax.f32 %v2845, 0.0
  %v2878 = vmax.f32 %v2846, 0.0
  %v2879 = vmax.f32 %v2847, 0.0
  %v2880 = vmax.f32 %v2848, 0.0
  %v2881 = vmax.f32 %v2849, 0.0
  %v2882 = vmax.f32 %v2850, 0.0
  %v2883 = vmax.f32 %v2851, 0.0
  %v2884 = vmax.f32 %v2852, 0.0
  %v2885 = vmax.f32 %v2853, 0.0
  %v2886 = vmax.f32 %v2854, 0.0
  %v2887 = vmax.f32 %v2855, 0.0
  %v2888 = vmax.f32 %v2856, 0.0
  %v2889 = vmax.f32 %v2857, 0.0
  %v2890 = vmax.f32 %v2858, 0.0
  %v2891 = vmax.f32 %v2859, 0.0
  %v2892 = vmax.f32 %v2860, 0.0
  %v2893 = vmax.f32 %v2861, 0.0
  %v2894 = vmax.f32 %v2862, 0.0
  %v2895 = vmax.f32 %v2863, 0.0
  %v2896 = vmax.f32 %v2864, 0.0
  %v2897 = vmax.f32 %v2865, 0.0
  %v2898 = vmax.f32 %v2866, 0.0
  %v2899 = vpack.c.bf16 %v2868, %v2867
  %v2900 = vpack.c.bf16 %v2870, %v2869
  %v2901 = vpack.c.bf16 %v2872, %v2871
  %v2902 = vpack.c.bf16 %v2874, %v2873
  %v2903 = vpack.c.bf16 %v2876, %v2875
  %v2904 = vpack.c.bf16 %v2878, %v2877
  %v2905 = vpack.c.bf16 %v2880, %v2879
  %v2906 = vpack.c.bf16 %v2882, %v2881
  %v2907 = vpack.c.bf16 %v2884, %v2883
  %v2908 = vpack.c.bf16 %v2886, %v2885
  %v2909 = vpack.c.bf16 %v2888, %v2887
  %v2910 = vpack.c.bf16 %v2890, %v2889
  %v2911 = vpack.c.bf16 %v2892, %v2891
  %v2912 = vpack.c.bf16 %v2894, %v2893
  %v2913 = vpack.c.bf16 %v2896, %v2895
  %v2914 = vpack.c.bf16 %v2898, %v2897
  %v2931 = vunpack.c.l.b16 %v2899
  %v2932 = vunpack.c.h.b16 %v2899
  %v2933 = vunpack.c.l.b16 %v2900
  %v2934 = vunpack.c.h.b16 %v2900
  %v2935 = vunpack.c.l.b16 %v2901
  %v2936 = vunpack.c.h.b16 %v2901
  %v2937 = vunpack.c.l.b16 %v2902
  %v2938 = vunpack.c.h.b16 %v2902
  %v2939 = vunpack.c.l.b16 %v2903
  %v2940 = vunpack.c.h.b16 %v2903
  %v2941 = vunpack.c.l.b16 %v2904
  %v2942 = vunpack.c.h.b16 %v2904
  %v2943 = vunpack.c.l.b16 %v2905
  %v2944 = vunpack.c.h.b16 %v2905
  %v2945 = vunpack.c.l.b16 %v2906
  %v2946 = vunpack.c.h.b16 %v2906
  %v2947 = vunpack.c.l.b16 %v2907
  %v2948 = vunpack.c.h.b16 %v2907
  %v2949 = vunpack.c.l.b16 %v2908
  %v2950 = vunpack.c.h.b16 %v2908
  %v2951 = vunpack.c.l.b16 %v2909
  %v2952 = vunpack.c.h.b16 %v2909
  %v2953 = vunpack.c.l.b16 %v2910
  %v2954 = vunpack.c.h.b16 %v2910
  %v2955 = vunpack.c.l.b16 %v2911
  %v2956 = vunpack.c.h.b16 %v2911
  %v2957 = vunpack.c.l.b16 %v2912
  %v2958 = vunpack.c.h.b16 %v2912
  %v2959 = vunpack.c.l.b16 %v2913
  %v2960 = vunpack.c.h.b16 %v2913
  %v2961 = vunpack.c.l.b16 %v2914
  %v2962 = vunpack.c.h.b16 %v2914
  %v2963 = vpack.c.b16 %v2931, %v2931
  %v2964 = vpack.c.b16 %v2932, %v2932
  %v2965 = vpack.c.b16 %v2933, %v2933
  %v2966 = vpack.c.b16 %v2934, %v2934
  %v2967 = vpack.c.b16 %v2935, %v2935
  %v2968 = vpack.c.b16 %v2936, %v2936
  %v2969 = vpack.c.b16 %v2937, %v2937
  %v2970 = vpack.c.b16 %v2938, %v2938
  %v2971 = vpack.c.b16 %v2939, %v2939
  %v2972 = vpack.c.b16 %v2940, %v2940
  %v2973 = vpack.c.b16 %v2941, %v2941
  %v2974 = vpack.c.b16 %v2942, %v2942
  %v2975 = vpack.c.b16 %v2943, %v2943
  %v2976 = vpack.c.b16 %v2944, %v2944
  %v2977 = vpack.c.b16 %v2945, %v2945
  %v2978 = vpack.c.b16 %v2946, %v2946
  %v2979 = vpack.c.b16 %v2947, %v2947
  %v2980 = vpack.c.b16 %v2948, %v2948
  %v2981 = vpack.c.b16 %v2949, %v2949
  %v2982 = vpack.c.b16 %v2950, %v2950
  %v2983 = vpack.c.b16 %v2951, %v2951
  %v2984 = vpack.c.b16 %v2952, %v2952
  %v2985 = vpack.c.b16 %v2953, %v2953
  %v2986 = vpack.c.b16 %v2954, %v2954
  %v2987 = vpack.c.b16 %v2955, %v2955
  %v2988 = vpack.c.b16 %v2956, %v2956
  %v2989 = vpack.c.b16 %v2957, %v2957
  %v2990 = vpack.c.b16 %v2958, %v2958
  %v2991 = vpack.c.b16 %v2959, %v2959
  %v2992 = vpack.c.b16 %v2960, %v2960
  %v2993 = vpack.c.b16 %v2961, %v2961
  %v2994 = vpack.c.b16 %v2962, %v2962
  %3027 = vst [vmem:[%s13] sm:$0xf] %v2963
  %3028 = vst [vmem:[%s13 + $0x4] sm:$0xf] %v2964
  %3029 = vst [vmem:[%s13 + $0x8] sm:$0xf] %v2965
  %3030 = vst [vmem:[%s13 + $0xc] sm:$0xf] %v2966
  %3031 = vst [vmem:[%s13 + $0x10] sm:$0xf] %v2967
  %3032 = vst [vmem:[%s13 + $0x14] sm:$0xf] %v2968
  %3033 = vst [vmem:[%s13 + $0x18] sm:$0xf] %v2969
  %3034 = vst [vmem:[%s13 + $0x1c] sm:$0xf] %v2970
  %3035 = vst [vmem:[%s13 + $0x20] sm:$0xf] %v2971
  %3036 = vst [vmem:[%s13 + $0x24] sm:$0xf] %v2972
  %3037 = vst [vmem:[%s13 + $0x28] sm:$0xf] %v2973
  %3038 = vst [vmem:[%s13 + $0x2c] sm:$0xf] %v2974
  %3039 = vst [vmem:[%s13 + $0x30] sm:$0xf] %v2975
  %3040 = vst [vmem:[%s13 + $0x34] sm:$0xf] %v2976
  %3041 = vst [vmem:[%s13 + $0x38] sm:$0xf] %v2977
  %3042 = vst [vmem:[%s13 + $0x3c] sm:$0xf] %v2978
  %3043 = vst [vmem:[%s13 + $0x40] sm:$0xf] %v2979
  %3044 = vst [vmem:[%s13 + $0x44] sm:$0xf] %v2980
  %3045 = vst [vmem:[%s13 + $0x48] sm:$0xf] %v2981
  %3046 = vst [vmem:[%s13 + $0x4c] sm:$0xf] %v2982
  %3047 = vst [vmem:[%s13 + $0x50] sm:$0xf] %v2983
  %3048 = vst [vmem:[%s13 + $0x54] sm:$0xf] %v2984
  %3049 = vst [vmem:[%s13 + $0x58] sm:$0xf] %v2985
  %3050 = vst [vmem:[%s13 + $0x5c] sm:$0xf] %v2986
  %3051 = vst [vmem:[%s13 + $0x60] sm:$0xf] %v2987
  %3052 = vst [vmem:[%s13 + $0x64] sm:$0xf] %v2988
  %3053 = vst [vmem:[%s13 + $0x68] sm:$0xf] %v2989
  %3054 = vst [vmem:[%s13 + $0x6c] sm:$0xf] %v2990
  %3055 = vst [vmem:[%s13 + $0x70] sm:$0xf] %v2991
  %3056 = vst [vmem:[%s13 + $0x74] sm:$0xf] %v2992
  %3057 = vst [vmem:[%s13 + $0x78] sm:$0xf] %v2993
  %3058 = vst [vmem:[%s13 + $0x7c] sm:$0xf] %v2994
  // Predicated region
  $region54: #{gmlp_res_multi_conv35_forward.12} parent=0 // pred_check
    _
  $region55: #{gmlp_res_multi_conv35_forward.12} parent=0 // pred_check_branch
    %3060 = sbr.rel (0) target = $region57
  $region56: #{gmlp_res_multi_conv35_forward.12} parent=0 // pred_region
    _
  $region57: #{gmlp_res_multi_conv35_forward.12} parent=0 // pred_fallthru
    _
  // Predicated region
  $region58: #{gmlp_res_multi_conv35_forward.12} parent=0 // pred_check
    _
  $region59: #{gmlp_res_multi_conv35_forward.12} parent=0 // pred_check_branch
    %3062 = sbr.rel (0) target = $region61
  $region60: #{gmlp_res_multi_conv35_forward.12} parent=0 // pred_region
    _
  $region61: #{gmlp_res_multi_conv35_forward.12} parent=0 // pred_fallthru
    _

// kernel: gmlp_res_multi_conv35_forward.13
$region0: #{gmlp_res_multi_conv35_forward.13}
  #allocation0 [shape = 'u32[]', space=smem, size = 0x4, offset = 0x4, fixed_abs, tag = 'smem constant byte address 0x4 - core index']
  #allocation1 [shape = 'u32[144,128]{1,0:T(1,128)}', space=vmem, size = 0x12000, scoped, tag = 'internal scratch']
  #allocation2 [shape = 'f32[2,128]{1,0:T(2,128)}', space=vmem, size = 0x400, scoped, tag = 'scratch operand']
  %s0 = inlined_call_operand.vmem [shape: bf16[2,16384], index: 0, kind: input, shape index: {}]
  %s1 = inlined_call_operand.vmem [shape: bf16[16384,128], index: 1, kind: input, shape index: {}]
  %s2 = inlined_call_operand.vmem [shape: f32[1,128], index: 2, kind: input, shape index: {}]
  %s3 = inlined_call_operand.hbm [shape: f32[2,128], index: 3, kind: output, shape index: {}]
  %s4 = sld [smem:[#allocation0]]
  $region53: #{gmlp_res_multi_conv35_forward.13} parent=0
    _
  %s6 = ssub.s32 1, %s4
  %s7 = scalar_select 0, %s6, %s4
  $region1: #{gmlp_res_multi_conv35_forward.13} parent=0
    #allocation3 [shape = 'u8[1024]{0}', space=vmem, size = 0x400, scoped, tag = 'output window, operand 0, single buffered']
    #allocation4 [shape = 's32[2]{0}', space=sflag, size = 0x8, scoped, tag = 'scoped memory for gmlp_res_multi_conv35_forward.13']
    %8 = vsyncpa [#allocation4], 0
    loop: start=0, step=1, limit=10
    $region2: #{gmlp_res_multi_conv35_forward.13} parent=1 // loop_pre_header
      _
    $region3: #{gmlp_res_multi_conv35_forward.13} parent=1 // loop_header
      %s10 = sphi 0, %s14
      %p11 = scmp.ge.s32.totalorder %s10, 10
      %s20 = sphi 0, %s22
      %s23 = sphi 0, %s20
      %s24 = sphi 0, %s23
      %s40 = sphi 0, %s24
      %s46 = sphi 0, %s48
      %s49 = sphi 0, %s46
      %s50 = sphi 0, %s49
      %s66 = sphi 0, %s50
      %s70 = sphi 0, %s70
      %s72 = sphi 0, %s70
      %s73 = sphi 0, %s72
      %s87 = sphi 0, %s73
      %s91 = sphi 0, %s91
      %s93 = sphi 0, %s91
      %s94 = sphi 0, %s93
      %s108 = sphi 0, %s94
    $region4: #{gmlp_res_multi_conv35_forward.13} parent=1 // loop_header_branch
      %13 = sbr.rel (%p11) target = $region8
    $region5: #{gmlp_res_multi_conv35_forward.13} parent=1 // loop_body
      %s15 = ssub.s32 %s10, 1
      %s16 = ssub.s32 %s10, 2
      %s17 = sadd.s32 %s10, 1
      %s18 = ssub.s32 %s10, %s17
      %p19 = scmp.eq.s32.totalorder %s18, 0
      %s21 = sadd.s32 %s20, 1
      %s22 = scalar_select %p19, %s20, %s21
      %p25 = pneg %p19
      %p26 = scmp.eq.s32.totalorder %s10, 7
      %p27 = por %p25, %p26
      %p28 = scmp.ne.s32.totalorder %s20, %s23
      %p29 = scmp.eq.s32.totalorder %s10, 0
      %p30 = por %p28, %p29
      %p31 = scmp.ne.s32.totalorder %s20, %s23
      %p32 = scmp.eq.s32.totalorder %s15, 7
      %p33 = por %p31, %p32
      %p34 = scmp.ne.s32.totalorder %s23, %s24
      %p35 = scmp.eq.s32.totalorder %s15, 0
      %p36 = por %p34, %p35
      %p37 = scmp.ne.s32.totalorder %s23, %s24
      %p38 = scmp.eq.s32.totalorder %s16, 7
      %p39 = por %p37, %p38
      %p41 = scmp.ne.s32.totalorder %s24, %s40
      %p42 = scmp.eq.s32.totalorder %s16, 0
      %p43 = por %p41, %p42
      %s44 = ssub.s32 %s10, %s17
      %p45 = scmp.eq.s32.totalorder %s44, 0
      %s47 = sadd.s32 %s46, 1
      %s48 = scalar_select %p45, %s46, %s47
      %p51 = pneg %p45
      %p52 = scmp.eq.s32.totalorder %s10, 7
      %p53 = por %p51, %p52
      %p54 = scmp.ne.s32.totalorder %s46, %s49
      %p55 = scmp.eq.s32.totalorder %s10, 0
      %p56 = por %p54, %p55
      %p57 = scmp.ne.s32.totalorder %s46, %s49
      %p58 = scmp.eq.s32.totalorder %s15, 7
      %p59 = por %p57, %p58
      %p60 = scmp.ne.s32.totalorder %s49, %s50
      %p61 = scmp.eq.s32.totalorder %s15, 0
      %p62 = por %p60, %p61
      %p63 = scmp.ne.s32.totalorder %s49, %s50
      %p64 = scmp.eq.s32.totalorder %s16, 7
      %p65 = por %p63, %p64
      %p67 = scmp.ne.s32.totalorder %s50, %s66
      %p68 = scmp.eq.s32.totalorder %s16, 0
      %p69 = por %p67, %p68
      %s71 = sadd.s32 %s70, 1
      %p74 = scmp.eq.s32.totalorder %s10, 7
      %p75 = scmp.ne.s32.totalorder %s70, %s72
      %p76 = scmp.eq.s32.totalorder %s10, 0
      %p77 = por %p75, %p76
      %p78 = scmp.ne.s32.totalorder %s70, %s72
      %p79 = scmp.eq.s32.totalorder %s15, 7
      %p80 = por %p78, %p79
      %p81 = scmp.ne.s32.totalorder %s72, %s73
      %p82 = scmp.eq.s32.totalorder %s15, 0
      %p83 = por %p81, %p82
      %p84 = scmp.ne.s32.totalorder %s72, %s73
      %p85 = scmp.eq.s32.totalorder %s16, 7
      %p86 = por %p84, %p85
      %p88 = scmp.ne.s32.totalorder %s73, %s87
      %p89 = scmp.eq.s32.totalorder %s16, 0
      %p90 = por %p88, %p89
      %s92 = sadd.s32 %s91, 1
      %p95 = scmp.eq.s32.totalorder %s10, 7
      %p96 = scmp.ne.s32.totalorder %s91, %s93
      %p97 = scmp.eq.s32.totalorder %s10, 0
      %p98 = por %p96, %p97
      %p99 = scmp.ne.s32.totalorder %s91, %s93
      %p100 = scmp.eq.s32.totalorder %s15, 7
      %p101 = por %p99, %p100
      %p102 = scmp.ne.s32.totalorder %s93, %s94
      %p103 = scmp.eq.s32.totalorder %s15, 0
      %p104 = por %p102, %p103
      %p105 = scmp.ne.s32.totalorder %s93, %s94
      %p106 = scmp.eq.s32.totalorder %s16, 7
      %p107 = por %p105, %p106
      %p109 = scmp.ne.s32.totalorder %s94, %s108
      %p110 = scmp.eq.s32.totalorder %s16, 0
      %p111 = por %p109, %p110
      %p112 = scmp.le.s32.totalorder 1, %s10
      %p113 = scmp.lt.s32.totalorder %s10, 9
      %p114 = pnand %p112, %p113
      %p115 = pneg %p114
      // Predicated region
      $region9: #{gmlp_res_multi_conv35_forward.13} parent=5 // pred_check
        _
      $region10: #{gmlp_res_multi_conv35_forward.13} parent=5 // pred_check_branch
        %117 = sbr.rel (%p114) target = $region12
      $region11: #{gmlp_res_multi_conv35_forward.13} parent=5 // pred_region
        %s118 = ssub.s32 %s10, 1
        // Predicated region
        $region13: #{gmlp_res_multi_conv35_forward.13} parent=11 // pred_check
          %p119 = pneg %p83
        $region14: #{gmlp_res_multi_conv35_forward.13} parent=11 // pred_check_branch
          %121 = sbr.rel (%p119) target = $region16
        $region15: #{gmlp_res_multi_conv35_forward.13} parent=11 // pred_region
          _
        $region16: #{gmlp_res_multi_conv35_forward.13} parent=11 // pred_fallthru
          _
      $region12: #{gmlp_res_multi_conv35_forward.13} parent=5 // pred_fallthru
        _
      %p122 = scmp.lt.s32.totalorder %s10, 8
      // Predicated region
      $region17: #{gmlp_res_multi_conv35_forward.13} parent=5 // pred_check
        %p123 = pneg %p122
      $region18: #{gmlp_res_multi_conv35_forward.13} parent=5 // pred_check_branch
        %125 = sbr.rel (%p123) target = $region20
      $region19: #{gmlp_res_multi_conv35_forward.13} parent=5 // pred_region
        // Predicated region
        $region21: #{gmlp_res_multi_conv35_forward.13} parent=19 // pred_check
          %p126 = pneg %p30
        $region22: #{gmlp_res_multi_conv35_forward.13} parent=19 // pred_check_branch
          %128 = sbr.rel (%p126) target = $region24
        $region23: #{gmlp_res_multi_conv35_forward.13} parent=19 // pred_region
          %s129 = smul.u32 16, %s10
          %p130 = scmp.lt.s32.totalorder %s129, 127
          %s131 = scalar_select %p130, %s129, 127
          %s132 = scalar_lea.vmem %s0, %s131
          %s133 = smul.u32 16, %s10
        $region24: #{gmlp_res_multi_conv35_forward.13} parent=19 // pred_fallthru
          _
        // Predicated region
        $region25: #{gmlp_res_multi_conv35_forward.13} parent=19 // pred_check
          %p134 = pneg %p56
        $region26: #{gmlp_res_multi_conv35_forward.13} parent=19 // pred_check_branch
          %136 = sbr.rel (%p134) target = $region28
        $region27: #{gmlp_res_multi_conv35_forward.13} parent=19 // pred_region
          %s137 = smul.u32 256, %s10
          %p138 = scmp.lt.s32.totalorder %s137, 2047
          %s139 = scalar_select %p138, %s137, 2047
          %s140 = smul.addr %s139, 4
          %s141 = scalar_lea.vmem %s1, %s140
          %s142 = smul.u32 256, %s10
        $region28: #{gmlp_res_multi_conv35_forward.13} parent=19 // pred_fallthru
          _
      $region20: #{gmlp_res_multi_conv35_forward.13} parent=5 // pred_fallthru
        _
      %p143 = scmp.le.s32.totalorder 1, %s10
      %p144 = scmp.lt.s32.totalorder %s10, 9
      %p145 = pnand %p143, %p144
      %p146 = pneg %p145
      // Predicated region
      $region29: #{gmlp_res_multi_conv35_forward.13} parent=5 // pred_check
        _
      $region30: #{gmlp_res_multi_conv35_forward.13} parent=5 // pred_check_branch
        %148 = sbr.rel (%p145) target = $region32
      $region31: #{gmlp_res_multi_conv35_forward.13} parent=5 // pred_region
        %s149 = ssub.s32 %s10, 1
        %s150 = smul.u32 16, %s15
        %p151 = scmp.lt.s32.totalorder %s150, 127
        %s152 = scalar_select %p151, %s150, 127
        %s153 = scalar_lea.vmem %s0, %s152
        %p154 = pneg %p36
        %p155 = pneg %p33
        %s156 = smul.u32 256, %s15
        %p157 = scmp.lt.s32.totalorder %s156, 2047
        %s158 = scalar_select %p157, %s156, 2047
        %s159 = smul.addr %s158, 4
        %s160 = scalar_lea.vmem %s1, %s159
        %p161 = pneg %p62
        %p162 = pneg %p59
        %p163 = pneg %p83
        %p164 = pneg %p80
        %p165 = pneg %p104
        %p166 = pneg %p101
        %s167 = smul.u32 16, %s15
        %p168 = scmp.lt.s32.totalorder %s167, 127
        %s169 = scalar_select %p168, %s167, 127
        %s170 = scalar_lea.vmem %s0, %s169
        %s171 = smul.u32 16, %s15
        %s172 = smul.u32 256, %s15
        %p173 = scmp.lt.s32.totalorder %s172, 2047
        %s174 = scalar_select %p173, %s172, 2047
        %s175 = smul.addr %s174, 4
        %s176 = scalar_lea.vmem %s1, %s175
        %s177 = smul.u32 256, %s15
        %p179 = scmp.eq.s32.totalorder %s15, 0
        // Predicated region
        $region33: #{gmlp_res_multi_conv35_forward.13} parent=31 // pred_check
          %p180 = pneg %p179
        $region34: #{gmlp_res_multi_conv35_forward.13} parent=31 // pred_check_branch
          %182 = sbr.rel (%p180) target = $region36
        $region35: #{gmlp_res_multi_conv35_forward.13} parent=31 // pred_region
          %183 = vst [vmem:[#allocation2] sm:$0x3] 0.0
        $region36: #{gmlp_res_multi_conv35_forward.13} parent=31 // pred_fallthru
          _
        %v184 = vld [vmem:[#allocation2] sm:$0x3]
        %v185 = vld [vmem:[%s170] sm:$0xff]
        %v186 = vld [vmem:[%s170 + $0x8] sm:$0xff]
        %v187 = vld [vmem:[%s176] sm:$0xf]
        %v188 = vld [vmem:[%s176 + $0x4] sm:$0xf]
        %v189 = vld [vmem:[%s176 + $0x8] sm:$0xf]
        %v190 = vld [vmem:[%s176 + $0xc] sm:$0xf]
        %v191 = vld [vmem:[%s176 + $0x10] sm:$0xf]
        %v192 = vld [vmem:[%s176 + $0x14] sm:$0xf]
        %v193 = vld [vmem:[%s176 + $0x18] sm:$0xf]
        %v194 = vld [vmem:[%s176 + $0x1c] sm:$0xf]
        %v195 = vld [vmem:[%s176 + $0x20] sm:$0xf]
        %v196 = vld [vmem:[%s176 + $0x24] sm:$0xf]
        %v197 = vld [vmem:[%s176 + $0x28] sm:$0xf]
        %v198 = vld [vmem:[%s176 + $0x2c] sm:$0xf]
        %v199 = vld [vmem:[%s176 + $0x30] sm:$0xf]
        %v200 = vld [vmem:[%s176 + $0x34] sm:$0xf]
        %v201 = vld [vmem:[%s176 + $0x38] sm:$0xf]
        %v202 = vld [vmem:[%s176 + $0x3c] sm:$0xf]
        %v203 = vld [vmem:[%s176 + $0x40] sm:$0xf]
        %v204 = vld [vmem:[%s176 + $0x44] sm:$0xf]
        %v205 = vld [vmem:[%s176 + $0x48] sm:$0xf]
        %v206 = vld [vmem:[%s176 + $0x4c] sm:$0xf]
        %v207 = vld [vmem:[%s176 + $0x50] sm:$0xf]
        %v208 = vld [vmem:[%s176 + $0x54] sm:$0xf]
        %v209 = vld [vmem:[%s176 + $0x58] sm:$0xf]
        %v210 = vld [vmem:[%s176 + $0x5c] sm:$0xf]
        %v211 = vld [vmem:[%s176 + $0x60] sm:$0xf]
        %v212 = vld [vmem:[%s176 + $0x64] sm:$0xf]
        %v213 = vld [vmem:[%s176 + $0x68] sm:$0xf]
        %v214 = vld [vmem:[%s176 + $0x6c] sm:$0xf]
        %v215 = vld [vmem:[%s176 + $0x70] sm:$0xf]
        %v216 = vld [vmem:[%s176 + $0x74] sm:$0xf]
        %v217 = vld [vmem:[%s176 + $0x78] sm:$0xf]
        %v218 = vld [vmem:[%s176 + $0x7c] sm:$0xf]
        %v219 = vld [vmem:[%s176 + $0x80] sm:$0xf]
        %v220 = vld [vmem:[%s176 + $0x84] sm:$0xf]
        %v221 = vld [vmem:[%s176 + $0x88] sm:$0xf]
        %v222 = vld [vmem:[%s176 + $0x8c] sm:$0xf]
        %v223 = vld [vmem:[%s176 + $0x90] sm:$0xf]
        %v224 = vld [vmem:[%s176 + $0x94] sm:$0xf]
        %v225 = vld [vmem:[%s176 + $0x98] sm:$0xf]
        %v226 = vld [vmem:[%s176 + $0x9c] sm:$0xf]
        %v227 = vld [vmem:[%s176 + $0xa0] sm:$0xf]
        %v228 = vld [vmem:[%s176 + $0xa4] sm:$0xf]
        %v229 = vld [vmem:[%s176 + $0xa8] sm:$0xf]
        %v230 = vld [vmem:[%s176 + $0xac] sm:$0xf]
        %v231 = vld [vmem:[%s176 + $0xb0] sm:$0xf]
        %v232 = vld [vmem:[%s176 + $0xb4] sm:$0xf]
        %v233 = vld [vmem:[%s176 + $0xb8] sm:$0xf]
        %v234 = vld [vmem:[%s176 + $0xbc] sm:$0xf]
        %v235 = vld [vmem:[%s176 + $0xc0] sm:$0xf]
        %v236 = vld [vmem:[%s176 + $0xc4] sm:$0xf]
        %v237 = vld [vmem:[%s176 + $0xc8] sm:$0xf]
        %v238 = vld [vmem:[%s176 + $0xcc] sm:$0xf]
        %v239 = vld [vmem:[%s176 + $0xd0] sm:$0xf]
        %v240 = vld [vmem:[%s176 + $0xd4] sm:$0xf]
        %v241 = vld [vmem:[%s176 + $0xd8] sm:$0xf]
        %v242 = vld [vmem:[%s176 + $0xdc] sm:$0xf]
        %v243 = vld [vmem:[%s176 + $0xe0] sm:$0xf]
        %v244 = vld [vmem:[%s176 + $0xe4] sm:$0xf]
        %v245 = vld [vmem:[%s176 + $0xe8] sm:$0xf]
        %v246 = vld [vmem:[%s176 + $0xec] sm:$0xf]
        %v247 = vld [vmem:[%s176 + $0xf0] sm:$0xf]
        %v248 = vld [vmem:[%s176 + $0xf4] sm:$0xf]
        %v249 = vld [vmem:[%s176 + $0xf8] sm:$0xf]
        %v250 = vld [vmem:[%s176 + $0xfc] sm:$0xf]
        %v251 = vld [vmem:[%s176 + $0x100] sm:$0xf]
        %v252 = vld [vmem:[%s176 + $0x104] sm:$0xf]
        %v253 = vld [vmem:[%s176 + $0x108] sm:$0xf]
        %v254 = vld [vmem:[%s176 + $0x10c] sm:$0xf]
        %v255 = vld [vmem:[%s176 + $0x110] sm:$0xf]
        %v256 = vld [vmem:[%s176 + $0x114] sm:$0xf]
        %v257 = vld [vmem:[%s176 + $0x118] sm:$0xf]
        %v258 = vld [vmem:[%s176 + $0x11c] sm:$0xf]
        %v259 = vld [vmem:[%s176 + $0x120] sm:$0xf]
        %v260 = vld [vmem:[%s176 + $0x124] sm:$0xf]
        %v261 = vld [vmem:[%s176 + $0x128] sm:$0xf]
        %v262 = vld [vmem:[%s176 + $0x12c] sm:$0xf]
        %v263 = vld [vmem:[%s176 + $0x130] sm:$0xf]
        %v264 = vld [vmem:[%s176 + $0x134] sm:$0xf]
        %v265 = vld [vmem:[%s176 + $0x138] sm:$0xf]
        %v266 = vld [vmem:[%s176 + $0x13c] sm:$0xf]
        %v267 = vld [vmem:[%s176 + $0x140] sm:$0xf]
        %v268 = vld [vmem:[%s176 + $0x144] sm:$0xf]
        %v269 = vld [vmem:[%s176 + $0x148] sm:$0xf]
        %v270 = vld [vmem:[%s176 + $0x14c] sm:$0xf]
        %v271 = vld [vmem:[%s176 + $0x150] sm:$0xf]
        %v272 = vld [vmem:[%s176 + $0x154] sm:$0xf]
        %v273 = vld [vmem:[%s176 + $0x158] sm:$0xf]
        %v274 = vld [vmem:[%s176 + $0x15c] sm:$0xf]
        %v275 = vld [vmem:[%s176 + $0x160] sm:$0xf]
        %v276 = vld [vmem:[%s176 + $0x164] sm:$0xf]
        %v277 = vld [vmem:[%s176 + $0x168] sm:$0xf]
        %v278 = vld [vmem:[%s176 + $0x16c] sm:$0xf]
        %v279 = vld [vmem:[%s176 + $0x170] sm:$0xf]
        %v280 = vld [vmem:[%s176 + $0x174] sm:$0xf]
        %v281 = vld [vmem:[%s176 + $0x178] sm:$0xf]
        %v282 = vld [vmem:[%s176 + $0x17c] sm:$0xf]
        %v283 = vld [vmem:[%s176 + $0x180] sm:$0xf]
        %v284 = vld [vmem:[%s176 + $0x184] sm:$0xf]
        %v285 = vld [vmem:[%s176 + $0x188] sm:$0xf]
        %v286 = vld [vmem:[%s176 + $0x18c] sm:$0xf]
        %v287 = vld [vmem:[%s176 + $0x190] sm:$0xf]
        %v288 = vld [vmem:[%s176 + $0x194] sm:$0xf]
        %v289 = vld [vmem:[%s176 + $0x198] sm:$0xf]
        %v290 = vld [vmem:[%s176 + $0x19c] sm:$0xf]
        %v291 = vld [vmem:[%s176 + $0x1a0] sm:$0xf]
        %v292 = vld [vmem:[%s176 + $0x1a4] sm:$0xf]
        %v293 = vld [vmem:[%s176 + $0x1a8] sm:$0xf]
        %v294 = vld [vmem:[%s176 + $0x1ac] sm:$0xf]
        %v295 = vld [vmem:[%s176 + $0x1b0] sm:$0xf]
        %v296 = vld [vmem:[%s176 + $0x1b4] sm:$0xf]
        %v297 = vld [vmem:[%s176 + $0x1b8] sm:$0xf]
        %v298 = vld [vmem:[%s176 + $0x1bc] sm:$0xf]
        %v299 = vld [vmem:[%s176 + $0x1c0] sm:$0xf]
        %v300 = vld [vmem:[%s176 + $0x1c4] sm:$0xf]
        %v301 = vld [vmem:[%s176 + $0x1c8] sm:$0xf]
        %v302 = vld [vmem:[%s176 + $0x1cc] sm:$0xf]
        %v303 = vld [vmem:[%s176 + $0x1d0] sm:$0xf]
        %v304 = vld [vmem:[%s176 + $0x1d4] sm:$0xf]
        %v305 = vld [vmem:[%s176 + $0x1d8] sm:$0xf]
        %v306 = vld [vmem:[%s176 + $0x1dc] sm:$0xf]
        %v307 = vld [vmem:[%s176 + $0x1e0] sm:$0xf]
        %v308 = vld [vmem:[%s176 + $0x1e4] sm:$0xf]
        %v309 = vld [vmem:[%s176 + $0x1e8] sm:$0xf]
        %v310 = vld [vmem:[%s176 + $0x1ec] sm:$0xf]
        %v311 = vld [vmem:[%s176 + $0x1f0] sm:$0xf]
        %v312 = vld [vmem:[%s176 + $0x1f4] sm:$0xf]
        %v313 = vld [vmem:[%s176 + $0x1f8] sm:$0xf]
        %v314 = vld [vmem:[%s176 + $0x1fc] sm:$0xf]
        %v315 = vld [vmem:[%s176 + $0x200] sm:$0xf]
        %v316 = vld [vmem:[%s176 + $0x204] sm:$0xf]
        %v317 = vld [vmem:[%s176 + $0x208] sm:$0xf]
        %v318 = vld [vmem:[%s176 + $0x20c] sm:$0xf]
        %v319 = vld [vmem:[%s176 + $0x210] sm:$0xf]
        %v320 = vld [vmem:[%s176 + $0x214] sm:$0xf]
        %v321 = vld [vmem:[%s176 + $0x218] sm:$0xf]
        %v322 = vld [vmem:[%s176 + $0x21c] sm:$0xf]
        %v323 = vld [vmem:[%s176 + $0x220] sm:$0xf]
        %v324 = vld [vmem:[%s176 + $0x224] sm:$0xf]
        %v325 = vld [vmem:[%s176 + $0x228] sm:$0xf]
        %v326 = vld [vmem:[%s176 + $0x22c] sm:$0xf]
        %v327 = vld [vmem:[%s176 + $0x230] sm:$0xf]
        %v328 = vld [vmem:[%s176 + $0x234] sm:$0xf]
        %v329 = vld [vmem:[%s176 + $0x238] sm:$0xf]
        %v330 = vld [vmem:[%s176 + $0x23c] sm:$0xf]
        %v331 = vld [vmem:[%s176 + $0x240] sm:$0xf]
        %v332 = vld [vmem:[%s176 + $0x244] sm:$0xf]
        %v333 = vld [vmem:[%s176 + $0x248] sm:$0xf]
        %v334 = vld [vmem:[%s176 + $0x24c] sm:$0xf]
        %v335 = vld [vmem:[%s176 + $0x250] sm:$0xf]
        %v336 = vld [vmem:[%s176 + $0x254] sm:$0xf]
        %v337 = vld [vmem:[%s176 + $0x258] sm:$0xf]
        %v338 = vld [vmem:[%s176 + $0x25c] sm:$0xf]
        %v339 = vld [vmem:[%s176 + $0x260] sm:$0xf]
        %v340 = vld [vmem:[%s176 + $0x264] sm:$0xf]
        %v341 = vld [vmem:[%s176 + $0x268] sm:$0xf]
        %v342 = vld [vmem:[%s176 + $0x26c] sm:$0xf]
        %v343 = vld [vmem:[%s176 + $0x270] sm:$0xf]
        %v344 = vld [vmem:[%s176 + $0x274] sm:$0xf]
        %v345 = vld [vmem:[%s176 + $0x278] sm:$0xf]
        %v346 = vld [vmem:[%s176 + $0x27c] sm:$0xf]
        %v347 = vld [vmem:[%s176 + $0x280] sm:$0xf]
        %v348 = vld [vmem:[%s176 + $0x284] sm:$0xf]
        %v349 = vld [vmem:[%s176 + $0x288] sm:$0xf]
        %v350 = vld [vmem:[%s176 + $0x28c] sm:$0xf]
        %v351 = vld [vmem:[%s176 + $0x290] sm:$0xf]
        %v352 = vld [vmem:[%s176 + $0x294] sm:$0xf]
        %v353 = vld [vmem:[%s176 + $0x298] sm:$0xf]
        %v354 = vld [vmem:[%s176 + $0x29c] sm:$0xf]
        %v355 = vld [vmem:[%s176 + $0x2a0] sm:$0xf]
        %v356 = vld [vmem:[%s176 + $0x2a4] sm:$0xf]
        %v357 = vld [vmem:[%s176 + $0x2a8] sm:$0xf]
        %v358 = vld [vmem:[%s176 + $0x2ac] sm:$0xf]
        %v359 = vld [vmem:[%s176 + $0x2b0] sm:$0xf]
        %v360 = vld [vmem:[%s176 + $0x2b4] sm:$0xf]
        %v361 = vld [vmem:[%s176 + $0x2b8] sm:$0xf]
        %v362 = vld [vmem:[%s176 + $0x2bc] sm:$0xf]
        %v363 = vld [vmem:[%s176 + $0x2c0] sm:$0xf]
        %v364 = vld [vmem:[%s176 + $0x2c4] sm:$0xf]
        %v365 = vld [vmem:[%s176 + $0x2c8] sm:$0xf]
        %v366 = vld [vmem:[%s176 + $0x2cc] sm:$0xf]
        %v367 = vld [vmem:[%s176 + $0x2d0] sm:$0xf]
        %v368 = vld [vmem:[%s176 + $0x2d4] sm:$0xf]
        %v369 = vld [vmem:[%s176 + $0x2d8] sm:$0xf]
        %v370 = vld [vmem:[%s176 + $0x2dc] sm:$0xf]
        %v371 = vld [vmem:[%s176 + $0x2e0] sm:$0xf]
        %v372 = vld [vmem:[%s176 + $0x2e4] sm:$0xf]
        %v373 = vld [vmem:[%s176 + $0x2e8] sm:$0xf]
        %v374 = vld [vmem:[%s176 + $0x2ec] sm:$0xf]
        %v375 = vld [vmem:[%s176 + $0x2f0] sm:$0xf]
        %v376 = vld [vmem:[%s176 + $0x2f4] sm:$0xf]
        %v377 = vld [vmem:[%s176 + $0x2f8] sm:$0xf]
        %v378 = vld [vmem:[%s176 + $0x2fc] sm:$0xf]
        %v379 = vld [vmem:[%s176 + $0x300] sm:$0xf]
        %v380 = vld [vmem:[%s176 + $0x304] sm:$0xf]
        %v381 = vld [vmem:[%s176 + $0x308] sm:$0xf]
        %v382 = vld [vmem:[%s176 + $0x30c] sm:$0xf]
        %v383 = vld [vmem:[%s176 + $0x310] sm:$0xf]
        %v384 = vld [vmem:[%s176 + $0x314] sm:$0xf]
        %v385 = vld [vmem:[%s176 + $0x318] sm:$0xf]
        %v386 = vld [vmem:[%s176 + $0x31c] sm:$0xf]
        %v387 = vld [vmem:[%s176 + $0x320] sm:$0xf]
        %v388 = vld [vmem:[%s176 + $0x324] sm:$0xf]
        %v389 = vld [vmem:[%s176 + $0x328] sm:$0xf]
        %v390 = vld [vmem:[%s176 + $0x32c] sm:$0xf]
        %v391 = vld [vmem:[%s176 + $0x330] sm:$0xf]
        %v392 = vld [vmem:[%s176 + $0x334] sm:$0xf]
        %v393 = vld [vmem:[%s176 + $0x338] sm:$0xf]
        %v394 = vld [vmem:[%s176 + $0x33c] sm:$0xf]
        %v395 = vld [vmem:[%s176 + $0x340] sm:$0xf]
        %v396 = vld [vmem:[%s176 + $0x344] sm:$0xf]
        %v397 = vld [vmem:[%s176 + $0x348] sm:$0xf]
        %v398 = vld [vmem:[%s176 + $0x34c] sm:$0xf]
        %v399 = vld [vmem:[%s176 + $0x350] sm:$0xf]
        %v400 = vld [vmem:[%s176 + $0x354] sm:$0xf]
        %v401 = vld [vmem:[%s176 + $0x358] sm:$0xf]
        %v402 = vld [vmem:[%s176 + $0x35c] sm:$0xf]
        %v403 = vld [vmem:[%s176 + $0x360] sm:$0xf]
        %v404 = vld [vmem:[%s176 + $0x364] sm:$0xf]
        %v405 = vld [vmem:[%s176 + $0x368] sm:$0xf]
        %v406 = vld [vmem:[%s176 + $0x36c] sm:$0xf]
        %v407 = vld [vmem:[%s176 + $0x370] sm:$0xf]
        %v408 = vld [vmem:[%s176 + $0x374] sm:$0xf]
        %v409 = vld [vmem:[%s176 + $0x378] sm:$0xf]
        %v410 = vld [vmem:[%s176 + $0x37c] sm:$0xf]
        %v411 = vld [vmem:[%s176 + $0x380] sm:$0xf]
        %v412 = vld [vmem:[%s176 + $0x384] sm:$0xf]
        %v413 = vld [vmem:[%s176 + $0x388] sm:$0xf]
        %v414 = vld [vmem:[%s176 + $0x38c] sm:$0xf]
        %v415 = vld [vmem:[%s176 + $0x390] sm:$0xf]
        %v416 = vld [vmem:[%s176 + $0x394] sm:$0xf]
        %v417 = vld [vmem:[%s176 + $0x398] sm:$0xf]
        %v418 = vld [vmem:[%s176 + $0x39c] sm:$0xf]
        %v419 = vld [vmem:[%s176 + $0x3a0] sm:$0xf]
        %v420 = vld [vmem:[%s176 + $0x3a4] sm:$0xf]
        %v421 = vld [vmem:[%s176 + $0x3a8] sm:$0xf]
        %v422 = vld [vmem:[%s176 + $0x3ac] sm:$0xf]
        %v423 = vld [vmem:[%s176 + $0x3b0] sm:$0xf]
        %v424 = vld [vmem:[%s176 + $0x3b4] sm:$0xf]
        %v425 = vld [vmem:[%s176 + $0x3b8] sm:$0xf]
        %v426 = vld [vmem:[%s176 + $0x3bc] sm:$0xf]
        %v427 = vld [vmem:[%s176 + $0x3c0] sm:$0xf]
        %v428 = vld [vmem:[%s176 + $0x3c4] sm:$0xf]
        %v429 = vld [vmem:[%s176 + $0x3c8] sm:$0xf]
        %v430 = vld [vmem:[%s176 + $0x3cc] sm:$0xf]
        %v431 = vld [vmem:[%s176 + $0x3d0] sm:$0xf]
        %v432 = vld [vmem:[%s176 + $0x3d4] sm:$0xf]
        %v433 = vld [vmem:[%s176 + $0x3d8] sm:$0xf]
        %v434 = vld [vmem:[%s176 + $0x3dc] sm:$0xf]
        %v435 = vld [vmem:[%s176 + $0x3e0] sm:$0xf]
        %v436 = vld [vmem:[%s176 + $0x3e4] sm:$0xf]
        %v437 = vld [vmem:[%s176 + $0x3e8] sm:$0xf]
        %v438 = vld [vmem:[%s176 + $0x3ec] sm:$0xf]
        %v439 = vld [vmem:[%s176 + $0x3f0] sm:$0xf]
        %v440 = vld [vmem:[%s176 + $0x3f4] sm:$0xf]
        %v441 = vld [vmem:[%s176 + $0x3f8] sm:$0xf]
        %v442 = vld [vmem:[%s176 + $0x3fc] sm:$0xf]
        %v445 = vcombine.high %v185, %v185
        %v447 = vunpack.c.l.s4 1966171168
        %v448 = vunpack.c.0.s8 %v447
        %v449 = vlaneseq
        %v450 = vshrl.u32 %v449, 7
        %v451 = vsub.s32 %v448, %v450
        %v452 = vrot.slane %v185, %v451
        %v454 = vunpack.c.l.s4 1966171168
        %v455 = vunpack.c.0.s8 %v454
        %v456 = vlaneseq
        %v457 = vshrl.u32 %v456, 7
        %v458 = vsub.s32 %v455, %v457
        %v459 = vrot.slane %v445, %v458
        %v460 = vcombine.high %v452, %v452
        %v461 = vcombine.high %v459, %v459
        %v463 = vunpack.c.l.s4 1966171168
        %v464 = vunpack.c.0.s8 %v463
        %v465 = vlaneseq
        %v466 = vshrl.u32 %v465, 7
        %v467 = vsub.s32 %v464, %v466
        %v468 = vrot.slane %v452, %v467
        %v470 = vunpack.c.l.s4 1966171168
        %v471 = vunpack.c.0.s8 %v470
        %v472 = vlaneseq
        %v473 = vshrl.u32 %v472, 7
        %v474 = vsub.s32 %v471, %v473
        %v475 = vrot.slane %v459, %v474
        %v477 = vunpack.c.l.s4 1966171168
        %v478 = vunpack.c.0.s8 %v477
        %v479 = vlaneseq
        %v480 = vshrl.u32 %v479, 7
        %v481 = vsub.s32 %v478, %v480
        %v482 = vrot.slane %v460, %v481
        %v484 = vunpack.c.l.s4 1966171168
        %v485 = vunpack.c.0.s8 %v484
        %v486 = vlaneseq
        %v487 = vshrl.u32 %v486, 7
        %v488 = vsub.s32 %v485, %v487
        %v489 = vrot.slane %v461, %v488
        %v490 = vcombine.high %v468, %v468
        %v491 = vcombine.high %v475, %v475
        %v492 = vcombine.high %v482, %v482
        %v493 = vcombine.high %v489, %v489
        %v494 = vcombine.high %v186, %v186
        %v496 = vunpack.c.l.s4 1966171168
        %v497 = vunpack.c.0.s8 %v496
        %v498 = vlaneseq
        %v499 = vshrl.u32 %v498, 7
        %v500 = vsub.s32 %v497, %v499
        %v501 = vrot.slane %v186, %v500
        %v503 = vunpack.c.l.s4 1966171168
        %v504 = vunpack.c.0.s8 %v503
        %v505 = vlaneseq
        %v506 = vshrl.u32 %v505, 7
        %v507 = vsub.s32 %v504, %v506
        %v508 = vrot.slane %v494, %v507
        %v509 = vcombine.high %v501, %v501
        %v510 = vcombine.high %v508, %v508
        %v512 = vunpack.c.l.s4 1966171168
        %v513 = vunpack.c.0.s8 %v512
        %v514 = vlaneseq
        %v515 = vshrl.u32 %v514, 7
        %v516 = vsub.s32 %v513, %v515
        %v517 = vrot.slane %v501, %v516
        %v519 = vunpack.c.l.s4 1966171168
        %v520 = vunpack.c.0.s8 %v519
        %v521 = vlaneseq
        %v522 = vshrl.u32 %v521, 7
        %v523 = vsub.s32 %v520, %v522
        %v524 = vrot.slane %v508, %v523
        %v526 = vunpack.c.l.s4 1966171168
        %v527 = vunpack.c.0.s8 %v526
        %v528 = vlaneseq
        %v529 = vshrl.u32 %v528, 7
        %v530 = vsub.s32 %v527, %v529
        %v531 = vrot.slane %v509, %v530
        %v533 = vunpack.c.l.s4 1966171168
        %v534 = vunpack.c.0.s8 %v533
        %v535 = vlaneseq
        %v536 = vshrl.u32 %v535, 7
        %v537 = vsub.s32 %v534, %v536
        %v538 = vrot.slane %v510, %v537
        %v539 = vcombine.high %v517, %v517
        %v540 = vcombine.high %v524, %v524
        %v541 = vcombine.high %v531, %v531
        %v542 = vcombine.high %v538, %v538
        %v815 = vunpack.c.l.b16 %v187
        %v816 = vunpack.c.l.b16 %v188
        %v817 = vunpack.c.l.b16 %v189
        %v818 = vunpack.c.l.b16 %v190
        %v819 = vunpack.c.l.b16 %v191
        %v820 = vunpack.c.l.b16 %v192
        %v821 = vunpack.c.l.b16 %v193
        %v822 = vunpack.c.l.b16 %v194
        %v823 = vunpack.c.l.b16 %v195
        %v824 = vunpack.c.l.b16 %v196
        %v825 = vunpack.c.l.b16 %v197
        %v826 = vunpack.c.l.b16 %v198
        %v827 = vunpack.c.l.b16 %v199
        %v828 = vunpack.c.l.b16 %v200
        %v829 = vunpack.c.l.b16 %v201
        %v830 = vunpack.c.l.b16 %v202
        %v831 = vunpack.c.l.b16 %v203
        %v832 = vunpack.c.l.b16 %v204
        %v833 = vunpack.c.l.b16 %v205
        %v834 = vunpack.c.l.b16 %v206
        %v835 = vunpack.c.l.b16 %v207
        %v836 = vunpack.c.l.b16 %v208
        %v837 = vunpack.c.l.b16 %v209
        %v838 = vunpack.c.l.b16 %v210
        %v839 = vunpack.c.l.b16 %v211
        %v840 = vunpack.c.l.b16 %v212
        %v841 = vunpack.c.l.b16 %v213
        %v842 = vunpack.c.l.b16 %v214
        %v843 = vunpack.c.l.b16 %v215
        %v844 = vunpack.c.l.b16 %v216
        %v845 = vunpack.c.l.b16 %v217
        %v846 = vunpack.c.l.b16 %v218
        %v847 = vunpack.c.l.b16 %v219
        %v848 = vunpack.c.l.b16 %v220
        %v849 = vunpack.c.l.b16 %v221
        %v850 = vunpack.c.l.b16 %v222
        %v851 = vunpack.c.l.b16 %v223
        %v852 = vunpack.c.l.b16 %v224
        %v853 = vunpack.c.l.b16 %v225
        %v854 = vunpack.c.l.b16 %v226
        %v855 = vunpack.c.l.b16 %v227
        %v856 = vunpack.c.l.b16 %v228
        %v857 = vunpack.c.l.b16 %v229
        %v858 = vunpack.c.l.b16 %v230
        %v859 = vunpack.c.l.b16 %v231
        %v860 = vunpack.c.l.b16 %v232
        %v861 = vunpack.c.l.b16 %v233
        %v862 = vunpack.c.l.b16 %v234
        %v863 = vunpack.c.l.b16 %v235
        %v864 = vunpack.c.l.b16 %v236
        %v865 = vunpack.c.l.b16 %v237
        %v866 = vunpack.c.l.b16 %v238
        %v867 = vunpack.c.l.b16 %v239
        %v868 = vunpack.c.l.b16 %v240
        %v869 = vunpack.c.l.b16 %v241
        %v870 = vunpack.c.l.b16 %v242
        %v871 = vunpack.c.l.b16 %v243
        %v872 = vunpack.c.l.b16 %v244
        %v873 = vunpack.c.l.b16 %v245
        %v874 = vunpack.c.l.b16 %v246
        %v875 = vunpack.c.l.b16 %v247
        %v876 = vunpack.c.l.b16 %v248
        %v877 = vunpack.c.l.b16 %v249
        %v878 = vunpack.c.l.b16 %v250
        %v879 = vunpack.c.l.b16 %v251
        %v880 = vunpack.c.l.b16 %v252
        %v881 = vunpack.c.l.b16 %v253
        %v882 = vunpack.c.l.b16 %v254
        %v883 = vunpack.c.l.b16 %v255
        %v884 = vunpack.c.l.b16 %v256
        %v885 = vunpack.c.l.b16 %v257
        %v886 = vunpack.c.l.b16 %v258
        %v887 = vunpack.c.l.b16 %v259
        %v888 = vunpack.c.l.b16 %v260
        %v889 = vunpack.c.l.b16 %v261
        %v890 = vunpack.c.l.b16 %v262
        %v891 = vunpack.c.l.b16 %v263
        %v892 = vunpack.c.l.b16 %v264
        %v893 = vunpack.c.l.b16 %v265
        %v894 = vunpack.c.l.b16 %v266
        %v895 = vunpack.c.l.b16 %v267
        %v896 = vunpack.c.l.b16 %v268
        %v897 = vunpack.c.l.b16 %v269
        %v898 = vunpack.c.l.b16 %v270
        %v899 = vunpack.c.l.b16 %v271
        %v900 = vunpack.c.l.b16 %v272
        %v901 = vunpack.c.l.b16 %v273
        %v902 = vunpack.c.l.b16 %v274
        %v903 = vunpack.c.l.b16 %v275
        %v904 = vunpack.c.l.b16 %v276
        %v905 = vunpack.c.l.b16 %v277
        %v906 = vunpack.c.l.b16 %v278
        %v907 = vunpack.c.l.b16 %v279
        %v908 = vunpack.c.l.b16 %v280
        %v909 = vunpack.c.l.b16 %v281
        %v910 = vunpack.c.l.b16 %v282
        %v911 = vunpack.c.l.b16 %v283
        %v912 = vunpack.c.l.b16 %v284
        %v913 = vunpack.c.l.b16 %v285
        %v914 = vunpack.c.l.b16 %v286
        %v915 = vunpack.c.l.b16 %v287
        %v916 = vunpack.c.l.b16 %v288
        %v917 = vunpack.c.l.b16 %v289
        %v918 = vunpack.c.l.b16 %v290
        %v919 = vunpack.c.l.b16 %v291
        %v920 = vunpack.c.l.b16 %v292
        %v921 = vunpack.c.l.b16 %v293
        %v922 = vunpack.c.l.b16 %v294
        %v923 = vunpack.c.l.b16 %v295
        %v924 = vunpack.c.l.b16 %v296
        %v925 = vunpack.c.l.b16 %v297
        %v926 = vunpack.c.l.b16 %v298
        %v927 = vunpack.c.l.b16 %v299
        %v928 = vunpack.c.l.b16 %v300
        %v929 = vunpack.c.l.b16 %v301
        %v930 = vunpack.c.l.b16 %v302
        %v931 = vunpack.c.l.b16 %v303
        %v932 = vunpack.c.l.b16 %v304
        %v933 = vunpack.c.l.b16 %v305
        %v934 = vunpack.c.l.b16 %v306
        %v935 = vunpack.c.l.b16 %v307
        %v936 = vunpack.c.l.b16 %v308
        %v937 = vunpack.c.l.b16 %v309
        %v938 = vunpack.c.l.b16 %v310
        %v939 = vunpack.c.l.b16 %v311
        %v940 = vunpack.c.l.b16 %v312
        %v941 = vunpack.c.l.b16 %v313
        %v942 = vunpack.c.l.b16 %v314
        %v943 = vunpack.c.l.b16 %v315
        %v944 = vunpack.c.l.b16 %v316
        %v945 = vunpack.c.l.b16 %v317
        %v946 = vunpack.c.l.b16 %v318
        %v947 = vunpack.c.l.b16 %v319
        %v948 = vunpack.c.l.b16 %v320
        %v949 = vunpack.c.l.b16 %v321
        %v950 = vunpack.c.l.b16 %v322
        %v951 = vunpack.c.l.b16 %v323
        %v952 = vunpack.c.l.b16 %v324
        %v953 = vunpack.c.l.b16 %v325
        %v954 = vunpack.c.l.b16 %v326
        %v955 = vunpack.c.l.b16 %v327
        %v956 = vunpack.c.l.b16 %v328
        %v957 = vunpack.c.l.b16 %v329
        %v958 = vunpack.c.l.b16 %v330
        %v959 = vunpack.c.l.b16 %v331
        %v960 = vunpack.c.l.b16 %v332
        %v961 = vunpack.c.l.b16 %v333
        %v962 = vunpack.c.l.b16 %v334
        %v963 = vunpack.c.l.b16 %v335
        %v964 = vunpack.c.l.b16 %v336
        %v965 = vunpack.c.l.b16 %v337
        %v966 = vunpack.c.l.b16 %v338
        %v967 = vunpack.c.l.b16 %v339
        %v968 = vunpack.c.l.b16 %v340
        %v969 = vunpack.c.l.b16 %v341
        %v970 = vunpack.c.l.b16 %v342
        %v971 = vunpack.c.l.b16 %v343
        %v972 = vunpack.c.l.b16 %v344
        %v973 = vunpack.c.l.b16 %v345
        %v974 = vunpack.c.l.b16 %v346
        %v975 = vunpack.c.l.b16 %v347
        %v976 = vunpack.c.l.b16 %v348
        %v977 = vunpack.c.l.b16 %v349
        %v978 = vunpack.c.l.b16 %v350
        %v979 = vunpack.c.l.b16 %v351
        %v980 = vunpack.c.l.b16 %v352
        %v981 = vunpack.c.l.b16 %v353
        %v982 = vunpack.c.l.b16 %v354
        %v983 = vunpack.c.l.b16 %v355
        %v984 = vunpack.c.l.b16 %v356
        %v985 = vunpack.c.l.b16 %v357
        %v986 = vunpack.c.l.b16 %v358
        %v987 = vunpack.c.l.b16 %v359
        %v988 = vunpack.c.l.b16 %v360
        %v989 = vunpack.c.l.b16 %v361
        %v990 = vunpack.c.l.b16 %v362
        %v991 = vunpack.c.l.b16 %v363
        %v992 = vunpack.c.l.b16 %v364
        %v993 = vunpack.c.l.b16 %v365
        %v994 = vunpack.c.l.b16 %v366
        %v995 = vunpack.c.l.b16 %v367
        %v996 = vunpack.c.l.b16 %v368
        %v997 = vunpack.c.l.b16 %v369
        %v998 = vunpack.c.l.b16 %v370
        %v999 = vunpack.c.l.b16 %v371
        %v1000 = vunpack.c.l.b16 %v372
        %v1001 = vunpack.c.l.b16 %v373
        %v1002 = vunpack.c.l.b16 %v374
        %v1003 = vunpack.c.l.b16 %v375
        %v1004 = vunpack.c.l.b16 %v376
        %v1005 = vunpack.c.l.b16 %v377
        %v1006 = vunpack.c.l.b16 %v378
        %v1007 = vunpack.c.l.b16 %v379
        %v1008 = vunpack.c.l.b16 %v380
        %v1009 = vunpack.c.l.b16 %v381
        %v1010 = vunpack.c.l.b16 %v382
        %v1011 = vunpack.c.l.b16 %v383
        %v1012 = vunpack.c.l.b16 %v384
        %v1013 = vunpack.c.l.b16 %v385
        %v1014 = vunpack.c.l.b16 %v386
        %v1015 = vunpack.c.l.b16 %v387
        %v1016 = vunpack.c.l.b16 %v388
        %v1017 = vunpack.c.l.b16 %v389
        %v1018 = vunpack.c.l.b16 %v390
        %v1019 = vunpack.c.l.b16 %v391
        %v1020 = vunpack.c.l.b16 %v392
        %v1021 = vunpack.c.l.b16 %v393
        %v1022 = vunpack.c.l.b16 %v394
        %v1023 = vunpack.c.l.b16 %v395
        %v1024 = vunpack.c.l.b16 %v396
        %v1025 = vunpack.c.l.b16 %v397
        %v1026 = vunpack.c.l.b16 %v398
        %v1027 = vunpack.c.l.b16 %v399
        %v1028 = vunpack.c.l.b16 %v400
        %v1029 = vunpack.c.l.b16 %v401
        %v1030 = vunpack.c.l.b16 %v402
        %v1031 = vunpack.c.l.b16 %v403
        %v1032 = vunpack.c.l.b16 %v404
        %v1033 = vunpack.c.l.b16 %v405
        %v1034 = vunpack.c.l.b16 %v406
        %v1035 = vunpack.c.l.b16 %v407
        %v1036 = vunpack.c.l.b16 %v408
        %v1037 = vunpack.c.l.b16 %v409
        %v1038 = vunpack.c.l.b16 %v410
        %v1039 = vunpack.c.l.b16 %v411
        %v1040 = vunpack.c.l.b16 %v412
        %v1041 = vunpack.c.l.b16 %v413
        %v1042 = vunpack.c.l.b16 %v414
        %v1043 = vunpack.c.l.b16 %v415
        %v1044 = vunpack.c.l.b16 %v416
        %v1045 = vunpack.c.l.b16 %v417
        %v1046 = vunpack.c.l.b16 %v418
        %v1047 = vunpack.c.l.b16 %v419
        %v1048 = vunpack.c.l.b16 %v420
        %v1049 = vunpack.c.l.b16 %v421
        %v1050 = vunpack.c.l.b16 %v422
        %v1051 = vunpack.c.l.b16 %v423
        %v1052 = vunpack.c.l.b16 %v424
        %v1053 = vunpack.c.l.b16 %v425
        %v1054 = vunpack.c.l.b16 %v426
        %v1055 = vunpack.c.l.b16 %v427
        %v1056 = vunpack.c.l.b16 %v428
        %v1057 = vunpack.c.l.b16 %v429
        %v1058 = vunpack.c.l.b16 %v430
        %v1059 = vunpack.c.l.b16 %v431
        %v1060 = vunpack.c.l.b16 %v432
        %v1061 = vunpack.c.l.b16 %v433
        %v1062 = vunpack.c.l.b16 %v434
        %v1063 = vunpack.c.l.b16 %v435
        %v1064 = vunpack.c.l.b16 %v436
        %v1065 = vunpack.c.l.b16 %v437
        %v1066 = vunpack.c.l.b16 %v438
        %v1067 = vunpack.c.l.b16 %v439
        %v1068 = vunpack.c.l.b16 %v440
        %v1069 = vunpack.c.l.b16 %v441
        %v1070 = vunpack.c.l.b16 %v442
        %v1071 = vpack.c.b16 %v816, %v815
        %v1072 = vpack.c.b16 %v818, %v817
        %v1073 = vpack.c.b16 %v820, %v819
        %v1074 = vpack.c.b16 %v822, %v821
        %v1075 = vpack.c.b16 %v824, %v823
        %v1076 = vpack.c.b16 %v826, %v825
        %v1077 = vpack.c.b16 %v828, %v827
        %v1078 = vpack.c.b16 %v830, %v829
        %v1079 = vpack.c.b16 %v832, %v831
        %v1080 = vpack.c.b16 %v834, %v833
        %v1081 = vpack.c.b16 %v836, %v835
        %v1082 = vpack.c.b16 %v838, %v837
        %v1083 = vpack.c.b16 %v840, %v839
        %v1084 = vpack.c.b16 %v842, %v841
        %v1085 = vpack.c.b16 %v844, %v843
        %v1086 = vpack.c.b16 %v846, %v845
        %v1087 = vpack.c.b16 %v848, %v847
        %v1088 = vpack.c.b16 %v850, %v849
        %v1089 = vpack.c.b16 %v852, %v851
        %v1090 = vpack.c.b16 %v854, %v853
        %v1091 = vpack.c.b16 %v856, %v855
        %v1092 = vpack.c.b16 %v858, %v857
        %v1093 = vpack.c.b16 %v860, %v859
        %v1094 = vpack.c.b16 %v862, %v861
        %v1095 = vpack.c.b16 %v864, %v863
        %v1096 = vpack.c.b16 %v866, %v865
        %v1097 = vpack.c.b16 %v868, %v867
        %v1098 = vpack.c.b16 %v870, %v869
        %v1099 = vpack.c.b16 %v872, %v871
        %v1100 = vpack.c.b16 %v874, %v873
        %v1101 = vpack.c.b16 %v876, %v875
        %v1102 = vpack.c.b16 %v878, %v877
        %v1103 = vpack.c.b16 %v880, %v879
        %v1104 = vpack.c.b16 %v882, %v881
        %v1105 = vpack.c.b16 %v884, %v883
        %v1106 = vpack.c.b16 %v886, %v885
        %v1107 = vpack.c.b16 %v888, %v887
        %v1108 = vpack.c.b16 %v890, %v889
        %v1109 = vpack.c.b16 %v892, %v891
        %v1110 = vpack.c.b16 %v894, %v893
        %v1111 = vpack.c.b16 %v896, %v895
        %v1112 = vpack.c.b16 %v898, %v897
        %v1113 = vpack.c.b16 %v900, %v899
        %v1114 = vpack.c.b16 %v902, %v901
        %v1115 = vpack.c.b16 %v904, %v903
        %v1116 = vpack.c.b16 %v906, %v905
        %v1117 = vpack.c.b16 %v908, %v907
        %v1118 = vpack.c.b16 %v910, %v909
        %v1119 = vpack.c.b16 %v912, %v911
        %v1120 = vpack.c.b16 %v914, %v913
        %v1121 = vpack.c.b16 %v916, %v915
        %v1122 = vpack.c.b16 %v918, %v917
        %v1123 = vpack.c.b16 %v920, %v919
        %v1124 = vpack.c.b16 %v922, %v921
        %v1125 = vpack.c.b16 %v924, %v923
        %v1126 = vpack.c.b16 %v926, %v925
        %v1127 = vpack.c.b16 %v928, %v927
        %v1128 = vpack.c.b16 %v930, %v929
        %v1129 = vpack.c.b16 %v932, %v931
        %v1130 = vpack.c.b16 %v934, %v933
        %v1131 = vpack.c.b16 %v936, %v935
        %v1132 = vpack.c.b16 %v938, %v937
        %v1133 = vpack.c.b16 %v940, %v939
        %v1134 = vpack.c.b16 %v942, %v941
        %v1135 = vpack.c.b16 %v944, %v943
        %v1136 = vpack.c.b16 %v946, %v945
        %v1137 = vpack.c.b16 %v948, %v947
        %v1138 = vpack.c.b16 %v950, %v949
        %v1139 = vpack.c.b16 %v952, %v951
        %v1140 = vpack.c.b16 %v954, %v953
        %v1141 = vpack.c.b16 %v956, %v955
        %v1142 = vpack.c.b16 %v958, %v957
        %v1143 = vpack.c.b16 %v960, %v959
        %v1144 = vpack.c.b16 %v962, %v961
        %v1145 = vpack.c.b16 %v964, %v963
        %v1146 = vpack.c.b16 %v966, %v965
        %v1147 = vpack.c.b16 %v968, %v967
        %v1148 = vpack.c.b16 %v970, %v969
        %v1149 = vpack.c.b16 %v972, %v971
        %v1150 = vpack.c.b16 %v974, %v973
        %v1151 = vpack.c.b16 %v976, %v975
        %v1152 = vpack.c.b16 %v978, %v977
        %v1153 = vpack.c.b16 %v980, %v979
        %v1154 = vpack.c.b16 %v982, %v981
        %v1155 = vpack.c.b16 %v984, %v983
        %v1156 = vpack.c.b16 %v986, %v985
        %v1157 = vpack.c.b16 %v988, %v987
        %v1158 = vpack.c.b16 %v990, %v989
        %v1159 = vpack.c.b16 %v992, %v991
        %v1160 = vpack.c.b16 %v994, %v993
        %v1161 = vpack.c.b16 %v996, %v995
        %v1162 = vpack.c.b16 %v998, %v997
        %v1163 = vpack.c.b16 %v1000, %v999
        %v1164 = vpack.c.b16 %v1002, %v1001
        %v1165 = vpack.c.b16 %v1004, %v1003
        %v1166 = vpack.c.b16 %v1006, %v1005
        %v1167 = vpack.c.b16 %v1008, %v1007
        %v1168 = vpack.c.b16 %v1010, %v1009
        %v1169 = vpack.c.b16 %v1012, %v1011
        %v1170 = vpack.c.b16 %v1014, %v1013
        %v1171 = vpack.c.b16 %v1016, %v1015
        %v1172 = vpack.c.b16 %v1018, %v1017
        %v1173 = vpack.c.b16 %v1020, %v1019
        %v1174 = vpack.c.b16 %v1022, %v1021
        %v1175 = vpack.c.b16 %v1024, %v1023
        %v1176 = vpack.c.b16 %v1026, %v1025
        %v1177 = vpack.c.b16 %v1028, %v1027
        %v1178 = vpack.c.b16 %v1030, %v1029
        %v1179 = vpack.c.b16 %v1032, %v1031
        %v1180 = vpack.c.b16 %v1034, %v1033
        %v1181 = vpack.c.b16 %v1036, %v1035
        %v1182 = vpack.c.b16 %v1038, %v1037
        %v1183 = vpack.c.b16 %v1040, %v1039
        %v1184 = vpack.c.b16 %v1042, %v1041
        %v1185 = vpack.c.b16 %v1044, %v1043
        %v1186 = vpack.c.b16 %v1046, %v1045
        %v1187 = vpack.c.b16 %v1048, %v1047
        %v1188 = vpack.c.b16 %v1050, %v1049
        %v1189 = vpack.c.b16 %v1052, %v1051
        %v1190 = vpack.c.b16 %v1054, %v1053
        %v1191 = vpack.c.b16 %v1056, %v1055
        %v1192 = vpack.c.b16 %v1058, %v1057
        %v1193 = vpack.c.b16 %v1060, %v1059
        %v1194 = vpack.c.b16 %v1062, %v1061
        %v1195 = vpack.c.b16 %v1064, %v1063
        %v1196 = vpack.c.b16 %v1066, %v1065
        %v1197 = vpack.c.b16 %v1068, %v1067
        %v1198 = vpack.c.b16 %v1070, %v1069
        %1327 = vmatprep.subr.bf16.mxu0 0
        %1328 = vmatpush1.bf16.msra.mxu0 %v1078
        %1329 = vmatprep.subr.bf16.mxu0 0
        %1330 = vmatpush1.bf16.msra.mxu0 %v1077
        %1331 = vmatprep.subr.bf16.mxu0 0
        %1332 = vmatpush1.bf16.msra.mxu0 %v1076
        %1333 = vmatprep.subr.bf16.mxu0 0
        %1334 = vmatpush1.bf16.msra.mxu0 %v1075
        %1335 = vmatprep.subr.bf16.mxu0 0
        %1336 = vmatpush1.bf16.msra.mxu0 %v1074
        %1337 = vmatprep.subr.bf16.mxu0 0
        %1338 = vmatpush1.bf16.msra.mxu0 %v1073
        %1339 = vmatprep.subr.bf16.mxu0 0
        %1340 = vmatpush1.bf16.msra.mxu0 %v1072
        %1341 = vmatprep.subr.bf16.mxu0 0
        %1342 = vmatpush1.bf16.msra.mxu0 %v1071
        %1343 = vmatprep.subr.bf16.mxu0 0
        %1344 = vmatpush2.bf16.msra.mxu0 %v1086
        %1345 = vmatprep.subr.bf16.mxu0 0
        %1346 = vmatpush2.bf16.msra.mxu0 %v1085
        %1347 = vmatprep.subr.bf16.mxu0 0
        %1348 = vmatpush2.bf16.msra.mxu0 %v1084
        %1349 = vmatprep.subr.bf16.mxu0 0
        %1350 = vmatpush2.bf16.msra.mxu0 %v1083
        %1351 = vmatprep.subr.bf16.mxu0 0
        %1352 = vmatpush2.bf16.msra.mxu0 %v1082
        %1353 = vmatprep.subr.bf16.mxu0 0
        %1354 = vmatpush2.bf16.msra.mxu0 %v1081
        %1355 = vmatprep.subr.bf16.mxu0 0
        %1356 = vmatpush2.bf16.msra.mxu0 %v1080
        %1357 = vmatprep.subr.bf16.mxu0 0
        %1358 = vmatpush2.bf16.msra.mxu0 %v1079
        %1359 = vmatprep.mubr.bf16.mxu0 %v482
        %1360 = vmatmul.mubr.bf16.gmra.mxu0 %v468
        %v1361 = vpop.f32.mrf.mxu0
        %v1362 = vadd.f32 0.0, %v1361
        %v1363 = vpop.f32.mrf.mxu0
        %v1364 = vpop.f32.mrf.mxu0
        %v1365 = vpop.f32.mrf.mxu0
        %1366 = vdwg.mxu0
        %1367 = vmatprep.subr.bf16.mxu0 0
        %1368 = vmatpush1.bf16.msra.mxu0 %v1094
        %1369 = vmatprep.subr.bf16.mxu0 0
        %1370 = vmatpush1.bf16.msra.mxu0 %v1093
        %1371 = vmatprep.subr.bf16.mxu0 0
        %1372 = vmatpush1.bf16.msra.mxu0 %v1092
        %1373 = vmatprep.subr.bf16.mxu0 0
        %1374 = vmatpush1.bf16.msra.mxu0 %v1091
        %1375 = vmatprep.subr.bf16.mxu0 0
        %1376 = vmatpush1.bf16.msra.mxu0 %v1090
        %1377 = vmatprep.subr.bf16.mxu0 0
        %1378 = vmatpush1.bf16.msra.mxu0 %v1089
        %1379 = vmatprep.subr.bf16.mxu0 0
        %1380 = vmatpush1.bf16.msra.mxu0 %v1088
        %1381 = vmatprep.subr.bf16.mxu0 0
        %1382 = vmatpush1.bf16.msra.mxu0 %v1087
        %1383 = vmatprep.subr.bf16.mxu0 0
        %1384 = vmatpush2.bf16.msra.mxu0 %v1102
        %1385 = vmatprep.subr.bf16.mxu0 0
        %1386 = vmatpush2.bf16.msra.mxu0 %v1101
        %1387 = vmatprep.subr.bf16.mxu0 0
        %1388 = vmatpush2.bf16.msra.mxu0 %v1100
        %1389 = vmatprep.subr.bf16.mxu0 0
        %1390 = vmatpush2.bf16.msra.mxu0 %v1099
        %1391 = vmatprep.subr.bf16.mxu0 0
        %1392 = vmatpush2.bf16.msra.mxu0 %v1098
        %1393 = vmatprep.subr.bf16.mxu0 0
        %1394 = vmatpush2.bf16.msra.mxu0 %v1097
        %1395 = vmatprep.subr.bf16.mxu0 0
        %1396 = vmatpush2.bf16.msra.mxu0 %v1096
        %1397 = vmatprep.subr.bf16.mxu0 0
        %1398 = vmatpush2.bf16.msra.mxu0 %v1095
        %1399 = vmatprep.mubr.bf16.mxu0 %v492
        %1400 = vmatmul.mubr.bf16.gmra.mxu0 %v490
        %v1401 = vpop.f32.mrf.mxu0
        %v1402 = vadd.f32 %v1362, %v1401
        %v1403 = vpop.f32.mrf.mxu0
        %v1404 = vpop.f32.mrf.mxu0
        %v1405 = vpop.f32.mrf.mxu0
        %1406 = vdwg.mxu0
        %1407 = vmatprep.subr.bf16.mxu0 0
        %1408 = vmatpush1.bf16.msra.mxu0 %v1110
        %1409 = vmatprep.subr.bf16.mxu0 0
        %1410 = vmatpush1.bf16.msra.mxu0 %v1109
        %1411 = vmatprep.subr.bf16.mxu0 0
        %1412 = vmatpush1.bf16.msra.mxu0 %v1108
        %1413 = vmatprep.subr.bf16.mxu0 0
        %1414 = vmatpush1.bf16.msra.mxu0 %v1107
        %1415 = vmatprep.subr.bf16.mxu0 0
        %1416 = vmatpush1.bf16.msra.mxu0 %v1106
        %1417 = vmatprep.subr.bf16.mxu0 0
        %1418 = vmatpush1.bf16.msra.mxu0 %v1105
        %1419 = vmatprep.subr.bf16.mxu0 0
        %1420 = vmatpush1.bf16.msra.mxu0 %v1104
        %1421 = vmatprep.subr.bf16.mxu0 0
        %1422 = vmatpush1.bf16.msra.mxu0 %v1103
        %1423 = vmatprep.subr.bf16.mxu0 0
        %1424 = vmatpush2.bf16.msra.mxu0 %v1118
        %1425 = vmatprep.subr.bf16.mxu0 0
        %1426 = vmatpush2.bf16.msra.mxu0 %v1117
        %1427 = vmatprep.subr.bf16.mxu0 0
        %1428 = vmatpush2.bf16.msra.mxu0 %v1116
        %1429 = vmatprep.subr.bf16.mxu0 0
        %1430 = vmatpush2.bf16.msra.mxu0 %v1115
        %1431 = vmatprep.subr.bf16.mxu0 0
        %1432 = vmatpush2.bf16.msra.mxu0 %v1114
        %1433 = vmatprep.subr.bf16.mxu0 0
        %1434 = vmatpush2.bf16.msra.mxu0 %v1113
        %1435 = vmatprep.subr.bf16.mxu0 0
        %1436 = vmatpush2.bf16.msra.mxu0 %v1112
        %1437 = vmatprep.subr.bf16.mxu0 0
        %1438 = vmatpush2.bf16.msra.mxu0 %v1111
        %1439 = vmatprep.mubr.bf16.mxu0 %v489
        %1440 = vmatmul.mubr.bf16.gmra.mxu0 %v475
        %v1441 = vpop.f32.mrf.mxu0
        %v1442 = vadd.f32 %v1402, %v1441
        %v1443 = vpop.f32.mrf.mxu0
        %v1444 = vpop.f32.mrf.mxu0
        %v1445 = vpop.f32.mrf.mxu0
        %1446 = vdwg.mxu0
        %1447 = vmatprep.subr.bf16.mxu0 0
        %1448 = vmatpush1.bf16.msra.mxu0 %v1126
        %1449 = vmatprep.subr.bf16.mxu0 0
        %1450 = vmatpush1.bf16.msra.mxu0 %v1125
        %1451 = vmatprep.subr.bf16.mxu0 0
        %1452 = vmatpush1.bf16.msra.mxu0 %v1124
        %1453 = vmatprep.subr.bf16.mxu0 0
        %1454 = vmatpush1.bf16.msra.mxu0 %v1123
        %1455 = vmatprep.subr.bf16.mxu0 0
        %1456 = vmatpush1.bf16.msra.mxu0 %v1122
        %1457 = vmatprep.subr.bf16.mxu0 0
        %1458 = vmatpush1.bf16.msra.mxu0 %v1121
        %1459 = vmatprep.subr.bf16.mxu0 0
        %1460 = vmatpush1.bf16.msra.mxu0 %v1120
        %1461 = vmatprep.subr.bf16.mxu0 0
        %1462 = vmatpush1.bf16.msra.mxu0 %v1119
        %1463 = vmatprep.subr.bf16.mxu0 0
        %1464 = vmatpush2.bf16.msra.mxu0 %v1134
        %1465 = vmatprep.subr.bf16.mxu0 0
        %1466 = vmatpush2.bf16.msra.mxu0 %v1133
        %1467 = vmatprep.subr.bf16.mxu0 0
        %1468 = vmatpush2.bf16.msra.mxu0 %v1132
        %1469 = vmatprep.subr.bf16.mxu0 0
        %1470 = vmatpush2.bf16.msra.mxu0 %v1131
        %1471 = vmatprep.subr.bf16.mxu0 0
        %1472 = vmatpush2.bf16.msra.mxu0 %v1130
        %1473 = vmatprep.subr.bf16.mxu0 0
        %1474 = vmatpush2.bf16.msra.mxu0 %v1129
        %1475 = vmatprep.subr.bf16.mxu0 0
        %1476 = vmatpush2.bf16.msra.mxu0 %v1128
        %1477 = vmatprep.subr.bf16.mxu0 0
        %1478 = vmatpush2.bf16.msra.mxu0 %v1127
        %1479 = vmatprep.mubr.bf16.mxu0 %v493
        %1480 = vmatmul.mubr.bf16.gmra.mxu0 %v491
        %v1481 = vpop.f32.mrf.mxu0
        %v1482 = vadd.f32 %v1442, %v1481
        %v1483 = vpop.f32.mrf.mxu0
        %v1484 = vpop.f32.mrf.mxu0
        %v1485 = vpop.f32.mrf.mxu0
        %1486 = vdwg.mxu0
        %1487 = vmatprep.subr.bf16.mxu0 0
        %1488 = vmatpush1.bf16.msra.mxu0 %v1142
        %1489 = vmatprep.subr.bf16.mxu0 0
        %1490 = vmatpush1.bf16.msra.mxu0 %v1141
        %1491 = vmatprep.subr.bf16.mxu0 0
        %1492 = vmatpush1.bf16.msra.mxu0 %v1140
        %1493 = vmatprep.subr.bf16.mxu0 0
        %1494 = vmatpush1.bf16.msra.mxu0 %v1139
        %1495 = vmatprep.subr.bf16.mxu0 0
        %1496 = vmatpush1.bf16.msra.mxu0 %v1138
        %1497 = vmatprep.subr.bf16.mxu0 0
        %1498 = vmatpush1.bf16.msra.mxu0 %v1137
        %1499 = vmatprep.subr.bf16.mxu0 0
        %1500 = vmatpush1.bf16.msra.mxu0 %v1136
        %1501 = vmatprep.subr.bf16.mxu0 0
        %1502 = vmatpush1.bf16.msra.mxu0 %v1135
        %1503 = vmatprep.subr.bf16.mxu0 0
        %1504 = vmatpush2.bf16.msra.mxu0 %v1150
        %1505 = vmatprep.subr.bf16.mxu0 0
        %1506 = vmatpush2.bf16.msra.mxu0 %v1149
        %1507 = vmatprep.subr.bf16.mxu0 0
        %1508 = vmatpush2.bf16.msra.mxu0 %v1148
        %1509 = vmatprep.subr.bf16.mxu0 0
        %1510 = vmatpush2.bf16.msra.mxu0 %v1147
        %1511 = vmatprep.subr.bf16.mxu0 0
        %1512 = vmatpush2.bf16.msra.mxu0 %v1146
        %1513 = vmatprep.subr.bf16.mxu0 0
        %1514 = vmatpush2.bf16.msra.mxu0 %v1145
        %1515 = vmatprep.subr.bf16.mxu0 0
        %1516 = vmatpush2.bf16.msra.mxu0 %v1144
        %1517 = vmatprep.subr.bf16.mxu0 0
        %1518 = vmatpush2.bf16.msra.mxu0 %v1143
        %1519 = vmatprep.mubr.bf16.mxu0 %v531
        %1520 = vmatmul.mubr.bf16.gmra.mxu0 %v517
        %v1521 = vpop.f32.mrf.mxu0
        %v1522 = vadd.f32 %v1482, %v1521
        %v1523 = vpop.f32.mrf.mxu0
        %v1524 = vpop.f32.mrf.mxu0
        %v1525 = vpop.f32.mrf.mxu0
        %1526 = vdwg.mxu0
        %1527 = vmatprep.subr.bf16.mxu0 0
        %1528 = vmatpush1.bf16.msra.mxu0 %v1158
        %1529 = vmatprep.subr.bf16.mxu0 0
        %1530 = vmatpush1.bf16.msra.mxu0 %v1157
        %1531 = vmatprep.subr.bf16.mxu0 0
        %1532 = vmatpush1.bf16.msra.mxu0 %v1156
        %1533 = vmatprep.subr.bf16.mxu0 0
        %1534 = vmatpush1.bf16.msra.mxu0 %v1155
        %1535 = vmatprep.subr.bf16.mxu0 0
        %1536 = vmatpush1.bf16.msra.mxu0 %v1154
        %1537 = vmatprep.subr.bf16.mxu0 0
        %1538 = vmatpush1.bf16.msra.mxu0 %v1153
        %1539 = vmatprep.subr.bf16.mxu0 0
        %1540 = vmatpush1.bf16.msra.mxu0 %v1152
        %1541 = vmatprep.subr.bf16.mxu0 0
        %1542 = vmatpush1.bf16.msra.mxu0 %v1151
        %1543 = vmatprep.subr.bf16.mxu0 0
        %1544 = vmatpush2.bf16.msra.mxu0 %v1166
        %1545 = vmatprep.subr.bf16.mxu0 0
        %1546 = vmatpush2.bf16.msra.mxu0 %v1165
        %1547 = vmatprep.subr.bf16.mxu0 0
        %1548 = vmatpush2.bf16.msra.mxu0 %v1164
        %1549 = vmatprep.subr.bf16.mxu0 0
        %1550 = vmatpush2.bf16.msra.mxu0 %v1163
        %1551 = vmatprep.subr.bf16.mxu0 0
        %1552 = vmatpush2.bf16.msra.mxu0 %v1162
        %1553 = vmatprep.subr.bf16.mxu0 0
        %1554 = vmatpush2.bf16.msra.mxu0 %v1161
        %1555 = vmatprep.subr.bf16.mxu0 0
        %1556 = vmatpush2.bf16.msra.mxu0 %v1160
        %1557 = vmatprep.subr.bf16.mxu0 0
        %1558 = vmatpush2.bf16.msra.mxu0 %v1159
        %1559 = vmatprep.mubr.bf16.mxu0 %v541
        %1560 = vmatmul.mubr.bf16.gmra.mxu0 %v539
        %v1561 = vpop.f32.mrf.mxu0
        %v1562 = vadd.f32 %v1522, %v1561
        %v1563 = vpop.f32.mrf.mxu0
        %v1564 = vpop.f32.mrf.mxu0
        %v1565 = vpop.f32.mrf.mxu0
        %1566 = vdwg.mxu0
        %1567 = vmatprep.subr.bf16.mxu0 0
        %1568 = vmatpush1.bf16.msra.mxu0 %v1174
        %1569 = vmatprep.subr.bf16.mxu0 0
        %1570 = vmatpush1.bf16.msra.mxu0 %v1173
        %1571 = vmatprep.subr.bf16.mxu0 0
        %1572 = vmatpush1.bf16.msra.mxu0 %v1172
        %1573 = vmatprep.subr.bf16.mxu0 0
        %1574 = vmatpush1.bf16.msra.mxu0 %v1171
        %1575 = vmatprep.subr.bf16.mxu0 0
        %1576 = vmatpush1.bf16.msra.mxu0 %v1170
        %1577 = vmatprep.subr.bf16.mxu0 0
        %1578 = vmatpush1.bf16.msra.mxu0 %v1169
        %1579 = vmatprep.subr.bf16.mxu0 0
        %1580 = vmatpush1.bf16.msra.mxu0 %v1168
        %1581 = vmatprep.subr.bf16.mxu0 0
        %1582 = vmatpush1.bf16.msra.mxu0 %v1167
        %1583 = vmatprep.subr.bf16.mxu0 0
        %1584 = vmatpush2.bf16.msra.mxu0 %v1182
        %1585 = vmatprep.subr.bf16.mxu0 0
        %1586 = vmatpush2.bf16.msra.mxu0 %v1181
        %1587 = vmatprep.subr.bf16.mxu0 0
        %1588 = vmatpush2.bf16.msra.mxu0 %v1180
        %1589 = vmatprep.subr.bf16.mxu0 0
        %1590 = vmatpush2.bf16.msra.mxu0 %v1179
        %1591 = vmatprep.subr.bf16.mxu0 0
        %1592 = vmatpush2.bf16.msra.mxu0 %v1178
        %1593 = vmatprep.subr.bf16.mxu0 0
        %1594 = vmatpush2.bf16.msra.mxu0 %v1177
        %1595 = vmatprep.subr.bf16.mxu0 0
        %1596 = vmatpush2.bf16.msra.mxu0 %v1176
        %1597 = vmatprep.subr.bf16.mxu0 0
        %1598 = vmatpush2.bf16.msra.mxu0 %v1175
        %1599 = vmatprep.mubr.bf16.mxu0 %v538
        %1600 = vmatmul.mubr.bf16.gmra.mxu0 %v524
        %v1601 = vpop.f32.mrf.mxu0
        %v1602 = vadd.f32 %v1562, %v1601
        %v1603 = vpop.f32.mrf.mxu0
        %v1604 = vpop.f32.mrf.mxu0
        %v1605 = vpop.f32.mrf.mxu0
        %1606 = vdwg.mxu0
        %1607 = vmatprep.subr.bf16.mxu0 0
        %1608 = vmatpush1.bf16.msra.mxu0 %v1190
        %1609 = vmatprep.subr.bf16.mxu0 0
        %1610 = vmatpush1.bf16.msra.mxu0 %v1189
        %1611 = vmatprep.subr.bf16.mxu0 0
        %1612 = vmatpush1.bf16.msra.mxu0 %v1188
        %1613 = vmatprep.subr.bf16.mxu0 0
        %1614 = vmatpush1.bf16.msra.mxu0 %v1187
        %1615 = vmatprep.subr.bf16.mxu0 0
        %1616 = vmatpush1.bf16.msra.mxu0 %v1186
        %1617 = vmatprep.subr.bf16.mxu0 0
        %1618 = vmatpush1.bf16.msra.mxu0 %v1185
        %1619 = vmatprep.subr.bf16.mxu0 0
        %1620 = vmatpush1.bf16.msra.mxu0 %v1184
        %1621 = vmatprep.subr.bf16.mxu0 0
        %1622 = vmatpush1.bf16.msra.mxu0 %v1183
        %1623 = vmatprep.subr.bf16.mxu0 0
        %1624 = vmatpush2.bf16.msra.mxu0 %v1198
        %1625 = vmatprep.subr.bf16.mxu0 0
        %1626 = vmatpush2.bf16.msra.mxu0 %v1197
        %1627 = vmatprep.subr.bf16.mxu0 0
        %1628 = vmatpush2.bf16.msra.mxu0 %v1196
        %1629 = vmatprep.subr.bf16.mxu0 0
        %1630 = vmatpush2.bf16.msra.mxu0 %v1195
        %1631 = vmatprep.subr.bf16.mxu0 0
        %1632 = vmatpush2.bf16.msra.mxu0 %v1194
        %1633 = vmatprep.subr.bf16.mxu0 0
        %1634 = vmatpush2.bf16.msra.mxu0 %v1193
        %1635 = vmatprep.subr.bf16.mxu0 0
        %1636 = vmatpush2.bf16.msra.mxu0 %v1192
        %1637 = vmatprep.subr.bf16.mxu0 0
        %1638 = vmatpush2.bf16.msra.mxu0 %v1191
        %1639 = vmatprep.mubr.bf16.mxu0 %v542
        %1640 = vmatmul.mubr.bf16.gmra.mxu0 %v540
        %v1641 = vpop.f32.mrf.mxu0
        %v1642 = vadd.f32 %v1602, %v1641
        %v1643 = vpop.f32.mrf.mxu0
        %v1644 = vpop.f32.mrf.mxu0
        %v1645 = vpop.f32.mrf.mxu0
        %1646 = vdwg.mxu0
        %v1647 = vadd.f32 %v184, %v1642
        %1648 = vst [vmem:[#allocation2] sm:$0x3] %v1647
        %p1649 = scmp.eq.s32.totalorder %s15, 7
        // Predicated region
        $region37: #{gmlp_res_multi_conv35_forward.13} parent=31 // pred_check
          %p1650 = pneg %p1649
        $region38: #{gmlp_res_multi_conv35_forward.13} parent=31 // pred_check_branch
          %1652 = sbr.rel (%p1650) target = $region40
        $region39: #{gmlp_res_multi_conv35_forward.13} parent=31 // pred_region
          %v1653 = vld [vmem:[#allocation2] sm:$0x3]
          %v1654 = vld [vmem:[%s2] sm:$0x1]
          %v1656 = vlaneseq
          %v1657 = vshrl.u32 %v1656, 7
          %v1658 = vsub.s32 0, %v1657
          %v1659 = vrot.slane %v1654, %v1658
          %v1661 = vadd.f32 %v1653, %v1659
          %1662 = vst [vmem:[#allocation3] sm:$0x3] %v1661
        $region40: #{gmlp_res_multi_conv35_forward.13} parent=31 // pred_fallthru
          _
        // Predicated region
        $region41: #{gmlp_res_multi_conv35_forward.13} parent=31 // pred_check
          %p1663 = pneg %p101
        $region42: #{gmlp_res_multi_conv35_forward.13} parent=31 // pred_check_branch
          %1665 = sbr.rel (%p1663) target = $region44
        $region43: #{gmlp_res_multi_conv35_forward.13} parent=31 // pred_region
          %s1667 = ssub.s32 32, 32
          %1668 = vsyncadd [#allocation4], %s1667
          %s1670 = sshll.u32 [#allocation3], 4
          %s1671 = int_to_ptr.vmem [resolvable:$true] %s1670
          %1673 = dma.vmem_to_hbm [thread:$0]  %s1671, 32, %s3, [#allocation4]
        $region44: #{gmlp_res_multi_conv35_forward.13} parent=31 // pred_fallthru
          _
        // Predicated region
        $region45: #{gmlp_res_multi_conv35_forward.13} parent=31 // pred_check
          %p1674 = pneg %p101
        $region46: #{gmlp_res_multi_conv35_forward.13} parent=31 // pred_check_branch
          %1676 = sbr.rel (%p1674) target = $region48
        $region47: #{gmlp_res_multi_conv35_forward.13} parent=31 // pred_region
          %1677 = dma.done [#allocation4], 32
        $region48: #{gmlp_res_multi_conv35_forward.13} parent=31 // pred_fallthru
          _
      $region32: #{gmlp_res_multi_conv35_forward.13} parent=5 // pred_fallthru
        _
      %p1678 = scmp.le.s32.totalorder 2, %s10
      // Predicated region
      $region49: #{gmlp_res_multi_conv35_forward.13} parent=5 // pred_check
        %p1679 = pneg %p1678
      $region50: #{gmlp_res_multi_conv35_forward.13} parent=5 // pred_check_branch
        %1681 = sbr.rel (%p1679) target = $region52
      $region51: #{gmlp_res_multi_conv35_forward.13} parent=5 // pred_region
        %s1682 = ssub.s32 %s10, 2
      $region52: #{gmlp_res_multi_conv35_forward.13} parent=5 // pred_fallthru
        _
    $region6: #{gmlp_res_multi_conv35_forward.13} parent=1 // loop_footer
      %s14 = sadd.s32 1, %s10
    $region7: #{gmlp_res_multi_conv35_forward.13} parent=1 // loop_footer_branch
      %9 = sbr.rel target = $region3
    $region8: #{gmlp_res_multi_conv35_forward.13} parent=1 // loop_exit
      _
    %1683 = vsyncpa [#allocation4], 1
    %s1684 = scalar_lea.sflag [#allocation4], 1
    %1685 = vsyncpa %s1684, 1

</llo_original>
